<compile_context>
chip_gen: v5e
topology: v5e:2x2
jax: 0.10.0
libtpu: 0.0.40
codegen_flags: <defaults>
</compile_context>

<pallas_src>
import functools
import math

import jax
import jax.numpy as jnp
from jax.experimental import pallas as pl
from jax.experimental.pallas import tpu as pltpu


def _mha_kernel(q_ref, k_ref, v_ref, w_ref, b_ref, out_ref, *,
                block_b, seq, d_model, heads, head_dim, inv_scale):
    f32 = jnp.float32
    bf16 = jnp.bfloat16
    m = block_b * seq  # rows fed to the MXU per projection

    # ---- Q/K/V projections (bf16 operands, f32 accumulation) ---------------
    # Three direct dots reading w_ref[i] / b_ref[i]; no jnp.stack of the
    # inputs (that was a pure 3*M*D VMEM copy with no MXU benefit).
    def proj(x_ref, i):
        x = x_ref[...].reshape(m, d_model)                      # bf16 (M, D)
        y = jnp.dot(x, w_ref[i], preferred_element_type=f32)    # f32  (M, D)
        return y + b_ref[i]                                     # bias kept f32

    # Fold 1/sqrt(d_model) into q once (M*D mults) instead of scaling every
    # (S,S) score tile.
    q = (proj(q_ref, 0) * inv_scale).astype(bf16).reshape(block_b, seq, d_model)
    k = proj(k_ref, 1).astype(bf16).reshape(block_b, seq, d_model)
    v = proj(v_ref, 2).astype(bf16).reshape(block_b, seq, d_model)

    # ---- Per-head attention -------------------------------------------------
    # `heads` is a small static constant, so the Python loop unrolls into
    # straight-line code.  A single two-batch-dim einsum ('bqhd,bkhd->bhqk')
    # would fuse the heads, but multi-batch-dim dot_general lowering on Mosaic
    # is not guaranteed and the alternative (transpose to (B,H,S,dh)) is a
    # sublane relayout, so we keep single-batch-dim contractions (no .T, no
    # transpose copies).
    # TODO(synk): fuse the head loop into one batched contraction once
    # multi-batch-dim dot_general lowering is confirmed, and add a KV-block
    # grid axis with online softmax for long sequences (scores grow as S^2).
    ctx = []
    for h in range(heads):
        sl = slice(h * head_dim, (h + 1) * head_dim)
        qh, kh, vh = q[:, :, sl], k[:, :, sl], v[:, :, sl]       # (Bt, S, dh)

        # Contract last dims directly (no kh.T -> no XLU transpose copy).
        s = jnp.einsum("bqd,bkd->bqk", qh, kh,
                       preferred_element_type=f32)               # (Bt, S, S)
        # (reference's masked_fill is out-of-place & discarded -> no masking)
        s_max = jnp.max(s, axis=-1, keepdims=True)
        p = jnp.exp(s - s_max)                                   # f32 stats
        # Approximate reciprocal runs on the otherwise-idle EUP slot.
        denom_inv = pl.reciprocal(jnp.sum(p, axis=-1, keepdims=True),
                                  approx=True)
        attn = (p * denom_inv).astype(bf16)                      # bf16 for MXU
        ctx.append(jnp.einsum("bqk,bkd->bqd", attn, vh,
                              preferred_element_type=f32))       # (Bt, S, dh)

    # One lane-dense full-width store per grid step (== transpose(-2,-3) +
    # reshape of the reference), instead of `heads` narrow masked stores.
    out_ref[...] = jnp.concatenate(ctx, axis=-1).astype(out_ref.dtype)


def _vmem_capacity_bytes():
    """Physical per-core VMEM; conservative (v7x-sized) fallback if unknown."""
    try:
        cap = getattr(pltpu.get_tpu_info(), "vmem_capacity_bytes", None)
    except Exception:  # noqa: BLE001 - any failure -> conservative default
        cap = None
    return int(cap) if cap else (64 << 20)


def _est_vmem_bytes(bb, seq, d_model, heads):
    """Rough per-step VMEM footprint (streams + weights + live activations)."""
    m = bb * seq
    BF16, F32 = 2, 4
    # Double-buffered streaming operands: q/k/v (bf16) in, output (f32) out.
    stream = 2 * (3 * m * d_model * BF16 + m * d_model * F32)
    # Weights + bias; assume double-buffered in case Buffered(1) isn't honoured.
    wgt = 2 * (3 * d_model * d_model * BF16 + 3 * d_model * F32)
    # Live in-kernel activations: q/k/v f32 projections + bf16 copies,
    # ~2 heads' worth of score/prob tiles, concatenated context.
    act = 3 * m * d_model * (F32 + BF16)
    act += 2 * min(heads, 2) * bb * seq * seq * F32
    act += m * d_model * F32
    return stream + wgt + act


def _pick_block_b(batch, seq, d_model, heads, vmem_budget_bytes, *,
                  mxu_rows=256):
    """Smallest divisor of `batch` giving >= mxu_rows matmul rows that fits
    the VMEM budget; prefers >= 2 grid steps so the parallel batch axis can
    shard across v7x's two TensorCores."""
    divisors = [d for d in range(1, batch + 1) if batch % d == 0]
    fitting = [d for d in divisors
               if _est_vmem_bytes(d, seq, d_model, heads) <= vmem_budget_bytes]
    fitting = fitting or divisors[:1]
    preferred = [d for d in fitting if batch // d >= 2] or fitting
    for d in preferred:
        if d * seq >= mxu_rows:
            return d
    return preferred[-1]


def multi_head_attention(query, key, value, params, mask=None, *,
                         d_model, heads, block_b=None):
    """Forward pass matching MultiHeadAttention.forward.

    `mask` is accepted but ignored (faithful to the reference, whose
    out-of-place masked_fill result is discarded)."""
    del mask
    wq, bq, wk, bk, wv, bv = params
    B, S, D = query.shape
    N = value.shape[0]
    assert S == N and D == d_model, (
        "reference .view(batch, N, heads, dh) requires seq == value.shape[0]")

    head_dim = d_model // heads
    inv_scale = 1.0 / math.sqrt(d_model)   # torch: sqrt(FloatTensor([d_model]))

    cap = _vmem_capacity_bytes()
    if block_b is None:
        block_b = _pick_block_b(B, S, D, heads, int(cap * 0.70))
    assert B % block_b == 0, "block_b must divide the batch"

    # bf16 operands for the MXU (f32 accumulation happens in-kernel); bias
    # stays f32 so the post-matmul add is exact.
    q16 = query.astype(jnp.bfloat16)
    k16 = key.astype(jnp.bfloat16)
    v16 = value.astype(jnp.bfloat16)
    w_qkv = jnp.stack([wq, wk, wv], axis=0).astype(jnp.bfloat16)   # (3, D, D)
    b_qkv = jnp.stack([bq, bk, bv], axis=0)[:, None, :]            # (3, 1, D)

    kernel = functools.partial(
        _mha_kernel, block_b=block_b, seq=S, d_model=D,
        heads=heads, head_dim=head_dim, inv_scale=inv_scale)

    def call(single_buffer_weights):
        const_kwargs = ({"pipeline_mode": pl.Buffered(1)}
                        if single_buffer_weights else {})
        batched = pl.BlockSpec((block_b, S, D), lambda b: (b, 0, 0))
        # Weights / bias are grid-invariant (same block every step).
        w_spec = pl.BlockSpec((3, D, D), lambda b: (0, 0, 0), **const_kwargs)
        b_spec = pl.BlockSpec((3, 1, D), lambda b: (0, 0, 0), **const_kwargs)
        return pl.pallas_call(
            kernel,
            out_shape=jax.ShapeDtypeStruct((B, S, D), jnp.float32),
            grid=(B // block_b,),
            in_specs=[batched, batched, batched, w_spec, b_spec],
            out_specs=batched,
            compiler_params=pltpu.CompilerParams(
                # Batch grid axis is independent -> megacore-shard it on v7x.
                dimension_semantics=("parallel",),
                # Raise the scoped VMEM limit toward physical capacity so the
                # compiler's 16/32 MiB default isn't the silent cap.
                vmem_limit_bytes=int(cap * 0.90)),
        )(q16, k16, v16, w_qkv, b_qkv)

    try:
        # Single-buffer the grid-invariant weights/bias (reclaims one (3,D,D)
        # VMEM copy for larger block_b).
        return call(True)
    except Exception:  # noqa: BLE001 - Buffered(1) unsupported -> default specs
        return call(False)


def _reference(query, key, value, params, d_model, heads):
    """Pure-JAX (f32) transcription of the PyTorch forward, for validation."""
    wq, bq, wk, bk, wv, bv = params
    B, S, D = query.shape
    dh = d_model // heads
    scale = math.sqrt(d_model)

    def proj(x, w, b):
        return (x @ w + b).reshape(B, S, heads, dh).transpose(0, 2, 1, 3)

    q, k, v = proj(query, wq, bq), proj(key, wk, bk), proj(value, wv, bv)
    aw = jax.nn.softmax(jnp.einsum("bhqd,bhkd->bhqk", q, k) / scale, axis=-1)
    ctx = jnp.einsum("bhqk,bhkd->bhqd", aw, v)
    return ctx.transpose(0, 2, 1, 3).reshape(B, S, d_model)


if __name__ == "__main__":
    # The reference forward forces seq == value.shape[0] == batch, so inputs
    # are (B, B, d_model). Small but large enough that block_b=8 gives
    # M = block_b*seq = 256 MXU rows and a grid of 4 parallel steps.
    d_model, heads = 32, 4
    B = 32
    S = B

    root = jax.random.PRNGKey(0)
    ks = jax.random.split(root, 9)

    query = jax.random.normal(ks[0], (B, S, d_model), dtype=jnp.float32)
    key_ = jax.random.normal(ks[1], (B, S, d_model), dtype=jnp.float32)
    value = jax.random.normal(ks[2], (B, S, d_model), dtype=jnp.float32)

    # Deterministic Linear-style init (uniform in +/- 1/sqrt(fan_in)).
    lim = 1.0 / math.sqrt(d_model)
    wq = jax.random.uniform(ks[3], (d_model, d_model), jnp.float32, -lim, lim)
    wk = jax.random.uniform(ks[4], (d_model, d_model), jnp.float32, -lim, lim)
    wv = jax.random.uniform(ks[5], (d_model, d_model), jnp.float32, -lim, lim)
    bq = jax.random.uniform(ks[6], (d_model,), jnp.float32, -lim, lim)
    bk = jax.random.uniform(ks[7], (d_model,), jnp.float32, -lim, lim)
    bv = jax.random.uniform(ks[8], (d_model,), jnp.float32, -lim, lim)
    params = (wq, bq, wk, bk, wv, bv)

    out = multi_head_attention(query, key_, value, params, mask=None,
                               d_model=d_model, heads=heads)
    out = jax.block_until_ready(out)

    ref = _reference(query, key_, value, params, d_model, heads)
    assert out.shape == (B, S, d_model)
    # Tolerance covers bf16 matmul operands + the EUP approximate reciprocal
    # (f32 accumulation and f32 softmax stats keep the error well below this).
    assert jnp.allclose(out, ref, atol=5e-2, rtol=5e-2), "mismatch vs reference"

    print("KERNEL_OK")
</pallas_src>

<mosaic_0001>
module attributes {stable_mosaic.version = 11 : i64} {
  func.func @_mha_kernel(%arg0: i32, %arg1: memref<8x32x32xbf16, #tpu.memory_space<vmem>>, %arg2: memref<8x32x32xbf16, #tpu.memory_space<vmem>>, %arg3: memref<8x32x32xbf16, #tpu.memory_space<vmem>>, %arg4: memref<3x32x32xbf16, #tpu.memory_space<vmem>>, %arg5: memref<3x1x32xf32, #tpu.memory_space<vmem>>, %arg6: memref<8x32x32xf32, #tpu.memory_space<vmem>>) attributes {dimension_semantics = [#tpu.dimension_semantics<parallel>], iteration_bounds = array<i64: 4>, scalar_prefetch = 0 : i64, scratch_operands = 0 : i64, tpu.core_type = #tpu.core_type<tc>, window_params = [{transform_indices = @transform_0, window_bounds = array<i64: 8, 32, 32>}, {transform_indices = @transform_1, window_bounds = array<i64: 8, 32, 32>}, {transform_indices = @transform_2, window_bounds = array<i64: 8, 32, 32>}, {pipeline_mode = #tpu.pipeline_mode<synchronous>, transform_indices = @transform_3, window_bounds = array<i64: 3, 32, 32>}, {pipeline_mode = #tpu.pipeline_mode<synchronous>, transform_indices = @transform_4, window_bounds = array<i64: 3, 1, 32>}, {transform_indices = @transform_5, window_bounds = array<i64: 8, 32, 32>}]} {
    %c0 = arith.constant 0 : index
    %c0_0 = arith.constant 0 : index
    %c0_1 = arith.constant 0 : index
    %0 = vector.load %arg1[%c0, %c0_0, %c0_1] : memref<8x32x32xbf16, #tpu.memory_space<vmem>>, vector<8x32x32xbf16>
    %1 = vector.shape_cast %0 : vector<8x32x32xbf16> to vector<256x32xbf16>
    %c0_2 = arith.constant 0 : index
    %c0_3 = arith.constant 0 : index
    %c0_4 = arith.constant 0 : index
    %2 = vector.load %arg4[%c0_2, %c0_3, %c0_4] : memref<3x32x32xbf16, #tpu.memory_space<vmem>>, vector<1x32x32xbf16>
    %3 = vector.shape_cast %2 : vector<1x32x32xbf16> to vector<32x32xbf16>
    %cst = arith.constant dense<0.000000e+00> : vector<256x32xf32>
    %4 = tpu.matmul %1, %3, %cst {dimension_numbers = #tpu.dot_dimension_numbers<[1], [0], [0], [1], [0, 0, 1, 1], [], []>} : vector<256x32xbf16>, vector<32x32xbf16>, vector<256x32xf32> -> vector<256x32xf32>
    %c0_5 = arith.constant 0 : index
    %c0_6 = arith.constant 0 : index
    %c0_7 = arith.constant 0 : index
    %5 = vector.load %arg5[%c0_5, %c0_6, %c0_7] : memref<3x1x32xf32, #tpu.memory_space<vmem>>, vector<1x1x32xf32>
    %6 = vector.shape_cast %5 : vector<1x1x32xf32> to vector<1x32xf32>
    %7 = vector.broadcast %6 : vector<1x32xf32> to vector<256x32xf32>
    %8 = arith.addf %4, %7 : vector<256x32xf32>
    %cst_8 = arith.constant 0.176776692 : f32
    %9 = vector.broadcast %cst_8 : f32 to vector<256x32xf32>
    %10 = arith.mulf %8, %9 : vector<256x32xf32>
    %11 = arith.truncf %10 : vector<256x32xf32> to vector<256x32xbf16>
    %12 = vector.shape_cast %11 : vector<256x32xbf16> to vector<8x32x32xbf16>
    %c0_9 = arith.constant 0 : index
    %c0_10 = arith.constant 0 : index
    %c0_11 = arith.constant 0 : index
    %13 = vector.load %arg2[%c0_9, %c0_10, %c0_11] : memref<8x32x32xbf16, #tpu.memory_space<vmem>>, vector<8x32x32xbf16>
    %14 = vector.shape_cast %13 : vector<8x32x32xbf16> to vector<256x32xbf16>
    %c1 = arith.constant 1 : index
    %c0_12 = arith.constant 0 : index
    %c0_13 = arith.constant 0 : index
    %15 = vector.load %arg4[%c1, %c0_12, %c0_13] : memref<3x32x32xbf16, #tpu.memory_space<vmem>>, vector<1x32x32xbf16>
    %16 = vector.shape_cast %15 : vector<1x32x32xbf16> to vector<32x32xbf16>
    %cst_14 = arith.constant dense<0.000000e+00> : vector<256x32xf32>
    %17 = tpu.matmul %14, %16, %cst_14 {dimension_numbers = #tpu.dot_dimension_numbers<[1], [0], [0], [1], [0, 0, 1, 1], [], []>} : vector<256x32xbf16>, vector<32x32xbf16>, vector<256x32xf32> -> vector<256x32xf32>
    %c1_15 = arith.constant 1 : index
    %c0_16 = arith.constant 0 : index
    %c0_17 = arith.constant 0 : index
    %18 = vector.load %arg5[%c1_15, %c0_16, %c0_17] : memref<3x1x32xf32, #tpu.memory_space<vmem>>, vector<1x1x32xf32>
    %19 = vector.shape_cast %18 : vector<1x1x32xf32> to vector<1x32xf32>
    %20 = vector.broadcast %19 : vector<1x32xf32> to vector<256x32xf32>
    %21 = arith.addf %17, %20 : vector<256x32xf32>
    %22 = arith.truncf %21 : vector<256x32xf32> to vector<256x32xbf16>
    %23 = vector.shape_cast %22 : vector<256x32xbf16> to vector<8x32x32xbf16>
    %c0_18 = arith.constant 0 : index
    %c0_19 = arith.constant 0 : index
    %c0_20 = arith.constant 0 : index
    %24 = vector.load %arg3[%c0_18, %c0_19, %c0_20] : memref<8x32x32xbf16, #tpu.memory_space<vmem>>, vector<8x32x32xbf16>
    %25 = vector.shape_cast %24 : vector<8x32x32xbf16> to vector<256x32xbf16>
    %c2 = arith.constant 2 : index
    %c0_21 = arith.constant 0 : index
    %c0_22 = arith.constant 0 : index
    %26 = vector.load %arg4[%c2, %c0_21, %c0_22] : memref<3x32x32xbf16, #tpu.memory_space<vmem>>, vector<1x32x32xbf16>
    %27 = vector.shape_cast %26 : vector<1x32x32xbf16> to vector<32x32xbf16>
    %cst_23 = arith.constant dense<0.000000e+00> : vector<256x32xf32>
    %28 = tpu.matmul %25, %27, %cst_23 {dimension_numbers = #tpu.dot_dimension_numbers<[1], [0], [0], [1], [0, 0, 1, 1], [], []>} : vector<256x32xbf16>, vector<32x32xbf16>, vector<256x32xf32> -> vector<256x32xf32>
    %c2_24 = arith.constant 2 : index
    %c0_25 = arith.constant 0 : index
    %c0_26 = arith.constant 0 : index
    %29 = vector.load %arg5[%c2_24, %c0_25, %c0_26] : memref<3x1x32xf32, #tpu.memory_space<vmem>>, vector<1x1x32xf32>
    %30 = vector.shape_cast %29 : vector<1x1x32xf32> to vector<1x32xf32>
    %31 = vector.broadcast %30 : vector<1x32xf32> to vector<256x32xf32>
    %32 = arith.addf %28, %31 : vector<256x32xf32>
    %33 = arith.truncf %32 : vector<256x32xf32> to vector<256x32xbf16>
    %34 = vector.shape_cast %33 : vector<256x32xbf16> to vector<8x32x32xbf16>
    %35 = vector.extract_strided_slice %12 {offsets = [0, 0, 0], sizes = [8, 32, 8], strides = [1, 1, 1]} : vector<8x32x32xbf16> to vector<8x32x8xbf16>
    %36 = vector.extract_strided_slice %23 {offsets = [0, 0, 0], sizes = [8, 32, 8], strides = [1, 1, 1]} : vector<8x32x32xbf16> to vector<8x32x8xbf16>
    %37 = vector.extract_strided_slice %34 {offsets = [0, 0, 0], sizes = [8, 32, 8], strides = [1, 1, 1]} : vector<8x32x32xbf16> to vector<8x32x8xbf16>
    "tpu.trace_start"() <{level = 10 : i32, message = "bqd,bkd->bqk"}> : () -> ()
    %cst_27 = arith.constant dense<0.000000e+00> : vector<8x32x32xf32>
    %38 = tpu.matmul %35, %36, %cst_27 {dimension_numbers = #tpu.dot_dimension_numbers<[2], [2], [1], [1], [0, 0, 0, 1, 1, 1], [0], [0]>} : vector<8x32x8xbf16>, vector<8x32x8xbf16>, vector<8x32x32xf32> -> vector<8x32x32xf32>
    "tpu.trace_stop"() : () -> ()
    %cst_28 = arith.constant dense<0xFF800000> : vector<8x32xf32>
    %39 = vector.multi_reduction <maximumf>, %38, %cst_28 [2] : vector<8x32x32xf32> to vector<8x32xf32>
    %40 = vector.shape_cast %39 : vector<8x32xf32> to vector<8x32x1xf32>
    %41 = vector.broadcast %40 : vector<8x32x1xf32> to vector<8x32x32xf32>
    %42 = arith.subf %38, %41 : vector<8x32x32xf32>
    %43 = math.exp %42 : vector<8x32x32xf32>
    %cst_29 = arith.constant dense<0.000000e+00> : vector<8x32xf32>
    %44 = vector.multi_reduction <add>, %43, %cst_29 [2] : vector<8x32x32xf32> to vector<8x32xf32>
    %45 = vector.shape_cast %44 : vector<8x32xf32> to vector<8x32x1xf32>
    %46 = tpu.reciprocal %45 {approx = true} : vector<8x32x1xf32> -> vector<8x32x1xf32>
    %47 = vector.broadcast %46 : vector<8x32x1xf32> to vector<8x32x32xf32>
    %48 = arith.mulf %43, %47 : vector<8x32x32xf32>
    %49 = arith.truncf %48 : vector<8x32x32xf32> to vector<8x32x32xbf16>
    "tpu.trace_start"() <{level = 10 : i32, message = "bqk,bkd->bqd"}> : () -> ()
    %cst_30 = arith.constant dense<0.000000e+00> : vector<8x32x8xf32>
    %50 = tpu.matmul %49, %37, %cst_30 {dimension_numbers = #tpu.dot_dimension_numbers<[2], [1], [1], [2], [0, 0, 0, 1, 1, 2], [0], [0]>} : vector<8x32x32xbf16>, vector<8x32x8xbf16>, vector<8x32x8xf32> -> vector<8x32x8xf32>
    "tpu.trace_stop"() : () -> ()
    %51 = vector.extract_strided_slice %12 {offsets = [0, 0, 8], sizes = [8, 32, 8], strides = [1, 1, 1]} : vector<8x32x32xbf16> to vector<8x32x8xbf16>
    %52 = vector.extract_strided_slice %23 {offsets = [0, 0, 8], sizes = [8, 32, 8], strides = [1, 1, 1]} : vector<8x32x32xbf16> to vector<8x32x8xbf16>
    %53 = vector.extract_strided_slice %34 {offsets = [0, 0, 8], sizes = [8, 32, 8], strides = [1, 1, 1]} : vector<8x32x32xbf16> to vector<8x32x8xbf16>
    "tpu.trace_start"() <{level = 10 : i32, message = "bqd,bkd->bqk"}> : () -> ()
    %cst_31 = arith.constant dense<0.000000e+00> : vector<8x32x32xf32>
    %54 = tpu.matmul %51, %52, %cst_31 {dimension_numbers = #tpu.dot_dimension_numbers<[2], [2], [1], [1], [0, 0, 0, 1, 1, 1], [0], [0]>} : vector<8x32x8xbf16>, vector<8x32x8xbf16>, vector<8x32x32xf32> -> vector<8x32x32xf32>
    "tpu.trace_stop"() : () -> ()
    %cst_32 = arith.constant dense<0xFF800000> : vector<8x32xf32>
    %55 = vector.multi_reduction <maximumf>, %54, %cst_32 [2] : vector<8x32x32xf32> to vector<8x32xf32>
    %56 = vector.shape_cast %55 : vector<8x32xf32> to vector<8x32x1xf32>
    %57 = vector.broadcast %56 : vector<8x32x1xf32> to vector<8x32x32xf32>
    %58 = arith.subf %54, %57 : vector<8x32x32xf32>
    %59 = math.exp %58 : vector<8x32x32xf32>
    %cst_33 = arith.constant dense<0.000000e+00> : vector<8x32xf32>
    %60 = vector.multi_reduction <add>, %59, %cst_33 [2] : vector<8x32x32xf32> to vector<8x32xf32>
    %61 = vector.shape_cast %60 : vector<8x32xf32> to vector<8x32x1xf32>
    %62 = tpu.reciprocal %61 {approx = true} : vector<8x32x1xf32> -> vector<8x32x1xf32>
    %63 = vector.broadcast %62 : vector<8x32x1xf32> to vector<8x32x32xf32>
    %64 = arith.mulf %59, %63 : vector<8x32x32xf32>
    %65 = arith.truncf %64 : vector<8x32x32xf32> to vector<8x32x32xbf16>
    "tpu.trace_start"() <{level = 10 : i32, message = "bqk,bkd->bqd"}> : () -> ()
    %cst_34 = arith.constant dense<0.000000e+00> : vector<8x32x8xf32>
    %66 = tpu.matmul %65, %53, %cst_34 {dimension_numbers = #tpu.dot_dimension_numbers<[2], [1], [1], [2], [0, 0, 0, 1, 1, 2], [0], [0]>} : vector<8x32x32xbf16>, vector<8x32x8xbf16>, vector<8x32x8xf32> -> vector<8x32x8xf32>
    "tpu.trace_stop"() : () -> ()
    %67 = vector.extract_strided_slice %12 {offsets = [0, 0, 16], sizes = [8, 32, 8], strides = [1, 1, 1]} : vector<8x32x32xbf16> to vector<8x32x8xbf16>
    %68 = vector.extract_strided_slice %23 {offsets = [0, 0, 16], sizes = [8, 32, 8], strides = [1, 1, 1]} : vector<8x32x32xbf16> to vector<8x32x8xbf16>
    %69 = vector.extract_strided_slice %34 {offsets = [0, 0, 16], sizes = [8, 32, 8], strides = [1, 1, 1]} : vector<8x32x32xbf16> to vector<8x32x8xbf16>
    "tpu.trace_start"() <{level = 10 : i32, message = "bqd,bkd->bqk"}> : () -> ()
    %cst_35 = arith.constant dense<0.000000e+00> : vector<8x32x32xf32>
    %70 = tpu.matmul %67, %68, %cst_35 {dimension_numbers = #tpu.dot_dimension_numbers<[2], [2], [1], [1], [0, 0, 0, 1, 1, 1], [0], [0]>} : vector<8x32x8xbf16>, vector<8x32x8xbf16>, vector<8x32x32xf32> -> vector<8x32x32xf32>
    "tpu.trace_stop"() : () -> ()
    %cst_36 = arith.constant dense<0xFF800000> : vector<8x32xf32>
    %71 = vector.multi_reduction <maximumf>, %70, %cst_36 [2] : vector<8x32x32xf32> to vector<8x32xf32>
    %72 = vector.shape_cast %71 : vector<8x32xf32> to vector<8x32x1xf32>
    %73 = vector.broadcast %72 : vector<8x32x1xf32> to vector<8x32x32xf32>
    %74 = arith.subf %70, %73 : vector<8x32x32xf32>
    %75 = math.exp %74 : vector<8x32x32xf32>
    %cst_37 = arith.constant dense<0.000000e+00> : vector<8x32xf32>
    %76 = vector.multi_reduction <add>, %75, %cst_37 [2] : vector<8x32x32xf32> to vector<8x32xf32>
    %77 = vector.shape_cast %76 : vector<8x32xf32> to vector<8x32x1xf32>
    %78 = tpu.reciprocal %77 {approx = true} : vector<8x32x1xf32> -> vector<8x32x1xf32>
    %79 = vector.broadcast %78 : vector<8x32x1xf32> to vector<8x32x32xf32>
    %80 = arith.mulf %75, %79 : vector<8x32x32xf32>
    %81 = arith.truncf %80 : vector<8x32x32xf32> to vector<8x32x32xbf16>
    "tpu.trace_start"() <{level = 10 : i32, message = "bqk,bkd->bqd"}> : () -> ()
    %cst_38 = arith.constant dense<0.000000e+00> : vector<8x32x8xf32>
    %82 = tpu.matmul %81, %69, %cst_38 {dimension_numbers = #tpu.dot_dimension_numbers<[2], [1], [1], [2], [0, 0, 0, 1, 1, 2], [0], [0]>} : vector<8x32x32xbf16>, vector<8x32x8xbf16>, vector<8x32x8xf32> -> vector<8x32x8xf32>
    "tpu.trace_stop"() : () -> ()
    %83 = vector.extract_strided_slice %12 {offsets = [0, 0, 24], sizes = [8, 32, 8], strides = [1, 1, 1]} : vector<8x32x32xbf16> to vector<8x32x8xbf16>
    %84 = vector.extract_strided_slice %23 {offsets = [0, 0, 24], sizes = [8, 32, 8], strides = [1, 1, 1]} : vector<8x32x32xbf16> to vector<8x32x8xbf16>
    %85 = vector.extract_strided_slice %34 {offsets = [0, 0, 24], sizes = [8, 32, 8], strides = [1, 1, 1]} : vector<8x32x32xbf16> to vector<8x32x8xbf16>
    "tpu.trace_start"() <{level = 10 : i32, message = "bqd,bkd->bqk"}> : () -> ()
    %cst_39 = arith.constant dense<0.000000e+00> : vector<8x32x32xf32>
    %86 = tpu.matmul %83, %84, %cst_39 {dimension_numbers = #tpu.dot_dimension_numbers<[2], [2], [1], [1], [0, 0, 0, 1, 1, 1], [0], [0]>} : vector<8x32x8xbf16>, vector<8x32x8xbf16>, vector<8x32x32xf32> -> vector<8x32x32xf32>
    "tpu.trace_stop"() : () -> ()
    %cst_40 = arith.constant dense<0xFF800000> : vector<8x32xf32>
    %87 = vector.multi_reduction <maximumf>, %86, %cst_40 [2] : vector<8x32x32xf32> to vector<8x32xf32>
    %88 = vector.shape_cast %87 : vector<8x32xf32> to vector<8x32x1xf32>
    %89 = vector.broadcast %88 : vector<8x32x1xf32> to vector<8x32x32xf32>
    %90 = arith.subf %86, %89 : vector<8x32x32xf32>
    %91 = math.exp %90 : vector<8x32x32xf32>
    %cst_41 = arith.constant dense<0.000000e+00> : vector<8x32xf32>
    %92 = vector.multi_reduction <add>, %91, %cst_41 [2] : vector<8x32x32xf32> to vector<8x32xf32>
    %93 = vector.shape_cast %92 : vector<8x32xf32> to vector<8x32x1xf32>
    %94 = tpu.reciprocal %93 {approx = true} : vector<8x32x1xf32> -> vector<8x32x1xf32>
    %95 = vector.broadcast %94 : vector<8x32x1xf32> to vector<8x32x32xf32>
    %96 = arith.mulf %91, %95 : vector<8x32x32xf32>
    %97 = arith.truncf %96 : vector<8x32x32xf32> to vector<8x32x32xbf16>
    "tpu.trace_start"() <{level = 10 : i32, message = "bqk,bkd->bqd"}> : () -> ()
    %cst_42 = arith.constant dense<0.000000e+00> : vector<8x32x8xf32>
    %98 = tpu.matmul %97, %85, %cst_42 {dimension_numbers = #tpu.dot_dimension_numbers<[2], [1], [1], [2], [0, 0, 0, 1, 1, 2], [0], [0]>} : vector<8x32x32xbf16>, vector<8x32x8xbf16>, vector<8x32x8xf32> -> vector<8x32x8xf32>
    "tpu.trace_stop"() : () -> ()
    %99 = tpu.concatenate %50, %66, %82, %98 in 2 : vector<8x32x8xf32>, vector<8x32x8xf32>, vector<8x32x8xf32>, vector<8x32x8xf32> -> vector<8x32x32xf32>
    %c0_43 = arith.constant 0 : index
    %c0_44 = arith.constant 0 : index
    %c0_45 = arith.constant 0 : index
    %100 = vector.load %arg6[%c0_43, %c0_44, %c0_45] : memref<8x32x32xf32, #tpu.memory_space<vmem>>, vector<8x32x32xf32>
    tpu.vector_store %arg6[%c0_43, %c0_44, %c0_45], %99 {strides = array<i32>} : memref<8x32x32xf32, #tpu.memory_space<vmem>>, vector<8x32x32xf32>,
    return
  }
  func.func @transform_0(%arg0: i32) -> (i32, i32, i32) {
    %c0_i32 = arith.constant 0 : i32
    %c0_i32_0 = arith.constant 0 : i32
    %c0_i32_1 = arith.constant 0 : i32
    return %arg0, %c0_i32, %c0_i32_0 : i32, i32, i32
  }
  func.func @transform_1(%arg0: i32) -> (i32, i32, i32) {
    %c0_i32 = arith.constant 0 : i32
    %c0_i32_0 = arith.constant 0 : i32
    %c0_i32_1 = arith.constant 0 : i32
    return %arg0, %c0_i32, %c0_i32_0 : i32, i32, i32
  }
  func.func @transform_2(%arg0: i32) -> (i32, i32, i32) {
    %c0_i32 = arith.constant 0 : i32
    %c0_i32_0 = arith.constant 0 : i32
    %c0_i32_1 = arith.constant 0 : i32
    return %arg0, %c0_i32, %c0_i32_0 : i32, i32, i32
  }
  func.func @transform_3(%arg0: i32) -> (i32, i32, i32) {
    %c0_i32 = arith.constant 0 : i32
    %c0_i32_0 = arith.constant 0 : i32
    %c0_i32_1 = arith.constant 0 : i32
    %c0_i32_2 = arith.constant 0 : i32
    return %c0_i32, %c0_i32_0, %c0_i32_1 : i32, i32, i32
  }
  func.func @transform_4(%arg0: i32) -> (i32, i32, i32) {
    %c0_i32 = arith.constant 0 : i32
    %c0_i32_0 = arith.constant 0 : i32
    %c0_i32_1 = arith.constant 0 : i32
    %c0_i32_2 = arith.constant 0 : i32
    return %c0_i32, %c0_i32_0, %c0_i32_1 : i32, i32, i32
  }
  func.func @transform_5(%arg0: i32) -> (i32, i32, i32) {
    %c0_i32 = arith.constant 0 : i32
    %c0_i32_0 = arith.constant 0 : i32
    %c0_i32_1 = arith.constant 0 : i32
    return %arg0, %c0_i32, %c0_i32_0 : i32, i32, i32
  }
}

module attributes {stable_mosaic.version = 11 : i64} {
  func.func @_mha_kernel(%arg0: i32, %arg1: memref<8x32x32xbf16, #tpu.memory_space<vmem>>, %arg2: memref<8x32x32xbf16, #tpu.memory_space<vmem>>, %arg3: memref<8x32x32xbf16, #tpu.memory_space<vmem>>, %arg4: memref<3x32x32xbf16, #tpu.memory_space<vmem>>, %arg5: memref<3x1x32xf32, #tpu.memory_space<vmem>>, %arg6: memref<8x32x32xf32, #tpu.memory_space<vmem>>) attributes {dimension_semantics = [#tpu.dimension_semantics<parallel>], iteration_bounds = array<i64: 4>, scalar_prefetch = 0 : i64, scratch_operands = 0 : i64, tpu.core_type = #tpu.core_type<tc>, window_params = [{transform_indices = @transform_0, window_bounds = array<i64: 8, 32, 32>}, {transform_indices = @transform_1, window_bounds = array<i64: 8, 32, 32>}, {transform_indices = @transform_2, window_bounds = array<i64: 8, 32, 32>}, {pipeline_mode = #tpu.pipeline_mode<synchronous>, transform_indices = @transform_3, window_bounds = array<i64: 3, 32, 32>}, {pipeline_mode = #tpu.pipeline_mode<synchronous>, transform_indices = @transform_4, window_bounds = array<i64: 3, 1, 32>}, {transform_indices = @transform_5, window_bounds = array<i64: 8, 32, 32>}]} {
    %c0 = arith.constant 0 : index
    %c0_0 = arith.constant 0 : index
    %c0_1 = arith.constant 0 : index
    %0 = vector.load %arg1[%c0, %c0_0, %c0_1] : memref<8x32x32xbf16, #tpu.memory_space<vmem>>, vector<8x32x32xbf16>
    %1 = vector.shape_cast %0 : vector<8x32x32xbf16> to vector<256x32xbf16>
    %c0_2 = arith.constant 0 : index
    %c0_3 = arith.constant 0 : index
    %c0_4 = arith.constant 0 : index
    %2 = vector.load %arg4[%c0_2, %c0_3, %c0_4] : memref<3x32x32xbf16, #tpu.memory_space<vmem>>, vector<1x32x32xbf16>
    %3 = vector.shape_cast %2 : vector<1x32x32xbf16> to vector<32x32xbf16>
    %cst = arith.constant dense<0.000000e+00> : vector<256x32xf32>
    %4 = tpu.matmul %1, %3, %cst {dimension_numbers = #tpu.dot_dimension_numbers<[1], [0], [0], [1], [0, 0, 1, 1], [], []>} : vector<256x32xbf16>, vector<32x32xbf16>, vector<256x32xf32> -> vector<256x32xf32>
    %c0_5 = arith.constant 0 : index
    %c0_6 = arith.constant 0 : index
    %c0_7 = arith.constant 0 : index
    %5 = vector.load %arg5[%c0_5, %c0_6, %c0_7] : memref<3x1x32xf32, #tpu.memory_space<vmem>>, vector<1x1x32xf32>
    %6 = vector.shape_cast %5 : vector<1x1x32xf32> to vector<1x32xf32>
    %7 = vector.broadcast %6 : vector<1x32xf32> to vector<256x32xf32>
    %8 = arith.addf %4, %7 : vector<256x32xf32>
    %cst_8 = arith.constant 0.176776692 : f32
    %9 = vector.broadcast %cst_8 : f32 to vector<256x32xf32>
    %10 = arith.mulf %8, %9 : vector<256x32xf32>
    %11 = arith.truncf %10 : vector<256x32xf32> to vector<256x32xbf16>
    %12 = vector.shape_cast %11 : vector<256x32xbf16> to vector<8x32x32xbf16>
    %c0_9 = arith.constant 0 : index
    %c0_10 = arith.constant 0 : index
    %c0_11 = arith.constant 0 : index
    %13 = vector.load %arg2[%c0_9, %c0_10, %c0_11] : memref<8x32x32xbf16, #tpu.memory_space<vmem>>, vector<8x32x32xbf16>
    %14 = vector.shape_cast %13 : vector<8x32x32xbf16> to vector<256x32xbf16>
    %c1 = arith.constant 1 : index
    %c0_12 = arith.constant 0 : index
    %c0_13 = arith.constant 0 : index
    %15 = vector.load %arg4[%c1, %c0_12, %c0_13] : memref<3x32x32xbf16, #tpu.memory_space<vmem>>, vector<1x32x32xbf16>
    %16 = vector.shape_cast %15 : vector<1x32x32xbf16> to vector<32x32xbf16>
    %cst_14 = arith.constant dense<0.000000e+00> : vector<256x32xf32>
    %17 = tpu.matmul %14, %16, %cst_14 {dimension_numbers = #tpu.dot_dimension_numbers<[1], [0], [0], [1], [0, 0, 1, 1], [], []>} : vector<256x32xbf16>, vector<32x32xbf16>, vector<256x32xf32> -> vector<256x32xf32>
    %c1_15 = arith.constant 1 : index
    %c0_16 = arith.constant 0 : index
    %c0_17 = arith.constant 0 : index
    %18 = vector.load %arg5[%c1_15, %c0_16, %c0_17] : memref<3x1x32xf32, #tpu.memory_space<vmem>>, vector<1x1x32xf32>
    %19 = vector.shape_cast %18 : vector<1x1x32xf32> to vector<1x32xf32>
    %20 = vector.broadcast %19 : vector<1x32xf32> to vector<256x32xf32>
    %21 = arith.addf %17, %20 : vector<256x32xf32>
    %22 = arith.truncf %21 : vector<256x32xf32> to vector<256x32xbf16>
    %23 = vector.shape_cast %22 : vector<256x32xbf16> to vector<8x32x32xbf16>
    %c0_18 = arith.constant 0 : index
    %c0_19 = arith.constant 0 : index
    %c0_20 = arith.constant 0 : index
    %24 = vector.load %arg3[%c0_18, %c0_19, %c0_20] : memref<8x32x32xbf16, #tpu.memory_space<vmem>>, vector<8x32x32xbf16>
    %25 = vector.shape_cast %24 : vector<8x32x32xbf16> to vector<256x32xbf16>
    %c2 = arith.constant 2 : index
    %c0_21 = arith.constant 0 : index
    %c0_22 = arith.constant 0 : index
    %26 = vector.load %arg4[%c2, %c0_21, %c0_22] : memref<3x32x32xbf16, #tpu.memory_space<vmem>>, vector<1x32x32xbf16>
    %27 = vector.shape_cast %26 : vector<1x32x32xbf16> to vector<32x32xbf16>
    %cst_23 = arith.constant dense<0.000000e+00> : vector<256x32xf32>
    %28 = tpu.matmul %25, %27, %cst_23 {dimension_numbers = #tpu.dot_dimension_numbers<[1], [0], [0], [1], [0, 0, 1, 1], [], []>} : vector<256x32xbf16>, vector<32x32xbf16>, vector<256x32xf32> -> vector<256x32xf32>
    %c2_24 = arith.constant 2 : index
    %c0_25 = arith.constant 0 : index
    %c0_26 = arith.constant 0 : index
    %29 = vector.load %arg5[%c2_24, %c0_25, %c0_26] : memref<3x1x32xf32, #tpu.memory_space<vmem>>, vector<1x1x32xf32>
    %30 = vector.shape_cast %29 : vector<1x1x32xf32> to vector<1x32xf32>
    %31 = vector.broadcast %30 : vector<1x32xf32> to vector<256x32xf32>
    %32 = arith.addf %28, %31 : vector<256x32xf32>
    %33 = arith.truncf %32 : vector<256x32xf32> to vector<256x32xbf16>
    %34 = vector.shape_cast %33 : vector<256x32xbf16> to vector<8x32x32xbf16>
    %35 = vector.extract_strided_slice %12 {offsets = [0, 0, 0], sizes = [8, 32, 8], strides = [1, 1, 1]} : vector<8x32x32xbf16> to vector<8x32x8xbf16>
    %36 = vector.extract_strided_slice %23 {offsets = [0, 0, 0], sizes = [8, 32, 8], strides = [1, 1, 1]} : vector<8x32x32xbf16> to vector<8x32x8xbf16>
    %37 = vector.extract_strided_slice %34 {offsets = [0, 0, 0], sizes = [8, 32, 8], strides = [1, 1, 1]} : vector<8x32x32xbf16> to vector<8x32x8xbf16>
    "tpu.trace_start"() <{level = 10 : i32, message = "bqd,bkd->bqk"}> : () -> ()
    %cst_27 = arith.constant dense<0.000000e+00> : vector<8x32x32xf32>
    %38 = tpu.matmul %35, %36, %cst_27 {dimension_numbers = #tpu.dot_dimension_numbers<[2], [2], [1], [1], [0, 0, 0, 1, 1, 1], [0], [0]>} : vector<8x32x8xbf16>, vector<8x32x8xbf16>, vector<8x32x32xf32> -> vector<8x32x32xf32>
    "tpu.trace_stop"() : () -> ()
    %cst_28 = arith.constant dense<0xFF800000> : vector<8x32xf32>
    %39 = vector.multi_reduction <maximumf>, %38, %cst_28 [2] : vector<8x32x32xf32> to vector<8x32xf32>
    %40 = vector.shape_cast %39 : vector<8x32xf32> to vector<8x32x1xf32>
    %41 = vector.broadcast %40 : vector<8x32x1xf32> to vector<8x32x32xf32>
    %42 = arith.subf %38, %41 : vector<8x32x32xf32>
    %43 = math.exp %42 : vector<8x32x32xf32>
    %cst_29 = arith.constant dense<0.000000e+00> : vector<8x32xf32>
    %44 = vector.multi_reduction <add>, %43, %cst_29 [2] : vector<8x32x32xf32> to vector<8x32xf32>
    %45 = vector.shape_cast %44 : vector<8x32xf32> to vector<8x32x1xf32>
    %46 = tpu.reciprocal %45 {approx = true} : vector<8x32x1xf32> -> vector<8x32x1xf32>
    %47 = vector.broadcast %46 : vector<8x32x1xf32> to vector<8x32x32xf32>
    %48 = arith.mulf %43, %47 : vector<8x32x32xf32>
    %49 = arith.truncf %48 : vector<8x32x32xf32> to vector<8x32x32xbf16>
    "tpu.trace_start"() <{level = 10 : i32, message = "bqk,bkd->bqd"}> : () -> ()
    %cst_30 = arith.constant dense<0.000000e+00> : vector<8x32x8xf32>
    %50 = tpu.matmul %49, %37, %cst_30 {dimension_numbers = #tpu.dot_dimension_numbers<[2], [1], [1], [2], [0, 0, 0, 1, 1, 2], [0], [0]>} : vector<8x32x32xbf16>, vector<8x32x8xbf16>, vector<8x32x8xf32> -> vector<8x32x8xf32>
    "tpu.trace_stop"() : () -> ()
    %51 = vector.extract_strided_slice %12 {offsets = [0, 0, 8], sizes = [8, 32, 8], strides = [1, 1, 1]} : vector<8x32x32xbf16> to vector<8x32x8xbf16>
    %52 = vector.extract_strided_slice %23 {offsets = [0, 0, 8], sizes = [8, 32, 8], strides = [1, 1, 1]} : vector<8x32x32xbf16> to vector<8x32x8xbf16>
    %53 = vector.extract_strided_slice %34 {offsets = [0, 0, 8], sizes = [8, 32, 8], strides = [1, 1, 1]} : vector<8x32x32xbf16> to vector<8x32x8xbf16>
    "tpu.trace_start"() <{level = 10 : i32, message = "bqd,bkd->bqk"}> : () -> ()
    %cst_31 = arith.constant dense<0.000000e+00> : vector<8x32x32xf32>
    %54 = tpu.matmul %51, %52, %cst_31 {dimension_numbers = #tpu.dot_dimension_numbers<[2], [2], [1], [1], [0, 0, 0, 1, 1, 1], [0], [0]>} : vector<8x32x8xbf16>, vector<8x32x8xbf16>, vector<8x32x32xf32> -> vector<8x32x32xf32>
    "tpu.trace_stop"() : () -> ()
    %cst_32 = arith.constant dense<0xFF800000> : vector<8x32xf32>
    %55 = vector.multi_reduction <maximumf>, %54, %cst_32 [2] : vector<8x32x32xf32> to vector<8x32xf32>
    %56 = vector.shape_cast %55 : vector<8x32xf32> to vector<8x32x1xf32>
    %57 = vector.broadcast %56 : vector<8x32x1xf32> to vector<8x32x32xf32>
    %58 = arith.subf %54, %57 : vector<8x32x32xf32>
    %59 = math.exp %58 : vector<8x32x32xf32>
    %cst_33 = arith.constant dense<0.000000e+00> : vector<8x32xf32>
    %60 = vector.multi_reduction <add>, %59, %cst_33 [2] : vector<8x32x32xf32> to vector<8x32xf32>
    %61 = vector.shape_cast %60 : vector<8x32xf32> to vector<8x32x1xf32>
    %62 = tpu.reciprocal %61 {approx = true} : vector<8x32x1xf32> -> vector<8x32x1xf32>
    %63 = vector.broadcast %62 : vector<8x32x1xf32> to vector<8x32x32xf32>
    %64 = arith.mulf %59, %63 : vector<8x32x32xf32>
    %65 = arith.truncf %64 : vector<8x32x32xf32> to vector<8x32x32xbf16>
    "tpu.trace_start"() <{level = 10 : i32, message = "bqk,bkd->bqd"}> : () -> ()
    %cst_34 = arith.constant dense<0.000000e+00> : vector<8x32x8xf32>
    %66 = tpu.matmul %65, %53, %cst_34 {dimension_numbers = #tpu.dot_dimension_numbers<[2], [1], [1], [2], [0, 0, 0, 1, 1, 2], [0], [0]>} : vector<8x32x32xbf16>, vector<8x32x8xbf16>, vector<8x32x8xf32> -> vector<8x32x8xf32>
    "tpu.trace_stop"() : () -> ()
    %67 = vector.extract_strided_slice %12 {offsets = [0, 0, 16], sizes = [8, 32, 8], strides = [1, 1, 1]} : vector<8x32x32xbf16> to vector<8x32x8xbf16>
    %68 = vector.extract_strided_slice %23 {offsets = [0, 0, 16], sizes = [8, 32, 8], strides = [1, 1, 1]} : vector<8x32x32xbf16> to vector<8x32x8xbf16>
    %69 = vector.extract_strided_slice %34 {offsets = [0, 0, 16], sizes = [8, 32, 8], strides = [1, 1, 1]} : vector<8x32x32xbf16> to vector<8x32x8xbf16>
    "tpu.trace_start"() <{level = 10 : i32, message = "bqd,bkd->bqk"}> : () -> ()
    %cst_35 = arith.constant dense<0.000000e+00> : vector<8x32x32xf32>
    %70 = tpu.matmul %67, %68, %cst_35 {dimension_numbers = #tpu.dot_dimension_numbers<[2], [2], [1], [1], [0, 0, 0, 1, 1, 1], [0], [0]>} : vector<8x32x8xbf16>, vector<8x32x8xbf16>, vector<8x32x32xf32> -> vector<8x32x32xf32>
    "tpu.trace_stop"() : () -> ()
    %cst_36 = arith.constant dense<0xFF800000> : vector<8x32xf32>
    %71 = vector.multi_reduction <maximumf>, %70, %cst_36 [2] : vector<8x32x32xf32> to vector<8x32xf32>
    %72 = vector.shape_cast %71 : vector<8x32xf32> to vector<8x32x1xf32>
    %73 = vector.broadcast %72 : vector<8x32x1xf32> to vector<8x32x32xf32>
    %74 = arith.subf %70, %73 : vector<8x32x32xf32>
    %75 = math.exp %74 : vector<8x32x32xf32>
    %cst_37 = arith.constant dense<0.000000e+00> : vector<8x32xf32>
    %76 = vector.multi_reduction <add>, %75, %cst_37 [2] : vector<8x32x32xf32> to vector<8x32xf32>
    %77 = vector.shape_cast %76 : vector<8x32xf32> to vector<8x32x1xf32>
    %78 = tpu.reciprocal %77 {approx = true} : vector<8x32x1xf32> -> vector<8x32x1xf32>
    %79 = vector.broadcast %78 : vector<8x32x1xf32> to vector<8x32x32xf32>
    %80 = arith.mulf %75, %79 : vector<8x32x32xf32>
    %81 = arith.truncf %80 : vector<8x32x32xf32> to vector<8x32x32xbf16>
    "tpu.trace_start"() <{level = 10 : i32, message = "bqk,bkd->bqd"}> : () -> ()
    %cst_38 = arith.constant dense<0.000000e+00> : vector<8x32x8xf32>
    %82 = tpu.matmul %81, %69, %cst_38 {dimension_numbers = #tpu.dot_dimension_numbers<[2], [1], [1], [2], [0, 0, 0, 1, 1, 2], [0], [0]>} : vector<8x32x32xbf16>, vector<8x32x8xbf16>, vector<8x32x8xf32> -> vector<8x32x8xf32>
    "tpu.trace_stop"() : () -> ()
    %83 = vector.extract_strided_slice %12 {offsets = [0, 0, 24], sizes = [8, 32, 8], strides = [1, 1, 1]} : vector<8x32x32xbf16> to vector<8x32x8xbf16>
    %84 = vector.extract_strided_slice %23 {offsets = [0, 0, 24], sizes = [8, 32, 8], strides = [1, 1, 1]} : vector<8x32x32xbf16> to vector<8x32x8xbf16>
    %85 = vector.extract_strided_slice %34 {offsets = [0, 0, 24], sizes = [8, 32, 8], strides = [1, 1, 1]} : vector<8x32x32xbf16> to vector<8x32x8xbf16>
    "tpu.trace_start"() <{level = 10 : i32, message = "bqd,bkd->bqk"}> : () -> ()
    %cst_39 = arith.constant dense<0.000000e+00> : vector<8x32x32xf32>
    %86 = tpu.matmul %83, %84, %cst_39 {dimension_numbers = #tpu.dot_dimension_numbers<[2], [2], [1], [1], [0, 0, 0, 1, 1, 1], [0], [0]>} : vector<8x32x8xbf16>, vector<8x32x8xbf16>, vector<8x32x32xf32> -> vector<8x32x32xf32>
    "tpu.trace_stop"() : () -> ()
    %cst_40 = arith.constant dense<0xFF800000> : vector<8x32xf32>
    %87 = vector.multi_reduction <maximumf>, %86, %cst_40 [2] : vector<8x32x32xf32> to vector<8x32xf32>
    %88 = vector.shape_cast %87 : vector<8x32xf32> to vector<8x32x1xf32>
    %89 = vector.broadcast %88 : vector<8x32x1xf32> to vector<8x32x32xf32>
    %90 = arith.subf %86, %89 : vector<8x32x32xf32>
    %91 = math.exp %90 : vector<8x32x32xf32>
    %cst_41 = arith.constant dense<0.000000e+00> : vector<8x32xf32>
    %92 = vector.multi_reduction <add>, %91, %cst_41 [2] : vector<8x32x32xf32> to vector<8x32xf32>
    %93 = vector.shape_cast %92 : vector<8x32xf32> to vector<8x32x1xf32>
    %94 = tpu.reciprocal %93 {approx = true} : vector<8x32x1xf32> -> vector<8x32x1xf32>
    %95 = vector.broadcast %94 : vector<8x32x1xf32> to vector<8x32x32xf32>
    %96 = arith.mulf %91, %95 : vector<8x32x32xf32>
    %97 = arith.truncf %96 : vector<8x32x32xf32> to vector<8x32x32xbf16>
    "tpu.trace_start"() <{level = 10 : i32, message = "bqk,bkd->bqd"}> : () -> ()
    %cst_42 = arith.constant dense<0.000000e+00> : vector<8x32x8xf32>
    %98 = tpu.matmul %97, %85, %cst_42 {dimension_numbers = #tpu.dot_dimension_numbers<[2], [1], [1], [2], [0, 0, 0, 1, 1, 2], [0], [0]>} : vector<8x32x32xbf16>, vector<8x32x8xbf16>, vector<8x32x8xf32> -> vector<8x32x8xf32>
    "tpu.trace_stop"() : () -> ()
    %99 = tpu.concatenate %50, %66, %82, %98 in 2 : vector<8x32x8xf32>, vector<8x32x8xf32>, vector<8x32x8xf32>, vector<8x32x8xf32> -> vector<8x32x32xf32>
    %c0_43 = arith.constant 0 : index
    %c0_44 = arith.constant 0 : index
    %c0_45 = arith.constant 0 : index
    %100 = vector.load %arg6[%c0_43, %c0_44, %c0_45] : memref<8x32x32xf32, #tpu.memory_space<vmem>>, vector<8x32x32xf32>
    tpu.vector_store %arg6[%c0_43, %c0_44, %c0_45], %99 {strides = array<i32>} : memref<8x32x32xf32, #tpu.memory_space<vmem>>, vector<8x32x32xf32>,
    return
  }
  func.func @transform_0(%arg0: i32) -> (i32, i32, i32) {
    %c0_i32 = arith.constant 0 : i32
    %c0_i32_0 = arith.constant 0 : i32
    %c0_i32_1 = arith.constant 0 : i32
    return %arg0, %c0_i32, %c0_i32_0 : i32, i32, i32
  }
  func.func @transform_1(%arg0: i32) -> (i32, i32, i32) {
    %c0_i32 = arith.constant 0 : i32
    %c0_i32_0 = arith.constant 0 : i32
    %c0_i32_1 = arith.constant 0 : i32
    return %arg0, %c0_i32, %c0_i32_0 : i32, i32, i32
  }
  func.func @transform_2(%arg0: i32) -> (i32, i32, i32) {
    %c0_i32 = arith.constant 0 : i32
    %c0_i32_0 = arith.constant 0 : i32
    %c0_i32_1 = arith.constant 0 : i32
    return %arg0, %c0_i32, %c0_i32_0 : i32, i32, i32
  }
  func.func @transform_3(%arg0: i32) -> (i32, i32, i32) {
    %c0_i32 = arith.constant 0 : i32
    %c0_i32_0 = arith.constant 0 : i32
    %c0_i32_1 = arith.constant 0 : i32
    %c0_i32_2 = arith.constant 0 : i32
    return %c0_i32, %c0_i32_0, %c0_i32_1 : i32, i32, i32
  }
  func.func @transform_4(%arg0: i32) -> (i32, i32, i32) {
    %c0_i32 = arith.constant 0 : i32
    %c0_i32_0 = arith.constant 0 : i32
    %c0_i32_1 = arith.constant 0 : i32
    %c0_i32_2 = arith.constant 0 : i32
    return %c0_i32, %c0_i32_0, %c0_i32_1 : i32, i32, i32
  }
  func.func @transform_5(%arg0: i32) -> (i32, i32, i32) {
    %c0_i32 = arith.constant 0 : i32
    %c0_i32_0 = arith.constant 0 : i32
    %c0_i32_1 = arith.constant 0 : i32
    return %arg0, %c0_i32, %c0_i32_0 : i32, i32, i32
  }
}

</mosaic_0001>

<llo_original>
// kernel: tpu_custom_call.1
$region0: #{tpu_custom_call.1}
  #allocation0 [shape = 'u32[]', space=smem, size = 0x4, offset = 0x4, fixed_abs, tag = 'smem constant byte address 0x4 - core index']
  #allocation1 [shape = 'u32[72,128]{1,0:T(1,128)}', space=vmem, size = 0x9000, scoped, tag = 'internal scratch']
  %s0 = inlined_call_operand.hbm [shape: bf16[32,32,32], index: 0, kind: input, shape index: {}]
  %s1 = inlined_call_operand.hbm [shape: bf16[32,32,32], index: 1, kind: input, shape index: {}]
  %s2 = inlined_call_operand.hbm [shape: bf16[32,32,32], index: 2, kind: input, shape index: {}]
  %s3 = inlined_call_operand.hbm [shape: bf16[3,32,32], index: 3, kind: input, shape index: {}]
  %s4 = inlined_call_operand.vmem [shape: f32[3,1,32], index: 4, kind: input, shape index: {}]
  %s5 = inlined_call_operand.hbm [shape: f32[32,32,32], index: 5, kind: output, shape index: {}]
  %s6 = sld [smem:[#allocation0]]
  $region69: #{tpu_custom_call.1} parent=0
    _
  %s8 = ssub.s32 1, %s6
  %s9 = scalar_select 0, %s8, %s6
  $region1: #{tpu_custom_call.1} parent=0
    #allocation2 [shape = 'u8[131072]{0}', space=vmem, size = 0x20000, scoped, tag = 'input window, operand 0']
    #allocation3 [shape = 's32[2]{0}', space=sflag, size = 0x8, scoped, tag = 'scoped memory for tpu_custom_call.1']
    #allocation4 [shape = 's32[2]{0}', space=sflag, size = 0x8, scoped, tag = 'scoped memory for tpu_custom_call.1']
    #allocation5 [shape = 'u8[131072]{0}', space=vmem, size = 0x20000, scoped, tag = 'input window, operand 1']
    #allocation6 [shape = 's32[2]{0}', space=sflag, size = 0x8, scoped, tag = 'scoped memory for tpu_custom_call.1']
    #allocation7 [shape = 'u8[131072]{0}', space=vmem, size = 0x20000, scoped, tag = 'input window, operand 2']
    #allocation8 [shape = 'u8[24576]{0}', space=vmem, size = 0x6000, scoped, tag = 'input window, operand 3, single buffered']
    #allocation9 [shape = 's32[1]{0}', space=sflag, size = 0x4, scoped, tag = 'scoped memory for tpu_custom_call.1']
    #allocation10 [shape = 'u8[262144]{0}', space=vmem, size = 0x40000, scoped, tag = 'output window, operand 0']
    %10 = vsyncpa [#allocation3], 0
    %s11 = scalar_lea.sflag [#allocation3], 1
    %12 = vsyncpa %s11, 0
    %13 = vsyncpa [#allocation6], 0
    %s14 = scalar_lea.sflag [#allocation6], 1
    %15 = vsyncpa %s14, 0
    %16 = vsyncpa [#allocation9], 0
    %17 = vsyncpa [#allocation4], 0
    %s18 = scalar_lea.sflag [#allocation4], 1
    %19 = vsyncpa %s18, 0
    loop: start=0, step=1, limit=6
    $region2: #{tpu_custom_call.1} parent=1 // loop_pre_header
      _
    $region3: #{tpu_custom_call.1} parent=1 // loop_header
      %s21 = sphi 0, %s25
      %p22 = scmp.ge.s32.totalorder %s21, 6
      %s31 = sphi 0, %s33
      %s34 = sphi 0, %s31
      %s35 = sphi 0, %s34
      %s51 = sphi 0, %s35
      %s57 = sphi 0, %s59
      %s60 = sphi 0, %s57
      %s61 = sphi 0, %s60
      %s77 = sphi 0, %s61
      %s83 = sphi 0, %s85
      %s86 = sphi 0, %s83
      %s87 = sphi 0, %s86
      %s103 = sphi 0, %s87
      %s107 = sphi 0, %s107
      %s109 = sphi 0, %s107
      %s110 = sphi 0, %s109
      %s124 = sphi 0, %s110
      %s128 = sphi 0, %s128
      %s130 = sphi 0, %s128
      %s131 = sphi 0, %s130
      %s145 = sphi 0, %s131
      %s151 = sphi 0, %s153
      %s154 = sphi 0, %s151
      %s155 = sphi 0, %s154
      %s171 = sphi 0, %s155
    $region4: #{tpu_custom_call.1} parent=1 // loop_header_branch
      %24 = sbr.rel (%p22) target = $region8
    $region5: #{tpu_custom_call.1} parent=1 // loop_body
      %s26 = ssub.s32 %s21, 1
      %s27 = ssub.s32 %s21, 2
      %s28 = sadd.s32 %s21, 1
      %s29 = ssub.s32 %s21, %s28
      %p30 = scmp.eq.s32.totalorder %s29, 0
      %s32 = sadd.s32 %s31, 1
      %s33 = scalar_select %p30, %s31, %s32
      %p36 = pneg %p30
      %p37 = scmp.eq.s32.totalorder %s21, 3
      %p38 = por %p36, %p37
      %p39 = scmp.ne.s32.totalorder %s31, %s34
      %p40 = scmp.eq.s32.totalorder %s21, 0
      %p41 = por %p39, %p40
      %p42 = scmp.ne.s32.totalorder %s31, %s34
      %p43 = scmp.eq.s32.totalorder %s26, 3
      %p44 = por %p42, %p43
      %p45 = scmp.ne.s32.totalorder %s34, %s35
      %p46 = scmp.eq.s32.totalorder %s26, 0
      %p47 = por %p45, %p46
      %p48 = scmp.ne.s32.totalorder %s34, %s35
      %p49 = scmp.eq.s32.totalorder %s27, 3
      %p50 = por %p48, %p49
      %p52 = scmp.ne.s32.totalorder %s35, %s51
      %p53 = scmp.eq.s32.totalorder %s27, 0
      %p54 = por %p52, %p53
      %s55 = ssub.s32 %s21, %s28
      %p56 = scmp.eq.s32.totalorder %s55, 0
      %s58 = sadd.s32 %s57, 1
      %s59 = scalar_select %p56, %s57, %s58
      %p62 = pneg %p56
      %p63 = scmp.eq.s32.totalorder %s21, 3
      %p64 = por %p62, %p63
      %p65 = scmp.ne.s32.totalorder %s57, %s60
      %p66 = scmp.eq.s32.totalorder %s21, 0
      %p67 = por %p65, %p66
      %p68 = scmp.ne.s32.totalorder %s57, %s60
      %p69 = scmp.eq.s32.totalorder %s26, 3
      %p70 = por %p68, %p69
      %p71 = scmp.ne.s32.totalorder %s60, %s61
      %p72 = scmp.eq.s32.totalorder %s26, 0
      %p73 = por %p71, %p72
      %p74 = scmp.ne.s32.totalorder %s60, %s61
      %p75 = scmp.eq.s32.totalorder %s27, 3
      %p76 = por %p74, %p75
      %p78 = scmp.ne.s32.totalorder %s61, %s77
      %p79 = scmp.eq.s32.totalorder %s27, 0
      %p80 = por %p78, %p79
      %s81 = ssub.s32 %s21, %s28
      %p82 = scmp.eq.s32.totalorder %s81, 0
      %s84 = sadd.s32 %s83, 1
      %s85 = scalar_select %p82, %s83, %s84
      %p88 = pneg %p82
      %p89 = scmp.eq.s32.totalorder %s21, 3
      %p90 = por %p88, %p89
      %p91 = scmp.ne.s32.totalorder %s83, %s86
      %p92 = scmp.eq.s32.totalorder %s21, 0
      %p93 = por %p91, %p92
      %p94 = scmp.ne.s32.totalorder %s83, %s86
      %p95 = scmp.eq.s32.totalorder %s26, 3
      %p96 = por %p94, %p95
      %p97 = scmp.ne.s32.totalorder %s86, %s87
      %p98 = scmp.eq.s32.totalorder %s26, 0
      %p99 = por %p97, %p98
      %p100 = scmp.ne.s32.totalorder %s86, %s87
      %p101 = scmp.eq.s32.totalorder %s27, 3
      %p102 = por %p100, %p101
      %p104 = scmp.ne.s32.totalorder %s87, %s103
      %p105 = scmp.eq.s32.totalorder %s27, 0
      %p106 = por %p104, %p105
      %s108 = sadd.s32 %s107, 1
      %p111 = scmp.eq.s32.totalorder %s21, 3
      %p112 = scmp.ne.s32.totalorder %s107, %s109
      %p113 = scmp.eq.s32.totalorder %s21, 0
      %p114 = por %p112, %p113
      %p115 = scmp.ne.s32.totalorder %s107, %s109
      %p116 = scmp.eq.s32.totalorder %s26, 3
      %p117 = por %p115, %p116
      %p118 = scmp.ne.s32.totalorder %s109, %s110
      %p119 = scmp.eq.s32.totalorder %s26, 0
      %p120 = por %p118, %p119
      %p121 = scmp.ne.s32.totalorder %s109, %s110
      %p122 = scmp.eq.s32.totalorder %s27, 3
      %p123 = por %p121, %p122
      %p125 = scmp.ne.s32.totalorder %s110, %s124
      %p126 = scmp.eq.s32.totalorder %s27, 0
      %p127 = por %p125, %p126
      %s129 = sadd.s32 %s128, 1
      %p132 = scmp.eq.s32.totalorder %s21, 3
      %p133 = scmp.ne.s32.totalorder %s128, %s130
      %p134 = scmp.eq.s32.totalorder %s21, 0
      %p135 = por %p133, %p134
      %p136 = scmp.ne.s32.totalorder %s128, %s130
      %p137 = scmp.eq.s32.totalorder %s26, 3
      %p138 = por %p136, %p137
      %p139 = scmp.ne.s32.totalorder %s130, %s131
      %p140 = scmp.eq.s32.totalorder %s26, 0
      %p141 = por %p139, %p140
      %p142 = scmp.ne.s32.totalorder %s130, %s131
      %p143 = scmp.eq.s32.totalorder %s27, 3
      %p144 = por %p142, %p143
      %p146 = scmp.ne.s32.totalorder %s131, %s145
      %p147 = scmp.eq.s32.totalorder %s27, 0
      %p148 = por %p146, %p147
      %s149 = ssub.s32 %s21, %s28
      %p150 = scmp.eq.s32.totalorder %s149, 0
      %s152 = sadd.s32 %s151, 1
      %s153 = scalar_select %p150, %s151, %s152
      %p156 = pneg %p150
      %p157 = scmp.eq.s32.totalorder %s21, 3
      %p158 = por %p156, %p157
      %p159 = scmp.ne.s32.totalorder %s151, %s154
      %p160 = scmp.eq.s32.totalorder %s21, 0
      %p161 = por %p159, %p160
      %p162 = scmp.ne.s32.totalorder %s151, %s154
      %p163 = scmp.eq.s32.totalorder %s26, 3
      %p164 = por %p162, %p163
      %p165 = scmp.ne.s32.totalorder %s154, %s155
      %p166 = scmp.eq.s32.totalorder %s26, 0
      %p167 = por %p165, %p166
      %p168 = scmp.ne.s32.totalorder %s154, %s155
      %p169 = scmp.eq.s32.totalorder %s27, 3
      %p170 = por %p168, %p169
      %p172 = scmp.ne.s32.totalorder %s155, %s171
      %p173 = scmp.eq.s32.totalorder %s27, 0
      %p174 = por %p172, %p173
      %p175 = scmp.le.s32.totalorder 1, %s21
      %p176 = scmp.lt.s32.totalorder %s21, 5
      %p177 = pnand %p175, %p176
      %p178 = pneg %p177
      // Predicated region
      $region9: #{tpu_custom_call.1} parent=5 // pred_check
        _
      $region10: #{tpu_custom_call.1} parent=5 // pred_check_branch
        %180 = sbr.rel (%p177) target = $region12
      $region11: #{tpu_custom_call.1} parent=5 // pred_region
        %s181 = ssub.s32 %s21, 1
        // Predicated region
        $region13: #{tpu_custom_call.1} parent=11 // pred_check
          %p182 = pneg %p120
        $region14: #{tpu_custom_call.1} parent=11 // pred_check_branch
          %184 = sbr.rel (%p182) target = $region16
        $region15: #{tpu_custom_call.1} parent=11 // pred_region
          %186 = vsyncadd [#allocation9], 0
          %s187 = sshll.u32 %s3, 4
          %s188 = int_to_ptr.hbm [resolvable:$true] %s187
          %s189 = sshll.u32 [#allocation8], 4
          %s190 = int_to_ptr.vmem [resolvable:$true] %s189
          %195 = dma.hbm_to_vmem [thread:$0]  %s188, 768, %s190, [#allocation9], 64, 64, 4
        $region16: #{tpu_custom_call.1} parent=11 // pred_fallthru
          _
        // Predicated region
        $region17: #{tpu_custom_call.1} parent=11 // pred_check
          %p196 = pneg %p141
        $region18: #{tpu_custom_call.1} parent=11 // pred_check_branch
          %198 = sbr.rel (%p196) target = $region20
        $region19: #{tpu_custom_call.1} parent=11 // pred_region
          _
        $region20: #{tpu_custom_call.1} parent=11 // pred_fallthru
          _
      $region12: #{tpu_custom_call.1} parent=5 // pred_fallthru
        _
      %p199 = scmp.lt.s32.totalorder %s21, 4
      // Predicated region
      $region21: #{tpu_custom_call.1} parent=5 // pred_check
        %p200 = pneg %p199
      $region22: #{tpu_custom_call.1} parent=5 // pred_check_branch
        %202 = sbr.rel (%p200) target = $region24
      $region23: #{tpu_custom_call.1} parent=5 // pred_region
        // Predicated region
        $region25: #{tpu_custom_call.1} parent=23 // pred_check
          %p203 = pneg %p41
        $region26: #{tpu_custom_call.1} parent=23 // pred_check_branch
          %205 = sbr.rel (%p203) target = $region28
        $region27: #{tpu_custom_call.1} parent=23 // pred_region
          %s206 = sand.u32 %s31, 1
          %s207 = scalar_lea.sflag [#allocation3], %s206
          %s208 = sand.u32 %s31, 1
          %s209 = smul.addr %s208, 128
          %s210 = scalar_lea.vmem [#allocation2], %s209
          %s211 = smul.u32 8, %s21
          %213 = vsyncadd %s207, 0
          %s214 = smul.addr %s211, 4
          %s215 = smul.addr %s214, 4
          %s216 = scalar_lea.hbm %s0, %s215
          %s217 = sshll.u32 %s216, 4
          %s218 = int_to_ptr.hbm [resolvable:$true] %s217
          %s219 = sshll.u32 %s210, 4
          %s220 = int_to_ptr.vmem [resolvable:$true] %s219
          %225 = dma.hbm_to_vmem [thread:$0]  %s218, 2048, %s220, %s207, 64, 64, 4
        $region28: #{tpu_custom_call.1} parent=23 // pred_fallthru
          _
        // Predicated region
        $region29: #{tpu_custom_call.1} parent=23 // pred_check
          %p226 = pneg %p67
        $region30: #{tpu_custom_call.1} parent=23 // pred_check_branch
          %228 = sbr.rel (%p226) target = $region32
        $region31: #{tpu_custom_call.1} parent=23 // pred_region
          %s229 = sand.u32 %s21, 1
          %s230 = scalar_lea.sflag [#allocation6], %s229
          %s231 = sand.u32 %s57, 1
          %s232 = smul.addr %s231, 128
          %s233 = scalar_lea.vmem [#allocation5], %s232
          %s234 = smul.u32 8, %s21
          %236 = vsyncadd %s230, 0
          %s237 = smul.addr %s234, 4
          %s238 = smul.addr %s237, 4
          %s239 = scalar_lea.hbm %s1, %s238
          %s240 = sshll.u32 %s239, 4
          %s241 = int_to_ptr.hbm [resolvable:$true] %s240
          %s242 = sshll.u32 %s233, 4
          %s243 = int_to_ptr.vmem [resolvable:$true] %s242
          %248 = dma.hbm_to_vmem [thread:$0]  %s241, 2048, %s243, %s230, 64, 64, 4
        $region32: #{tpu_custom_call.1} parent=23 // pred_fallthru
          _
        // Predicated region
        $region33: #{tpu_custom_call.1} parent=23 // pred_check
          %p249 = pneg %p93
        $region34: #{tpu_custom_call.1} parent=23 // pred_check_branch
          %251 = sbr.rel (%p249) target = $region36
        $region35: #{tpu_custom_call.1} parent=23 // pred_region
          %s252 = sand.u32 %s21, 1
          %s253 = scalar_lea.sflag [#allocation6], %s252
          %s254 = sand.u32 %s83, 1
          %s255 = smul.addr %s254, 128
          %s256 = scalar_lea.vmem [#allocation7], %s255
          %s257 = smul.u32 8, %s21
          %259 = vsyncadd %s253, 0
          %s260 = smul.addr %s257, 4
          %s261 = smul.addr %s260, 4
          %s262 = scalar_lea.hbm %s2, %s261
          %s263 = sshll.u32 %s262, 4
          %s264 = int_to_ptr.hbm [resolvable:$true] %s263
          %s265 = sshll.u32 %s256, 4
          %s266 = int_to_ptr.vmem [resolvable:$true] %s265
          %271 = dma.hbm_to_vmem [thread:$0]  %s264, 2048, %s266, %s253, 64, 64, 4
        $region36: #{tpu_custom_call.1} parent=23 // pred_fallthru
          _
      $region24: #{tpu_custom_call.1} parent=5 // pred_fallthru
        _
      %p272 = scmp.le.s32.totalorder 1, %s21
      %p273 = scmp.lt.s32.totalorder %s21, 5
      %p274 = pnand %p272, %p273
      %p275 = pneg %p274
      // Predicated region
      $region37: #{tpu_custom_call.1} parent=5 // pred_check
        _
      $region38: #{tpu_custom_call.1} parent=5 // pred_check_branch
        %277 = sbr.rel (%p274) target = $region40
      $region39: #{tpu_custom_call.1} parent=5 // pred_region
        %s278 = ssub.s32 %s21, 1
        %s279 = sand.u32 %s34, 1
        %s280 = scalar_lea.sflag [#allocation3], %s279
        %s281 = sand.u32 %s34, 1
        %s282 = smul.addr %s281, 128
        %s283 = scalar_lea.vmem [#allocation2], %s282
        // Predicated region
        $region41: #{tpu_custom_call.1} parent=39 // pred_check
          %p284 = pneg %p47
        $region42: #{tpu_custom_call.1} parent=39 // pred_check_branch
          %286 = sbr.rel (%p284) target = $region44
        $region43: #{tpu_custom_call.1} parent=39 // pred_region
          %288 = dma.done %s280, 2048
        $region44: #{tpu_custom_call.1} parent=39 // pred_fallthru
          _
        %s289 = sand.u32 %s26, 1
        %s290 = scalar_lea.sflag [#allocation6], %s289
        %s291 = sand.u32 %s60, 1
        %s292 = smul.addr %s291, 128
        %s293 = scalar_lea.vmem [#allocation5], %s292
        // Predicated region
        $region45: #{tpu_custom_call.1} parent=39 // pred_check
          %p294 = pneg %p73
        $region46: #{tpu_custom_call.1} parent=39 // pred_check_branch
          %296 = sbr.rel (%p294) target = $region48
        $region47: #{tpu_custom_call.1} parent=39 // pred_region
          %298 = dma.done %s290, 2048
        $region48: #{tpu_custom_call.1} parent=39 // pred_fallthru
          _
        %s299 = sand.u32 %s26, 1
        %s300 = scalar_lea.sflag [#allocation6], %s299
        %s301 = sand.u32 %s86, 1
        %s302 = smul.addr %s301, 128
        %s303 = scalar_lea.vmem [#allocation7], %s302
        // Predicated region
        $region49: #{tpu_custom_call.1} parent=39 // pred_check
          %p304 = pneg %p99
        $region50: #{tpu_custom_call.1} parent=39 // pred_check_branch
          %306 = sbr.rel (%p304) target = $region52
        $region51: #{tpu_custom_call.1} parent=39 // pred_region
          %308 = dma.done %s300, 2048
        $region52: #{tpu_custom_call.1} parent=39 // pred_fallthru
          _
        // Predicated region
        $region53: #{tpu_custom_call.1} parent=39 // pred_check
          %p309 = pneg %p120
        $region54: #{tpu_custom_call.1} parent=39 // pred_check_branch
          %311 = sbr.rel (%p309) target = $region56
        $region55: #{tpu_custom_call.1} parent=39 // pred_region
          %313 = dma.done [#allocation9], 768
        $region56: #{tpu_custom_call.1} parent=39 // pred_fallthru
          _
        %s314 = sand.u32 %s34, 1
        %s315 = scalar_lea.sflag [#allocation3], %s314
        %s316 = sand.u32 %s34, 1
        %s317 = smul.addr %s316, 128
        %s318 = scalar_lea.vmem [#allocation2], %s317
        %p319 = pneg %p47
        %p320 = pneg %p44
        %s321 = sand.u32 %s26, 1
        %s322 = scalar_lea.sflag [#allocation6], %s321
        %s323 = sand.u32 %s60, 1
        %s324 = smul.addr %s323, 128
        %s325 = scalar_lea.vmem [#allocation5], %s324
        %p326 = pneg %p73
        %p327 = pneg %p70
        %s328 = sand.u32 %s26, 1
        %s329 = scalar_lea.sflag [#allocation6], %s328
        %s330 = sand.u32 %s86, 1
        %s331 = smul.addr %s330, 128
        %s332 = scalar_lea.vmem [#allocation7], %s331
        %p333 = pneg %p99
        %p334 = pneg %p96
        %p335 = pneg %p120
        %p336 = pneg %p117
        %p337 = pneg %p141
        %p338 = pneg %p138
        %p339 = pneg %p167
        %p340 = pneg %p164
        %s341 = sand.u32 %s154, 1
        %s342 = scalar_lea.sflag [#allocation4], %s341
        %s343 = sand.u32 %s154, 1
        %s344 = smul.addr %s343, 256
        %s345 = scalar_lea.vmem [#allocation10], %s344
        %s346 = smul.u32 8, %s26
        %s347 = smul.u32 8, %s26
        %s348 = smul.u32 8, %s26
        %s349 = smul.u32 8, %s26
        %v351 = vld [vmem:[%s283] sm:$0xf]
        %v352 = vld [vmem:[%s283 + $0x4] sm:$0xf]
        %v353 = vld [vmem:[%s283 + $0x8] sm:$0xf]
        %v354 = vld [vmem:[%s283 + $0xc] sm:$0xf]
        %v355 = vld [vmem:[%s283 + $0x10] sm:$0xf]
        %v356 = vld [vmem:[%s283 + $0x14] sm:$0xf]
        %v357 = vld [vmem:[%s283 + $0x18] sm:$0xf]
        %v358 = vld [vmem:[%s283 + $0x1c] sm:$0xf]
        %v359 = vld [vmem:[%s283 + $0x20] sm:$0xf]
        %v360 = vld [vmem:[%s283 + $0x24] sm:$0xf]
        %v361 = vld [vmem:[%s283 + $0x28] sm:$0xf]
        %v362 = vld [vmem:[%s283 + $0x2c] sm:$0xf]
        %v363 = vld [vmem:[%s283 + $0x30] sm:$0xf]
        %v364 = vld [vmem:[%s283 + $0x34] sm:$0xf]
        %v365 = vld [vmem:[%s283 + $0x38] sm:$0xf]
        %v366 = vld [vmem:[%s283 + $0x3c] sm:$0xf]
        %v367 = vld [vmem:[%s283 + $0x40] sm:$0xf]
        %v368 = vld [vmem:[%s283 + $0x44] sm:$0xf]
        %v369 = vld [vmem:[%s283 + $0x48] sm:$0xf]
        %v370 = vld [vmem:[%s283 + $0x4c] sm:$0xf]
        %v371 = vld [vmem:[%s283 + $0x50] sm:$0xf]
        %v372 = vld [vmem:[%s283 + $0x54] sm:$0xf]
        %v373 = vld [vmem:[%s283 + $0x58] sm:$0xf]
        %v374 = vld [vmem:[%s283 + $0x5c] sm:$0xf]
        %v375 = vld [vmem:[%s283 + $0x60] sm:$0xf]
        %v376 = vld [vmem:[%s283 + $0x64] sm:$0xf]
        %v377 = vld [vmem:[%s283 + $0x68] sm:$0xf]
        %v378 = vld [vmem:[%s283 + $0x6c] sm:$0xf]
        %v379 = vld [vmem:[%s283 + $0x70] sm:$0xf]
        %v380 = vld [vmem:[%s283 + $0x74] sm:$0xf]
        %v381 = vld [vmem:[%s283 + $0x78] sm:$0xf]
        %v382 = vld [vmem:[%s283 + $0x7c] sm:$0xf]
        %v383 = vld [vmem:[#allocation8] sm:$0xf]
        %v384 = vld [vmem:[#allocation8 + $0x4] sm:$0xf]
        %v385 = vld [vmem:[#allocation8 + $0x8] sm:$0xf]
        %v386 = vld [vmem:[#allocation8 + $0xc] sm:$0xf]
        %v387 = vld [vmem:[%s4] sm:$0x1]
        %v389 = vperm.slane %v387, 0
        %v423 = vunpack.c.l.b16 %v351
        %v424 = vunpack.c.l.b16 %v352
        %v425 = vunpack.c.l.b16 %v353
        %v426 = vunpack.c.l.b16 %v354
        %v427 = vunpack.c.l.b16 %v355
        %v428 = vunpack.c.l.b16 %v356
        %v429 = vunpack.c.l.b16 %v357
        %v430 = vunpack.c.l.b16 %v358
        %v431 = vunpack.c.l.b16 %v359
        %v432 = vunpack.c.l.b16 %v360
        %v433 = vunpack.c.l.b16 %v361
        %v434 = vunpack.c.l.b16 %v362
        %v435 = vunpack.c.l.b16 %v363
        %v436 = vunpack.c.l.b16 %v364
        %v437 = vunpack.c.l.b16 %v365
        %v438 = vunpack.c.l.b16 %v366
        %v439 = vunpack.c.l.b16 %v367
        %v440 = vunpack.c.l.b16 %v368
        %v441 = vunpack.c.l.b16 %v369
        %v442 = vunpack.c.l.b16 %v370
        %v443 = vunpack.c.l.b16 %v371
        %v444 = vunpack.c.l.b16 %v372
        %v445 = vunpack.c.l.b16 %v373
        %v446 = vunpack.c.l.b16 %v374
        %v447 = vunpack.c.l.b16 %v375
        %v448 = vunpack.c.l.b16 %v376
        %v449 = vunpack.c.l.b16 %v377
        %v450 = vunpack.c.l.b16 %v378
        %v451 = vunpack.c.l.b16 %v379
        %v452 = vunpack.c.l.b16 %v380
        %v453 = vunpack.c.l.b16 %v381
        %v454 = vunpack.c.l.b16 %v382
        %v455 = vpack.c.b16 %v424, %v423
        %v456 = vpack.c.b16 %v426, %v425
        %v457 = vpack.c.b16 %v428, %v427
        %v458 = vpack.c.b16 %v430, %v429
        %v459 = vpack.c.b16 %v432, %v431
        %v460 = vpack.c.b16 %v434, %v433
        %v461 = vpack.c.b16 %v436, %v435
        %v462 = vpack.c.b16 %v438, %v437
        %v463 = vpack.c.b16 %v440, %v439
        %v464 = vpack.c.b16 %v442, %v441
        %v465 = vpack.c.b16 %v444, %v443
        %v466 = vpack.c.b16 %v446, %v445
        %v467 = vpack.c.b16 %v448, %v447
        %v468 = vpack.c.b16 %v450, %v449
        %v469 = vpack.c.b16 %v452, %v451
        %v470 = vpack.c.b16 %v454, %v453
        %v475 = vunpack.c.l.b16 %v383
        %v476 = vunpack.c.l.b16 %v384
        %v477 = vunpack.c.l.b16 %v385
        %v478 = vunpack.c.l.b16 %v386
        %v479 = vpack.c.b16 %v476, %v475
        %v480 = vpack.c.b16 %v478, %v477
        %vm483 = vcmask 261120
        %v485 = vsel %vm483, %v455, 0
        %v488 = vsel %vm483, %v456, 0
        %v491 = vsel %vm483, %v457, 0
        %v494 = vsel %vm483, %v458, 0
        %v497 = vsel %vm483, %v459, 0
        %v500 = vsel %vm483, %v460, 0
        %v503 = vsel %vm483, %v461, 0
        %v506 = vsel %vm483, %v462, 0
        %v509 = vsel %vm483, %v463, 0
        %v512 = vsel %vm483, %v464, 0
        %v515 = vsel %vm483, %v465, 0
        %v518 = vsel %vm483, %v466, 0
        %v521 = vsel %vm483, %v467, 0
        %v524 = vsel %vm483, %v468, 0
        %v527 = vsel %vm483, %v469, 0
        %v530 = vsel %vm483, %v470, 0
        %532 = vmatpush.bf16.msra.mxu0 0
        %533 = vmatpush.bf16.msra.mxu0 0
        %534 = vmatpush.bf16.msra.mxu0 0
        %535 = vmatpush.bf16.msra.mxu0 0
        %536 = vmatpush.bf16.msra.mxu0 0
        %537 = vmatpush.bf16.msra.mxu0 0
        %538 = vmatpush.bf16.msra.mxu0 %v480
        %539 = vmatpush.bf16.msra.mxu0 %v479
        %540 = vmatmul.bf16.gmra.mxu0 %v485
        %v541 = vpop.f32.mrf.mxu0
        %v542 = vadd.f32 %v389, %v541
        %v543 = vpop.f32.mrf.mxu0
        %v544 = vadd.f32 %v389, %v543
        %545 = vmatmul.bf16.gmra.mxu0 %v488
        %v546 = vpop.f32.mrf.mxu0
        %v547 = vadd.f32 %v389, %v546
        %v548 = vpop.f32.mrf.mxu0
        %v549 = vadd.f32 %v389, %v548
        %550 = vmatmul.bf16.gmra.mxu0 %v491
        %v551 = vpop.f32.mrf.mxu0
        %v552 = vadd.f32 %v389, %v551
        %v553 = vpop.f32.mrf.mxu0
        %v554 = vadd.f32 %v389, %v553
        %555 = vmatmul.bf16.gmra.mxu0 %v494
        %v556 = vpop.f32.mrf.mxu0
        %v557 = vadd.f32 %v389, %v556
        %v558 = vpop.f32.mrf.mxu0
        %v559 = vadd.f32 %v389, %v558
        %560 = vmatmul.bf16.gmra.mxu0 %v497
        %v561 = vpop.f32.mrf.mxu0
        %v562 = vadd.f32 %v389, %v561
        %v563 = vpop.f32.mrf.mxu0
        %v564 = vadd.f32 %v389, %v563
        %565 = vmatmul.bf16.gmra.mxu0 %v500
        %v566 = vpop.f32.mrf.mxu0
        %v567 = vadd.f32 %v389, %v566
        %v568 = vpop.f32.mrf.mxu0
        %v569 = vadd.f32 %v389, %v568
        %570 = vmatmul.bf16.gmra.mxu0 %v503
        %v571 = vpop.f32.mrf.mxu0
        %v572 = vadd.f32 %v389, %v571
        %v573 = vpop.f32.mrf.mxu0
        %v574 = vadd.f32 %v389, %v573
        %575 = vmatmul.bf16.gmra.mxu0 %v506
        %v576 = vpop.f32.mrf.mxu0
        %v577 = vadd.f32 %v389, %v576
        %v578 = vpop.f32.mrf.mxu0
        %v579 = vadd.f32 %v389, %v578
        %580 = vmatmul.bf16.gmra.mxu0 %v509
        %v581 = vpop.f32.mrf.mxu0
        %v582 = vadd.f32 %v389, %v581
        %v583 = vpop.f32.mrf.mxu0
        %v584 = vadd.f32 %v389, %v583
        %585 = vmatmul.bf16.gmra.mxu0 %v512
        %v586 = vpop.f32.mrf.mxu0
        %v587 = vadd.f32 %v389, %v586
        %v588 = vpop.f32.mrf.mxu0
        %v589 = vadd.f32 %v389, %v588
        %590 = vmatmul.bf16.gmra.mxu0 %v515
        %v591 = vpop.f32.mrf.mxu0
        %v592 = vadd.f32 %v389, %v591
        %v593 = vpop.f32.mrf.mxu0
        %v594 = vadd.f32 %v389, %v593
        %595 = vmatmul.bf16.gmra.mxu0 %v518
        %v596 = vpop.f32.mrf.mxu0
        %v597 = vadd.f32 %v389, %v596
        %v598 = vpop.f32.mrf.mxu0
        %v599 = vadd.f32 %v389, %v598
        %600 = vmatmul.bf16.gmra.mxu0 %v521
        %v601 = vpop.f32.mrf.mxu0
        %v602 = vadd.f32 %v389, %v601
        %v603 = vpop.f32.mrf.mxu0
        %v604 = vadd.f32 %v389, %v603
        %605 = vmatmul.bf16.gmra.mxu0 %v524
        %v606 = vpop.f32.mrf.mxu0
        %v607 = vadd.f32 %v389, %v606
        %v608 = vpop.f32.mrf.mxu0
        %v609 = vadd.f32 %v389, %v608
        %610 = vmatmul.bf16.gmra.mxu0 %v527
        %v611 = vpop.f32.mrf.mxu0
        %v612 = vadd.f32 %v389, %v611
        %v613 = vpop.f32.mrf.mxu0
        %v614 = vadd.f32 %v389, %v613
        %615 = vmatmul.bf16.gmra.mxu0 %v530
        %v616 = vpop.f32.mrf.mxu0
        %v617 = vadd.f32 %v389, %v616
        %v618 = vpop.f32.mrf.mxu0
        %v619 = vadd.f32 %v389, %v618
        %620 = vdwg.mxu0
        %v621 = vmul.f32 %v542, 0.17677669
        %v622 = vmul.f32 %v544, 0.17677669
        %v623 = vmul.f32 %v547, 0.17677669
        %v624 = vmul.f32 %v549, 0.17677669
        %v625 = vmul.f32 %v552, 0.17677669
        %v626 = vmul.f32 %v554, 0.17677669
        %v627 = vmul.f32 %v557, 0.17677669
        %v628 = vmul.f32 %v559, 0.17677669
        %v629 = vmul.f32 %v562, 0.17677669
        %v630 = vmul.f32 %v564, 0.17677669
        %v631 = vmul.f32 %v567, 0.17677669
        %v632 = vmul.f32 %v569, 0.17677669
        %v633 = vmul.f32 %v572, 0.17677669
        %v634 = vmul.f32 %v574, 0.17677669
        %v635 = vmul.f32 %v577, 0.17677669
        %v636 = vmul.f32 %v579, 0.17677669
        %v637 = vmul.f32 %v582, 0.17677669
        %v638 = vmul.f32 %v584, 0.17677669
        %v639 = vmul.f32 %v587, 0.17677669
        %v640 = vmul.f32 %v589, 0.17677669
        %v641 = vmul.f32 %v592, 0.17677669
        %v642 = vmul.f32 %v594, 0.17677669
        %v643 = vmul.f32 %v597, 0.17677669
        %v644 = vmul.f32 %v599, 0.17677669
        %v645 = vmul.f32 %v602, 0.17677669
        %v646 = vmul.f32 %v604, 0.17677669
        %v647 = vmul.f32 %v607, 0.17677669
        %v648 = vmul.f32 %v609, 0.17677669
        %v649 = vmul.f32 %v612, 0.17677669
        %v650 = vmul.f32 %v614, 0.17677669
        %v651 = vmul.f32 %v617, 0.17677669
        %v652 = vmul.f32 %v619, 0.17677669
        %v653 = vpack.c.bf16 %v621, %v621
        %v654 = vpack.c.bf16 %v622, %v622
        %v655 = vpack.c.bf16 %v623, %v623
        %v656 = vpack.c.bf16 %v624, %v624
        %v657 = vpack.c.bf16 %v625, %v625
        %v658 = vpack.c.bf16 %v626, %v626
        %v659 = vpack.c.bf16 %v627, %v627
        %v660 = vpack.c.bf16 %v628, %v628
        %v661 = vpack.c.bf16 %v629, %v629
        %v662 = vpack.c.bf16 %v630, %v630
        %v663 = vpack.c.bf16 %v631, %v631
        %v664 = vpack.c.bf16 %v632, %v632
        %v665 = vpack.c.bf16 %v633, %v633
        %v666 = vpack.c.bf16 %v634, %v634
        %v667 = vpack.c.bf16 %v635, %v635
        %v668 = vpack.c.bf16 %v636, %v636
        %v669 = vpack.c.bf16 %v637, %v637
        %v670 = vpack.c.bf16 %v638, %v638
        %v671 = vpack.c.bf16 %v639, %v639
        %v672 = vpack.c.bf16 %v640, %v640
        %v673 = vpack.c.bf16 %v641, %v641
        %v674 = vpack.c.bf16 %v642, %v642
        %v675 = vpack.c.bf16 %v643, %v643
        %v676 = vpack.c.bf16 %v644, %v644
        %v677 = vpack.c.bf16 %v645, %v645
        %v678 = vpack.c.bf16 %v646, %v646
        %v679 = vpack.c.bf16 %v647, %v647
        %v680 = vpack.c.bf16 %v648, %v648
        %v681 = vpack.c.bf16 %v649, %v649
        %v682 = vpack.c.bf16 %v650, %v650
        %v683 = vpack.c.bf16 %v651, %v651
        %v684 = vpack.c.bf16 %v652, %v652
        %v685 = vld [vmem:[%s293] sm:$0xf]
        %v686 = vld [vmem:[%s293 + $0x4] sm:$0xf]
        %v687 = vld [vmem:[%s293 + $0x8] sm:$0xf]
        %v688 = vld [vmem:[%s293 + $0xc] sm:$0xf]
        %v689 = vld [vmem:[%s293 + $0x10] sm:$0xf]
        %v690 = vld [vmem:[%s293 + $0x14] sm:$0xf]
        %v691 = vld [vmem:[%s293 + $0x18] sm:$0xf]
        %v692 = vld [vmem:[%s293 + $0x1c] sm:$0xf]
        %v693 = vld [vmem:[%s293 + $0x20] sm:$0xf]
        %v694 = vld [vmem:[%s293 + $0x24] sm:$0xf]
        %v695 = vld [vmem:[%s293 + $0x28] sm:$0xf]
        %v696 = vld [vmem:[%s293 + $0x2c] sm:$0xf]
        %v697 = vld [vmem:[%s293 + $0x30] sm:$0xf]
        %v698 = vld [vmem:[%s293 + $0x34] sm:$0xf]
        %v699 = vld [vmem:[%s293 + $0x38] sm:$0xf]
        %v700 = vld [vmem:[%s293 + $0x3c] sm:$0xf]
        %v701 = vld [vmem:[%s293 + $0x40] sm:$0xf]
        %v702 = vld [vmem:[%s293 + $0x44] sm:$0xf]
        %v703 = vld [vmem:[%s293 + $0x48] sm:$0xf]
        %v704 = vld [vmem:[%s293 + $0x4c] sm:$0xf]
        %v705 = vld [vmem:[%s293 + $0x50] sm:$0xf]
        %v706 = vld [vmem:[%s293 + $0x54] sm:$0xf]
        %v707 = vld [vmem:[%s293 + $0x58] sm:$0xf]
        %v708 = vld [vmem:[%s293 + $0x5c] sm:$0xf]
        %v709 = vld [vmem:[%s293 + $0x60] sm:$0xf]
        %v710 = vld [vmem:[%s293 + $0x64] sm:$0xf]
        %v711 = vld [vmem:[%s293 + $0x68] sm:$0xf]
        %v712 = vld [vmem:[%s293 + $0x6c] sm:$0xf]
        %v713 = vld [vmem:[%s293 + $0x70] sm:$0xf]
        %v714 = vld [vmem:[%s293 + $0x74] sm:$0xf]
        %v715 = vld [vmem:[%s293 + $0x78] sm:$0xf]
        %v716 = vld [vmem:[%s293 + $0x7c] sm:$0xf]
        %s717 = scalar_lea.vmem [#allocation8], 16
        %v718 = vld [vmem:[%s717] sm:$0xf]
        %v719 = vld [vmem:[%s717 + $0x4] sm:$0xf]
        %v720 = vld [vmem:[%s717 + $0x8] sm:$0xf]
        %v721 = vld [vmem:[%s717 + $0xc] sm:$0xf]
        %s722 = scalar_lea.vmem %s4, 1
        %v723 = vld [vmem:[%s722] sm:$0x1]
        %v725 = vperm.slane %v723, 0
        %v759 = vunpack.c.l.b16 %v685
        %v760 = vunpack.c.l.b16 %v686
        %v761 = vunpack.c.l.b16 %v687
        %v762 = vunpack.c.l.b16 %v688
        %v763 = vunpack.c.l.b16 %v689
        %v764 = vunpack.c.l.b16 %v690
        %v765 = vunpack.c.l.b16 %v691
        %v766 = vunpack.c.l.b16 %v692
        %v767 = vunpack.c.l.b16 %v693
        %v768 = vunpack.c.l.b16 %v694
        %v769 = vunpack.c.l.b16 %v695
        %v770 = vunpack.c.l.b16 %v696
        %v771 = vunpack.c.l.b16 %v697
        %v772 = vunpack.c.l.b16 %v698
        %v773 = vunpack.c.l.b16 %v699
        %v774 = vunpack.c.l.b16 %v700
        %v775 = vunpack.c.l.b16 %v701
        %v776 = vunpack.c.l.b16 %v702
        %v777 = vunpack.c.l.b16 %v703
        %v778 = vunpack.c.l.b16 %v704
        %v779 = vunpack.c.l.b16 %v705
        %v780 = vunpack.c.l.b16 %v706
        %v781 = vunpack.c.l.b16 %v707
        %v782 = vunpack.c.l.b16 %v708
        %v783 = vunpack.c.l.b16 %v709
        %v784 = vunpack.c.l.b16 %v710
        %v785 = vunpack.c.l.b16 %v711
        %v786 = vunpack.c.l.b16 %v712
        %v787 = vunpack.c.l.b16 %v713
        %v788 = vunpack.c.l.b16 %v714
        %v789 = vunpack.c.l.b16 %v715
        %v790 = vunpack.c.l.b16 %v716
        %v791 = vpack.c.b16 %v760, %v759
        %v792 = vpack.c.b16 %v762, %v761
        %v793 = vpack.c.b16 %v764, %v763
        %v794 = vpack.c.b16 %v766, %v765
        %v795 = vpack.c.b16 %v768, %v767
        %v796 = vpack.c.b16 %v770, %v769
        %v797 = vpack.c.b16 %v772, %v771
        %v798 = vpack.c.b16 %v774, %v773
        %v799 = vpack.c.b16 %v776, %v775
        %v800 = vpack.c.b16 %v778, %v777
        %v801 = vpack.c.b16 %v780, %v779
        %v802 = vpack.c.b16 %v782, %v781
        %v803 = vpack.c.b16 %v784, %v783
        %v804 = vpack.c.b16 %v786, %v785
        %v805 = vpack.c.b16 %v788, %v787
        %v806 = vpack.c.b16 %v790, %v789
        %v811 = vunpack.c.l.b16 %v718
        %v812 = vunpack.c.l.b16 %v719
        %v813 = vunpack.c.l.b16 %v720
        %v814 = vunpack.c.l.b16 %v721
        %v815 = vpack.c.b16 %v812, %v811
        %v816 = vpack.c.b16 %v814, %v813
        %v820 = vsel %vm483, %v791, 0
        %v823 = vsel %vm483, %v792, 0
        %v826 = vsel %vm483, %v793, 0
        %v829 = vsel %vm483, %v794, 0
        %v832 = vsel %vm483, %v795, 0
        %v835 = vsel %vm483, %v796, 0
        %v838 = vsel %vm483, %v797, 0
        %v841 = vsel %vm483, %v798, 0
        %v844 = vsel %vm483, %v799, 0
        %v847 = vsel %vm483, %v800, 0
        %v850 = vsel %vm483, %v801, 0
        %v853 = vsel %vm483, %v802, 0
        %v856 = vsel %vm483, %v803, 0
        %v859 = vsel %vm483, %v804, 0
        %v862 = vsel %vm483, %v805, 0
        %v865 = vsel %vm483, %v806, 0
        %867 = vmatpush.bf16.msra.mxu0 0
        %868 = vmatpush.bf16.msra.mxu0 0
        %869 = vmatpush.bf16.msra.mxu0 0
        %870 = vmatpush.bf16.msra.mxu0 0
        %871 = vmatpush.bf16.msra.mxu0 0
        %872 = vmatpush.bf16.msra.mxu0 0
        %873 = vmatpush.bf16.msra.mxu0 %v816
        %874 = vmatpush.bf16.msra.mxu0 %v815
        %875 = vmatmul.bf16.gmra.mxu0 %v820
        %v876 = vpop.f32.mrf.mxu0
        %v877 = vadd.f32 %v725, %v876
        %v878 = vpop.f32.mrf.mxu0
        %v879 = vadd.f32 %v725, %v878
        %880 = vmatmul.bf16.gmra.mxu0 %v823
        %v881 = vpop.f32.mrf.mxu0
        %v882 = vadd.f32 %v725, %v881
        %v883 = vpop.f32.mrf.mxu0
        %v884 = vadd.f32 %v725, %v883
        %885 = vmatmul.bf16.gmra.mxu0 %v826
        %v886 = vpop.f32.mrf.mxu0
        %v887 = vadd.f32 %v725, %v886
        %v888 = vpop.f32.mrf.mxu0
        %v889 = vadd.f32 %v725, %v888
        %890 = vmatmul.bf16.gmra.mxu0 %v829
        %v891 = vpop.f32.mrf.mxu0
        %v892 = vadd.f32 %v725, %v891
        %v893 = vpop.f32.mrf.mxu0
        %v894 = vadd.f32 %v725, %v893
        %895 = vmatmul.bf16.gmra.mxu0 %v832
        %v896 = vpop.f32.mrf.mxu0
        %v897 = vadd.f32 %v725, %v896
        %v898 = vpop.f32.mrf.mxu0
        %v899 = vadd.f32 %v725, %v898
        %900 = vmatmul.bf16.gmra.mxu0 %v835
        %v901 = vpop.f32.mrf.mxu0
        %v902 = vadd.f32 %v725, %v901
        %v903 = vpop.f32.mrf.mxu0
        %v904 = vadd.f32 %v725, %v903
        %905 = vmatmul.bf16.gmra.mxu0 %v838
        %v906 = vpop.f32.mrf.mxu0
        %v907 = vadd.f32 %v725, %v906
        %v908 = vpop.f32.mrf.mxu0
        %v909 = vadd.f32 %v725, %v908
        %910 = vmatmul.bf16.gmra.mxu0 %v841
        %v911 = vpop.f32.mrf.mxu0
        %v912 = vadd.f32 %v725, %v911
        %v913 = vpop.f32.mrf.mxu0
        %v914 = vadd.f32 %v725, %v913
        %915 = vmatmul.bf16.gmra.mxu0 %v844
        %v916 = vpop.f32.mrf.mxu0
        %v917 = vadd.f32 %v725, %v916
        %v918 = vpop.f32.mrf.mxu0
        %v919 = vadd.f32 %v725, %v918
        %920 = vmatmul.bf16.gmra.mxu0 %v847
        %v921 = vpop.f32.mrf.mxu0
        %v922 = vadd.f32 %v725, %v921
        %v923 = vpop.f32.mrf.mxu0
        %v924 = vadd.f32 %v725, %v923
        %925 = vmatmul.bf16.gmra.mxu0 %v850
        %v926 = vpop.f32.mrf.mxu0
        %v927 = vadd.f32 %v725, %v926
        %v928 = vpop.f32.mrf.mxu0
        %v929 = vadd.f32 %v725, %v928
        %930 = vmatmul.bf16.gmra.mxu0 %v853
        %v931 = vpop.f32.mrf.mxu0
        %v932 = vadd.f32 %v725, %v931
        %v933 = vpop.f32.mrf.mxu0
        %v934 = vadd.f32 %v725, %v933
        %935 = vmatmul.bf16.gmra.mxu0 %v856
        %v936 = vpop.f32.mrf.mxu0
        %v937 = vadd.f32 %v725, %v936
        %v938 = vpop.f32.mrf.mxu0
        %v939 = vadd.f32 %v725, %v938
        %940 = vmatmul.bf16.gmra.mxu0 %v859
        %v941 = vpop.f32.mrf.mxu0
        %v942 = vadd.f32 %v725, %v941
        %v943 = vpop.f32.mrf.mxu0
        %v944 = vadd.f32 %v725, %v943
        %945 = vmatmul.bf16.gmra.mxu0 %v862
        %v946 = vpop.f32.mrf.mxu0
        %v947 = vadd.f32 %v725, %v946
        %v948 = vpop.f32.mrf.mxu0
        %v949 = vadd.f32 %v725, %v948
        %950 = vmatmul.bf16.gmra.mxu0 %v865
        %v951 = vpop.f32.mrf.mxu0
        %v952 = vadd.f32 %v725, %v951
        %v953 = vpop.f32.mrf.mxu0
        %v954 = vadd.f32 %v725, %v953
        %955 = vdwg.mxu0
        %v956 = vpack.c.bf16 %v877, %v877
        %v957 = vpack.c.bf16 %v879, %v879
        %v958 = vpack.c.bf16 %v882, %v882
        %v959 = vpack.c.bf16 %v884, %v884
        %v960 = vpack.c.bf16 %v887, %v887
        %v961 = vpack.c.bf16 %v889, %v889
        %v962 = vpack.c.bf16 %v892, %v892
        %v963 = vpack.c.bf16 %v894, %v894
        %v964 = vpack.c.bf16 %v897, %v897
        %v965 = vpack.c.bf16 %v899, %v899
        %v966 = vpack.c.bf16 %v902, %v902
        %v967 = vpack.c.bf16 %v904, %v904
        %v968 = vpack.c.bf16 %v907, %v907
        %v969 = vpack.c.bf16 %v909, %v909
        %v970 = vpack.c.bf16 %v912, %v912
        %v971 = vpack.c.bf16 %v914, %v914
        %v972 = vpack.c.bf16 %v917, %v917
        %v973 = vpack.c.bf16 %v919, %v919
        %v974 = vpack.c.bf16 %v922, %v922
        %v975 = vpack.c.bf16 %v924, %v924
        %v976 = vpack.c.bf16 %v927, %v927
        %v977 = vpack.c.bf16 %v929, %v929
        %v978 = vpack.c.bf16 %v932, %v932
        %v979 = vpack.c.bf16 %v934, %v934
        %v980 = vpack.c.bf16 %v937, %v937
        %v981 = vpack.c.bf16 %v939, %v939
        %v982 = vpack.c.bf16 %v942, %v942
        %v983 = vpack.c.bf16 %v944, %v944
        %v984 = vpack.c.bf16 %v947, %v947
        %v985 = vpack.c.bf16 %v949, %v949
        %v986 = vpack.c.bf16 %v952, %v952
        %v987 = vpack.c.bf16 %v954, %v954
        %v988 = vld [vmem:[%s303] sm:$0xf]
        %v989 = vld [vmem:[%s303 + $0x4] sm:$0xf]
        %v990 = vld [vmem:[%s303 + $0x8] sm:$0xf]
        %v991 = vld [vmem:[%s303 + $0xc] sm:$0xf]
        %v992 = vld [vmem:[%s303 + $0x10] sm:$0xf]
        %v993 = vld [vmem:[%s303 + $0x14] sm:$0xf]
        %v994 = vld [vmem:[%s303 + $0x18] sm:$0xf]
        %v995 = vld [vmem:[%s303 + $0x1c] sm:$0xf]
        %v996 = vld [vmem:[%s303 + $0x20] sm:$0xf]
        %v997 = vld [vmem:[%s303 + $0x24] sm:$0xf]
        %v998 = vld [vmem:[%s303 + $0x28] sm:$0xf]
        %v999 = vld [vmem:[%s303 + $0x2c] sm:$0xf]
        %v1000 = vld [vmem:[%s303 + $0x30] sm:$0xf]
        %v1001 = vld [vmem:[%s303 + $0x34] sm:$0xf]
        %v1002 = vld [vmem:[%s303 + $0x38] sm:$0xf]
        %v1003 = vld [vmem:[%s303 + $0x3c] sm:$0xf]
        %v1004 = vld [vmem:[%s303 + $0x40] sm:$0xf]
        %v1005 = vld [vmem:[%s303 + $0x44] sm:$0xf]
        %v1006 = vld [vmem:[%s303 + $0x48] sm:$0xf]
        %v1007 = vld [vmem:[%s303 + $0x4c] sm:$0xf]
        %v1008 = vld [vmem:[%s303 + $0x50] sm:$0xf]
        %v1009 = vld [vmem:[%s303 + $0x54] sm:$0xf]
        %v1010 = vld [vmem:[%s303 + $0x58] sm:$0xf]
        %v1011 = vld [vmem:[%s303 + $0x5c] sm:$0xf]
        %v1012 = vld [vmem:[%s303 + $0x60] sm:$0xf]
        %v1013 = vld [vmem:[%s303 + $0x64] sm:$0xf]
        %v1014 = vld [vmem:[%s303 + $0x68] sm:$0xf]
        %v1015 = vld [vmem:[%s303 + $0x6c] sm:$0xf]
        %v1016 = vld [vmem:[%s303 + $0x70] sm:$0xf]
        %v1017 = vld [vmem:[%s303 + $0x74] sm:$0xf]
        %v1018 = vld [vmem:[%s303 + $0x78] sm:$0xf]
        %v1019 = vld [vmem:[%s303 + $0x7c] sm:$0xf]
        %s1020 = scalar_lea.vmem [#allocation8], 32
        %v1021 = vld [vmem:[%s1020] sm:$0xf]
        %v1022 = vld [vmem:[%s1020 + $0x4] sm:$0xf]
        %v1023 = vld [vmem:[%s1020 + $0x8] sm:$0xf]
        %v1024 = vld [vmem:[%s1020 + $0xc] sm:$0xf]
        %s1025 = scalar_lea.vmem %s4, 2
        %v1026 = vld [vmem:[%s1025] sm:$0x1]
        %v1028 = vperm.slane %v1026, 0
        %v1062 = vunpack.c.l.b16 %v988
        %v1063 = vunpack.c.l.b16 %v989
        %v1064 = vunpack.c.l.b16 %v990
        %v1065 = vunpack.c.l.b16 %v991
        %v1066 = vunpack.c.l.b16 %v992
        %v1067 = vunpack.c.l.b16 %v993
        %v1068 = vunpack.c.l.b16 %v994
        %v1069 = vunpack.c.l.b16 %v995
        %v1070 = vunpack.c.l.b16 %v996
        %v1071 = vunpack.c.l.b16 %v997
        %v1072 = vunpack.c.l.b16 %v998
        %v1073 = vunpack.c.l.b16 %v999
        %v1074 = vunpack.c.l.b16 %v1000
        %v1075 = vunpack.c.l.b16 %v1001
        %v1076 = vunpack.c.l.b16 %v1002
        %v1077 = vunpack.c.l.b16 %v1003
        %v1078 = vunpack.c.l.b16 %v1004
        %v1079 = vunpack.c.l.b16 %v1005
        %v1080 = vunpack.c.l.b16 %v1006
        %v1081 = vunpack.c.l.b16 %v1007
        %v1082 = vunpack.c.l.b16 %v1008
        %v1083 = vunpack.c.l.b16 %v1009
        %v1084 = vunpack.c.l.b16 %v1010
        %v1085 = vunpack.c.l.b16 %v1011
        %v1086 = vunpack.c.l.b16 %v1012
        %v1087 = vunpack.c.l.b16 %v1013
        %v1088 = vunpack.c.l.b16 %v1014
        %v1089 = vunpack.c.l.b16 %v1015
        %v1090 = vunpack.c.l.b16 %v1016
        %v1091 = vunpack.c.l.b16 %v1017
        %v1092 = vunpack.c.l.b16 %v1018
        %v1093 = vunpack.c.l.b16 %v1019
        %v1094 = vpack.c.b16 %v1063, %v1062
        %v1095 = vpack.c.b16 %v1065, %v1064
        %v1096 = vpack.c.b16 %v1067, %v1066
        %v1097 = vpack.c.b16 %v1069, %v1068
        %v1098 = vpack.c.b16 %v1071, %v1070
        %v1099 = vpack.c.b16 %v1073, %v1072
        %v1100 = vpack.c.b16 %v1075, %v1074
        %v1101 = vpack.c.b16 %v1077, %v1076
        %v1102 = vpack.c.b16 %v1079, %v1078
        %v1103 = vpack.c.b16 %v1081, %v1080
        %v1104 = vpack.c.b16 %v1083, %v1082
        %v1105 = vpack.c.b16 %v1085, %v1084
        %v1106 = vpack.c.b16 %v1087, %v1086
        %v1107 = vpack.c.b16 %v1089, %v1088
        %v1108 = vpack.c.b16 %v1091, %v1090
        %v1109 = vpack.c.b16 %v1093, %v1092
        %v1114 = vunpack.c.l.b16 %v1021
        %v1115 = vunpack.c.l.b16 %v1022
        %v1116 = vunpack.c.l.b16 %v1023
        %v1117 = vunpack.c.l.b16 %v1024
        %v1118 = vpack.c.b16 %v1115, %v1114
        %v1119 = vpack.c.b16 %v1117, %v1116
        %v1123 = vsel %vm483, %v1094, 0
        %v1126 = vsel %vm483, %v1095, 0
        %v1129 = vsel %vm483, %v1096, 0
        %v1132 = vsel %vm483, %v1097, 0
        %v1135 = vsel %vm483, %v1098, 0
        %v1138 = vsel %vm483, %v1099, 0
        %v1141 = vsel %vm483, %v1100, 0
        %v1144 = vsel %vm483, %v1101, 0
        %v1147 = vsel %vm483, %v1102, 0
        %v1150 = vsel %vm483, %v1103, 0
        %v1153 = vsel %vm483, %v1104, 0
        %v1156 = vsel %vm483, %v1105, 0
        %v1159 = vsel %vm483, %v1106, 0
        %v1162 = vsel %vm483, %v1107, 0
        %v1165 = vsel %vm483, %v1108, 0
        %v1168 = vsel %vm483, %v1109, 0
        %1170 = vmatpush.bf16.msra.mxu0 0
        %1171 = vmatpush.bf16.msra.mxu0 0
        %1172 = vmatpush.bf16.msra.mxu0 0
        %1173 = vmatpush.bf16.msra.mxu0 0
        %1174 = vmatpush.bf16.msra.mxu0 0
        %1175 = vmatpush.bf16.msra.mxu0 0
        %1176 = vmatpush.bf16.msra.mxu0 %v1119
        %1177 = vmatpush.bf16.msra.mxu0 %v1118
        %1178 = vmatmul.bf16.gmra.mxu0 %v1123
        %v1179 = vpop.f32.mrf.mxu0
        %v1180 = vadd.f32 %v1028, %v1179
        %v1181 = vpop.f32.mrf.mxu0
        %v1182 = vadd.f32 %v1028, %v1181
        %1183 = vmatmul.bf16.gmra.mxu0 %v1126
        %v1184 = vpop.f32.mrf.mxu0
        %v1185 = vadd.f32 %v1028, %v1184
        %v1186 = vpop.f32.mrf.mxu0
        %v1187 = vadd.f32 %v1028, %v1186
        %1188 = vmatmul.bf16.gmra.mxu0 %v1129
        %v1189 = vpop.f32.mrf.mxu0
        %v1190 = vadd.f32 %v1028, %v1189
        %v1191 = vpop.f32.mrf.mxu0
        %v1192 = vadd.f32 %v1028, %v1191
        %1193 = vmatmul.bf16.gmra.mxu0 %v1132
        %v1194 = vpop.f32.mrf.mxu0
        %v1195 = vadd.f32 %v1028, %v1194
        %v1196 = vpop.f32.mrf.mxu0
        %v1197 = vadd.f32 %v1028, %v1196
        %1198 = vmatmul.bf16.gmra.mxu0 %v1135
        %v1199 = vpop.f32.mrf.mxu0
        %v1200 = vadd.f32 %v1028, %v1199
        %v1201 = vpop.f32.mrf.mxu0
        %v1202 = vadd.f32 %v1028, %v1201
        %1203 = vmatmul.bf16.gmra.mxu0 %v1138
        %v1204 = vpop.f32.mrf.mxu0
        %v1205 = vadd.f32 %v1028, %v1204
        %v1206 = vpop.f32.mrf.mxu0
        %v1207 = vadd.f32 %v1028, %v1206
        %1208 = vmatmul.bf16.gmra.mxu0 %v1141
        %v1209 = vpop.f32.mrf.mxu0
        %v1210 = vadd.f32 %v1028, %v1209
        %v1211 = vpop.f32.mrf.mxu0
        %v1212 = vadd.f32 %v1028, %v1211
        %1213 = vmatmul.bf16.gmra.mxu0 %v1144
        %v1214 = vpop.f32.mrf.mxu0
        %v1215 = vadd.f32 %v1028, %v1214
        %v1216 = vpop.f32.mrf.mxu0
        %v1217 = vadd.f32 %v1028, %v1216
        %1218 = vmatmul.bf16.gmra.mxu0 %v1147
        %v1219 = vpop.f32.mrf.mxu0
        %v1220 = vadd.f32 %v1028, %v1219
        %v1221 = vpop.f32.mrf.mxu0
        %v1222 = vadd.f32 %v1028, %v1221
        %1223 = vmatmul.bf16.gmra.mxu0 %v1150
        %v1224 = vpop.f32.mrf.mxu0
        %v1225 = vadd.f32 %v1028, %v1224
        %v1226 = vpop.f32.mrf.mxu0
        %v1227 = vadd.f32 %v1028, %v1226
        %1228 = vmatmul.bf16.gmra.mxu0 %v1153
        %v1229 = vpop.f32.mrf.mxu0
        %v1230 = vadd.f32 %v1028, %v1229
        %v1231 = vpop.f32.mrf.mxu0
        %v1232 = vadd.f32 %v1028, %v1231
        %1233 = vmatmul.bf16.gmra.mxu0 %v1156
        %v1234 = vpop.f32.mrf.mxu0
        %v1235 = vadd.f32 %v1028, %v1234
        %v1236 = vpop.f32.mrf.mxu0
        %v1237 = vadd.f32 %v1028, %v1236
        %1238 = vmatmul.bf16.gmra.mxu0 %v1159
        %v1239 = vpop.f32.mrf.mxu0
        %v1240 = vadd.f32 %v1028, %v1239
        %v1241 = vpop.f32.mrf.mxu0
        %v1242 = vadd.f32 %v1028, %v1241
        %1243 = vmatmul.bf16.gmra.mxu0 %v1162
        %v1244 = vpop.f32.mrf.mxu0
        %v1245 = vadd.f32 %v1028, %v1244
        %v1246 = vpop.f32.mrf.mxu0
        %v1247 = vadd.f32 %v1028, %v1246
        %1248 = vmatmul.bf16.gmra.mxu0 %v1165
        %v1249 = vpop.f32.mrf.mxu0
        %v1250 = vadd.f32 %v1028, %v1249
        %v1251 = vpop.f32.mrf.mxu0
        %v1252 = vadd.f32 %v1028, %v1251
        %1253 = vmatmul.bf16.gmra.mxu0 %v1168
        %v1254 = vpop.f32.mrf.mxu0
        %v1255 = vadd.f32 %v1028, %v1254
        %v1256 = vpop.f32.mrf.mxu0
        %v1257 = vadd.f32 %v1028, %v1256
        %1258 = vdwg.mxu0
        %v1259 = vpack.c.bf16 %v1180, %v1180
        %v1260 = vpack.c.bf16 %v1182, %v1182
        %v1261 = vpack.c.bf16 %v1185, %v1185
        %v1262 = vpack.c.bf16 %v1187, %v1187
        %v1263 = vpack.c.bf16 %v1190, %v1190
        %v1264 = vpack.c.bf16 %v1192, %v1192
        %v1265 = vpack.c.bf16 %v1195, %v1195
        %v1266 = vpack.c.bf16 %v1197, %v1197
        %v1267 = vpack.c.bf16 %v1200, %v1200
        %v1268 = vpack.c.bf16 %v1202, %v1202
        %v1269 = vpack.c.bf16 %v1205, %v1205
        %v1270 = vpack.c.bf16 %v1207, %v1207
        %v1271 = vpack.c.bf16 %v1210, %v1210
        %v1272 = vpack.c.bf16 %v1212, %v1212
        %v1273 = vpack.c.bf16 %v1215, %v1215
        %v1274 = vpack.c.bf16 %v1217, %v1217
        %v1275 = vpack.c.bf16 %v1220, %v1220
        %v1276 = vpack.c.bf16 %v1222, %v1222
        %v1277 = vpack.c.bf16 %v1225, %v1225
        %v1278 = vpack.c.bf16 %v1227, %v1227
        %v1279 = vpack.c.bf16 %v1230, %v1230
        %v1280 = vpack.c.bf16 %v1232, %v1232
        %v1281 = vpack.c.bf16 %v1235, %v1235
        %v1282 = vpack.c.bf16 %v1237, %v1237
        %v1283 = vpack.c.bf16 %v1240, %v1240
        %v1284 = vpack.c.bf16 %v1242, %v1242
        %v1285 = vpack.c.bf16 %v1245, %v1245
        %v1286 = vpack.c.bf16 %v1247, %v1247
        %v1287 = vpack.c.bf16 %v1250, %v1250
        %v1288 = vpack.c.bf16 %v1252, %v1252
        %v1289 = vpack.c.bf16 %v1255, %v1255
        %v1290 = vpack.c.bf16 %v1257, %v1257
        %v1295 = vunpack.c.l.b16 %v653
        %v1296 = vunpack.c.l.b16 %v654
        %v1297 = vunpack.c.l.b16 %v655
        %v1298 = vunpack.c.l.b16 %v656
        %v1299 = vpack.c.b16 %v1296, %v1295
        %v1300 = vpack.c.b16 %v1298, %v1297
        %v1305 = vunpack.c.l.b16 %v956
        %v1306 = vunpack.c.l.b16 %v957
        %v1307 = vunpack.c.l.b16 %v958
        %v1308 = vunpack.c.l.b16 %v959
        %v1309 = vpack.c.b16 %v1306, %v1305
        %v1310 = vpack.c.b16 %v1308, %v1307
        %vm1311 = vcmask 64512
        %v1313 = vsel %vm1311, %v1299, 0
        %v1316 = vsel %vm1311, %v1300, 0
        %v1319 = vsel %vm1311, %v1309, 0
        %v1322 = vsel %vm1311, %v1310, 0
        %1324 = vmatpush.bf16.xpose.msra.mxu0 0
        %1325 = vmatpush.bf16.xpose.msra.mxu0 0
        %1326 = vmatpush.bf16.xpose.msra.mxu0 0
        %1327 = vmatpush.bf16.xpose.msra.mxu0 0
        %1328 = vmatpush.bf16.xpose.msra.mxu0 0
        %1329 = vmatpush.bf16.xpose.msra.mxu0 0
        %1330 = vmatpush.bf16.xpose.msra.mxu0 %v1322
        %1331 = vmatpush.bf16.xpose.msra.mxu0 %v1319
        %1332 = vmatmul.bf16.gmra.mxu0 %v1313
        %v1333 = vpop.f32.mrf.mxu0
        %v1334 = vadd.f32 0.0, %v1333
        %v1335 = vpop.f32.mrf.mxu0
        %v1336 = vadd.f32 0.0, %v1335
        %1337 = vmatmul.bf16.gmra.mxu0 %v1316
        %v1338 = vpop.f32.mrf.mxu0
        %v1339 = vadd.f32 0.0, %v1338
        %v1340 = vpop.f32.mrf.mxu0
        %v1341 = vadd.f32 0.0, %v1340
        %1342 = vdwg.mxu0
        %v1347 = vunpack.c.l.b16 %v657
        %v1348 = vunpack.c.l.b16 %v658
        %v1349 = vunpack.c.l.b16 %v659
        %v1350 = vunpack.c.l.b16 %v660
        %v1351 = vpack.c.b16 %v1348, %v1347
        %v1352 = vpack.c.b16 %v1350, %v1349
        %v1357 = vunpack.c.l.b16 %v960
        %v1358 = vunpack.c.l.b16 %v961
        %v1359 = vunpack.c.l.b16 %v962
        %v1360 = vunpack.c.l.b16 %v963
        %v1361 = vpack.c.b16 %v1358, %v1357
        %v1362 = vpack.c.b16 %v1360, %v1359
        %v1364 = vsel %vm1311, %v1351, 0
        %v1367 = vsel %vm1311, %v1352, 0
        %v1370 = vsel %vm1311, %v1361, 0
        %v1373 = vsel %vm1311, %v1362, 0
        %1375 = vmatpush.bf16.xpose.msra.mxu0 0
        %1376 = vmatpush.bf16.xpose.msra.mxu0 0
        %1377 = vmatpush.bf16.xpose.msra.mxu0 0
        %1378 = vmatpush.bf16.xpose.msra.mxu0 0
        %1379 = vmatpush.bf16.xpose.msra.mxu0 0
        %1380 = vmatpush.bf16.xpose.msra.mxu0 0
        %1381 = vmatpush.bf16.xpose.msra.mxu0 %v1373
        %1382 = vmatpush.bf16.xpose.msra.mxu0 %v1370
        %1383 = vmatmul.bf16.gmra.mxu0 %v1364
        %v1384 = vpop.f32.mrf.mxu0
        %v1385 = vadd.f32 0.0, %v1384
        %v1386 = vpop.f32.mrf.mxu0
        %v1387 = vadd.f32 0.0, %v1386
        %1388 = vmatmul.bf16.gmra.mxu0 %v1367
        %v1389 = vpop.f32.mrf.mxu0
        %v1390 = vadd.f32 0.0, %v1389
        %v1391 = vpop.f32.mrf.mxu0
        %v1392 = vadd.f32 0.0, %v1391
        %1393 = vdwg.mxu0
        %v1398 = vunpack.c.l.b16 %v661
        %v1399 = vunpack.c.l.b16 %v662
        %v1400 = vunpack.c.l.b16 %v663
        %v1401 = vunpack.c.l.b16 %v664
        %v1402 = vpack.c.b16 %v1399, %v1398
        %v1403 = vpack.c.b16 %v1401, %v1400
        %v1408 = vunpack.c.l.b16 %v964
        %v1409 = vunpack.c.l.b16 %v965
        %v1410 = vunpack.c.l.b16 %v966
        %v1411 = vunpack.c.l.b16 %v967
        %v1412 = vpack.c.b16 %v1409, %v1408
        %v1413 = vpack.c.b16 %v1411, %v1410
        %v1415 = vsel %vm1311, %v1402, 0
        %v1418 = vsel %vm1311, %v1403, 0
        %v1421 = vsel %vm1311, %v1412, 0
        %v1424 = vsel %vm1311, %v1413, 0
        %1426 = vmatpush.bf16.xpose.msra.mxu0 0
        %1427 = vmatpush.bf16.xpose.msra.mxu0 0
        %1428 = vmatpush.bf16.xpose.msra.mxu0 0
        %1429 = vmatpush.bf16.xpose.msra.mxu0 0
        %1430 = vmatpush.bf16.xpose.msra.mxu0 0
        %1431 = vmatpush.bf16.xpose.msra.mxu0 0
        %1432 = vmatpush.bf16.xpose.msra.mxu0 %v1424
        %1433 = vmatpush.bf16.xpose.msra.mxu0 %v1421
        %1434 = vmatmul.bf16.gmra.mxu0 %v1415
        %v1435 = vpop.f32.mrf.mxu0
        %v1436 = vadd.f32 0.0, %v1435
        %v1437 = vpop.f32.mrf.mxu0
        %v1438 = vadd.f32 0.0, %v1437
        %1439 = vmatmul.bf16.gmra.mxu0 %v1418
        %v1440 = vpop.f32.mrf.mxu0
        %v1441 = vadd.f32 0.0, %v1440
        %v1442 = vpop.f32.mrf.mxu0
        %v1443 = vadd.f32 0.0, %v1442
        %1444 = vdwg.mxu0
        %v1449 = vunpack.c.l.b16 %v665
        %v1450 = vunpack.c.l.b16 %v666
        %v1451 = vunpack.c.l.b16 %v667
        %v1452 = vunpack.c.l.b16 %v668
        %v1453 = vpack.c.b16 %v1450, %v1449
        %v1454 = vpack.c.b16 %v1452, %v1451
        %v1459 = vunpack.c.l.b16 %v968
        %v1460 = vunpack.c.l.b16 %v969
        %v1461 = vunpack.c.l.b16 %v970
        %v1462 = vunpack.c.l.b16 %v971
        %v1463 = vpack.c.b16 %v1460, %v1459
        %v1464 = vpack.c.b16 %v1462, %v1461
        %v1466 = vsel %vm1311, %v1453, 0
        %v1469 = vsel %vm1311, %v1454, 0
        %v1472 = vsel %vm1311, %v1463, 0
        %v1475 = vsel %vm1311, %v1464, 0
        %1477 = vmatpush.bf16.xpose.msra.mxu0 0
        %1478 = vmatpush.bf16.xpose.msra.mxu0 0
        %1479 = vmatpush.bf16.xpose.msra.mxu0 0
        %1480 = vmatpush.bf16.xpose.msra.mxu0 0
        %1481 = vmatpush.bf16.xpose.msra.mxu0 0
        %1482 = vmatpush.bf16.xpose.msra.mxu0 0
        %1483 = vmatpush.bf16.xpose.msra.mxu0 %v1475
        %1484 = vmatpush.bf16.xpose.msra.mxu0 %v1472
        %1485 = vmatmul.bf16.gmra.mxu0 %v1466
        %v1486 = vpop.f32.mrf.mxu0
        %v1487 = vadd.f32 0.0, %v1486
        %v1488 = vpop.f32.mrf.mxu0
        %v1489 = vadd.f32 0.0, %v1488
        %1490 = vmatmul.bf16.gmra.mxu0 %v1469
        %v1491 = vpop.f32.mrf.mxu0
        %v1492 = vadd.f32 0.0, %v1491
        %v1493 = vpop.f32.mrf.mxu0
        %v1494 = vadd.f32 0.0, %v1493
        %1495 = vdwg.mxu0
        %v1500 = vunpack.c.l.b16 %v669
        %v1501 = vunpack.c.l.b16 %v670
        %v1502 = vunpack.c.l.b16 %v671
        %v1503 = vunpack.c.l.b16 %v672
        %v1504 = vpack.c.b16 %v1501, %v1500
        %v1505 = vpack.c.b16 %v1503, %v1502
        %v1510 = vunpack.c.l.b16 %v972
        %v1511 = vunpack.c.l.b16 %v973
        %v1512 = vunpack.c.l.b16 %v974
        %v1513 = vunpack.c.l.b16 %v975
        %v1514 = vpack.c.b16 %v1511, %v1510
        %v1515 = vpack.c.b16 %v1513, %v1512
        %v1517 = vsel %vm1311, %v1504, 0
        %v1520 = vsel %vm1311, %v1505, 0
        %v1523 = vsel %vm1311, %v1514, 0
        %v1526 = vsel %vm1311, %v1515, 0
        %1528 = vmatpush.bf16.xpose.msra.mxu0 0
        %1529 = vmatpush.bf16.xpose.msra.mxu0 0
        %1530 = vmatpush.bf16.xpose.msra.mxu0 0
        %1531 = vmatpush.bf16.xpose.msra.mxu0 0
        %1532 = vmatpush.bf16.xpose.msra.mxu0 0
        %1533 = vmatpush.bf16.xpose.msra.mxu0 0
        %1534 = vmatpush.bf16.xpose.msra.mxu0 %v1526
        %1535 = vmatpush.bf16.xpose.msra.mxu0 %v1523
        %1536 = vmatmul.bf16.gmra.mxu0 %v1517
        %v1537 = vpop.f32.mrf.mxu0
        %v1538 = vadd.f32 0.0, %v1537
        %v1539 = vpop.f32.mrf.mxu0
        %v1540 = vadd.f32 0.0, %v1539
        %1541 = vmatmul.bf16.gmra.mxu0 %v1520
        %v1542 = vpop.f32.mrf.mxu0
        %v1543 = vadd.f32 0.0, %v1542
        %v1544 = vpop.f32.mrf.mxu0
        %v1545 = vadd.f32 0.0, %v1544
        %1546 = vdwg.mxu0
        %v1551 = vunpack.c.l.b16 %v673
        %v1552 = vunpack.c.l.b16 %v674
        %v1553 = vunpack.c.l.b16 %v675
        %v1554 = vunpack.c.l.b16 %v676
        %v1555 = vpack.c.b16 %v1552, %v1551
        %v1556 = vpack.c.b16 %v1554, %v1553
        %v1561 = vunpack.c.l.b16 %v976
        %v1562 = vunpack.c.l.b16 %v977
        %v1563 = vunpack.c.l.b16 %v978
        %v1564 = vunpack.c.l.b16 %v979
        %v1565 = vpack.c.b16 %v1562, %v1561
        %v1566 = vpack.c.b16 %v1564, %v1563
        %v1568 = vsel %vm1311, %v1555, 0
        %v1571 = vsel %vm1311, %v1556, 0
        %v1574 = vsel %vm1311, %v1565, 0
        %v1577 = vsel %vm1311, %v1566, 0
        %1579 = vmatpush.bf16.xpose.msra.mxu0 0
        %1580 = vmatpush.bf16.xpose.msra.mxu0 0
        %1581 = vmatpush.bf16.xpose.msra.mxu0 0
        %1582 = vmatpush.bf16.xpose.msra.mxu0 0
        %1583 = vmatpush.bf16.xpose.msra.mxu0 0
        %1584 = vmatpush.bf16.xpose.msra.mxu0 0
        %1585 = vmatpush.bf16.xpose.msra.mxu0 %v1577
        %1586 = vmatpush.bf16.xpose.msra.mxu0 %v1574
        %1587 = vmatmul.bf16.gmra.mxu0 %v1568
        %v1588 = vpop.f32.mrf.mxu0
        %v1589 = vadd.f32 0.0, %v1588
        %v1590 = vpop.f32.mrf.mxu0
        %v1591 = vadd.f32 0.0, %v1590
        %1592 = vmatmul.bf16.gmra.mxu0 %v1571
        %v1593 = vpop.f32.mrf.mxu0
        %v1594 = vadd.f32 0.0, %v1593
        %v1595 = vpop.f32.mrf.mxu0
        %v1596 = vadd.f32 0.0, %v1595
        %1597 = vdwg.mxu0
        %v1602 = vunpack.c.l.b16 %v677
        %v1603 = vunpack.c.l.b16 %v678
        %v1604 = vunpack.c.l.b16 %v679
        %v1605 = vunpack.c.l.b16 %v680
        %v1606 = vpack.c.b16 %v1603, %v1602
        %v1607 = vpack.c.b16 %v1605, %v1604
        %v1612 = vunpack.c.l.b16 %v980
        %v1613 = vunpack.c.l.b16 %v981
        %v1614 = vunpack.c.l.b16 %v982
        %v1615 = vunpack.c.l.b16 %v983
        %v1616 = vpack.c.b16 %v1613, %v1612
        %v1617 = vpack.c.b16 %v1615, %v1614
        %v1619 = vsel %vm1311, %v1606, 0
        %v1622 = vsel %vm1311, %v1607, 0
        %v1625 = vsel %vm1311, %v1616, 0
        %v1628 = vsel %vm1311, %v1617, 0
        %1630 = vmatpush.bf16.xpose.msra.mxu0 0
        %1631 = vmatpush.bf16.xpose.msra.mxu0 0
        %1632 = vmatpush.bf16.xpose.msra.mxu0 0
        %1633 = vmatpush.bf16.xpose.msra.mxu0 0
        %1634 = vmatpush.bf16.xpose.msra.mxu0 0
        %1635 = vmatpush.bf16.xpose.msra.mxu0 0
        %1636 = vmatpush.bf16.xpose.msra.mxu0 %v1628
        %1637 = vmatpush.bf16.xpose.msra.mxu0 %v1625
        %1638 = vmatmul.bf16.gmra.mxu0 %v1619
        %v1639 = vpop.f32.mrf.mxu0
        %v1640 = vadd.f32 0.0, %v1639
        %v1641 = vpop.f32.mrf.mxu0
        %v1642 = vadd.f32 0.0, %v1641
        %1643 = vmatmul.bf16.gmra.mxu0 %v1622
        %v1644 = vpop.f32.mrf.mxu0
        %v1645 = vadd.f32 0.0, %v1644
        %v1646 = vpop.f32.mrf.mxu0
        %v1647 = vadd.f32 0.0, %v1646
        %1648 = vdwg.mxu0
        %v1653 = vunpack.c.l.b16 %v681
        %v1654 = vunpack.c.l.b16 %v682
        %v1655 = vunpack.c.l.b16 %v683
        %v1656 = vunpack.c.l.b16 %v684
        %v1657 = vpack.c.b16 %v1654, %v1653
        %v1658 = vpack.c.b16 %v1656, %v1655
        %v1663 = vunpack.c.l.b16 %v984
        %v1664 = vunpack.c.l.b16 %v985
        %v1665 = vunpack.c.l.b16 %v986
        %v1666 = vunpack.c.l.b16 %v987
        %v1667 = vpack.c.b16 %v1664, %v1663
        %v1668 = vpack.c.b16 %v1666, %v1665
        %v1670 = vsel %vm1311, %v1657, 0
        %v1673 = vsel %vm1311, %v1658, 0
        %v1676 = vsel %vm1311, %v1667, 0
        %v1679 = vsel %vm1311, %v1668, 0
        %1681 = vmatpush.bf16.xpose.msra.mxu0 0
        %1682 = vmatpush.bf16.xpose.msra.mxu0 0
        %1683 = vmatpush.bf16.xpose.msra.mxu0 0
        %1684 = vmatpush.bf16.xpose.msra.mxu0 0
        %1685 = vmatpush.bf16.xpose.msra.mxu0 0
        %1686 = vmatpush.bf16.xpose.msra.mxu0 0
        %1687 = vmatpush.bf16.xpose.msra.mxu0 %v1679
        %1688 = vmatpush.bf16.xpose.msra.mxu0 %v1676
        %1689 = vmatmul.bf16.gmra.mxu0 %v1670
        %v1690 = vpop.f32.mrf.mxu0
        %v1691 = vadd.f32 0.0, %v1690
        %v1692 = vpop.f32.mrf.mxu0
        %v1693 = vadd.f32 0.0, %v1692
        %1694 = vmatmul.bf16.gmra.mxu0 %v1673
        %v1695 = vpop.f32.mrf.mxu0
        %v1696 = vadd.f32 0.0, %v1695
        %v1697 = vpop.f32.mrf.mxu0
        %v1698 = vadd.f32 0.0, %v1697
        %1699 = vdwg.mxu0
        %v1700 = vsel %vm483, %v1334, -inf
        %1701 = vmax.xlane.f32.xlu0 %v1700
        %v1702 = vpop.xlane.xlu0 %1701
        %v1703 = vsel %vm483, %v1336, -inf
        %1704 = vmax.xlane.f32.xlu0 %v1703
        %v1705 = vpop.xlane.xlu0 %1704
        %v1706 = vsel %vm483, %v1339, -inf
        %1707 = vmax.xlane.f32.xlu0 %v1706
        %v1708 = vpop.xlane.xlu0 %1707
        %v1709 = vsel %vm483, %v1341, -inf
        %1710 = vmax.xlane.f32.xlu0 %v1709
        %v1711 = vpop.xlane.xlu0 %1710
        %v1712 = vsel %vm483, %v1385, -inf
        %1713 = vmax.xlane.f32.xlu0 %v1712
        %v1714 = vpop.xlane.xlu0 %1713
        %v1715 = vsel %vm483, %v1387, -inf
        %1716 = vmax.xlane.f32.xlu0 %v1715
        %v1717 = vpop.xlane.xlu0 %1716
        %v1718 = vsel %vm483, %v1390, -inf
        %1719 = vmax.xlane.f32.xlu0 %v1718
        %v1720 = vpop.xlane.xlu0 %1719
        %v1721 = vsel %vm483, %v1392, -inf
        %1722 = vmax.xlane.f32.xlu0 %v1721
        %v1723 = vpop.xlane.xlu0 %1722
        %v1724 = vsel %vm483, %v1436, -inf
        %1725 = vmax.xlane.f32.xlu0 %v1724
        %v1726 = vpop.xlane.xlu0 %1725
        %v1727 = vsel %vm483, %v1438, -inf
        %1728 = vmax.xlane.f32.xlu0 %v1727
        %v1729 = vpop.xlane.xlu0 %1728
        %v1730 = vsel %vm483, %v1441, -inf
        %1731 = vmax.xlane.f32.xlu0 %v1730
        %v1732 = vpop.xlane.xlu0 %1731
        %v1733 = vsel %vm483, %v1443, -inf
        %1734 = vmax.xlane.f32.xlu0 %v1733
        %v1735 = vpop.xlane.xlu0 %1734
        %v1736 = vsel %vm483, %v1487, -inf
        %1737 = vmax.xlane.f32.xlu0 %v1736
        %v1738 = vpop.xlane.xlu0 %1737
        %v1739 = vsel %vm483, %v1489, -inf
        %1740 = vmax.xlane.f32.xlu0 %v1739
        %v1741 = vpop.xlane.xlu0 %1740
        %v1742 = vsel %vm483, %v1492, -inf
        %1743 = vmax.xlane.f32.xlu0 %v1742
        %v1744 = vpop.xlane.xlu0 %1743
        %v1745 = vsel %vm483, %v1494, -inf
        %1746 = vmax.xlane.f32.xlu0 %v1745
        %v1747 = vpop.xlane.xlu0 %1746
        %v1748 = vsel %vm483, %v1538, -inf
        %1749 = vmax.xlane.f32.xlu0 %v1748
        %v1750 = vpop.xlane.xlu0 %1749
        %v1751 = vsel %vm483, %v1540, -inf
        %1752 = vmax.xlane.f32.xlu0 %v1751
        %v1753 = vpop.xlane.xlu0 %1752
        %v1754 = vsel %vm483, %v1543, -inf
        %1755 = vmax.xlane.f32.xlu0 %v1754
        %v1756 = vpop.xlane.xlu0 %1755
        %v1757 = vsel %vm483, %v1545, -inf
        %1758 = vmax.xlane.f32.xlu0 %v1757
        %v1759 = vpop.xlane.xlu0 %1758
        %v1760 = vsel %vm483, %v1589, -inf
        %1761 = vmax.xlane.f32.xlu0 %v1760
        %v1762 = vpop.xlane.xlu0 %1761
        %v1763 = vsel %vm483, %v1591, -inf
        %1764 = vmax.xlane.f32.xlu0 %v1763
        %v1765 = vpop.xlane.xlu0 %1764
        %v1766 = vsel %vm483, %v1594, -inf
        %1767 = vmax.xlane.f32.xlu0 %v1766
        %v1768 = vpop.xlane.xlu0 %1767
        %v1769 = vsel %vm483, %v1596, -inf
        %1770 = vmax.xlane.f32.xlu0 %v1769
        %v1771 = vpop.xlane.xlu0 %1770
        %v1772 = vsel %vm483, %v1640, -inf
        %1773 = vmax.xlane.f32.xlu0 %v1772
        %v1774 = vpop.xlane.xlu0 %1773
        %v1775 = vsel %vm483, %v1642, -inf
        %1776 = vmax.xlane.f32.xlu0 %v1775
        %v1777 = vpop.xlane.xlu0 %1776
        %v1778 = vsel %vm483, %v1645, -inf
        %1779 = vmax.xlane.f32.xlu0 %v1778
        %v1780 = vpop.xlane.xlu0 %1779
        %v1781 = vsel %vm483, %v1647, -inf
        %1782 = vmax.xlane.f32.xlu0 %v1781
        %v1783 = vpop.xlane.xlu0 %1782
        %v1784 = vsel %vm483, %v1691, -inf
        %1785 = vmax.xlane.f32.xlu0 %v1784
        %v1786 = vpop.xlane.xlu0 %1785
        %v1787 = vsel %vm483, %v1693, -inf
        %1788 = vmax.xlane.f32.xlu0 %v1787
        %v1789 = vpop.xlane.xlu0 %1788
        %v1790 = vsel %vm483, %v1696, -inf
        %1791 = vmax.xlane.f32.xlu0 %v1790
        %v1792 = vpop.xlane.xlu0 %1791
        %v1793 = vsel %vm483, %v1698, -inf
        %1794 = vmax.xlane.f32.xlu0 %v1793
        %v1795 = vpop.xlane.xlu0 %1794
        %v1796 = vsub.f32 %v1334, %v1702
        %v1797 = vsub.f32 %v1336, %v1705
        %v1798 = vsub.f32 %v1339, %v1708
        %v1799 = vsub.f32 %v1341, %v1711
        %v1800 = vsub.f32 %v1385, %v1714
        %v1801 = vsub.f32 %v1387, %v1717
        %v1802 = vsub.f32 %v1390, %v1720
        %v1803 = vsub.f32 %v1392, %v1723
        %v1804 = vsub.f32 %v1436, %v1726
        %v1805 = vsub.f32 %v1438, %v1729
        %v1806 = vsub.f32 %v1441, %v1732
        %v1807 = vsub.f32 %v1443, %v1735
        %v1808 = vsub.f32 %v1487, %v1738
        %v1809 = vsub.f32 %v1489, %v1741
        %v1810 = vsub.f32 %v1492, %v1744
        %v1811 = vsub.f32 %v1494, %v1747
        %v1812 = vsub.f32 %v1538, %v1750
        %v1813 = vsub.f32 %v1540, %v1753
        %v1814 = vsub.f32 %v1543, %v1756
        %v1815 = vsub.f32 %v1545, %v1759
        %v1816 = vsub.f32 %v1589, %v1762
        %v1817 = vsub.f32 %v1591, %v1765
        %v1818 = vsub.f32 %v1594, %v1768
        %v1819 = vsub.f32 %v1596, %v1771
        %v1820 = vsub.f32 %v1640, %v1774
        %v1821 = vsub.f32 %v1642, %v1777
        %v1822 = vsub.f32 %v1645, %v1780
        %v1823 = vsub.f32 %v1647, %v1783
        %v1824 = vsub.f32 %v1691, %v1786
        %v1825 = vsub.f32 %v1693, %v1789
        %v1826 = vsub.f32 %v1696, %v1792
        %v1827 = vsub.f32 %v1698, %v1795
        %v1828 = vmul.f32 %v1796, 1.442695
        %v1829 = vpow.pop %v1828
        %v1830 = vmul.f32 %v1797, 1.442695
        %v1831 = vpow.pop %v1830
        %v1832 = vmul.f32 %v1798, 1.442695
        %v1833 = vpow.pop %v1832
        %v1834 = vmul.f32 %v1799, 1.442695
        %v1835 = vpow.pop %v1834
        %v1836 = vmul.f32 %v1800, 1.442695
        %v1837 = vpow.pop %v1836
        %v1838 = vmul.f32 %v1801, 1.442695
        %v1839 = vpow.pop %v1838
        %v1840 = vmul.f32 %v1802, 1.442695
        %v1841 = vpow.pop %v1840
        %v1842 = vmul.f32 %v1803, 1.442695
        %v1843 = vpow.pop %v1842
        %v1844 = vmul.f32 %v1804, 1.442695
        %v1845 = vpow.pop %v1844
        %v1846 = vmul.f32 %v1805, 1.442695
        %v1847 = vpow.pop %v1846
        %v1848 = vmul.f32 %v1806, 1.442695
        %v1849 = vpow.pop %v1848
        %v1850 = vmul.f32 %v1807, 1.442695
        %v1851 = vpow.pop %v1850
        %v1852 = vmul.f32 %v1808, 1.442695
        %v1853 = vpow.pop %v1852
        %v1854 = vmul.f32 %v1809, 1.442695
        %v1855 = vpow.pop %v1854
        %v1856 = vmul.f32 %v1810, 1.442695
        %v1857 = vpow.pop %v1856
        %v1858 = vmul.f32 %v1811, 1.442695
        %v1859 = vpow.pop %v1858
        %v1860 = vmul.f32 %v1812, 1.442695
        %v1861 = vpow.pop %v1860
        %v1862 = vmul.f32 %v1813, 1.442695
        %v1863 = vpow.pop %v1862
        %v1864 = vmul.f32 %v1814, 1.442695
        %v1865 = vpow.pop %v1864
        %v1866 = vmul.f32 %v1815, 1.442695
        %v1867 = vpow.pop %v1866
        %v1868 = vmul.f32 %v1816, 1.442695
        %v1869 = vpow.pop %v1868
        %v1870 = vmul.f32 %v1817, 1.442695
        %v1871 = vpow.pop %v1870
        %v1872 = vmul.f32 %v1818, 1.442695
        %v1873 = vpow.pop %v1872
        %v1874 = vmul.f32 %v1819, 1.442695
        %v1875 = vpow.pop %v1874
        %v1876 = vmul.f32 %v1820, 1.442695
        %v1877 = vpow.pop %v1876
        %v1878 = vmul.f32 %v1821, 1.442695
        %v1879 = vpow.pop %v1878
        %v1880 = vmul.f32 %v1822, 1.442695
        %v1881 = vpow.pop %v1880
        %v1882 = vmul.f32 %v1823, 1.442695
        %v1883 = vpow.pop %v1882
        %v1884 = vmul.f32 %v1824, 1.442695
        %v1885 = vpow.pop %v1884
        %v1886 = vmul.f32 %v1825, 1.442695
        %v1887 = vpow.pop %v1886
        %v1888 = vmul.f32 %v1826, 1.442695
        %v1889 = vpow.pop %v1888
        %v1890 = vmul.f32 %v1827, 1.442695
        %v1891 = vpow.pop %v1890
        %v1892 = vsel %vm483, %v1829, 0.0
        %1893 = vadd.xlane.f32.xlu0 %v1892
        %v1894 = vpop.xlane.xlu0 %1893
        %v1895 = vsel %vm483, %v1831, 0.0
        %1896 = vadd.xlane.f32.xlu0 %v1895
        %v1897 = vpop.xlane.xlu0 %1896
        %v1898 = vsel %vm483, %v1833, 0.0
        %1899 = vadd.xlane.f32.xlu0 %v1898
        %v1900 = vpop.xlane.xlu0 %1899
        %v1901 = vsel %vm483, %v1835, 0.0
        %1902 = vadd.xlane.f32.xlu0 %v1901
        %v1903 = vpop.xlane.xlu0 %1902
        %v1904 = vsel %vm483, %v1837, 0.0
        %1905 = vadd.xlane.f32.xlu0 %v1904
        %v1906 = vpop.xlane.xlu0 %1905
        %v1907 = vsel %vm483, %v1839, 0.0
        %1908 = vadd.xlane.f32.xlu0 %v1907
        %v1909 = vpop.xlane.xlu0 %1908
        %v1910 = vsel %vm483, %v1841, 0.0
        %1911 = vadd.xlane.f32.xlu0 %v1910
        %v1912 = vpop.xlane.xlu0 %1911
        %v1913 = vsel %vm483, %v1843, 0.0
        %1914 = vadd.xlane.f32.xlu0 %v1913
        %v1915 = vpop.xlane.xlu0 %1914
        %v1916 = vsel %vm483, %v1845, 0.0
        %1917 = vadd.xlane.f32.xlu0 %v1916
        %v1918 = vpop.xlane.xlu0 %1917
        %v1919 = vsel %vm483, %v1847, 0.0
        %1920 = vadd.xlane.f32.xlu0 %v1919
        %v1921 = vpop.xlane.xlu0 %1920
        %v1922 = vsel %vm483, %v1849, 0.0
        %1923 = vadd.xlane.f32.xlu0 %v1922
        %v1924 = vpop.xlane.xlu0 %1923
        %v1925 = vsel %vm483, %v1851, 0.0
        %1926 = vadd.xlane.f32.xlu0 %v1925
        %v1927 = vpop.xlane.xlu0 %1926
        %v1928 = vsel %vm483, %v1853, 0.0
        %1929 = vadd.xlane.f32.xlu0 %v1928
        %v1930 = vpop.xlane.xlu0 %1929
        %v1931 = vsel %vm483, %v1855, 0.0
        %1932 = vadd.xlane.f32.xlu0 %v1931
        %v1933 = vpop.xlane.xlu0 %1932
        %v1934 = vsel %vm483, %v1857, 0.0
        %1935 = vadd.xlane.f32.xlu0 %v1934
        %v1936 = vpop.xlane.xlu0 %1935
        %v1937 = vsel %vm483, %v1859, 0.0
        %1938 = vadd.xlane.f32.xlu0 %v1937
        %v1939 = vpop.xlane.xlu0 %1938
        %v1940 = vsel %vm483, %v1861, 0.0
        %1941 = vadd.xlane.f32.xlu0 %v1940
        %v1942 = vpop.xlane.xlu0 %1941
        %v1943 = vsel %vm483, %v1863, 0.0
        %1944 = vadd.xlane.f32.xlu0 %v1943
        %v1945 = vpop.xlane.xlu0 %1944
        %v1946 = vsel %vm483, %v1865, 0.0
        %1947 = vadd.xlane.f32.xlu0 %v1946
        %v1948 = vpop.xlane.xlu0 %1947
        %v1949 = vsel %vm483, %v1867, 0.0
        %1950 = vadd.xlane.f32.xlu0 %v1949
        %v1951 = vpop.xlane.xlu0 %1950
        %v1952 = vsel %vm483, %v1869, 0.0
        %1953 = vadd.xlane.f32.xlu0 %v1952
        %v1954 = vpop.xlane.xlu0 %1953
        %v1955 = vsel %vm483, %v1871, 0.0
        %1956 = vadd.xlane.f32.xlu0 %v1955
        %v1957 = vpop.xlane.xlu0 %1956
        %v1958 = vsel %vm483, %v1873, 0.0
        %1959 = vadd.xlane.f32.xlu0 %v1958
        %v1960 = vpop.xlane.xlu0 %1959
        %v1961 = vsel %vm483, %v1875, 0.0
        %1962 = vadd.xlane.f32.xlu0 %v1961
        %v1963 = vpop.xlane.xlu0 %1962
        %v1964 = vsel %vm483, %v1877, 0.0
        %1965 = vadd.xlane.f32.xlu0 %v1964
        %v1966 = vpop.xlane.xlu0 %1965
        %v1967 = vsel %vm483, %v1879, 0.0
        %1968 = vadd.xlane.f32.xlu0 %v1967
        %v1969 = vpop.xlane.xlu0 %1968
        %v1970 = vsel %vm483, %v1881, 0.0
        %1971 = vadd.xlane.f32.xlu0 %v1970
        %v1972 = vpop.xlane.xlu0 %1971
        %v1973 = vsel %vm483, %v1883, 0.0
        %1974 = vadd.xlane.f32.xlu0 %v1973
        %v1975 = vpop.xlane.xlu0 %1974
        %v1976 = vsel %vm483, %v1885, 0.0
        %1977 = vadd.xlane.f32.xlu0 %v1976
        %v1978 = vpop.xlane.xlu0 %1977
        %v1979 = vsel %vm483, %v1887, 0.0
        %1980 = vadd.xlane.f32.xlu0 %v1979
        %v1981 = vpop.xlane.xlu0 %1980
        %v1982 = vsel %vm483, %v1889, 0.0
        %1983 = vadd.xlane.f32.xlu0 %v1982
        %v1984 = vpop.xlane.xlu0 %1983
        %v1985 = vsel %vm483, %v1891, 0.0
        %1986 = vadd.xlane.f32.xlu0 %v1985
        %v1987 = vpop.xlane.xlu0 %1986
        %v1988 = vrcp.pop %v1894
        %v1989 = vrcp.pop %v1897
        %v1990 = vrcp.pop %v1900
        %v1991 = vrcp.pop %v1903
        %v1992 = vrcp.pop %v1906
        %v1993 = vrcp.pop %v1909
        %v1994 = vrcp.pop %v1912
        %v1995 = vrcp.pop %v1915
        %v1996 = vrcp.pop %v1918
        %v1997 = vrcp.pop %v1921
        %v1998 = vrcp.pop %v1924
        %v1999 = vrcp.pop %v1927
        %v2000 = vrcp.pop %v1930
        %v2001 = vrcp.pop %v1933
        %v2002 = vrcp.pop %v1936
        %v2003 = vrcp.pop %v1939
        %v2004 = vrcp.pop %v1942
        %v2005 = vrcp.pop %v1945
        %v2006 = vrcp.pop %v1948
        %v2007 = vrcp.pop %v1951
        %v2008 = vrcp.pop %v1954
        %v2009 = vrcp.pop %v1957
        %v2010 = vrcp.pop %v1960
        %v2011 = vrcp.pop %v1963
        %v2012 = vrcp.pop %v1966
        %v2013 = vrcp.pop %v1969
        %v2014 = vrcp.pop %v1972
        %v2015 = vrcp.pop %v1975
        %v2016 = vrcp.pop %v1978
        %v2017 = vrcp.pop %v1981
        %v2018 = vrcp.pop %v1984
        %v2019 = vrcp.pop %v1987
        %v2020 = vmul.f32 %v1829, %v1988
        %v2021 = vmul.f32 %v1831, %v1989
        %v2022 = vmul.f32 %v1833, %v1990
        %v2023 = vmul.f32 %v1835, %v1991
        %v2024 = vmul.f32 %v1837, %v1992
        %v2025 = vmul.f32 %v1839, %v1993
        %v2026 = vmul.f32 %v1841, %v1994
        %v2027 = vmul.f32 %v1843, %v1995
        %v2028 = vmul.f32 %v1845, %v1996
        %v2029 = vmul.f32 %v1847, %v1997
        %v2030 = vmul.f32 %v1849, %v1998
        %v2031 = vmul.f32 %v1851, %v1999
        %v2032 = vmul.f32 %v1853, %v2000
        %v2033 = vmul.f32 %v1855, %v2001
        %v2034 = vmul.f32 %v1857, %v2002
        %v2035 = vmul.f32 %v1859, %v2003
        %v2036 = vmul.f32 %v1861, %v2004
        %v2037 = vmul.f32 %v1863, %v2005
        %v2038 = vmul.f32 %v1865, %v2006
        %v2039 = vmul.f32 %v1867, %v2007
        %v2040 = vmul.f32 %v1869, %v2008
        %v2041 = vmul.f32 %v1871, %v2009
        %v2042 = vmul.f32 %v1873, %v2010
        %v2043 = vmul.f32 %v1875, %v2011
        %v2044 = vmul.f32 %v1877, %v2012
        %v2045 = vmul.f32 %v1879, %v2013
        %v2046 = vmul.f32 %v1881, %v2014
        %v2047 = vmul.f32 %v1883, %v2015
        %v2048 = vmul.f32 %v1885, %v2016
        %v2049 = vmul.f32 %v1887, %v2017
        %v2050 = vmul.f32 %v1889, %v2018
        %v2051 = vmul.f32 %v1891, %v2019
        %v2052 = vpack.c.bf16 %v2020, %v2020
        %v2053 = vpack.c.bf16 %v2021, %v2021
        %v2054 = vpack.c.bf16 %v2022, %v2022
        %v2055 = vpack.c.bf16 %v2023, %v2023
        %v2056 = vpack.c.bf16 %v2024, %v2024
        %v2057 = vpack.c.bf16 %v2025, %v2025
        %v2058 = vpack.c.bf16 %v2026, %v2026
        %v2059 = vpack.c.bf16 %v2027, %v2027
        %v2060 = vpack.c.bf16 %v2028, %v2028
        %v2061 = vpack.c.bf16 %v2029, %v2029
        %v2062 = vpack.c.bf16 %v2030, %v2030
        %v2063 = vpack.c.bf16 %v2031, %v2031
        %v2064 = vpack.c.bf16 %v2032, %v2032
        %v2065 = vpack.c.bf16 %v2033, %v2033
        %v2066 = vpack.c.bf16 %v2034, %v2034
        %v2067 = vpack.c.bf16 %v2035, %v2035
        %v2068 = vpack.c.bf16 %v2036, %v2036
        %v2069 = vpack.c.bf16 %v2037, %v2037
        %v2070 = vpack.c.bf16 %v2038, %v2038
        %v2071 = vpack.c.bf16 %v2039, %v2039
        %v2072 = vpack.c.bf16 %v2040, %v2040
        %v2073 = vpack.c.bf16 %v2041, %v2041
        %v2074 = vpack.c.bf16 %v2042, %v2042
        %v2075 = vpack.c.bf16 %v2043, %v2043
        %v2076 = vpack.c.bf16 %v2044, %v2044
        %v2077 = vpack.c.bf16 %v2045, %v2045
        %v2078 = vpack.c.bf16 %v2046, %v2046
        %v2079 = vpack.c.bf16 %v2047, %v2047
        %v2080 = vpack.c.bf16 %v2048, %v2048
        %v2081 = vpack.c.bf16 %v2049, %v2049
        %v2082 = vpack.c.bf16 %v2050, %v2050
        %v2083 = vpack.c.bf16 %v2051, %v2051
        %v2088 = vunpack.c.l.b16 %v2052
        %v2089 = vunpack.c.l.b16 %v2053
        %v2090 = vunpack.c.l.b16 %v2054
        %v2091 = vunpack.c.l.b16 %v2055
        %v2092 = vpack.c.b16 %v2089, %v2088
        %v2093 = vpack.c.b16 %v2091, %v2090
        %v2098 = vunpack.c.l.b16 %v1259
        %v2099 = vunpack.c.l.b16 %v1260
        %v2100 = vunpack.c.l.b16 %v1261
        %v2101 = vunpack.c.l.b16 %v1262
        %v2102 = vpack.c.b16 %v2099, %v2098
        %v2103 = vpack.c.b16 %v2101, %v2100
        %v2107 = vsel %vm483, %v2092, 0
        %v2110 = vsel %vm483, %v2093, 0
        %2112 = vmatpush.bf16.msra.mxu0 0
        %2113 = vmatpush.bf16.msra.mxu0 0
        %2114 = vmatpush.bf16.msra.mxu0 0
        %2115 = vmatpush.bf16.msra.mxu0 0
        %2116 = vmatpush.bf16.msra.mxu0 0
        %2117 = vmatpush.bf16.msra.mxu0 0
        %2118 = vmatpush.bf16.msra.mxu0 %v2103
        %2119 = vmatpush.bf16.msra.mxu0 %v2102
        %2120 = vmatmul.bf16.gmra.mxu0 %v2107
        %v2121 = vpop.f32.mrf.mxu0
        %v2122 = vadd.f32 0.0, %v2121
        %v2123 = vpop.f32.mrf.mxu0
        %v2124 = vadd.f32 0.0, %v2123
        %2125 = vmatmul.bf16.gmra.mxu0 %v2110
        %v2126 = vpop.f32.mrf.mxu0
        %v2127 = vadd.f32 0.0, %v2126
        %v2128 = vpop.f32.mrf.mxu0
        %v2129 = vadd.f32 0.0, %v2128
        %2130 = vdwg.mxu0
        %v2135 = vunpack.c.l.b16 %v2056
        %v2136 = vunpack.c.l.b16 %v2057
        %v2137 = vunpack.c.l.b16 %v2058
        %v2138 = vunpack.c.l.b16 %v2059
        %v2139 = vpack.c.b16 %v2136, %v2135
        %v2140 = vpack.c.b16 %v2138, %v2137
        %v2145 = vunpack.c.l.b16 %v1263
        %v2146 = vunpack.c.l.b16 %v1264
        %v2147 = vunpack.c.l.b16 %v1265
        %v2148 = vunpack.c.l.b16 %v1266
        %v2149 = vpack.c.b16 %v2146, %v2145
        %v2150 = vpack.c.b16 %v2148, %v2147
        %v2154 = vsel %vm483, %v2139, 0
        %v2157 = vsel %vm483, %v2140, 0
        %2159 = vmatpush.bf16.msra.mxu0 0
        %2160 = vmatpush.bf16.msra.mxu0 0
        %2161 = vmatpush.bf16.msra.mxu0 0
        %2162 = vmatpush.bf16.msra.mxu0 0
        %2163 = vmatpush.bf16.msra.mxu0 0
        %2164 = vmatpush.bf16.msra.mxu0 0
        %2165 = vmatpush.bf16.msra.mxu0 %v2150
        %2166 = vmatpush.bf16.msra.mxu0 %v2149
        %2167 = vmatmul.bf16.gmra.mxu0 %v2154
        %v2168 = vpop.f32.mrf.mxu0
        %v2169 = vadd.f32 0.0, %v2168
        %v2170 = vpop.f32.mrf.mxu0
        %v2171 = vadd.f32 0.0, %v2170
        %2172 = vmatmul.bf16.gmra.mxu0 %v2157
        %v2173 = vpop.f32.mrf.mxu0
        %v2174 = vadd.f32 0.0, %v2173
        %v2175 = vpop.f32.mrf.mxu0
        %v2176 = vadd.f32 0.0, %v2175
        %2177 = vdwg.mxu0
        %v2182 = vunpack.c.l.b16 %v2060
        %v2183 = vunpack.c.l.b16 %v2061
        %v2184 = vunpack.c.l.b16 %v2062
        %v2185 = vunpack.c.l.b16 %v2063
        %v2186 = vpack.c.b16 %v2183, %v2182
        %v2187 = vpack.c.b16 %v2185, %v2184
        %v2192 = vunpack.c.l.b16 %v1267
        %v2193 = vunpack.c.l.b16 %v1268
        %v2194 = vunpack.c.l.b16 %v1269
        %v2195 = vunpack.c.l.b16 %v1270
        %v2196 = vpack.c.b16 %v2193, %v2192
        %v2197 = vpack.c.b16 %v2195, %v2194
        %v2201 = vsel %vm483, %v2186, 0
        %v2204 = vsel %vm483, %v2187, 0
        %2206 = vmatpush.bf16.msra.mxu0 0
        %2207 = vmatpush.bf16.msra.mxu0 0
        %2208 = vmatpush.bf16.msra.mxu0 0
        %2209 = vmatpush.bf16.msra.mxu0 0
        %2210 = vmatpush.bf16.msra.mxu0 0
        %2211 = vmatpush.bf16.msra.mxu0 0
        %2212 = vmatpush.bf16.msra.mxu0 %v2197
        %2213 = vmatpush.bf16.msra.mxu0 %v2196
        %2214 = vmatmul.bf16.gmra.mxu0 %v2201
        %v2215 = vpop.f32.mrf.mxu0
        %v2216 = vadd.f32 0.0, %v2215
        %v2217 = vpop.f32.mrf.mxu0
        %v2218 = vadd.f32 0.0, %v2217
        %2219 = vmatmul.bf16.gmra.mxu0 %v2204
        %v2220 = vpop.f32.mrf.mxu0
        %v2221 = vadd.f32 0.0, %v2220
        %v2222 = vpop.f32.mrf.mxu0
        %v2223 = vadd.f32 0.0, %v2222
        %2224 = vdwg.mxu0
        %v2229 = vunpack.c.l.b16 %v2064
        %v2230 = vunpack.c.l.b16 %v2065
        %v2231 = vunpack.c.l.b16 %v2066
        %v2232 = vunpack.c.l.b16 %v2067
        %v2233 = vpack.c.b16 %v2230, %v2229
        %v2234 = vpack.c.b16 %v2232, %v2231
        %v2239 = vunpack.c.l.b16 %v1271
        %v2240 = vunpack.c.l.b16 %v1272
        %v2241 = vunpack.c.l.b16 %v1273
        %v2242 = vunpack.c.l.b16 %v1274
        %v2243 = vpack.c.b16 %v2240, %v2239
        %v2244 = vpack.c.b16 %v2242, %v2241
        %v2248 = vsel %vm483, %v2233, 0
        %v2251 = vsel %vm483, %v2234, 0
        %2253 = vmatpush.bf16.msra.mxu0 0
        %2254 = vmatpush.bf16.msra.mxu0 0
        %2255 = vmatpush.bf16.msra.mxu0 0
        %2256 = vmatpush.bf16.msra.mxu0 0
        %2257 = vmatpush.bf16.msra.mxu0 0
        %2258 = vmatpush.bf16.msra.mxu0 0
        %2259 = vmatpush.bf16.msra.mxu0 %v2244
        %2260 = vmatpush.bf16.msra.mxu0 %v2243
        %2261 = vmatmul.bf16.gmra.mxu0 %v2248
        %v2262 = vpop.f32.mrf.mxu0
        %v2263 = vadd.f32 0.0, %v2262
        %v2264 = vpop.f32.mrf.mxu0
        %v2265 = vadd.f32 0.0, %v2264
        %2266 = vmatmul.bf16.gmra.mxu0 %v2251
        %v2267 = vpop.f32.mrf.mxu0
        %v2268 = vadd.f32 0.0, %v2267
        %v2269 = vpop.f32.mrf.mxu0
        %v2270 = vadd.f32 0.0, %v2269
        %2271 = vdwg.mxu0
        %v2276 = vunpack.c.l.b16 %v2068
        %v2277 = vunpack.c.l.b16 %v2069
        %v2278 = vunpack.c.l.b16 %v2070
        %v2279 = vunpack.c.l.b16 %v2071
        %v2280 = vpack.c.b16 %v2277, %v2276
        %v2281 = vpack.c.b16 %v2279, %v2278
        %v2286 = vunpack.c.l.b16 %v1275
        %v2287 = vunpack.c.l.b16 %v1276
        %v2288 = vunpack.c.l.b16 %v1277
        %v2289 = vunpack.c.l.b16 %v1278
        %v2290 = vpack.c.b16 %v2287, %v2286
        %v2291 = vpack.c.b16 %v2289, %v2288
        %v2295 = vsel %vm483, %v2280, 0
        %v2298 = vsel %vm483, %v2281, 0
        %2300 = vmatpush.bf16.msra.mxu0 0
        %2301 = vmatpush.bf16.msra.mxu0 0
        %2302 = vmatpush.bf16.msra.mxu0 0
        %2303 = vmatpush.bf16.msra.mxu0 0
        %2304 = vmatpush.bf16.msra.mxu0 0
        %2305 = vmatpush.bf16.msra.mxu0 0
        %2306 = vmatpush.bf16.msra.mxu0 %v2291
        %2307 = vmatpush.bf16.msra.mxu0 %v2290
        %2308 = vmatmul.bf16.gmra.mxu0 %v2295
        %v2309 = vpop.f32.mrf.mxu0
        %v2310 = vadd.f32 0.0, %v2309
        %v2311 = vpop.f32.mrf.mxu0
        %v2312 = vadd.f32 0.0, %v2311
        %2313 = vmatmul.bf16.gmra.mxu0 %v2298
        %v2314 = vpop.f32.mrf.mxu0
        %v2315 = vadd.f32 0.0, %v2314
        %v2316 = vpop.f32.mrf.mxu0
        %v2317 = vadd.f32 0.0, %v2316
        %2318 = vdwg.mxu0
        %v2323 = vunpack.c.l.b16 %v2072
        %v2324 = vunpack.c.l.b16 %v2073
        %v2325 = vunpack.c.l.b16 %v2074
        %v2326 = vunpack.c.l.b16 %v2075
        %v2327 = vpack.c.b16 %v2324, %v2323
        %v2328 = vpack.c.b16 %v2326, %v2325
        %v2333 = vunpack.c.l.b16 %v1279
        %v2334 = vunpack.c.l.b16 %v1280
        %v2335 = vunpack.c.l.b16 %v1281
        %v2336 = vunpack.c.l.b16 %v1282
        %v2337 = vpack.c.b16 %v2334, %v2333
        %v2338 = vpack.c.b16 %v2336, %v2335
        %v2342 = vsel %vm483, %v2327, 0
        %v2345 = vsel %vm483, %v2328, 0
        %2347 = vmatpush.bf16.msra.mxu0 0
        %2348 = vmatpush.bf16.msra.mxu0 0
        %2349 = vmatpush.bf16.msra.mxu0 0
        %2350 = vmatpush.bf16.msra.mxu0 0
        %2351 = vmatpush.bf16.msra.mxu0 0
        %2352 = vmatpush.bf16.msra.mxu0 0
        %2353 = vmatpush.bf16.msra.mxu0 %v2338
        %2354 = vmatpush.bf16.msra.mxu0 %v2337
        %2355 = vmatmul.bf16.gmra.mxu0 %v2342
        %v2356 = vpop.f32.mrf.mxu0
        %v2357 = vadd.f32 0.0, %v2356
        %v2358 = vpop.f32.mrf.mxu0
        %v2359 = vadd.f32 0.0, %v2358
        %2360 = vmatmul.bf16.gmra.mxu0 %v2345
        %v2361 = vpop.f32.mrf.mxu0
        %v2362 = vadd.f32 0.0, %v2361
        %v2363 = vpop.f32.mrf.mxu0
        %v2364 = vadd.f32 0.0, %v2363
        %2365 = vdwg.mxu0
        %v2370 = vunpack.c.l.b16 %v2076
        %v2371 = vunpack.c.l.b16 %v2077
        %v2372 = vunpack.c.l.b16 %v2078
        %v2373 = vunpack.c.l.b16 %v2079
        %v2374 = vpack.c.b16 %v2371, %v2370
        %v2375 = vpack.c.b16 %v2373, %v2372
        %v2380 = vunpack.c.l.b16 %v1283
        %v2381 = vunpack.c.l.b16 %v1284
        %v2382 = vunpack.c.l.b16 %v1285
        %v2383 = vunpack.c.l.b16 %v1286
        %v2384 = vpack.c.b16 %v2381, %v2380
        %v2385 = vpack.c.b16 %v2383, %v2382
        %v2389 = vsel %vm483, %v2374, 0
        %v2392 = vsel %vm483, %v2375, 0
        %2394 = vmatpush.bf16.msra.mxu0 0
        %2395 = vmatpush.bf16.msra.mxu0 0
        %2396 = vmatpush.bf16.msra.mxu0 0
        %2397 = vmatpush.bf16.msra.mxu0 0
        %2398 = vmatpush.bf16.msra.mxu0 0
        %2399 = vmatpush.bf16.msra.mxu0 0
        %2400 = vmatpush.bf16.msra.mxu0 %v2385
        %2401 = vmatpush.bf16.msra.mxu0 %v2384
        %2402 = vmatmul.bf16.gmra.mxu0 %v2389
        %v2403 = vpop.f32.mrf.mxu0
        %v2404 = vadd.f32 0.0, %v2403
        %v2405 = vpop.f32.mrf.mxu0
        %v2406 = vadd.f32 0.0, %v2405
        %2407 = vmatmul.bf16.gmra.mxu0 %v2392
        %v2408 = vpop.f32.mrf.mxu0
        %v2409 = vadd.f32 0.0, %v2408
        %v2410 = vpop.f32.mrf.mxu0
        %v2411 = vadd.f32 0.0, %v2410
        %2412 = vdwg.mxu0
        %v2417 = vunpack.c.l.b16 %v2080
        %v2418 = vunpack.c.l.b16 %v2081
        %v2419 = vunpack.c.l.b16 %v2082
        %v2420 = vunpack.c.l.b16 %v2083
        %v2421 = vpack.c.b16 %v2418, %v2417
        %v2422 = vpack.c.b16 %v2420, %v2419
        %v2427 = vunpack.c.l.b16 %v1287
        %v2428 = vunpack.c.l.b16 %v1288
        %v2429 = vunpack.c.l.b16 %v1289
        %v2430 = vunpack.c.l.b16 %v1290
        %v2431 = vpack.c.b16 %v2428, %v2427
        %v2432 = vpack.c.b16 %v2430, %v2429
        %v2436 = vsel %vm483, %v2421, 0
        %v2439 = vsel %vm483, %v2422, 0
        %2441 = vmatpush.bf16.msra.mxu0 0
        %2442 = vmatpush.bf16.msra.mxu0 0
        %2443 = vmatpush.bf16.msra.mxu0 0
        %2444 = vmatpush.bf16.msra.mxu0 0
        %2445 = vmatpush.bf16.msra.mxu0 0
        %2446 = vmatpush.bf16.msra.mxu0 0
        %2447 = vmatpush.bf16.msra.mxu0 %v2432
        %2448 = vmatpush.bf16.msra.mxu0 %v2431
        %2449 = vmatmul.bf16.gmra.mxu0 %v2436
        %v2450 = vpop.f32.mrf.mxu0
        %v2451 = vadd.f32 0.0, %v2450
        %v2452 = vpop.f32.mrf.mxu0
        %v2453 = vadd.f32 0.0, %v2452
        %2454 = vmatmul.bf16.gmra.mxu0 %v2439
        %v2455 = vpop.f32.mrf.mxu0
        %v2456 = vadd.f32 0.0, %v2455
        %v2457 = vpop.f32.mrf.mxu0
        %v2458 = vadd.f32 0.0, %v2457
        %2459 = vdwg.mxu0
        %2460 = vrot.lane.b32.xlu0 %v1299, 120
        %v2461 = vpop.permute.xlu0 %2460
        %2462 = vrot.lane.b32.xlu0 %v1300, 120
        %v2463 = vpop.permute.xlu0 %2462
        %2464 = vrot.lane.b32.xlu0 %v1309, 120
        %v2465 = vpop.permute.xlu0 %2464
        %2466 = vrot.lane.b32.xlu0 %v1310, 120
        %v2467 = vpop.permute.xlu0 %2466
        %v2469 = vsel %vm1311, %v2461, 0
        %v2472 = vsel %vm1311, %v2463, 0
        %v2475 = vsel %vm1311, %v2465, 0
        %v2478 = vsel %vm1311, %v2467, 0
        %2480 = vmatpush.bf16.xpose.msra.mxu0 0
        %2481 = vmatpush.bf16.xpose.msra.mxu0 0
        %2482 = vmatpush.bf16.xpose.msra.mxu0 0
        %2483 = vmatpush.bf16.xpose.msra.mxu0 0
        %2484 = vmatpush.bf16.xpose.msra.mxu0 0
        %2485 = vmatpush.bf16.xpose.msra.mxu0 0
        %2486 = vmatpush.bf16.xpose.msra.mxu0 %v2478
        %2487 = vmatpush.bf16.xpose.msra.mxu0 %v2475
        %2488 = vmatmul.bf16.gmra.mxu0 %v2469
        %v2489 = vpop.f32.mrf.mxu0
        %v2490 = vadd.f32 0.0, %v2489
        %v2491 = vpop.f32.mrf.mxu0
        %v2492 = vadd.f32 0.0, %v2491
        %2493 = vmatmul.bf16.gmra.mxu0 %v2472
        %v2494 = vpop.f32.mrf.mxu0
        %v2495 = vadd.f32 0.0, %v2494
        %v2496 = vpop.f32.mrf.mxu0
        %v2497 = vadd.f32 0.0, %v2496
        %2498 = vdwg.mxu0
        %2499 = vrot.lane.b32.xlu0 %v1351, 120
        %v2500 = vpop.permute.xlu0 %2499
        %2501 = vrot.lane.b32.xlu0 %v1352, 120
        %v2502 = vpop.permute.xlu0 %2501
        %2503 = vrot.lane.b32.xlu0 %v1361, 120
        %v2504 = vpop.permute.xlu0 %2503
        %2505 = vrot.lane.b32.xlu0 %v1362, 120
        %v2506 = vpop.permute.xlu0 %2505
        %v2508 = vsel %vm1311, %v2500, 0
        %v2511 = vsel %vm1311, %v2502, 0
        %v2514 = vsel %vm1311, %v2504, 0
        %v2517 = vsel %vm1311, %v2506, 0
        %2519 = vmatpush.bf16.xpose.msra.mxu0 0
        %2520 = vmatpush.bf16.xpose.msra.mxu0 0
        %2521 = vmatpush.bf16.xpose.msra.mxu0 0
        %2522 = vmatpush.bf16.xpose.msra.mxu0 0
        %2523 = vmatpush.bf16.xpose.msra.mxu0 0
        %2524 = vmatpush.bf16.xpose.msra.mxu0 0
        %2525 = vmatpush.bf16.xpose.msra.mxu0 %v2517
        %2526 = vmatpush.bf16.xpose.msra.mxu0 %v2514
        %2527 = vmatmul.bf16.gmra.mxu0 %v2508
        %v2528 = vpop.f32.mrf.mxu0
        %v2529 = vadd.f32 0.0, %v2528
        %v2530 = vpop.f32.mrf.mxu0
        %v2531 = vadd.f32 0.0, %v2530
        %2532 = vmatmul.bf16.gmra.mxu0 %v2511
        %v2533 = vpop.f32.mrf.mxu0
        %v2534 = vadd.f32 0.0, %v2533
        %v2535 = vpop.f32.mrf.mxu0
        %v2536 = vadd.f32 0.0, %v2535
        %2537 = vdwg.mxu0
        %2538 = vrot.lane.b32.xlu0 %v1402, 120
        %v2539 = vpop.permute.xlu0 %2538
        %2540 = vrot.lane.b32.xlu0 %v1403, 120
        %v2541 = vpop.permute.xlu0 %2540
        %2542 = vrot.lane.b32.xlu0 %v1412, 120
        %v2543 = vpop.permute.xlu0 %2542
        %2544 = vrot.lane.b32.xlu0 %v1413, 120
        %v2545 = vpop.permute.xlu0 %2544
        %v2547 = vsel %vm1311, %v2539, 0
        %v2550 = vsel %vm1311, %v2541, 0
        %v2553 = vsel %vm1311, %v2543, 0
        %v2556 = vsel %vm1311, %v2545, 0
        %2558 = vmatpush.bf16.xpose.msra.mxu0 0
        %2559 = vmatpush.bf16.xpose.msra.mxu0 0
        %2560 = vmatpush.bf16.xpose.msra.mxu0 0
        %2561 = vmatpush.bf16.xpose.msra.mxu0 0
        %2562 = vmatpush.bf16.xpose.msra.mxu0 0
        %2563 = vmatpush.bf16.xpose.msra.mxu0 0
        %2564 = vmatpush.bf16.xpose.msra.mxu0 %v2556
        %2565 = vmatpush.bf16.xpose.msra.mxu0 %v2553
        %2566 = vmatmul.bf16.gmra.mxu0 %v2547
        %v2567 = vpop.f32.mrf.mxu0
        %v2568 = vadd.f32 0.0, %v2567
        %v2569 = vpop.f32.mrf.mxu0
        %v2570 = vadd.f32 0.0, %v2569
        %2571 = vmatmul.bf16.gmra.mxu0 %v2550
        %v2572 = vpop.f32.mrf.mxu0
        %v2573 = vadd.f32 0.0, %v2572
        %v2574 = vpop.f32.mrf.mxu0
        %v2575 = vadd.f32 0.0, %v2574
        %2576 = vdwg.mxu0
        %2577 = vrot.lane.b32.xlu0 %v1453, 120
        %v2578 = vpop.permute.xlu0 %2577
        %2579 = vrot.lane.b32.xlu0 %v1454, 120
        %v2580 = vpop.permute.xlu0 %2579
        %2581 = vrot.lane.b32.xlu0 %v1463, 120
        %v2582 = vpop.permute.xlu0 %2581
        %2583 = vrot.lane.b32.xlu0 %v1464, 120
        %v2584 = vpop.permute.xlu0 %2583
        %v2586 = vsel %vm1311, %v2578, 0
        %v2589 = vsel %vm1311, %v2580, 0
        %v2592 = vsel %vm1311, %v2582, 0
        %v2595 = vsel %vm1311, %v2584, 0
        %2597 = vmatpush.bf16.xpose.msra.mxu0 0
        %2598 = vmatpush.bf16.xpose.msra.mxu0 0
        %2599 = vmatpush.bf16.xpose.msra.mxu0 0
        %2600 = vmatpush.bf16.xpose.msra.mxu0 0
        %2601 = vmatpush.bf16.xpose.msra.mxu0 0
        %2602 = vmatpush.bf16.xpose.msra.mxu0 0
        %2603 = vmatpush.bf16.xpose.msra.mxu0 %v2595
        %2604 = vmatpush.bf16.xpose.msra.mxu0 %v2592
        %2605 = vmatmul.bf16.gmra.mxu0 %v2586
        %v2606 = vpop.f32.mrf.mxu0
        %v2607 = vadd.f32 0.0, %v2606
        %v2608 = vpop.f32.mrf.mxu0
        %v2609 = vadd.f32 0.0, %v2608
        %2610 = vmatmul.bf16.gmra.mxu0 %v2589
        %v2611 = vpop.f32.mrf.mxu0
        %v2612 = vadd.f32 0.0, %v2611
        %v2613 = vpop.f32.mrf.mxu0
        %v2614 = vadd.f32 0.0, %v2613
        %2615 = vdwg.mxu0
        %2616 = vrot.lane.b32.xlu0 %v1504, 120
        %v2617 = vpop.permute.xlu0 %2616
        %2618 = vrot.lane.b32.xlu0 %v1505, 120
        %v2619 = vpop.permute.xlu0 %2618
        %2620 = vrot.lane.b32.xlu0 %v1514, 120
        %v2621 = vpop.permute.xlu0 %2620
        %2622 = vrot.lane.b32.xlu0 %v1515, 120
        %v2623 = vpop.permute.xlu0 %2622
        %v2625 = vsel %vm1311, %v2617, 0
        %v2628 = vsel %vm1311, %v2619, 0
        %v2631 = vsel %vm1311, %v2621, 0
        %v2634 = vsel %vm1311, %v2623, 0
        %2636 = vmatpush.bf16.xpose.msra.mxu0 0
        %2637 = vmatpush.bf16.xpose.msra.mxu0 0
        %2638 = vmatpush.bf16.xpose.msra.mxu0 0
        %2639 = vmatpush.bf16.xpose.msra.mxu0 0
        %2640 = vmatpush.bf16.xpose.msra.mxu0 0
        %2641 = vmatpush.bf16.xpose.msra.mxu0 0
        %2642 = vmatpush.bf16.xpose.msra.mxu0 %v2634
        %2643 = vmatpush.bf16.xpose.msra.mxu0 %v2631
        %2644 = vmatmul.bf16.gmra.mxu0 %v2625
        %v2645 = vpop.f32.mrf.mxu0
        %v2646 = vadd.f32 0.0, %v2645
        %v2647 = vpop.f32.mrf.mxu0
        %v2648 = vadd.f32 0.0, %v2647
        %2649 = vmatmul.bf16.gmra.mxu0 %v2628
        %v2650 = vpop.f32.mrf.mxu0
        %v2651 = vadd.f32 0.0, %v2650
        %v2652 = vpop.f32.mrf.mxu0
        %v2653 = vadd.f32 0.0, %v2652
        %2654 = vdwg.mxu0
        %2655 = vrot.lane.b32.xlu0 %v1555, 120
        %v2656 = vpop.permute.xlu0 %2655
        %2657 = vrot.lane.b32.xlu0 %v1556, 120
        %v2658 = vpop.permute.xlu0 %2657
        %2659 = vrot.lane.b32.xlu0 %v1565, 120
        %v2660 = vpop.permute.xlu0 %2659
        %2661 = vrot.lane.b32.xlu0 %v1566, 120
        %v2662 = vpop.permute.xlu0 %2661
        %v2664 = vsel %vm1311, %v2656, 0
        %v2667 = vsel %vm1311, %v2658, 0
        %v2670 = vsel %vm1311, %v2660, 0
        %v2673 = vsel %vm1311, %v2662, 0
        %2675 = vmatpush.bf16.xpose.msra.mxu0 0
        %2676 = vmatpush.bf16.xpose.msra.mxu0 0
        %2677 = vmatpush.bf16.xpose.msra.mxu0 0
        %2678 = vmatpush.bf16.xpose.msra.mxu0 0
        %2679 = vmatpush.bf16.xpose.msra.mxu0 0
        %2680 = vmatpush.bf16.xpose.msra.mxu0 0
        %2681 = vmatpush.bf16.xpose.msra.mxu0 %v2673
        %2682 = vmatpush.bf16.xpose.msra.mxu0 %v2670
        %2683 = vmatmul.bf16.gmra.mxu0 %v2664
        %v2684 = vpop.f32.mrf.mxu0
        %v2685 = vadd.f32 0.0, %v2684
        %v2686 = vpop.f32.mrf.mxu0
        %v2687 = vadd.f32 0.0, %v2686
        %2688 = vmatmul.bf16.gmra.mxu0 %v2667
        %v2689 = vpop.f32.mrf.mxu0
        %v2690 = vadd.f32 0.0, %v2689
        %v2691 = vpop.f32.mrf.mxu0
        %v2692 = vadd.f32 0.0, %v2691
        %2693 = vdwg.mxu0
        %2694 = vrot.lane.b32.xlu0 %v1606, 120
        %v2695 = vpop.permute.xlu0 %2694
        %2696 = vrot.lane.b32.xlu0 %v1607, 120
        %v2697 = vpop.permute.xlu0 %2696
        %2698 = vrot.lane.b32.xlu0 %v1616, 120
        %v2699 = vpop.permute.xlu0 %2698
        %2700 = vrot.lane.b32.xlu0 %v1617, 120
        %v2701 = vpop.permute.xlu0 %2700
        %v2703 = vsel %vm1311, %v2695, 0
        %v2706 = vsel %vm1311, %v2697, 0
        %v2709 = vsel %vm1311, %v2699, 0
        %v2712 = vsel %vm1311, %v2701, 0
        %2714 = vmatpush.bf16.xpose.msra.mxu0 0
        %2715 = vmatpush.bf16.xpose.msra.mxu0 0
        %2716 = vmatpush.bf16.xpose.msra.mxu0 0
        %2717 = vmatpush.bf16.xpose.msra.mxu0 0
        %2718 = vmatpush.bf16.xpose.msra.mxu0 0
        %2719 = vmatpush.bf16.xpose.msra.mxu0 0
        %2720 = vmatpush.bf16.xpose.msra.mxu0 %v2712
        %2721 = vmatpush.bf16.xpose.msra.mxu0 %v2709
        %2722 = vmatmul.bf16.gmra.mxu0 %v2703
        %v2723 = vpop.f32.mrf.mxu0
        %v2724 = vadd.f32 0.0, %v2723
        %v2725 = vpop.f32.mrf.mxu0
        %v2726 = vadd.f32 0.0, %v2725
        %2727 = vmatmul.bf16.gmra.mxu0 %v2706
        %v2728 = vpop.f32.mrf.mxu0
        %v2729 = vadd.f32 0.0, %v2728
        %v2730 = vpop.f32.mrf.mxu0
        %v2731 = vadd.f32 0.0, %v2730
        %2732 = vdwg.mxu0
        %2733 = vrot.lane.b32.xlu0 %v1657, 120
        %v2734 = vpop.permute.xlu0 %2733
        %2735 = vrot.lane.b32.xlu0 %v1658, 120
        %v2736 = vpop.permute.xlu0 %2735
        %2737 = vrot.lane.b32.xlu0 %v1667, 120
        %v2738 = vpop.permute.xlu0 %2737
        %2739 = vrot.lane.b32.xlu0 %v1668, 120
        %v2740 = vpop.permute.xlu0 %2739
        %v2742 = vsel %vm1311, %v2734, 0
        %v2745 = vsel %vm1311, %v2736, 0
        %v2748 = vsel %vm1311, %v2738, 0
        %v2751 = vsel %vm1311, %v2740, 0
        %2753 = vmatpush.bf16.xpose.msra.mxu0 0
        %2754 = vmatpush.bf16.xpose.msra.mxu0 0
        %2755 = vmatpush.bf16.xpose.msra.mxu0 0
        %2756 = vmatpush.bf16.xpose.msra.mxu0 0
        %2757 = vmatpush.bf16.xpose.msra.mxu0 0
        %2758 = vmatpush.bf16.xpose.msra.mxu0 0
        %2759 = vmatpush.bf16.xpose.msra.mxu0 %v2751
        %2760 = vmatpush.bf16.xpose.msra.mxu0 %v2748
        %2761 = vmatmul.bf16.gmra.mxu0 %v2742
        %v2762 = vpop.f32.mrf.mxu0
        %v2763 = vadd.f32 0.0, %v2762
        %v2764 = vpop.f32.mrf.mxu0
        %v2765 = vadd.f32 0.0, %v2764
        %2766 = vmatmul.bf16.gmra.mxu0 %v2745
        %v2767 = vpop.f32.mrf.mxu0
        %v2768 = vadd.f32 0.0, %v2767
        %v2769 = vpop.f32.mrf.mxu0
        %v2770 = vadd.f32 0.0, %v2769
        %2771 = vdwg.mxu0
        %v2772 = vsel %vm483, %v2490, -inf
        %2773 = vmax.xlane.f32.xlu0 %v2772
        %v2774 = vpop.xlane.xlu0 %2773
        %v2775 = vsel %vm483, %v2492, -inf
        %2776 = vmax.xlane.f32.xlu0 %v2775
        %v2777 = vpop.xlane.xlu0 %2776
        %v2778 = vsel %vm483, %v2495, -inf
        %2779 = vmax.xlane.f32.xlu0 %v2778
        %v2780 = vpop.xlane.xlu0 %2779
        %v2781 = vsel %vm483, %v2497, -inf
        %2782 = vmax.xlane.f32.xlu0 %v2781
        %v2783 = vpop.xlane.xlu0 %2782
        %v2784 = vsel %vm483, %v2529, -inf
        %2785 = vmax.xlane.f32.xlu0 %v2784
        %v2786 = vpop.xlane.xlu0 %2785
        %v2787 = vsel %vm483, %v2531, -inf
        %2788 = vmax.xlane.f32.xlu0 %v2787
        %v2789 = vpop.xlane.xlu0 %2788
        %v2790 = vsel %vm483, %v2534, -inf
        %2791 = vmax.xlane.f32.xlu0 %v2790
        %v2792 = vpop.xlane.xlu0 %2791
        %v2793 = vsel %vm483, %v2536, -inf
        %2794 = vmax.xlane.f32.xlu0 %v2793
        %v2795 = vpop.xlane.xlu0 %2794
        %v2796 = vsel %vm483, %v2568, -inf
        %2797 = vmax.xlane.f32.xlu0 %v2796
        %v2798 = vpop.xlane.xlu0 %2797
        %v2799 = vsel %vm483, %v2570, -inf
        %2800 = vmax.xlane.f32.xlu0 %v2799
        %v2801 = vpop.xlane.xlu0 %2800
        %v2802 = vsel %vm483, %v2573, -inf
        %2803 = vmax.xlane.f32.xlu0 %v2802
        %v2804 = vpop.xlane.xlu0 %2803
        %v2805 = vsel %vm483, %v2575, -inf
        %2806 = vmax.xlane.f32.xlu0 %v2805
        %v2807 = vpop.xlane.xlu0 %2806
        %v2808 = vsel %vm483, %v2607, -inf
        %2809 = vmax.xlane.f32.xlu0 %v2808
        %v2810 = vpop.xlane.xlu0 %2809
        %v2811 = vsel %vm483, %v2609, -inf
        %2812 = vmax.xlane.f32.xlu0 %v2811
        %v2813 = vpop.xlane.xlu0 %2812
        %v2814 = vsel %vm483, %v2612, -inf
        %2815 = vmax.xlane.f32.xlu0 %v2814
        %v2816 = vpop.xlane.xlu0 %2815
        %v2817 = vsel %vm483, %v2614, -inf
        %2818 = vmax.xlane.f32.xlu0 %v2817
        %v2819 = vpop.xlane.xlu0 %2818
        %v2820 = vsel %vm483, %v2646, -inf
        %2821 = vmax.xlane.f32.xlu0 %v2820
        %v2822 = vpop.xlane.xlu0 %2821
        %v2823 = vsel %vm483, %v2648, -inf
        %2824 = vmax.xlane.f32.xlu0 %v2823
        %v2825 = vpop.xlane.xlu0 %2824
        %v2826 = vsel %vm483, %v2651, -inf
        %2827 = vmax.xlane.f32.xlu0 %v2826
        %v2828 = vpop.xlane.xlu0 %2827
        %v2829 = vsel %vm483, %v2653, -inf
        %2830 = vmax.xlane.f32.xlu0 %v2829
        %v2831 = vpop.xlane.xlu0 %2830
        %v2832 = vsel %vm483, %v2685, -inf
        %2833 = vmax.xlane.f32.xlu0 %v2832
        %v2834 = vpop.xlane.xlu0 %2833
        %v2835 = vsel %vm483, %v2687, -inf
        %2836 = vmax.xlane.f32.xlu0 %v2835
        %v2837 = vpop.xlane.xlu0 %2836
        %v2838 = vsel %vm483, %v2690, -inf
        %2839 = vmax.xlane.f32.xlu0 %v2838
        %v2840 = vpop.xlane.xlu0 %2839
        %v2841 = vsel %vm483, %v2692, -inf
        %2842 = vmax.xlane.f32.xlu0 %v2841
        %v2843 = vpop.xlane.xlu0 %2842
        %v2844 = vsel %vm483, %v2724, -inf
        %2845 = vmax.xlane.f32.xlu0 %v2844
        %v2846 = vpop.xlane.xlu0 %2845
        %v2847 = vsel %vm483, %v2726, -inf
        %2848 = vmax.xlane.f32.xlu0 %v2847
        %v2849 = vpop.xlane.xlu0 %2848
        %v2850 = vsel %vm483, %v2729, -inf
        %2851 = vmax.xlane.f32.xlu0 %v2850
        %v2852 = vpop.xlane.xlu0 %2851
        %v2853 = vsel %vm483, %v2731, -inf
        %2854 = vmax.xlane.f32.xlu0 %v2853
        %v2855 = vpop.xlane.xlu0 %2854
        %v2856 = vsel %vm483, %v2763, -inf
        %2857 = vmax.xlane.f32.xlu0 %v2856
        %v2858 = vpop.xlane.xlu0 %2857
        %v2859 = vsel %vm483, %v2765, -inf
        %2860 = vmax.xlane.f32.xlu0 %v2859
        %v2861 = vpop.xlane.xlu0 %2860
        %v2862 = vsel %vm483, %v2768, -inf
        %2863 = vmax.xlane.f32.xlu0 %v2862
        %v2864 = vpop.xlane.xlu0 %2863
        %v2865 = vsel %vm483, %v2770, -inf
        %2866 = vmax.xlane.f32.xlu0 %v2865
        %v2867 = vpop.xlane.xlu0 %2866
        %v2868 = vsub.f32 %v2490, %v2774
        %v2869 = vsub.f32 %v2492, %v2777
        %v2870 = vsub.f32 %v2495, %v2780
        %v2871 = vsub.f32 %v2497, %v2783
        %v2872 = vsub.f32 %v2529, %v2786
        %v2873 = vsub.f32 %v2531, %v2789
        %v2874 = vsub.f32 %v2534, %v2792
        %v2875 = vsub.f32 %v2536, %v2795
        %v2876 = vsub.f32 %v2568, %v2798
        %v2877 = vsub.f32 %v2570, %v2801
        %v2878 = vsub.f32 %v2573, %v2804
        %v2879 = vsub.f32 %v2575, %v2807
        %v2880 = vsub.f32 %v2607, %v2810
        %v2881 = vsub.f32 %v2609, %v2813
        %v2882 = vsub.f32 %v2612, %v2816
        %v2883 = vsub.f32 %v2614, %v2819
        %v2884 = vsub.f32 %v2646, %v2822
        %v2885 = vsub.f32 %v2648, %v2825
        %v2886 = vsub.f32 %v2651, %v2828
        %v2887 = vsub.f32 %v2653, %v2831
        %v2888 = vsub.f32 %v2685, %v2834
        %v2889 = vsub.f32 %v2687, %v2837
        %v2890 = vsub.f32 %v2690, %v2840
        %v2891 = vsub.f32 %v2692, %v2843
        %v2892 = vsub.f32 %v2724, %v2846
        %v2893 = vsub.f32 %v2726, %v2849
        %v2894 = vsub.f32 %v2729, %v2852
        %v2895 = vsub.f32 %v2731, %v2855
        %v2896 = vsub.f32 %v2763, %v2858
        %v2897 = vsub.f32 %v2765, %v2861
        %v2898 = vsub.f32 %v2768, %v2864
        %v2899 = vsub.f32 %v2770, %v2867
        %v2900 = vmul.f32 %v2868, 1.442695
        %v2901 = vpow.pop %v2900
        %v2902 = vmul.f32 %v2869, 1.442695
        %v2903 = vpow.pop %v2902
        %v2904 = vmul.f32 %v2870, 1.442695
        %v2905 = vpow.pop %v2904
        %v2906 = vmul.f32 %v2871, 1.442695
        %v2907 = vpow.pop %v2906
        %v2908 = vmul.f32 %v2872, 1.442695
        %v2909 = vpow.pop %v2908
        %v2910 = vmul.f32 %v2873, 1.442695
        %v2911 = vpow.pop %v2910
        %v2912 = vmul.f32 %v2874, 1.442695
        %v2913 = vpow.pop %v2912
        %v2914 = vmul.f32 %v2875, 1.442695
        %v2915 = vpow.pop %v2914
        %v2916 = vmul.f32 %v2876, 1.442695
        %v2917 = vpow.pop %v2916
        %v2918 = vmul.f32 %v2877, 1.442695
        %v2919 = vpow.pop %v2918
        %v2920 = vmul.f32 %v2878, 1.442695
        %v2921 = vpow.pop %v2920
        %v2922 = vmul.f32 %v2879, 1.442695
        %v2923 = vpow.pop %v2922
        %v2924 = vmul.f32 %v2880, 1.442695
        %v2925 = vpow.pop %v2924
        %v2926 = vmul.f32 %v2881, 1.442695
        %v2927 = vpow.pop %v2926
        %v2928 = vmul.f32 %v2882, 1.442695
        %v2929 = vpow.pop %v2928
        %v2930 = vmul.f32 %v2883, 1.442695
        %v2931 = vpow.pop %v2930
        %v2932 = vmul.f32 %v2884, 1.442695
        %v2933 = vpow.pop %v2932
        %v2934 = vmul.f32 %v2885, 1.442695
        %v2935 = vpow.pop %v2934
        %v2936 = vmul.f32 %v2886, 1.442695
        %v2937 = vpow.pop %v2936
        %v2938 = vmul.f32 %v2887, 1.442695
        %v2939 = vpow.pop %v2938
        %v2940 = vmul.f32 %v2888, 1.442695
        %v2941 = vpow.pop %v2940
        %v2942 = vmul.f32 %v2889, 1.442695
        %v2943 = vpow.pop %v2942
        %v2944 = vmul.f32 %v2890, 1.442695
        %v2945 = vpow.pop %v2944
        %v2946 = vmul.f32 %v2891, 1.442695
        %v2947 = vpow.pop %v2946
        %v2948 = vmul.f32 %v2892, 1.442695
        %v2949 = vpow.pop %v2948
        %v2950 = vmul.f32 %v2893, 1.442695
        %v2951 = vpow.pop %v2950
        %v2952 = vmul.f32 %v2894, 1.442695
        %v2953 = vpow.pop %v2952
        %v2954 = vmul.f32 %v2895, 1.442695
        %v2955 = vpow.pop %v2954
        %v2956 = vmul.f32 %v2896, 1.442695
        %v2957 = vpow.pop %v2956
        %v2958 = vmul.f32 %v2897, 1.442695
        %v2959 = vpow.pop %v2958
        %v2960 = vmul.f32 %v2898, 1.442695
        %v2961 = vpow.pop %v2960
        %v2962 = vmul.f32 %v2899, 1.442695
        %v2963 = vpow.pop %v2962
        %v2964 = vsel %vm483, %v2901, 0.0
        %2965 = vadd.xlane.f32.xlu0 %v2964
        %v2966 = vpop.xlane.xlu0 %2965
        %v2967 = vsel %vm483, %v2903, 0.0
        %2968 = vadd.xlane.f32.xlu0 %v2967
        %v2969 = vpop.xlane.xlu0 %2968
        %v2970 = vsel %vm483, %v2905, 0.0
        %2971 = vadd.xlane.f32.xlu0 %v2970
        %v2972 = vpop.xlane.xlu0 %2971
        %v2973 = vsel %vm483, %v2907, 0.0
        %2974 = vadd.xlane.f32.xlu0 %v2973
        %v2975 = vpop.xlane.xlu0 %2974
        %v2976 = vsel %vm483, %v2909, 0.0
        %2977 = vadd.xlane.f32.xlu0 %v2976
        %v2978 = vpop.xlane.xlu0 %2977
        %v2979 = vsel %vm483, %v2911, 0.0
        %2980 = vadd.xlane.f32.xlu0 %v2979
        %v2981 = vpop.xlane.xlu0 %2980
        %v2982 = vsel %vm483, %v2913, 0.0
        %2983 = vadd.xlane.f32.xlu0 %v2982
        %v2984 = vpop.xlane.xlu0 %2983
        %v2985 = vsel %vm483, %v2915, 0.0
        %2986 = vadd.xlane.f32.xlu0 %v2985
        %v2987 = vpop.xlane.xlu0 %2986
        %v2988 = vsel %vm483, %v2917, 0.0
        %2989 = vadd.xlane.f32.xlu0 %v2988
        %v2990 = vpop.xlane.xlu0 %2989
        %v2991 = vsel %vm483, %v2919, 0.0
        %2992 = vadd.xlane.f32.xlu0 %v2991
        %v2993 = vpop.xlane.xlu0 %2992
        %v2994 = vsel %vm483, %v2921, 0.0
        %2995 = vadd.xlane.f32.xlu0 %v2994
        %v2996 = vpop.xlane.xlu0 %2995
        %v2997 = vsel %vm483, %v2923, 0.0
        %2998 = vadd.xlane.f32.xlu0 %v2997
        %v2999 = vpop.xlane.xlu0 %2998
        %v3000 = vsel %vm483, %v2925, 0.0
        %3001 = vadd.xlane.f32.xlu0 %v3000
        %v3002 = vpop.xlane.xlu0 %3001
        %v3003 = vsel %vm483, %v2927, 0.0
        %3004 = vadd.xlane.f32.xlu0 %v3003
        %v3005 = vpop.xlane.xlu0 %3004
        %v3006 = vsel %vm483, %v2929, 0.0
        %3007 = vadd.xlane.f32.xlu0 %v3006
        %v3008 = vpop.xlane.xlu0 %3007
        %v3009 = vsel %vm483, %v2931, 0.0
        %3010 = vadd.xlane.f32.xlu0 %v3009
        %v3011 = vpop.xlane.xlu0 %3010
        %v3012 = vsel %vm483, %v2933, 0.0
        %3013 = vadd.xlane.f32.xlu0 %v3012
        %v3014 = vpop.xlane.xlu0 %3013
        %v3015 = vsel %vm483, %v2935, 0.0
        %3016 = vadd.xlane.f32.xlu0 %v3015
        %v3017 = vpop.xlane.xlu0 %3016
        %v3018 = vsel %vm483, %v2937, 0.0
        %3019 = vadd.xlane.f32.xlu0 %v3018
        %v3020 = vpop.xlane.xlu0 %3019
        %v3021 = vsel %vm483, %v2939, 0.0
        %3022 = vadd.xlane.f32.xlu0 %v3021
        %v3023 = vpop.xlane.xlu0 %3022
        %v3024 = vsel %vm483, %v2941, 0.0
        %3025 = vadd.xlane.f32.xlu0 %v3024
        %v3026 = vpop.xlane.xlu0 %3025
        %v3027 = vsel %vm483, %v2943, 0.0
        %3028 = vadd.xlane.f32.xlu0 %v3027
        %v3029 = vpop.xlane.xlu0 %3028
        %v3030 = vsel %vm483, %v2945, 0.0
        %3031 = vadd.xlane.f32.xlu0 %v3030
        %v3032 = vpop.xlane.xlu0 %3031
        %v3033 = vsel %vm483, %v2947, 0.0
        %3034 = vadd.xlane.f32.xlu0 %v3033
        %v3035 = vpop.xlane.xlu0 %3034
        %v3036 = vsel %vm483, %v2949, 0.0
        %3037 = vadd.xlane.f32.xlu0 %v3036
        %v3038 = vpop.xlane.xlu0 %3037
        %v3039 = vsel %vm483, %v2951, 0.0
        %3040 = vadd.xlane.f32.xlu0 %v3039
        %v3041 = vpop.xlane.xlu0 %3040
        %v3042 = vsel %vm483, %v2953, 0.0
        %3043 = vadd.xlane.f32.xlu0 %v3042
        %v3044 = vpop.xlane.xlu0 %3043
        %v3045 = vsel %vm483, %v2955, 0.0
        %3046 = vadd.xlane.f32.xlu0 %v3045
        %v3047 = vpop.xlane.xlu0 %3046
        %v3048 = vsel %vm483, %v2957, 0.0
        %3049 = vadd.xlane.f32.xlu0 %v3048
        %v3050 = vpop.xlane.xlu0 %3049
        %v3051 = vsel %vm483, %v2959, 0.0
        %3052 = vadd.xlane.f32.xlu0 %v3051
        %v3053 = vpop.xlane.xlu0 %3052
        %v3054 = vsel %vm483, %v2961, 0.0
        %3055 = vadd.xlane.f32.xlu0 %v3054
        %v3056 = vpop.xlane.xlu0 %3055
        %v3057 = vsel %vm483, %v2963, 0.0
        %3058 = vadd.xlane.f32.xlu0 %v3057
        %v3059 = vpop.xlane.xlu0 %3058
        %v3060 = vrcp.pop %v2966
        %v3061 = vrcp.pop %v2969
        %v3062 = vrcp.pop %v2972
        %v3063 = vrcp.pop %v2975
        %v3064 = vrcp.pop %v2978
        %v3065 = vrcp.pop %v2981
        %v3066 = vrcp.pop %v2984
        %v3067 = vrcp.pop %v2987
        %v3068 = vrcp.pop %v2990
        %v3069 = vrcp.pop %v2993
        %v3070 = vrcp.pop %v2996
        %v3071 = vrcp.pop %v2999
        %v3072 = vrcp.pop %v3002
        %v3073 = vrcp.pop %v3005
        %v3074 = vrcp.pop %v3008
        %v3075 = vrcp.pop %v3011
        %v3076 = vrcp.pop %v3014
        %v3077 = vrcp.pop %v3017
        %v3078 = vrcp.pop %v3020
        %v3079 = vrcp.pop %v3023
        %v3080 = vrcp.pop %v3026
        %v3081 = vrcp.pop %v3029
        %v3082 = vrcp.pop %v3032
        %v3083 = vrcp.pop %v3035
        %v3084 = vrcp.pop %v3038
        %v3085 = vrcp.pop %v3041
        %v3086 = vrcp.pop %v3044
        %v3087 = vrcp.pop %v3047
        %v3088 = vrcp.pop %v3050
        %v3089 = vrcp.pop %v3053
        %v3090 = vrcp.pop %v3056
        %v3091 = vrcp.pop %v3059
        %v3092 = vmul.f32 %v2901, %v3060
        %v3093 = vmul.f32 %v2903, %v3061
        %v3094 = vmul.f32 %v2905, %v3062
        %v3095 = vmul.f32 %v2907, %v3063
        %v3096 = vmul.f32 %v2909, %v3064
        %v3097 = vmul.f32 %v2911, %v3065
        %v3098 = vmul.f32 %v2913, %v3066
        %v3099 = vmul.f32 %v2915, %v3067
        %v3100 = vmul.f32 %v2917, %v3068
        %v3101 = vmul.f32 %v2919, %v3069
        %v3102 = vmul.f32 %v2921, %v3070
        %v3103 = vmul.f32 %v2923, %v3071
        %v3104 = vmul.f32 %v2925, %v3072
        %v3105 = vmul.f32 %v2927, %v3073
        %v3106 = vmul.f32 %v2929, %v3074
        %v3107 = vmul.f32 %v2931, %v3075
        %v3108 = vmul.f32 %v2933, %v3076
        %v3109 = vmul.f32 %v2935, %v3077
        %v3110 = vmul.f32 %v2937, %v3078
        %v3111 = vmul.f32 %v2939, %v3079
        %v3112 = vmul.f32 %v2941, %v3080
        %v3113 = vmul.f32 %v2943, %v3081
        %v3114 = vmul.f32 %v2945, %v3082
        %v3115 = vmul.f32 %v2947, %v3083
        %v3116 = vmul.f32 %v2949, %v3084
        %v3117 = vmul.f32 %v2951, %v3085
        %v3118 = vmul.f32 %v2953, %v3086
        %v3119 = vmul.f32 %v2955, %v3087
        %v3120 = vmul.f32 %v2957, %v3088
        %v3121 = vmul.f32 %v2959, %v3089
        %v3122 = vmul.f32 %v2961, %v3090
        %v3123 = vmul.f32 %v2963, %v3091
        %v3124 = vpack.c.bf16 %v3092, %v3092
        %v3125 = vpack.c.bf16 %v3093, %v3093
        %v3126 = vpack.c.bf16 %v3094, %v3094
        %v3127 = vpack.c.bf16 %v3095, %v3095
        %v3128 = vpack.c.bf16 %v3096, %v3096
        %v3129 = vpack.c.bf16 %v3097, %v3097
        %v3130 = vpack.c.bf16 %v3098, %v3098
        %v3131 = vpack.c.bf16 %v3099, %v3099
        %v3132 = vpack.c.bf16 %v3100, %v3100
        %v3133 = vpack.c.bf16 %v3101, %v3101
        %v3134 = vpack.c.bf16 %v3102, %v3102
        %v3135 = vpack.c.bf16 %v3103, %v3103
        %v3136 = vpack.c.bf16 %v3104, %v3104
        %v3137 = vpack.c.bf16 %v3105, %v3105
        %v3138 = vpack.c.bf16 %v3106, %v3106
        %v3139 = vpack.c.bf16 %v3107, %v3107
        %v3140 = vpack.c.bf16 %v3108, %v3108
        %v3141 = vpack.c.bf16 %v3109, %v3109
        %v3142 = vpack.c.bf16 %v3110, %v3110
        %v3143 = vpack.c.bf16 %v3111, %v3111
        %v3144 = vpack.c.bf16 %v3112, %v3112
        %v3145 = vpack.c.bf16 %v3113, %v3113
        %v3146 = vpack.c.bf16 %v3114, %v3114
        %v3147 = vpack.c.bf16 %v3115, %v3115
        %v3148 = vpack.c.bf16 %v3116, %v3116
        %v3149 = vpack.c.bf16 %v3117, %v3117
        %v3150 = vpack.c.bf16 %v3118, %v3118
        %v3151 = vpack.c.bf16 %v3119, %v3119
        %v3152 = vpack.c.bf16 %v3120, %v3120
        %v3153 = vpack.c.bf16 %v3121, %v3121
        %v3154 = vpack.c.bf16 %v3122, %v3122
        %v3155 = vpack.c.bf16 %v3123, %v3123
        %v3160 = vunpack.c.l.b16 %v3124
        %v3161 = vunpack.c.l.b16 %v3125
        %v3162 = vunpack.c.l.b16 %v3126
        %v3163 = vunpack.c.l.b16 %v3127
        %v3164 = vpack.c.b16 %v3161, %v3160
        %v3165 = vpack.c.b16 %v3163, %v3162
        %3166 = vrot.lane.b32.xlu0 %v2102, 120
        %v3167 = vpop.permute.xlu0 %3166
        %3168 = vrot.lane.b32.xlu0 %v2103, 120
        %v3169 = vpop.permute.xlu0 %3168
        %v3173 = vsel %vm483, %v3164, 0
        %v3176 = vsel %vm483, %v3165, 0
        %3178 = vmatpush.bf16.msra.mxu0 0
        %3179 = vmatpush.bf16.msra.mxu0 0
        %3180 = vmatpush.bf16.msra.mxu0 0
        %3181 = vmatpush.bf16.msra.mxu0 0
        %3182 = vmatpush.bf16.msra.mxu0 0
        %3183 = vmatpush.bf16.msra.mxu0 0
        %3184 = vmatpush.bf16.msra.mxu0 %v3169
        %3185 = vmatpush.bf16.msra.mxu0 %v3167
        %3186 = vmatmul.bf16.gmra.mxu0 %v3173
        %v3187 = vpop.f32.mrf.mxu0
        %v3188 = vadd.f32 0.0, %v3187
        %v3189 = vpop.f32.mrf.mxu0
        %v3190 = vadd.f32 0.0, %v3189
        %3191 = vmatmul.bf16.gmra.mxu0 %v3176
        %v3192 = vpop.f32.mrf.mxu0
        %v3193 = vadd.f32 0.0, %v3192
        %v3194 = vpop.f32.mrf.mxu0
        %v3195 = vadd.f32 0.0, %v3194
        %3196 = vdwg.mxu0
        %v3201 = vunpack.c.l.b16 %v3128
        %v3202 = vunpack.c.l.b16 %v3129
        %v3203 = vunpack.c.l.b16 %v3130
        %v3204 = vunpack.c.l.b16 %v3131
        %v3205 = vpack.c.b16 %v3202, %v3201
        %v3206 = vpack.c.b16 %v3204, %v3203
        %3207 = vrot.lane.b32.xlu0 %v2149, 120
        %v3208 = vpop.permute.xlu0 %3207
        %3209 = vrot.lane.b32.xlu0 %v2150, 120
        %v3210 = vpop.permute.xlu0 %3209
        %v3214 = vsel %vm483, %v3205, 0
        %v3217 = vsel %vm483, %v3206, 0
        %3219 = vmatpush.bf16.msra.mxu0 0
        %3220 = vmatpush.bf16.msra.mxu0 0
        %3221 = vmatpush.bf16.msra.mxu0 0
        %3222 = vmatpush.bf16.msra.mxu0 0
        %3223 = vmatpush.bf16.msra.mxu0 0
        %3224 = vmatpush.bf16.msra.mxu0 0
        %3225 = vmatpush.bf16.msra.mxu0 %v3210
        %3226 = vmatpush.bf16.msra.mxu0 %v3208
        %3227 = vmatmul.bf16.gmra.mxu0 %v3214
        %v3228 = vpop.f32.mrf.mxu0
        %v3229 = vadd.f32 0.0, %v3228
        %v3230 = vpop.f32.mrf.mxu0
        %v3231 = vadd.f32 0.0, %v3230
        %3232 = vmatmul.bf16.gmra.mxu0 %v3217
        %v3233 = vpop.f32.mrf.mxu0
        %v3234 = vadd.f32 0.0, %v3233
        %v3235 = vpop.f32.mrf.mxu0
        %v3236 = vadd.f32 0.0, %v3235
        %3237 = vdwg.mxu0
        %v3242 = vunpack.c.l.b16 %v3132
        %v3243 = vunpack.c.l.b16 %v3133
        %v3244 = vunpack.c.l.b16 %v3134
        %v3245 = vunpack.c.l.b16 %v3135
        %v3246 = vpack.c.b16 %v3243, %v3242
        %v3247 = vpack.c.b16 %v3245, %v3244
        %3248 = vrot.lane.b32.xlu0 %v2196, 120
        %v3249 = vpop.permute.xlu0 %3248
        %3250 = vrot.lane.b32.xlu0 %v2197, 120
        %v3251 = vpop.permute.xlu0 %3250
        %v3255 = vsel %vm483, %v3246, 0
        %v3258 = vsel %vm483, %v3247, 0
        %3260 = vmatpush.bf16.msra.mxu0 0
        %3261 = vmatpush.bf16.msra.mxu0 0
        %3262 = vmatpush.bf16.msra.mxu0 0
        %3263 = vmatpush.bf16.msra.mxu0 0
        %3264 = vmatpush.bf16.msra.mxu0 0
        %3265 = vmatpush.bf16.msra.mxu0 0
        %3266 = vmatpush.bf16.msra.mxu0 %v3251
        %3267 = vmatpush.bf16.msra.mxu0 %v3249
        %3268 = vmatmul.bf16.gmra.mxu0 %v3255
        %v3269 = vpop.f32.mrf.mxu0
        %v3270 = vadd.f32 0.0, %v3269
        %v3271 = vpop.f32.mrf.mxu0
        %v3272 = vadd.f32 0.0, %v3271
        %3273 = vmatmul.bf16.gmra.mxu0 %v3258
        %v3274 = vpop.f32.mrf.mxu0
        %v3275 = vadd.f32 0.0, %v3274
        %v3276 = vpop.f32.mrf.mxu0
        %v3277 = vadd.f32 0.0, %v3276
        %3278 = vdwg.mxu0
        %v3283 = vunpack.c.l.b16 %v3136
        %v3284 = vunpack.c.l.b16 %v3137
        %v3285 = vunpack.c.l.b16 %v3138
        %v3286 = vunpack.c.l.b16 %v3139
        %v3287 = vpack.c.b16 %v3284, %v3283
        %v3288 = vpack.c.b16 %v3286, %v3285
        %3289 = vrot.lane.b32.xlu0 %v2243, 120
        %v3290 = vpop.permute.xlu0 %3289
        %3291 = vrot.lane.b32.xlu0 %v2244, 120
        %v3292 = vpop.permute.xlu0 %3291
        %v3296 = vsel %vm483, %v3287, 0
        %v3299 = vsel %vm483, %v3288, 0
        %3301 = vmatpush.bf16.msra.mxu0 0
        %3302 = vmatpush.bf16.msra.mxu0 0
        %3303 = vmatpush.bf16.msra.mxu0 0
        %3304 = vmatpush.bf16.msra.mxu0 0
        %3305 = vmatpush.bf16.msra.mxu0 0
        %3306 = vmatpush.bf16.msra.mxu0 0
        %3307 = vmatpush.bf16.msra.mxu0 %v3292
        %3308 = vmatpush.bf16.msra.mxu0 %v3290
        %3309 = vmatmul.bf16.gmra.mxu0 %v3296
        %v3310 = vpop.f32.mrf.mxu0
        %v3311 = vadd.f32 0.0, %v3310
        %v3312 = vpop.f32.mrf.mxu0
        %v3313 = vadd.f32 0.0, %v3312
        %3314 = vmatmul.bf16.gmra.mxu0 %v3299
        %v3315 = vpop.f32.mrf.mxu0
        %v3316 = vadd.f32 0.0, %v3315
        %v3317 = vpop.f32.mrf.mxu0
        %v3318 = vadd.f32 0.0, %v3317
        %3319 = vdwg.mxu0
        %v3324 = vunpack.c.l.b16 %v3140
        %v3325 = vunpack.c.l.b16 %v3141
        %v3326 = vunpack.c.l.b16 %v3142
        %v3327 = vunpack.c.l.b16 %v3143
        %v3328 = vpack.c.b16 %v3325, %v3324
        %v3329 = vpack.c.b16 %v3327, %v3326
        %3330 = vrot.lane.b32.xlu0 %v2290, 120
        %v3331 = vpop.permute.xlu0 %3330
        %3332 = vrot.lane.b32.xlu0 %v2291, 120
        %v3333 = vpop.permute.xlu0 %3332
        %v3337 = vsel %vm483, %v3328, 0
        %v3340 = vsel %vm483, %v3329, 0
        %3342 = vmatpush.bf16.msra.mxu0 0
        %3343 = vmatpush.bf16.msra.mxu0 0
        %3344 = vmatpush.bf16.msra.mxu0 0
        %3345 = vmatpush.bf16.msra.mxu0 0
        %3346 = vmatpush.bf16.msra.mxu0 0
        %3347 = vmatpush.bf16.msra.mxu0 0
        %3348 = vmatpush.bf16.msra.mxu0 %v3333
        %3349 = vmatpush.bf16.msra.mxu0 %v3331
        %3350 = vmatmul.bf16.gmra.mxu0 %v3337
        %v3351 = vpop.f32.mrf.mxu0
        %v3352 = vadd.f32 0.0, %v3351
        %v3353 = vpop.f32.mrf.mxu0
        %v3354 = vadd.f32 0.0, %v3353
        %3355 = vmatmul.bf16.gmra.mxu0 %v3340
        %v3356 = vpop.f32.mrf.mxu0
        %v3357 = vadd.f32 0.0, %v3356
        %v3358 = vpop.f32.mrf.mxu0
        %v3359 = vadd.f32 0.0, %v3358
        %3360 = vdwg.mxu0
        %v3365 = vunpack.c.l.b16 %v3144
        %v3366 = vunpack.c.l.b16 %v3145
        %v3367 = vunpack.c.l.b16 %v3146
        %v3368 = vunpack.c.l.b16 %v3147
        %v3369 = vpack.c.b16 %v3366, %v3365
        %v3370 = vpack.c.b16 %v3368, %v3367
        %3371 = vrot.lane.b32.xlu0 %v2337, 120
        %v3372 = vpop.permute.xlu0 %3371
        %3373 = vrot.lane.b32.xlu0 %v2338, 120
        %v3374 = vpop.permute.xlu0 %3373
        %v3378 = vsel %vm483, %v3369, 0
        %v3381 = vsel %vm483, %v3370, 0
        %3383 = vmatpush.bf16.msra.mxu0 0
        %3384 = vmatpush.bf16.msra.mxu0 0
        %3385 = vmatpush.bf16.msra.mxu0 0
        %3386 = vmatpush.bf16.msra.mxu0 0
        %3387 = vmatpush.bf16.msra.mxu0 0
        %3388 = vmatpush.bf16.msra.mxu0 0
        %3389 = vmatpush.bf16.msra.mxu0 %v3374
        %3390 = vmatpush.bf16.msra.mxu0 %v3372
        %3391 = vmatmul.bf16.gmra.mxu0 %v3378
        %v3392 = vpop.f32.mrf.mxu0
        %v3393 = vadd.f32 0.0, %v3392
        %v3394 = vpop.f32.mrf.mxu0
        %v3395 = vadd.f32 0.0, %v3394
        %3396 = vmatmul.bf16.gmra.mxu0 %v3381
        %v3397 = vpop.f32.mrf.mxu0
        %v3398 = vadd.f32 0.0, %v3397
        %v3399 = vpop.f32.mrf.mxu0
        %v3400 = vadd.f32 0.0, %v3399
        %3401 = vdwg.mxu0
        %v3406 = vunpack.c.l.b16 %v3148
        %v3407 = vunpack.c.l.b16 %v3149
        %v3408 = vunpack.c.l.b16 %v3150
        %v3409 = vunpack.c.l.b16 %v3151
        %v3410 = vpack.c.b16 %v3407, %v3406
        %v3411 = vpack.c.b16 %v3409, %v3408
        %3412 = vrot.lane.b32.xlu0 %v2384, 120
        %v3413 = vpop.permute.xlu0 %3412
        %3414 = vrot.lane.b32.xlu0 %v2385, 120
        %v3415 = vpop.permute.xlu0 %3414
        %v3419 = vsel %vm483, %v3410, 0
        %v3422 = vsel %vm483, %v3411, 0
        %3424 = vmatpush.bf16.msra.mxu0 0
        %3425 = vmatpush.bf16.msra.mxu0 0
        %3426 = vmatpush.bf16.msra.mxu0 0
        %3427 = vmatpush.bf16.msra.mxu0 0
        %3428 = vmatpush.bf16.msra.mxu0 0
        %3429 = vmatpush.bf16.msra.mxu0 0
        %3430 = vmatpush.bf16.msra.mxu0 %v3415
        %3431 = vmatpush.bf16.msra.mxu0 %v3413
        %3432 = vmatmul.bf16.gmra.mxu0 %v3419
        %v3433 = vpop.f32.mrf.mxu0
        %v3434 = vadd.f32 0.0, %v3433
        %v3435 = vpop.f32.mrf.mxu0
        %v3436 = vadd.f32 0.0, %v3435
        %3437 = vmatmul.bf16.gmra.mxu0 %v3422
        %v3438 = vpop.f32.mrf.mxu0
        %v3439 = vadd.f32 0.0, %v3438
        %v3440 = vpop.f32.mrf.mxu0
        %v3441 = vadd.f32 0.0, %v3440
        %3442 = vdwg.mxu0
        %v3447 = vunpack.c.l.b16 %v3152
        %v3448 = vunpack.c.l.b16 %v3153
        %v3449 = vunpack.c.l.b16 %v3154
        %v3450 = vunpack.c.l.b16 %v3155
        %v3451 = vpack.c.b16 %v3448, %v3447
        %v3452 = vpack.c.b16 %v3450, %v3449
        %3453 = vrot.lane.b32.xlu0 %v2431, 120
        %v3454 = vpop.permute.xlu0 %3453
        %3455 = vrot.lane.b32.xlu0 %v2432, 120
        %v3456 = vpop.permute.xlu0 %3455
        %v3460 = vsel %vm483, %v3451, 0
        %v3463 = vsel %vm483, %v3452, 0
        %3465 = vmatpush.bf16.msra.mxu0 0
        %3466 = vmatpush.bf16.msra.mxu0 0
        %3467 = vmatpush.bf16.msra.mxu0 0
        %3468 = vmatpush.bf16.msra.mxu0 0
        %3469 = vmatpush.bf16.msra.mxu0 0
        %3470 = vmatpush.bf16.msra.mxu0 0
        %3471 = vmatpush.bf16.msra.mxu0 %v3456
        %3472 = vmatpush.bf16.msra.mxu0 %v3454
        %3473 = vmatmul.bf16.gmra.mxu0 %v3460
        %v3474 = vpop.f32.mrf.mxu0
        %v3475 = vadd.f32 0.0, %v3474
        %v3476 = vpop.f32.mrf.mxu0
        %v3477 = vadd.f32 0.0, %v3476
        %3478 = vmatmul.bf16.gmra.mxu0 %v3463
        %v3479 = vpop.f32.mrf.mxu0
        %v3480 = vadd.f32 0.0, %v3479
        %v3481 = vpop.f32.mrf.mxu0
        %v3482 = vadd.f32 0.0, %v3481
        %3483 = vdwg.mxu0
        %3484 = vrot.lane.b32.xlu0 %v1299, 112
        %v3485 = vpop.permute.xlu0 %3484
        %3486 = vrot.lane.b32.xlu0 %v1300, 112
        %v3487 = vpop.permute.xlu0 %3486
        %3488 = vrot.lane.b32.xlu0 %v1309, 112
        %v3489 = vpop.permute.xlu0 %3488
        %3490 = vrot.lane.b32.xlu0 %v1310, 112
        %v3491 = vpop.permute.xlu0 %3490
        %v3493 = vsel %vm1311, %v3485, 0
        %v3496 = vsel %vm1311, %v3487, 0
        %v3499 = vsel %vm1311, %v3489, 0
        %v3502 = vsel %vm1311, %v3491, 0
        %3504 = vmatpush.bf16.xpose.msra.mxu0 0
        %3505 = vmatpush.bf16.xpose.msra.mxu0 0
        %3506 = vmatpush.bf16.xpose.msra.mxu0 0
        %3507 = vmatpush.bf16.xpose.msra.mxu0 0
        %3508 = vmatpush.bf16.xpose.msra.mxu0 0
        %3509 = vmatpush.bf16.xpose.msra.mxu0 0
        %3510 = vmatpush.bf16.xpose.msra.mxu0 %v3502
        %3511 = vmatpush.bf16.xpose.msra.mxu0 %v3499
        %3512 = vmatmul.bf16.gmra.mxu0 %v3493
        %v3513 = vpop.f32.mrf.mxu0
        %v3514 = vadd.f32 0.0, %v3513
        %v3515 = vpop.f32.mrf.mxu0
        %v3516 = vadd.f32 0.0, %v3515
        %3517 = vmatmul.bf16.gmra.mxu0 %v3496
        %v3518 = vpop.f32.mrf.mxu0
        %v3519 = vadd.f32 0.0, %v3518
        %v3520 = vpop.f32.mrf.mxu0
        %v3521 = vadd.f32 0.0, %v3520
        %3522 = vdwg.mxu0
        %3523 = vrot.lane.b32.xlu0 %v1351, 112
        %v3524 = vpop.permute.xlu0 %3523
        %3525 = vrot.lane.b32.xlu0 %v1352, 112
        %v3526 = vpop.permute.xlu0 %3525
        %3527 = vrot.lane.b32.xlu0 %v1361, 112
        %v3528 = vpop.permute.xlu0 %3527
        %3529 = vrot.lane.b32.xlu0 %v1362, 112
        %v3530 = vpop.permute.xlu0 %3529
        %v3532 = vsel %vm1311, %v3524, 0
        %v3535 = vsel %vm1311, %v3526, 0
        %v3538 = vsel %vm1311, %v3528, 0
        %v3541 = vsel %vm1311, %v3530, 0
        %3543 = vmatpush.bf16.xpose.msra.mxu0 0
        %3544 = vmatpush.bf16.xpose.msra.mxu0 0
        %3545 = vmatpush.bf16.xpose.msra.mxu0 0
        %3546 = vmatpush.bf16.xpose.msra.mxu0 0
        %3547 = vmatpush.bf16.xpose.msra.mxu0 0
        %3548 = vmatpush.bf16.xpose.msra.mxu0 0
        %3549 = vmatpush.bf16.xpose.msra.mxu0 %v3541
        %3550 = vmatpush.bf16.xpose.msra.mxu0 %v3538
        %3551 = vmatmul.bf16.gmra.mxu0 %v3532
        %v3552 = vpop.f32.mrf.mxu0
        %v3553 = vadd.f32 0.0, %v3552
        %v3554 = vpop.f32.mrf.mxu0
        %v3555 = vadd.f32 0.0, %v3554
        %3556 = vmatmul.bf16.gmra.mxu0 %v3535
        %v3557 = vpop.f32.mrf.mxu0
        %v3558 = vadd.f32 0.0, %v3557
        %v3559 = vpop.f32.mrf.mxu0
        %v3560 = vadd.f32 0.0, %v3559
        %3561 = vdwg.mxu0
        %3562 = vrot.lane.b32.xlu0 %v1402, 112
        %v3563 = vpop.permute.xlu0 %3562
        %3564 = vrot.lane.b32.xlu0 %v1403, 112
        %v3565 = vpop.permute.xlu0 %3564
        %3566 = vrot.lane.b32.xlu0 %v1412, 112
        %v3567 = vpop.permute.xlu0 %3566
        %3568 = vrot.lane.b32.xlu0 %v1413, 112
        %v3569 = vpop.permute.xlu0 %3568
        %v3571 = vsel %vm1311, %v3563, 0
        %v3574 = vsel %vm1311, %v3565, 0
        %v3577 = vsel %vm1311, %v3567, 0
        %v3580 = vsel %vm1311, %v3569, 0
        %3582 = vmatpush.bf16.xpose.msra.mxu0 0
        %3583 = vmatpush.bf16.xpose.msra.mxu0 0
        %3584 = vmatpush.bf16.xpose.msra.mxu0 0
        %3585 = vmatpush.bf16.xpose.msra.mxu0 0
        %3586 = vmatpush.bf16.xpose.msra.mxu0 0
        %3587 = vmatpush.bf16.xpose.msra.mxu0 0
        %3588 = vmatpush.bf16.xpose.msra.mxu0 %v3580
        %3589 = vmatpush.bf16.xpose.msra.mxu0 %v3577
        %3590 = vmatmul.bf16.gmra.mxu0 %v3571
        %v3591 = vpop.f32.mrf.mxu0
        %v3592 = vadd.f32 0.0, %v3591
        %v3593 = vpop.f32.mrf.mxu0
        %v3594 = vadd.f32 0.0, %v3593
        %3595 = vmatmul.bf16.gmra.mxu0 %v3574
        %v3596 = vpop.f32.mrf.mxu0
        %v3597 = vadd.f32 0.0, %v3596
        %v3598 = vpop.f32.mrf.mxu0
        %v3599 = vadd.f32 0.0, %v3598
        %3600 = vdwg.mxu0
        %3601 = vrot.lane.b32.xlu0 %v1453, 112
        %v3602 = vpop.permute.xlu0 %3601
        %3603 = vrot.lane.b32.xlu0 %v1454, 112
        %v3604 = vpop.permute.xlu0 %3603
        %3605 = vrot.lane.b32.xlu0 %v1463, 112
        %v3606 = vpop.permute.xlu0 %3605
        %3607 = vrot.lane.b32.xlu0 %v1464, 112
        %v3608 = vpop.permute.xlu0 %3607
        %v3610 = vsel %vm1311, %v3602, 0
        %v3613 = vsel %vm1311, %v3604, 0
        %v3616 = vsel %vm1311, %v3606, 0
        %v3619 = vsel %vm1311, %v3608, 0
        %3621 = vmatpush.bf16.xpose.msra.mxu0 0
        %3622 = vmatpush.bf16.xpose.msra.mxu0 0
        %3623 = vmatpush.bf16.xpose.msra.mxu0 0
        %3624 = vmatpush.bf16.xpose.msra.mxu0 0
        %3625 = vmatpush.bf16.xpose.msra.mxu0 0
        %3626 = vmatpush.bf16.xpose.msra.mxu0 0
        %3627 = vmatpush.bf16.xpose.msra.mxu0 %v3619
        %3628 = vmatpush.bf16.xpose.msra.mxu0 %v3616
        %3629 = vmatmul.bf16.gmra.mxu0 %v3610
        %v3630 = vpop.f32.mrf.mxu0
        %v3631 = vadd.f32 0.0, %v3630
        %v3632 = vpop.f32.mrf.mxu0
        %v3633 = vadd.f32 0.0, %v3632
        %3634 = vmatmul.bf16.gmra.mxu0 %v3613
        %v3635 = vpop.f32.mrf.mxu0
        %v3636 = vadd.f32 0.0, %v3635
        %v3637 = vpop.f32.mrf.mxu0
        %v3638 = vadd.f32 0.0, %v3637
        %3639 = vdwg.mxu0
        %3640 = vrot.lane.b32.xlu0 %v1504, 112
        %v3641 = vpop.permute.xlu0 %3640
        %3642 = vrot.lane.b32.xlu0 %v1505, 112
        %v3643 = vpop.permute.xlu0 %3642
        %3644 = vrot.lane.b32.xlu0 %v1514, 112
        %v3645 = vpop.permute.xlu0 %3644
        %3646 = vrot.lane.b32.xlu0 %v1515, 112
        %v3647 = vpop.permute.xlu0 %3646
        %v3649 = vsel %vm1311, %v3641, 0
        %v3652 = vsel %vm1311, %v3643, 0
        %v3655 = vsel %vm1311, %v3645, 0
        %v3658 = vsel %vm1311, %v3647, 0
        %3660 = vmatpush.bf16.xpose.msra.mxu0 0
        %3661 = vmatpush.bf16.xpose.msra.mxu0 0
        %3662 = vmatpush.bf16.xpose.msra.mxu0 0
        %3663 = vmatpush.bf16.xpose.msra.mxu0 0
        %3664 = vmatpush.bf16.xpose.msra.mxu0 0
        %3665 = vmatpush.bf16.xpose.msra.mxu0 0
        %3666 = vmatpush.bf16.xpose.msra.mxu0 %v3658
        %3667 = vmatpush.bf16.xpose.msra.mxu0 %v3655
        %3668 = vmatmul.bf16.gmra.mxu0 %v3649
        %v3669 = vpop.f32.mrf.mxu0
        %v3670 = vadd.f32 0.0, %v3669
        %v3671 = vpop.f32.mrf.mxu0
        %v3672 = vadd.f32 0.0, %v3671
        %3673 = vmatmul.bf16.gmra.mxu0 %v3652
        %v3674 = vpop.f32.mrf.mxu0
        %v3675 = vadd.f32 0.0, %v3674
        %v3676 = vpop.f32.mrf.mxu0
        %v3677 = vadd.f32 0.0, %v3676
        %3678 = vdwg.mxu0
        %3679 = vrot.lane.b32.xlu0 %v1555, 112
        %v3680 = vpop.permute.xlu0 %3679
        %3681 = vrot.lane.b32.xlu0 %v1556, 112
        %v3682 = vpop.permute.xlu0 %3681
        %3683 = vrot.lane.b32.xlu0 %v1565, 112
        %v3684 = vpop.permute.xlu0 %3683
        %3685 = vrot.lane.b32.xlu0 %v1566, 112
        %v3686 = vpop.permute.xlu0 %3685
        %v3688 = vsel %vm1311, %v3680, 0
        %v3691 = vsel %vm1311, %v3682, 0
        %v3694 = vsel %vm1311, %v3684, 0
        %v3697 = vsel %vm1311, %v3686, 0
        %3699 = vmatpush.bf16.xpose.msra.mxu0 0
        %3700 = vmatpush.bf16.xpose.msra.mxu0 0
        %3701 = vmatpush.bf16.xpose.msra.mxu0 0
        %3702 = vmatpush.bf16.xpose.msra.mxu0 0
        %3703 = vmatpush.bf16.xpose.msra.mxu0 0
        %3704 = vmatpush.bf16.xpose.msra.mxu0 0
        %3705 = vmatpush.bf16.xpose.msra.mxu0 %v3697
        %3706 = vmatpush.bf16.xpose.msra.mxu0 %v3694
        %3707 = vmatmul.bf16.gmra.mxu0 %v3688
        %v3708 = vpop.f32.mrf.mxu0
        %v3709 = vadd.f32 0.0, %v3708
        %v3710 = vpop.f32.mrf.mxu0
        %v3711 = vadd.f32 0.0, %v3710
        %3712 = vmatmul.bf16.gmra.mxu0 %v3691
        %v3713 = vpop.f32.mrf.mxu0
        %v3714 = vadd.f32 0.0, %v3713
        %v3715 = vpop.f32.mrf.mxu0
        %v3716 = vadd.f32 0.0, %v3715
        %3717 = vdwg.mxu0
        %3718 = vrot.lane.b32.xlu0 %v1606, 112
        %v3719 = vpop.permute.xlu0 %3718
        %3720 = vrot.lane.b32.xlu0 %v1607, 112
        %v3721 = vpop.permute.xlu0 %3720
        %3722 = vrot.lane.b32.xlu0 %v1616, 112
        %v3723 = vpop.permute.xlu0 %3722
        %3724 = vrot.lane.b32.xlu0 %v1617, 112
        %v3725 = vpop.permute.xlu0 %3724
        %v3727 = vsel %vm1311, %v3719, 0
        %v3730 = vsel %vm1311, %v3721, 0
        %v3733 = vsel %vm1311, %v3723, 0
        %v3736 = vsel %vm1311, %v3725, 0
        %3738 = vmatpush.bf16.xpose.msra.mxu0 0
        %3739 = vmatpush.bf16.xpose.msra.mxu0 0
        %3740 = vmatpush.bf16.xpose.msra.mxu0 0
        %3741 = vmatpush.bf16.xpose.msra.mxu0 0
        %3742 = vmatpush.bf16.xpose.msra.mxu0 0
        %3743 = vmatpush.bf16.xpose.msra.mxu0 0
        %3744 = vmatpush.bf16.xpose.msra.mxu0 %v3736
        %3745 = vmatpush.bf16.xpose.msra.mxu0 %v3733
        %3746 = vmatmul.bf16.gmra.mxu0 %v3727
        %v3747 = vpop.f32.mrf.mxu0
        %v3748 = vadd.f32 0.0, %v3747
        %v3749 = vpop.f32.mrf.mxu0
        %v3750 = vadd.f32 0.0, %v3749
        %3751 = vmatmul.bf16.gmra.mxu0 %v3730
        %v3752 = vpop.f32.mrf.mxu0
        %v3753 = vadd.f32 0.0, %v3752
        %v3754 = vpop.f32.mrf.mxu0
        %v3755 = vadd.f32 0.0, %v3754
        %3756 = vdwg.mxu0
        %3757 = vrot.lane.b32.xlu0 %v1657, 112
        %v3758 = vpop.permute.xlu0 %3757
        %3759 = vrot.lane.b32.xlu0 %v1658, 112
        %v3760 = vpop.permute.xlu0 %3759
        %3761 = vrot.lane.b32.xlu0 %v1667, 112
        %v3762 = vpop.permute.xlu0 %3761
        %3763 = vrot.lane.b32.xlu0 %v1668, 112
        %v3764 = vpop.permute.xlu0 %3763
        %v3766 = vsel %vm1311, %v3758, 0
        %v3769 = vsel %vm1311, %v3760, 0
        %v3772 = vsel %vm1311, %v3762, 0
        %v3775 = vsel %vm1311, %v3764, 0
        %3777 = vmatpush.bf16.xpose.msra.mxu0 0
        %3778 = vmatpush.bf16.xpose.msra.mxu0 0
        %3779 = vmatpush.bf16.xpose.msra.mxu0 0
        %3780 = vmatpush.bf16.xpose.msra.mxu0 0
        %3781 = vmatpush.bf16.xpose.msra.mxu0 0
        %3782 = vmatpush.bf16.xpose.msra.mxu0 0
        %3783 = vmatpush.bf16.xpose.msra.mxu0 %v3775
        %3784 = vmatpush.bf16.xpose.msra.mxu0 %v3772
        %3785 = vmatmul.bf16.gmra.mxu0 %v3766
        %v3786 = vpop.f32.mrf.mxu0
        %v3787 = vadd.f32 0.0, %v3786
        %v3788 = vpop.f32.mrf.mxu0
        %v3789 = vadd.f32 0.0, %v3788
        %3790 = vmatmul.bf16.gmra.mxu0 %v3769
        %v3791 = vpop.f32.mrf.mxu0
        %v3792 = vadd.f32 0.0, %v3791
        %v3793 = vpop.f32.mrf.mxu0
        %v3794 = vadd.f32 0.0, %v3793
        %3795 = vdwg.mxu0
        %v3796 = vsel %vm483, %v3514, -inf
        %3797 = vmax.xlane.f32.xlu0 %v3796
        %v3798 = vpop.xlane.xlu0 %3797
        %v3799 = vsel %vm483, %v3516, -inf
        %3800 = vmax.xlane.f32.xlu0 %v3799
        %v3801 = vpop.xlane.xlu0 %3800
        %v3802 = vsel %vm483, %v3519, -inf
        %3803 = vmax.xlane.f32.xlu0 %v3802
        %v3804 = vpop.xlane.xlu0 %3803
        %v3805 = vsel %vm483, %v3521, -inf
        %3806 = vmax.xlane.f32.xlu0 %v3805
        %v3807 = vpop.xlane.xlu0 %3806
        %v3808 = vsel %vm483, %v3553, -inf
        %3809 = vmax.xlane.f32.xlu0 %v3808
        %v3810 = vpop.xlane.xlu0 %3809
        %v3811 = vsel %vm483, %v3555, -inf
        %3812 = vmax.xlane.f32.xlu0 %v3811
        %v3813 = vpop.xlane.xlu0 %3812
        %v3814 = vsel %vm483, %v3558, -inf
        %3815 = vmax.xlane.f32.xlu0 %v3814
        %v3816 = vpop.xlane.xlu0 %3815
        %v3817 = vsel %vm483, %v3560, -inf
        %3818 = vmax.xlane.f32.xlu0 %v3817
        %v3819 = vpop.xlane.xlu0 %3818
        %v3820 = vsel %vm483, %v3592, -inf
        %3821 = vmax.xlane.f32.xlu0 %v3820
        %v3822 = vpop.xlane.xlu0 %3821
        %v3823 = vsel %vm483, %v3594, -inf
        %3824 = vmax.xlane.f32.xlu0 %v3823
        %v3825 = vpop.xlane.xlu0 %3824
        %v3826 = vsel %vm483, %v3597, -inf
        %3827 = vmax.xlane.f32.xlu0 %v3826
        %v3828 = vpop.xlane.xlu0 %3827
        %v3829 = vsel %vm483, %v3599, -inf
        %3830 = vmax.xlane.f32.xlu0 %v3829
        %v3831 = vpop.xlane.xlu0 %3830
        %v3832 = vsel %vm483, %v3631, -inf
        %3833 = vmax.xlane.f32.xlu0 %v3832
        %v3834 = vpop.xlane.xlu0 %3833
        %v3835 = vsel %vm483, %v3633, -inf
        %3836 = vmax.xlane.f32.xlu0 %v3835
        %v3837 = vpop.xlane.xlu0 %3836
        %v3838 = vsel %vm483, %v3636, -inf
        %3839 = vmax.xlane.f32.xlu0 %v3838
        %v3840 = vpop.xlane.xlu0 %3839
        %v3841 = vsel %vm483, %v3638, -inf
        %3842 = vmax.xlane.f32.xlu0 %v3841
        %v3843 = vpop.xlane.xlu0 %3842
        %v3844 = vsel %vm483, %v3670, -inf
        %3845 = vmax.xlane.f32.xlu0 %v3844
        %v3846 = vpop.xlane.xlu0 %3845
        %v3847 = vsel %vm483, %v3672, -inf
        %3848 = vmax.xlane.f32.xlu0 %v3847
        %v3849 = vpop.xlane.xlu0 %3848
        %v3850 = vsel %vm483, %v3675, -inf
        %3851 = vmax.xlane.f32.xlu0 %v3850
        %v3852 = vpop.xlane.xlu0 %3851
        %v3853 = vsel %vm483, %v3677, -inf
        %3854 = vmax.xlane.f32.xlu0 %v3853
        %v3855 = vpop.xlane.xlu0 %3854
        %v3856 = vsel %vm483, %v3709, -inf
        %3857 = vmax.xlane.f32.xlu0 %v3856
        %v3858 = vpop.xlane.xlu0 %3857
        %v3859 = vsel %vm483, %v3711, -inf
        %3860 = vmax.xlane.f32.xlu0 %v3859
        %v3861 = vpop.xlane.xlu0 %3860
        %v3862 = vsel %vm483, %v3714, -inf
        %3863 = vmax.xlane.f32.xlu0 %v3862
        %v3864 = vpop.xlane.xlu0 %3863
        %v3865 = vsel %vm483, %v3716, -inf
        %3866 = vmax.xlane.f32.xlu0 %v3865
        %v3867 = vpop.xlane.xlu0 %3866
        %v3868 = vsel %vm483, %v3748, -inf
        %3869 = vmax.xlane.f32.xlu0 %v3868
        %v3870 = vpop.xlane.xlu0 %3869
        %v3871 = vsel %vm483, %v3750, -inf
        %3872 = vmax.xlane.f32.xlu0 %v3871
        %v3873 = vpop.xlane.xlu0 %3872
        %v3874 = vsel %vm483, %v3753, -inf
        %3875 = vmax.xlane.f32.xlu0 %v3874
        %v3876 = vpop.xlane.xlu0 %3875
        %v3877 = vsel %vm483, %v3755, -inf
        %3878 = vmax.xlane.f32.xlu0 %v3877
        %v3879 = vpop.xlane.xlu0 %3878
        %v3880 = vsel %vm483, %v3787, -inf
        %3881 = vmax.xlane.f32.xlu0 %v3880
        %v3882 = vpop.xlane.xlu0 %3881
        %v3883 = vsel %vm483, %v3789, -inf
        %3884 = vmax.xlane.f32.xlu0 %v3883
        %v3885 = vpop.xlane.xlu0 %3884
        %v3886 = vsel %vm483, %v3792, -inf
        %3887 = vmax.xlane.f32.xlu0 %v3886
        %v3888 = vpop.xlane.xlu0 %3887
        %v3889 = vsel %vm483, %v3794, -inf
        %3890 = vmax.xlane.f32.xlu0 %v3889
        %v3891 = vpop.xlane.xlu0 %3890
        %v3892 = vsub.f32 %v3514, %v3798
        %v3893 = vsub.f32 %v3516, %v3801
        %v3894 = vsub.f32 %v3519, %v3804
        %v3895 = vsub.f32 %v3521, %v3807
        %v3896 = vsub.f32 %v3553, %v3810
        %v3897 = vsub.f32 %v3555, %v3813
        %v3898 = vsub.f32 %v3558, %v3816
        %v3899 = vsub.f32 %v3560, %v3819
        %v3900 = vsub.f32 %v3592, %v3822
        %v3901 = vsub.f32 %v3594, %v3825
        %v3902 = vsub.f32 %v3597, %v3828
        %v3903 = vsub.f32 %v3599, %v3831
        %v3904 = vsub.f32 %v3631, %v3834
        %v3905 = vsub.f32 %v3633, %v3837
        %v3906 = vsub.f32 %v3636, %v3840
        %v3907 = vsub.f32 %v3638, %v3843
        %v3908 = vsub.f32 %v3670, %v3846
        %v3909 = vsub.f32 %v3672, %v3849
        %v3910 = vsub.f32 %v3675, %v3852
        %v3911 = vsub.f32 %v3677, %v3855
        %v3912 = vsub.f32 %v3709, %v3858
        %v3913 = vsub.f32 %v3711, %v3861
        %v3914 = vsub.f32 %v3714, %v3864
        %v3915 = vsub.f32 %v3716, %v3867
        %v3916 = vsub.f32 %v3748, %v3870
        %v3917 = vsub.f32 %v3750, %v3873
        %v3918 = vsub.f32 %v3753, %v3876
        %v3919 = vsub.f32 %v3755, %v3879
        %v3920 = vsub.f32 %v3787, %v3882
        %v3921 = vsub.f32 %v3789, %v3885
        %v3922 = vsub.f32 %v3792, %v3888
        %v3923 = vsub.f32 %v3794, %v3891
        %v3924 = vmul.f32 %v3892, 1.442695
        %v3925 = vpow.pop %v3924
        %v3926 = vmul.f32 %v3893, 1.442695
        %v3927 = vpow.pop %v3926
        %v3928 = vmul.f32 %v3894, 1.442695
        %v3929 = vpow.pop %v3928
        %v3930 = vmul.f32 %v3895, 1.442695
        %v3931 = vpow.pop %v3930
        %v3932 = vmul.f32 %v3896, 1.442695
        %v3933 = vpow.pop %v3932
        %v3934 = vmul.f32 %v3897, 1.442695
        %v3935 = vpow.pop %v3934
        %v3936 = vmul.f32 %v3898, 1.442695
        %v3937 = vpow.pop %v3936
        %v3938 = vmul.f32 %v3899, 1.442695
        %v3939 = vpow.pop %v3938
        %v3940 = vmul.f32 %v3900, 1.442695
        %v3941 = vpow.pop %v3940
        %v3942 = vmul.f32 %v3901, 1.442695
        %v3943 = vpow.pop %v3942
        %v3944 = vmul.f32 %v3902, 1.442695
        %v3945 = vpow.pop %v3944
        %v3946 = vmul.f32 %v3903, 1.442695
        %v3947 = vpow.pop %v3946
        %v3948 = vmul.f32 %v3904, 1.442695
        %v3949 = vpow.pop %v3948
        %v3950 = vmul.f32 %v3905, 1.442695
        %v3951 = vpow.pop %v3950
        %v3952 = vmul.f32 %v3906, 1.442695
        %v3953 = vpow.pop %v3952
        %v3954 = vmul.f32 %v3907, 1.442695
        %v3955 = vpow.pop %v3954
        %v3956 = vmul.f32 %v3908, 1.442695
        %v3957 = vpow.pop %v3956
        %v3958 = vmul.f32 %v3909, 1.442695
        %v3959 = vpow.pop %v3958
        %v3960 = vmul.f32 %v3910, 1.442695
        %v3961 = vpow.pop %v3960
        %v3962 = vmul.f32 %v3911, 1.442695
        %v3963 = vpow.pop %v3962
        %v3964 = vmul.f32 %v3912, 1.442695
        %v3965 = vpow.pop %v3964
        %v3966 = vmul.f32 %v3913, 1.442695
        %v3967 = vpow.pop %v3966
        %v3968 = vmul.f32 %v3914, 1.442695
        %v3969 = vpow.pop %v3968
        %v3970 = vmul.f32 %v3915, 1.442695
        %v3971 = vpow.pop %v3970
        %v3972 = vmul.f32 %v3916, 1.442695
        %v3973 = vpow.pop %v3972
        %v3974 = vmul.f32 %v3917, 1.442695
        %v3975 = vpow.pop %v3974
        %v3976 = vmul.f32 %v3918, 1.442695
        %v3977 = vpow.pop %v3976
        %v3978 = vmul.f32 %v3919, 1.442695
        %v3979 = vpow.pop %v3978
        %v3980 = vmul.f32 %v3920, 1.442695
        %v3981 = vpow.pop %v3980
        %v3982 = vmul.f32 %v3921, 1.442695
        %v3983 = vpow.pop %v3982
        %v3984 = vmul.f32 %v3922, 1.442695
        %v3985 = vpow.pop %v3984
        %v3986 = vmul.f32 %v3923, 1.442695
        %v3987 = vpow.pop %v3986
        %v3988 = vsel %vm483, %v3925, 0.0
        %3989 = vadd.xlane.f32.xlu0 %v3988
        %v3990 = vpop.xlane.xlu0 %3989
        %v3991 = vsel %vm483, %v3927, 0.0
        %3992 = vadd.xlane.f32.xlu0 %v3991
        %v3993 = vpop.xlane.xlu0 %3992
        %v3994 = vsel %vm483, %v3929, 0.0
        %3995 = vadd.xlane.f32.xlu0 %v3994
        %v3996 = vpop.xlane.xlu0 %3995
        %v3997 = vsel %vm483, %v3931, 0.0
        %3998 = vadd.xlane.f32.xlu0 %v3997
        %v3999 = vpop.xlane.xlu0 %3998
        %v4000 = vsel %vm483, %v3933, 0.0
        %4001 = vadd.xlane.f32.xlu0 %v4000
        %v4002 = vpop.xlane.xlu0 %4001
        %v4003 = vsel %vm483, %v3935, 0.0
        %4004 = vadd.xlane.f32.xlu0 %v4003
        %v4005 = vpop.xlane.xlu0 %4004
        %v4006 = vsel %vm483, %v3937, 0.0
        %4007 = vadd.xlane.f32.xlu0 %v4006
        %v4008 = vpop.xlane.xlu0 %4007
        %v4009 = vsel %vm483, %v3939, 0.0
        %4010 = vadd.xlane.f32.xlu0 %v4009
        %v4011 = vpop.xlane.xlu0 %4010
        %v4012 = vsel %vm483, %v3941, 0.0
        %4013 = vadd.xlane.f32.xlu0 %v4012
        %v4014 = vpop.xlane.xlu0 %4013
        %v4015 = vsel %vm483, %v3943, 0.0
        %4016 = vadd.xlane.f32.xlu0 %v4015
        %v4017 = vpop.xlane.xlu0 %4016
        %v4018 = vsel %vm483, %v3945, 0.0
        %4019 = vadd.xlane.f32.xlu0 %v4018
        %v4020 = vpop.xlane.xlu0 %4019
        %v4021 = vsel %vm483, %v3947, 0.0
        %4022 = vadd.xlane.f32.xlu0 %v4021
        %v4023 = vpop.xlane.xlu0 %4022
        %v4024 = vsel %vm483, %v3949, 0.0
        %4025 = vadd.xlane.f32.xlu0 %v4024
        %v4026 = vpop.xlane.xlu0 %4025
        %v4027 = vsel %vm483, %v3951, 0.0
        %4028 = vadd.xlane.f32.xlu0 %v4027
        %v4029 = vpop.xlane.xlu0 %4028
        %v4030 = vsel %vm483, %v3953, 0.0
        %4031 = vadd.xlane.f32.xlu0 %v4030
        %v4032 = vpop.xlane.xlu0 %4031
        %v4033 = vsel %vm483, %v3955, 0.0
        %4034 = vadd.xlane.f32.xlu0 %v4033
        %v4035 = vpop.xlane.xlu0 %4034
        %v4036 = vsel %vm483, %v3957, 0.0
        %4037 = vadd.xlane.f32.xlu0 %v4036
        %v4038 = vpop.xlane.xlu0 %4037
        %v4039 = vsel %vm483, %v3959, 0.0
        %4040 = vadd.xlane.f32.xlu0 %v4039
        %v4041 = vpop.xlane.xlu0 %4040
        %v4042 = vsel %vm483, %v3961, 0.0
        %4043 = vadd.xlane.f32.xlu0 %v4042
        %v4044 = vpop.xlane.xlu0 %4043
        %v4045 = vsel %vm483, %v3963, 0.0
        %4046 = vadd.xlane.f32.xlu0 %v4045
        %v4047 = vpop.xlane.xlu0 %4046
        %v4048 = vsel %vm483, %v3965, 0.0
        %4049 = vadd.xlane.f32.xlu0 %v4048
        %v4050 = vpop.xlane.xlu0 %4049
        %v4051 = vsel %vm483, %v3967, 0.0
        %4052 = vadd.xlane.f32.xlu0 %v4051
        %v4053 = vpop.xlane.xlu0 %4052
        %v4054 = vsel %vm483, %v3969, 0.0
        %4055 = vadd.xlane.f32.xlu0 %v4054
        %v4056 = vpop.xlane.xlu0 %4055
        %v4057 = vsel %vm483, %v3971, 0.0
        %4058 = vadd.xlane.f32.xlu0 %v4057
        %v4059 = vpop.xlane.xlu0 %4058
        %v4060 = vsel %vm483, %v3973, 0.0
        %4061 = vadd.xlane.f32.xlu0 %v4060
        %v4062 = vpop.xlane.xlu0 %4061
        %v4063 = vsel %vm483, %v3975, 0.0
        %4064 = vadd.xlane.f32.xlu0 %v4063
        %v4065 = vpop.xlane.xlu0 %4064
        %v4066 = vsel %vm483, %v3977, 0.0
        %4067 = vadd.xlane.f32.xlu0 %v4066
        %v4068 = vpop.xlane.xlu0 %4067
        %v4069 = vsel %vm483, %v3979, 0.0
        %4070 = vadd.xlane.f32.xlu0 %v4069
        %v4071 = vpop.xlane.xlu0 %4070
        %v4072 = vsel %vm483, %v3981, 0.0
        %4073 = vadd.xlane.f32.xlu0 %v4072
        %v4074 = vpop.xlane.xlu0 %4073
        %v4075 = vsel %vm483, %v3983, 0.0
        %4076 = vadd.xlane.f32.xlu0 %v4075
        %v4077 = vpop.xlane.xlu0 %4076
        %v4078 = vsel %vm483, %v3985, 0.0
        %4079 = vadd.xlane.f32.xlu0 %v4078
        %v4080 = vpop.xlane.xlu0 %4079
        %v4081 = vsel %vm483, %v3987, 0.0
        %4082 = vadd.xlane.f32.xlu0 %v4081
        %v4083 = vpop.xlane.xlu0 %4082
        %v4084 = vrcp.pop %v3990
        %v4085 = vrcp.pop %v3993
        %v4086 = vrcp.pop %v3996
        %v4087 = vrcp.pop %v3999
        %v4088 = vrcp.pop %v4002
        %v4089 = vrcp.pop %v4005
        %v4090 = vrcp.pop %v4008
        %v4091 = vrcp.pop %v4011
        %v4092 = vrcp.pop %v4014
        %v4093 = vrcp.pop %v4017
        %v4094 = vrcp.pop %v4020
        %v4095 = vrcp.pop %v4023
        %v4096 = vrcp.pop %v4026
        %v4097 = vrcp.pop %v4029
        %v4098 = vrcp.pop %v4032
        %v4099 = vrcp.pop %v4035
        %v4100 = vrcp.pop %v4038
        %v4101 = vrcp.pop %v4041
        %v4102 = vrcp.pop %v4044
        %v4103 = vrcp.pop %v4047
        %v4104 = vrcp.pop %v4050
        %v4105 = vrcp.pop %v4053
        %v4106 = vrcp.pop %v4056
        %v4107 = vrcp.pop %v4059
        %v4108 = vrcp.pop %v4062
        %v4109 = vrcp.pop %v4065
        %v4110 = vrcp.pop %v4068
        %v4111 = vrcp.pop %v4071
        %v4112 = vrcp.pop %v4074
        %v4113 = vrcp.pop %v4077
        %v4114 = vrcp.pop %v4080
        %v4115 = vrcp.pop %v4083
        %v4116 = vmul.f32 %v3925, %v4084
        %v4117 = vmul.f32 %v3927, %v4085
        %v4118 = vmul.f32 %v3929, %v4086
        %v4119 = vmul.f32 %v3931, %v4087
        %v4120 = vmul.f32 %v3933, %v4088
        %v4121 = vmul.f32 %v3935, %v4089
        %v4122 = vmul.f32 %v3937, %v4090
        %v4123 = vmul.f32 %v3939, %v4091
        %v4124 = vmul.f32 %v3941, %v4092
        %v4125 = vmul.f32 %v3943, %v4093
        %v4126 = vmul.f32 %v3945, %v4094
        %v4127 = vmul.f32 %v3947, %v4095
        %v4128 = vmul.f32 %v3949, %v4096
        %v4129 = vmul.f32 %v3951, %v4097
        %v4130 = vmul.f32 %v3953, %v4098
        %v4131 = vmul.f32 %v3955, %v4099
        %v4132 = vmul.f32 %v3957, %v4100
        %v4133 = vmul.f32 %v3959, %v4101
        %v4134 = vmul.f32 %v3961, %v4102
        %v4135 = vmul.f32 %v3963, %v4103
        %v4136 = vmul.f32 %v3965, %v4104
        %v4137 = vmul.f32 %v3967, %v4105
        %v4138 = vmul.f32 %v3969, %v4106
        %v4139 = vmul.f32 %v3971, %v4107
        %v4140 = vmul.f32 %v3973, %v4108
        %v4141 = vmul.f32 %v3975, %v4109
        %v4142 = vmul.f32 %v3977, %v4110
        %v4143 = vmul.f32 %v3979, %v4111
        %v4144 = vmul.f32 %v3981, %v4112
        %v4145 = vmul.f32 %v3983, %v4113
        %v4146 = vmul.f32 %v3985, %v4114
        %v4147 = vmul.f32 %v3987, %v4115
        %v4148 = vpack.c.bf16 %v4116, %v4116
        %v4149 = vpack.c.bf16 %v4117, %v4117
        %v4150 = vpack.c.bf16 %v4118, %v4118
        %v4151 = vpack.c.bf16 %v4119, %v4119
        %v4152 = vpack.c.bf16 %v4120, %v4120
        %v4153 = vpack.c.bf16 %v4121, %v4121
        %v4154 = vpack.c.bf16 %v4122, %v4122
        %v4155 = vpack.c.bf16 %v4123, %v4123
        %v4156 = vpack.c.bf16 %v4124, %v4124
        %v4157 = vpack.c.bf16 %v4125, %v4125
        %v4158 = vpack.c.bf16 %v4126, %v4126
        %v4159 = vpack.c.bf16 %v4127, %v4127
        %v4160 = vpack.c.bf16 %v4128, %v4128
        %v4161 = vpack.c.bf16 %v4129, %v4129
        %v4162 = vpack.c.bf16 %v4130, %v4130
        %v4163 = vpack.c.bf16 %v4131, %v4131
        %v4164 = vpack.c.bf16 %v4132, %v4132
        %v4165 = vpack.c.bf16 %v4133, %v4133
        %v4166 = vpack.c.bf16 %v4134, %v4134
        %v4167 = vpack.c.bf16 %v4135, %v4135
        %v4168 = vpack.c.bf16 %v4136, %v4136
        %v4169 = vpack.c.bf16 %v4137, %v4137
        %v4170 = vpack.c.bf16 %v4138, %v4138
        %v4171 = vpack.c.bf16 %v4139, %v4139
        %v4172 = vpack.c.bf16 %v4140, %v4140
        %v4173 = vpack.c.bf16 %v4141, %v4141
        %v4174 = vpack.c.bf16 %v4142, %v4142
        %v4175 = vpack.c.bf16 %v4143, %v4143
        %v4176 = vpack.c.bf16 %v4144, %v4144
        %v4177 = vpack.c.bf16 %v4145, %v4145
        %v4178 = vpack.c.bf16 %v4146, %v4146
        %v4179 = vpack.c.bf16 %v4147, %v4147
        %v4184 = vunpack.c.l.b16 %v4148
        %v4185 = vunpack.c.l.b16 %v4149
        %v4186 = vunpack.c.l.b16 %v4150
        %v4187 = vunpack.c.l.b16 %v4151
        %v4188 = vpack.c.b16 %v4185, %v4184
        %v4189 = vpack.c.b16 %v4187, %v4186
        %4190 = vrot.lane.b32.xlu0 %v2102, 112
        %v4191 = vpop.permute.xlu0 %4190
        %4192 = vrot.lane.b32.xlu0 %v2103, 112
        %v4193 = vpop.permute.xlu0 %4192
        %v4197 = vsel %vm483, %v4188, 0
        %v4200 = vsel %vm483, %v4189, 0
        %4202 = vmatpush.bf16.msra.mxu0 0
        %4203 = vmatpush.bf16.msra.mxu0 0
        %4204 = vmatpush.bf16.msra.mxu0 0
        %4205 = vmatpush.bf16.msra.mxu0 0
        %4206 = vmatpush.bf16.msra.mxu0 0
        %4207 = vmatpush.bf16.msra.mxu0 0
        %4208 = vmatpush.bf16.msra.mxu0 %v4193
        %4209 = vmatpush.bf16.msra.mxu0 %v4191
        %4210 = vmatmul.bf16.gmra.mxu0 %v4197
        %v4211 = vpop.f32.mrf.mxu0
        %v4212 = vadd.f32 0.0, %v4211
        %v4213 = vpop.f32.mrf.mxu0
        %v4214 = vadd.f32 0.0, %v4213
        %4215 = vmatmul.bf16.gmra.mxu0 %v4200
        %v4216 = vpop.f32.mrf.mxu0
        %v4217 = vadd.f32 0.0, %v4216
        %v4218 = vpop.f32.mrf.mxu0
        %v4219 = vadd.f32 0.0, %v4218
        %4220 = vdwg.mxu0
        %v4225 = vunpack.c.l.b16 %v4152
        %v4226 = vunpack.c.l.b16 %v4153
        %v4227 = vunpack.c.l.b16 %v4154
        %v4228 = vunpack.c.l.b16 %v4155
        %v4229 = vpack.c.b16 %v4226, %v4225
        %v4230 = vpack.c.b16 %v4228, %v4227
        %4231 = vrot.lane.b32.xlu0 %v2149, 112
        %v4232 = vpop.permute.xlu0 %4231
        %4233 = vrot.lane.b32.xlu0 %v2150, 112
        %v4234 = vpop.permute.xlu0 %4233
        %v4238 = vsel %vm483, %v4229, 0
        %v4241 = vsel %vm483, %v4230, 0
        %4243 = vmatpush.bf16.msra.mxu0 0
        %4244 = vmatpush.bf16.msra.mxu0 0
        %4245 = vmatpush.bf16.msra.mxu0 0
        %4246 = vmatpush.bf16.msra.mxu0 0
        %4247 = vmatpush.bf16.msra.mxu0 0
        %4248 = vmatpush.bf16.msra.mxu0 0
        %4249 = vmatpush.bf16.msra.mxu0 %v4234
        %4250 = vmatpush.bf16.msra.mxu0 %v4232
        %4251 = vmatmul.bf16.gmra.mxu0 %v4238
        %v4252 = vpop.f32.mrf.mxu0
        %v4253 = vadd.f32 0.0, %v4252
        %v4254 = vpop.f32.mrf.mxu0
        %v4255 = vadd.f32 0.0, %v4254
        %4256 = vmatmul.bf16.gmra.mxu0 %v4241
        %v4257 = vpop.f32.mrf.mxu0
        %v4258 = vadd.f32 0.0, %v4257
        %v4259 = vpop.f32.mrf.mxu0
        %v4260 = vadd.f32 0.0, %v4259
        %4261 = vdwg.mxu0
        %v4266 = vunpack.c.l.b16 %v4156
        %v4267 = vunpack.c.l.b16 %v4157
        %v4268 = vunpack.c.l.b16 %v4158
        %v4269 = vunpack.c.l.b16 %v4159
        %v4270 = vpack.c.b16 %v4267, %v4266
        %v4271 = vpack.c.b16 %v4269, %v4268
        %4272 = vrot.lane.b32.xlu0 %v2196, 112
        %v4273 = vpop.permute.xlu0 %4272
        %4274 = vrot.lane.b32.xlu0 %v2197, 112
        %v4275 = vpop.permute.xlu0 %4274
        %v4279 = vsel %vm483, %v4270, 0
        %v4282 = vsel %vm483, %v4271, 0
        %4284 = vmatpush.bf16.msra.mxu0 0
        %4285 = vmatpush.bf16.msra.mxu0 0
        %4286 = vmatpush.bf16.msra.mxu0 0
        %4287 = vmatpush.bf16.msra.mxu0 0
        %4288 = vmatpush.bf16.msra.mxu0 0
        %4289 = vmatpush.bf16.msra.mxu0 0
        %4290 = vmatpush.bf16.msra.mxu0 %v4275
        %4291 = vmatpush.bf16.msra.mxu0 %v4273
        %4292 = vmatmul.bf16.gmra.mxu0 %v4279
        %v4293 = vpop.f32.mrf.mxu0
        %v4294 = vadd.f32 0.0, %v4293
        %v4295 = vpop.f32.mrf.mxu0
        %v4296 = vadd.f32 0.0, %v4295
        %4297 = vmatmul.bf16.gmra.mxu0 %v4282
        %v4298 = vpop.f32.mrf.mxu0
        %v4299 = vadd.f32 0.0, %v4298
        %v4300 = vpop.f32.mrf.mxu0
        %v4301 = vadd.f32 0.0, %v4300
        %4302 = vdwg.mxu0
        %v4307 = vunpack.c.l.b16 %v4160
        %v4308 = vunpack.c.l.b16 %v4161
        %v4309 = vunpack.c.l.b16 %v4162
        %v4310 = vunpack.c.l.b16 %v4163
        %v4311 = vpack.c.b16 %v4308, %v4307
        %v4312 = vpack.c.b16 %v4310, %v4309
        %4313 = vrot.lane.b32.xlu0 %v2243, 112
        %v4314 = vpop.permute.xlu0 %4313
        %4315 = vrot.lane.b32.xlu0 %v2244, 112
        %v4316 = vpop.permute.xlu0 %4315
        %v4320 = vsel %vm483, %v4311, 0
        %v4323 = vsel %vm483, %v4312, 0
        %4325 = vmatpush.bf16.msra.mxu0 0
        %4326 = vmatpush.bf16.msra.mxu0 0
        %4327 = vmatpush.bf16.msra.mxu0 0
        %4328 = vmatpush.bf16.msra.mxu0 0
        %4329 = vmatpush.bf16.msra.mxu0 0
        %4330 = vmatpush.bf16.msra.mxu0 0
        %4331 = vmatpush.bf16.msra.mxu0 %v4316
        %4332 = vmatpush.bf16.msra.mxu0 %v4314
        %4333 = vmatmul.bf16.gmra.mxu0 %v4320
        %v4334 = vpop.f32.mrf.mxu0
        %v4335 = vadd.f32 0.0, %v4334
        %v4336 = vpop.f32.mrf.mxu0
        %v4337 = vadd.f32 0.0, %v4336
        %4338 = vmatmul.bf16.gmra.mxu0 %v4323
        %v4339 = vpop.f32.mrf.mxu0
        %v4340 = vadd.f32 0.0, %v4339
        %v4341 = vpop.f32.mrf.mxu0
        %v4342 = vadd.f32 0.0, %v4341
        %4343 = vdwg.mxu0
        %v4348 = vunpack.c.l.b16 %v4164
        %v4349 = vunpack.c.l.b16 %v4165
        %v4350 = vunpack.c.l.b16 %v4166
        %v4351 = vunpack.c.l.b16 %v4167
        %v4352 = vpack.c.b16 %v4349, %v4348
        %v4353 = vpack.c.b16 %v4351, %v4350
        %4354 = vrot.lane.b32.xlu0 %v2290, 112
        %v4355 = vpop.permute.xlu0 %4354
        %4356 = vrot.lane.b32.xlu0 %v2291, 112
        %v4357 = vpop.permute.xlu0 %4356
        %v4361 = vsel %vm483, %v4352, 0
        %v4364 = vsel %vm483, %v4353, 0
        %4366 = vmatpush.bf16.msra.mxu0 0
        %4367 = vmatpush.bf16.msra.mxu0 0
        %4368 = vmatpush.bf16.msra.mxu0 0
        %4369 = vmatpush.bf16.msra.mxu0 0
        %4370 = vmatpush.bf16.msra.mxu0 0
        %4371 = vmatpush.bf16.msra.mxu0 0
        %4372 = vmatpush.bf16.msra.mxu0 %v4357
        %4373 = vmatpush.bf16.msra.mxu0 %v4355
        %4374 = vmatmul.bf16.gmra.mxu0 %v4361
        %v4375 = vpop.f32.mrf.mxu0
        %v4376 = vadd.f32 0.0, %v4375
        %v4377 = vpop.f32.mrf.mxu0
        %v4378 = vadd.f32 0.0, %v4377
        %4379 = vmatmul.bf16.gmra.mxu0 %v4364
        %v4380 = vpop.f32.mrf.mxu0
        %v4381 = vadd.f32 0.0, %v4380
        %v4382 = vpop.f32.mrf.mxu0
        %v4383 = vadd.f32 0.0, %v4382
        %4384 = vdwg.mxu0
        %v4389 = vunpack.c.l.b16 %v4168
        %v4390 = vunpack.c.l.b16 %v4169
        %v4391 = vunpack.c.l.b16 %v4170
        %v4392 = vunpack.c.l.b16 %v4171
        %v4393 = vpack.c.b16 %v4390, %v4389
        %v4394 = vpack.c.b16 %v4392, %v4391
        %4395 = vrot.lane.b32.xlu0 %v2337, 112
        %v4396 = vpop.permute.xlu0 %4395
        %4397 = vrot.lane.b32.xlu0 %v2338, 112
        %v4398 = vpop.permute.xlu0 %4397
        %v4402 = vsel %vm483, %v4393, 0
        %v4405 = vsel %vm483, %v4394, 0
        %4407 = vmatpush.bf16.msra.mxu0 0
        %4408 = vmatpush.bf16.msra.mxu0 0
        %4409 = vmatpush.bf16.msra.mxu0 0
        %4410 = vmatpush.bf16.msra.mxu0 0
        %4411 = vmatpush.bf16.msra.mxu0 0
        %4412 = vmatpush.bf16.msra.mxu0 0
        %4413 = vmatpush.bf16.msra.mxu0 %v4398
        %4414 = vmatpush.bf16.msra.mxu0 %v4396
        %4415 = vmatmul.bf16.gmra.mxu0 %v4402
        %v4416 = vpop.f32.mrf.mxu0
        %v4417 = vadd.f32 0.0, %v4416
        %v4418 = vpop.f32.mrf.mxu0
        %v4419 = vadd.f32 0.0, %v4418
        %4420 = vmatmul.bf16.gmra.mxu0 %v4405
        %v4421 = vpop.f32.mrf.mxu0
        %v4422 = vadd.f32 0.0, %v4421
        %v4423 = vpop.f32.mrf.mxu0
        %v4424 = vadd.f32 0.0, %v4423
        %4425 = vdwg.mxu0
        %v4430 = vunpack.c.l.b16 %v4172
        %v4431 = vunpack.c.l.b16 %v4173
        %v4432 = vunpack.c.l.b16 %v4174
        %v4433 = vunpack.c.l.b16 %v4175
        %v4434 = vpack.c.b16 %v4431, %v4430
        %v4435 = vpack.c.b16 %v4433, %v4432
        %4436 = vrot.lane.b32.xlu0 %v2384, 112
        %v4437 = vpop.permute.xlu0 %4436
        %4438 = vrot.lane.b32.xlu0 %v2385, 112
        %v4439 = vpop.permute.xlu0 %4438
        %v4443 = vsel %vm483, %v4434, 0
        %v4446 = vsel %vm483, %v4435, 0
        %4448 = vmatpush.bf16.msra.mxu0 0
        %4449 = vmatpush.bf16.msra.mxu0 0
        %4450 = vmatpush.bf16.msra.mxu0 0
        %4451 = vmatpush.bf16.msra.mxu0 0
        %4452 = vmatpush.bf16.msra.mxu0 0
        %4453 = vmatpush.bf16.msra.mxu0 0
        %4454 = vmatpush.bf16.msra.mxu0 %v4439
        %4455 = vmatpush.bf16.msra.mxu0 %v4437
        %4456 = vmatmul.bf16.gmra.mxu0 %v4443
        %v4457 = vpop.f32.mrf.mxu0
        %v4458 = vadd.f32 0.0, %v4457
        %v4459 = vpop.f32.mrf.mxu0
        %v4460 = vadd.f32 0.0, %v4459
        %4461 = vmatmul.bf16.gmra.mxu0 %v4446
        %v4462 = vpop.f32.mrf.mxu0
        %v4463 = vadd.f32 0.0, %v4462
        %v4464 = vpop.f32.mrf.mxu0
        %v4465 = vadd.f32 0.0, %v4464
        %4466 = vdwg.mxu0
        %v4471 = vunpack.c.l.b16 %v4176
        %v4472 = vunpack.c.l.b16 %v4177
        %v4473 = vunpack.c.l.b16 %v4178
        %v4474 = vunpack.c.l.b16 %v4179
        %v4475 = vpack.c.b16 %v4472, %v4471
        %v4476 = vpack.c.b16 %v4474, %v4473
        %4477 = vrot.lane.b32.xlu0 %v2431, 112
        %v4478 = vpop.permute.xlu0 %4477
        %4479 = vrot.lane.b32.xlu0 %v2432, 112
        %v4480 = vpop.permute.xlu0 %4479
        %v4484 = vsel %vm483, %v4475, 0
        %v4487 = vsel %vm483, %v4476, 0
        %4489 = vmatpush.bf16.msra.mxu0 0
        %4490 = vmatpush.bf16.msra.mxu0 0
        %4491 = vmatpush.bf16.msra.mxu0 0
        %4492 = vmatpush.bf16.msra.mxu0 0
        %4493 = vmatpush.bf16.msra.mxu0 0
        %4494 = vmatpush.bf16.msra.mxu0 0
        %4495 = vmatpush.bf16.msra.mxu0 %v4480
        %4496 = vmatpush.bf16.msra.mxu0 %v4478
        %4497 = vmatmul.bf16.gmra.mxu0 %v4484
        %v4498 = vpop.f32.mrf.mxu0
        %v4499 = vadd.f32 0.0, %v4498
        %v4500 = vpop.f32.mrf.mxu0
        %v4501 = vadd.f32 0.0, %v4500
        %4502 = vmatmul.bf16.gmra.mxu0 %v4487
        %v4503 = vpop.f32.mrf.mxu0
        %v4504 = vadd.f32 0.0, %v4503
        %v4505 = vpop.f32.mrf.mxu0
        %v4506 = vadd.f32 0.0, %v4505
        %4507 = vdwg.mxu0
        %4508 = vrot.lane.b32.xlu0 %v1299, 104
        %v4509 = vpop.permute.xlu0 %4508
        %4510 = vrot.lane.b32.xlu0 %v1300, 104
        %v4511 = vpop.permute.xlu0 %4510
        %4512 = vrot.lane.b32.xlu0 %v1309, 104
        %v4513 = vpop.permute.xlu0 %4512
        %4514 = vrot.lane.b32.xlu0 %v1310, 104
        %v4515 = vpop.permute.xlu0 %4514
        %v4517 = vsel %vm1311, %v4509, 0
        %v4520 = vsel %vm1311, %v4511, 0
        %v4523 = vsel %vm1311, %v4513, 0
        %v4526 = vsel %vm1311, %v4515, 0
        %4528 = vmatpush.bf16.xpose.msra.mxu0 0
        %4529 = vmatpush.bf16.xpose.msra.mxu0 0
        %4530 = vmatpush.bf16.xpose.msra.mxu0 0
        %4531 = vmatpush.bf16.xpose.msra.mxu0 0
        %4532 = vmatpush.bf16.xpose.msra.mxu0 0
        %4533 = vmatpush.bf16.xpose.msra.mxu0 0
        %4534 = vmatpush.bf16.xpose.msra.mxu0 %v4526
        %4535 = vmatpush.bf16.xpose.msra.mxu0 %v4523
        %4536 = vmatmul.bf16.gmra.mxu0 %v4517
        %v4537 = vpop.f32.mrf.mxu0
        %v4538 = vadd.f32 0.0, %v4537
        %v4539 = vpop.f32.mrf.mxu0
        %v4540 = vadd.f32 0.0, %v4539
        %4541 = vmatmul.bf16.gmra.mxu0 %v4520
        %v4542 = vpop.f32.mrf.mxu0
        %v4543 = vadd.f32 0.0, %v4542
        %v4544 = vpop.f32.mrf.mxu0
        %v4545 = vadd.f32 0.0, %v4544
        %4546 = vdwg.mxu0
        %4547 = vrot.lane.b32.xlu0 %v1351, 104
        %v4548 = vpop.permute.xlu0 %4547
        %4549 = vrot.lane.b32.xlu0 %v1352, 104
        %v4550 = vpop.permute.xlu0 %4549
        %4551 = vrot.lane.b32.xlu0 %v1361, 104
        %v4552 = vpop.permute.xlu0 %4551
        %4553 = vrot.lane.b32.xlu0 %v1362, 104
        %v4554 = vpop.permute.xlu0 %4553
        %v4556 = vsel %vm1311, %v4548, 0
        %v4559 = vsel %vm1311, %v4550, 0
        %v4562 = vsel %vm1311, %v4552, 0
        %v4565 = vsel %vm1311, %v4554, 0
        %4567 = vmatpush.bf16.xpose.msra.mxu0 0
        %4568 = vmatpush.bf16.xpose.msra.mxu0 0
        %4569 = vmatpush.bf16.xpose.msra.mxu0 0
        %4570 = vmatpush.bf16.xpose.msra.mxu0 0
        %4571 = vmatpush.bf16.xpose.msra.mxu0 0
        %4572 = vmatpush.bf16.xpose.msra.mxu0 0
        %4573 = vmatpush.bf16.xpose.msra.mxu0 %v4565
        %4574 = vmatpush.bf16.xpose.msra.mxu0 %v4562
        %4575 = vmatmul.bf16.gmra.mxu0 %v4556
        %v4576 = vpop.f32.mrf.mxu0
        %v4577 = vadd.f32 0.0, %v4576
        %v4578 = vpop.f32.mrf.mxu0
        %v4579 = vadd.f32 0.0, %v4578
        %4580 = vmatmul.bf16.gmra.mxu0 %v4559
        %v4581 = vpop.f32.mrf.mxu0
        %v4582 = vadd.f32 0.0, %v4581
        %v4583 = vpop.f32.mrf.mxu0
        %v4584 = vadd.f32 0.0, %v4583
        %4585 = vdwg.mxu0
        %4586 = vrot.lane.b32.xlu0 %v1402, 104
        %v4587 = vpop.permute.xlu0 %4586
        %4588 = vrot.lane.b32.xlu0 %v1403, 104
        %v4589 = vpop.permute.xlu0 %4588
        %4590 = vrot.lane.b32.xlu0 %v1412, 104
        %v4591 = vpop.permute.xlu0 %4590
        %4592 = vrot.lane.b32.xlu0 %v1413, 104
        %v4593 = vpop.permute.xlu0 %4592
        %v4595 = vsel %vm1311, %v4587, 0
        %v4598 = vsel %vm1311, %v4589, 0
        %v4601 = vsel %vm1311, %v4591, 0
        %v4604 = vsel %vm1311, %v4593, 0
        %4606 = vmatpush.bf16.xpose.msra.mxu0 0
        %4607 = vmatpush.bf16.xpose.msra.mxu0 0
        %4608 = vmatpush.bf16.xpose.msra.mxu0 0
        %4609 = vmatpush.bf16.xpose.msra.mxu0 0
        %4610 = vmatpush.bf16.xpose.msra.mxu0 0
        %4611 = vmatpush.bf16.xpose.msra.mxu0 0
        %4612 = vmatpush.bf16.xpose.msra.mxu0 %v4604
        %4613 = vmatpush.bf16.xpose.msra.mxu0 %v4601
        %4614 = vmatmul.bf16.gmra.mxu0 %v4595
        %v4615 = vpop.f32.mrf.mxu0
        %v4616 = vadd.f32 0.0, %v4615
        %v4617 = vpop.f32.mrf.mxu0
        %v4618 = vadd.f32 0.0, %v4617
        %4619 = vmatmul.bf16.gmra.mxu0 %v4598
        %v4620 = vpop.f32.mrf.mxu0
        %v4621 = vadd.f32 0.0, %v4620
        %v4622 = vpop.f32.mrf.mxu0
        %v4623 = vadd.f32 0.0, %v4622
        %4624 = vdwg.mxu0
        %4625 = vrot.lane.b32.xlu0 %v1453, 104
        %v4626 = vpop.permute.xlu0 %4625
        %4627 = vrot.lane.b32.xlu0 %v1454, 104
        %v4628 = vpop.permute.xlu0 %4627
        %4629 = vrot.lane.b32.xlu0 %v1463, 104
        %v4630 = vpop.permute.xlu0 %4629
        %4631 = vrot.lane.b32.xlu0 %v1464, 104
        %v4632 = vpop.permute.xlu0 %4631
        %v4634 = vsel %vm1311, %v4626, 0
        %v4637 = vsel %vm1311, %v4628, 0
        %v4640 = vsel %vm1311, %v4630, 0
        %v4643 = vsel %vm1311, %v4632, 0
        %4645 = vmatpush.bf16.xpose.msra.mxu0 0
        %4646 = vmatpush.bf16.xpose.msra.mxu0 0
        %4647 = vmatpush.bf16.xpose.msra.mxu0 0
        %4648 = vmatpush.bf16.xpose.msra.mxu0 0
        %4649 = vmatpush.bf16.xpose.msra.mxu0 0
        %4650 = vmatpush.bf16.xpose.msra.mxu0 0
        %4651 = vmatpush.bf16.xpose.msra.mxu0 %v4643
        %4652 = vmatpush.bf16.xpose.msra.mxu0 %v4640
        %4653 = vmatmul.bf16.gmra.mxu0 %v4634
        %v4654 = vpop.f32.mrf.mxu0
        %v4655 = vadd.f32 0.0, %v4654
        %v4656 = vpop.f32.mrf.mxu0
        %v4657 = vadd.f32 0.0, %v4656
        %4658 = vmatmul.bf16.gmra.mxu0 %v4637
        %v4659 = vpop.f32.mrf.mxu0
        %v4660 = vadd.f32 0.0, %v4659
        %v4661 = vpop.f32.mrf.mxu0
        %v4662 = vadd.f32 0.0, %v4661
        %4663 = vdwg.mxu0
        %4664 = vrot.lane.b32.xlu0 %v1504, 104
        %v4665 = vpop.permute.xlu0 %4664
        %4666 = vrot.lane.b32.xlu0 %v1505, 104
        %v4667 = vpop.permute.xlu0 %4666
        %4668 = vrot.lane.b32.xlu0 %v1514, 104
        %v4669 = vpop.permute.xlu0 %4668
        %4670 = vrot.lane.b32.xlu0 %v1515, 104
        %v4671 = vpop.permute.xlu0 %4670
        %v4673 = vsel %vm1311, %v4665, 0
        %v4676 = vsel %vm1311, %v4667, 0
        %v4679 = vsel %vm1311, %v4669, 0
        %v4682 = vsel %vm1311, %v4671, 0
        %4684 = vmatpush.bf16.xpose.msra.mxu0 0
        %4685 = vmatpush.bf16.xpose.msra.mxu0 0
        %4686 = vmatpush.bf16.xpose.msra.mxu0 0
        %4687 = vmatpush.bf16.xpose.msra.mxu0 0
        %4688 = vmatpush.bf16.xpose.msra.mxu0 0
        %4689 = vmatpush.bf16.xpose.msra.mxu0 0
        %4690 = vmatpush.bf16.xpose.msra.mxu0 %v4682
        %4691 = vmatpush.bf16.xpose.msra.mxu0 %v4679
        %4692 = vmatmul.bf16.gmra.mxu0 %v4673
        %v4693 = vpop.f32.mrf.mxu0
        %v4694 = vadd.f32 0.0, %v4693
        %v4695 = vpop.f32.mrf.mxu0
        %v4696 = vadd.f32 0.0, %v4695
        %4697 = vmatmul.bf16.gmra.mxu0 %v4676
        %v4698 = vpop.f32.mrf.mxu0
        %v4699 = vadd.f32 0.0, %v4698
        %v4700 = vpop.f32.mrf.mxu0
        %v4701 = vadd.f32 0.0, %v4700
        %4702 = vdwg.mxu0
        %4703 = vrot.lane.b32.xlu0 %v1555, 104
        %v4704 = vpop.permute.xlu0 %4703
        %4705 = vrot.lane.b32.xlu0 %v1556, 104
        %v4706 = vpop.permute.xlu0 %4705
        %4707 = vrot.lane.b32.xlu0 %v1565, 104
        %v4708 = vpop.permute.xlu0 %4707
        %4709 = vrot.lane.b32.xlu0 %v1566, 104
        %v4710 = vpop.permute.xlu0 %4709
        %v4712 = vsel %vm1311, %v4704, 0
        %v4715 = vsel %vm1311, %v4706, 0
        %v4718 = vsel %vm1311, %v4708, 0
        %v4721 = vsel %vm1311, %v4710, 0
        %4723 = vmatpush.bf16.xpose.msra.mxu0 0
        %4724 = vmatpush.bf16.xpose.msra.mxu0 0
        %4725 = vmatpush.bf16.xpose.msra.mxu0 0
        %4726 = vmatpush.bf16.xpose.msra.mxu0 0
        %4727 = vmatpush.bf16.xpose.msra.mxu0 0
        %4728 = vmatpush.bf16.xpose.msra.mxu0 0
        %4729 = vmatpush.bf16.xpose.msra.mxu0 %v4721
        %4730 = vmatpush.bf16.xpose.msra.mxu0 %v4718
        %4731 = vmatmul.bf16.gmra.mxu0 %v4712
        %v4732 = vpop.f32.mrf.mxu0
        %v4733 = vadd.f32 0.0, %v4732
        %v4734 = vpop.f32.mrf.mxu0
        %v4735 = vadd.f32 0.0, %v4734
        %4736 = vmatmul.bf16.gmra.mxu0 %v4715
        %v4737 = vpop.f32.mrf.mxu0
        %v4738 = vadd.f32 0.0, %v4737
        %v4739 = vpop.f32.mrf.mxu0
        %v4740 = vadd.f32 0.0, %v4739
        %4741 = vdwg.mxu0
        %4742 = vrot.lane.b32.xlu0 %v1606, 104
        %v4743 = vpop.permute.xlu0 %4742
        %4744 = vrot.lane.b32.xlu0 %v1607, 104
        %v4745 = vpop.permute.xlu0 %4744
        %4746 = vrot.lane.b32.xlu0 %v1616, 104
        %v4747 = vpop.permute.xlu0 %4746
        %4748 = vrot.lane.b32.xlu0 %v1617, 104
        %v4749 = vpop.permute.xlu0 %4748
        %v4751 = vsel %vm1311, %v4743, 0
        %v4754 = vsel %vm1311, %v4745, 0
        %v4757 = vsel %vm1311, %v4747, 0
        %v4760 = vsel %vm1311, %v4749, 0
        %4762 = vmatpush.bf16.xpose.msra.mxu0 0
        %4763 = vmatpush.bf16.xpose.msra.mxu0 0
        %4764 = vmatpush.bf16.xpose.msra.mxu0 0
        %4765 = vmatpush.bf16.xpose.msra.mxu0 0
        %4766 = vmatpush.bf16.xpose.msra.mxu0 0
        %4767 = vmatpush.bf16.xpose.msra.mxu0 0
        %4768 = vmatpush.bf16.xpose.msra.mxu0 %v4760
        %4769 = vmatpush.bf16.xpose.msra.mxu0 %v4757
        %4770 = vmatmul.bf16.gmra.mxu0 %v4751
        %v4771 = vpop.f32.mrf.mxu0
        %v4772 = vadd.f32 0.0, %v4771
        %v4773 = vpop.f32.mrf.mxu0
        %v4774 = vadd.f32 0.0, %v4773
        %4775 = vmatmul.bf16.gmra.mxu0 %v4754
        %v4776 = vpop.f32.mrf.mxu0
        %v4777 = vadd.f32 0.0, %v4776
        %v4778 = vpop.f32.mrf.mxu0
        %v4779 = vadd.f32 0.0, %v4778
        %4780 = vdwg.mxu0
        %4781 = vrot.lane.b32.xlu0 %v1657, 104
        %v4782 = vpop.permute.xlu0 %4781
        %4783 = vrot.lane.b32.xlu0 %v1658, 104
        %v4784 = vpop.permute.xlu0 %4783
        %4785 = vrot.lane.b32.xlu0 %v1667, 104
        %v4786 = vpop.permute.xlu0 %4785
        %4787 = vrot.lane.b32.xlu0 %v1668, 104
        %v4788 = vpop.permute.xlu0 %4787
        %v4790 = vsel %vm1311, %v4782, 0
        %v4793 = vsel %vm1311, %v4784, 0
        %v4796 = vsel %vm1311, %v4786, 0
        %v4799 = vsel %vm1311, %v4788, 0
        %4801 = vmatpush.bf16.xpose.msra.mxu0 0
        %4802 = vmatpush.bf16.xpose.msra.mxu0 0
        %4803 = vmatpush.bf16.xpose.msra.mxu0 0
        %4804 = vmatpush.bf16.xpose.msra.mxu0 0
        %4805 = vmatpush.bf16.xpose.msra.mxu0 0
        %4806 = vmatpush.bf16.xpose.msra.mxu0 0
        %4807 = vmatpush.bf16.xpose.msra.mxu0 %v4799
        %4808 = vmatpush.bf16.xpose.msra.mxu0 %v4796
        %4809 = vmatmul.bf16.gmra.mxu0 %v4790
        %v4810 = vpop.f32.mrf.mxu0
        %v4811 = vadd.f32 0.0, %v4810
        %v4812 = vpop.f32.mrf.mxu0
        %v4813 = vadd.f32 0.0, %v4812
        %4814 = vmatmul.bf16.gmra.mxu0 %v4793
        %v4815 = vpop.f32.mrf.mxu0
        %v4816 = vadd.f32 0.0, %v4815
        %v4817 = vpop.f32.mrf.mxu0
        %v4818 = vadd.f32 0.0, %v4817
        %4819 = vdwg.mxu0
        %v4820 = vsel %vm483, %v4538, -inf
        %4821 = vmax.xlane.f32.xlu0 %v4820
        %v4822 = vpop.xlane.xlu0 %4821
        %v4823 = vsel %vm483, %v4540, -inf
        %4824 = vmax.xlane.f32.xlu0 %v4823
        %v4825 = vpop.xlane.xlu0 %4824
        %v4826 = vsel %vm483, %v4543, -inf
        %4827 = vmax.xlane.f32.xlu0 %v4826
        %v4828 = vpop.xlane.xlu0 %4827
        %v4829 = vsel %vm483, %v4545, -inf
        %4830 = vmax.xlane.f32.xlu0 %v4829
        %v4831 = vpop.xlane.xlu0 %4830
        %v4832 = vsel %vm483, %v4577, -inf
        %4833 = vmax.xlane.f32.xlu0 %v4832
        %v4834 = vpop.xlane.xlu0 %4833
        %v4835 = vsel %vm483, %v4579, -inf
        %4836 = vmax.xlane.f32.xlu0 %v4835
        %v4837 = vpop.xlane.xlu0 %4836
        %v4838 = vsel %vm483, %v4582, -inf
        %4839 = vmax.xlane.f32.xlu0 %v4838
        %v4840 = vpop.xlane.xlu0 %4839
        %v4841 = vsel %vm483, %v4584, -inf
        %4842 = vmax.xlane.f32.xlu0 %v4841
        %v4843 = vpop.xlane.xlu0 %4842
        %v4844 = vsel %vm483, %v4616, -inf
        %4845 = vmax.xlane.f32.xlu0 %v4844
        %v4846 = vpop.xlane.xlu0 %4845
        %v4847 = vsel %vm483, %v4618, -inf
        %4848 = vmax.xlane.f32.xlu0 %v4847
        %v4849 = vpop.xlane.xlu0 %4848
        %v4850 = vsel %vm483, %v4621, -inf
        %4851 = vmax.xlane.f32.xlu0 %v4850
        %v4852 = vpop.xlane.xlu0 %4851
        %v4853 = vsel %vm483, %v4623, -inf
        %4854 = vmax.xlane.f32.xlu0 %v4853
        %v4855 = vpop.xlane.xlu0 %4854
        %v4856 = vsel %vm483, %v4655, -inf
        %4857 = vmax.xlane.f32.xlu0 %v4856
        %v4858 = vpop.xlane.xlu0 %4857
        %v4859 = vsel %vm483, %v4657, -inf
        %4860 = vmax.xlane.f32.xlu0 %v4859
        %v4861 = vpop.xlane.xlu0 %4860
        %v4862 = vsel %vm483, %v4660, -inf
        %4863 = vmax.xlane.f32.xlu0 %v4862
        %v4864 = vpop.xlane.xlu0 %4863
        %v4865 = vsel %vm483, %v4662, -inf
        %4866 = vmax.xlane.f32.xlu0 %v4865
        %v4867 = vpop.xlane.xlu0 %4866
        %v4868 = vsel %vm483, %v4694, -inf
        %4869 = vmax.xlane.f32.xlu0 %v4868
        %v4870 = vpop.xlane.xlu0 %4869
        %v4871 = vsel %vm483, %v4696, -inf
        %4872 = vmax.xlane.f32.xlu0 %v4871
        %v4873 = vpop.xlane.xlu0 %4872
        %v4874 = vsel %vm483, %v4699, -inf
        %4875 = vmax.xlane.f32.xlu0 %v4874
        %v4876 = vpop.xlane.xlu0 %4875
        %v4877 = vsel %vm483, %v4701, -inf
        %4878 = vmax.xlane.f32.xlu0 %v4877
        %v4879 = vpop.xlane.xlu0 %4878
        %v4880 = vsel %vm483, %v4733, -inf
        %4881 = vmax.xlane.f32.xlu0 %v4880
        %v4882 = vpop.xlane.xlu0 %4881
        %v4883 = vsel %vm483, %v4735, -inf
        %4884 = vmax.xlane.f32.xlu0 %v4883
        %v4885 = vpop.xlane.xlu0 %4884
        %v4886 = vsel %vm483, %v4738, -inf
        %4887 = vmax.xlane.f32.xlu0 %v4886
        %v4888 = vpop.xlane.xlu0 %4887
        %v4889 = vsel %vm483, %v4740, -inf
        %4890 = vmax.xlane.f32.xlu0 %v4889
        %v4891 = vpop.xlane.xlu0 %4890
        %v4892 = vsel %vm483, %v4772, -inf
        %4893 = vmax.xlane.f32.xlu0 %v4892
        %v4894 = vpop.xlane.xlu0 %4893
        %v4895 = vsel %vm483, %v4774, -inf
        %4896 = vmax.xlane.f32.xlu0 %v4895
        %v4897 = vpop.xlane.xlu0 %4896
        %v4898 = vsel %vm483, %v4777, -inf
        %4899 = vmax.xlane.f32.xlu0 %v4898
        %v4900 = vpop.xlane.xlu0 %4899
        %v4901 = vsel %vm483, %v4779, -inf
        %4902 = vmax.xlane.f32.xlu0 %v4901
        %v4903 = vpop.xlane.xlu0 %4902
        %v4904 = vsel %vm483, %v4811, -inf
        %4905 = vmax.xlane.f32.xlu0 %v4904
        %v4906 = vpop.xlane.xlu0 %4905
        %v4907 = vsel %vm483, %v4813, -inf
        %4908 = vmax.xlane.f32.xlu0 %v4907
        %v4909 = vpop.xlane.xlu0 %4908
        %v4910 = vsel %vm483, %v4816, -inf
        %4911 = vmax.xlane.f32.xlu0 %v4910
        %v4912 = vpop.xlane.xlu0 %4911
        %v4913 = vsel %vm483, %v4818, -inf
        %4914 = vmax.xlane.f32.xlu0 %v4913
        %v4915 = vpop.xlane.xlu0 %4914
        %v4916 = vsub.f32 %v4538, %v4822
        %v4917 = vsub.f32 %v4540, %v4825
        %v4918 = vsub.f32 %v4543, %v4828
        %v4919 = vsub.f32 %v4545, %v4831
        %v4920 = vsub.f32 %v4577, %v4834
        %v4921 = vsub.f32 %v4579, %v4837
        %v4922 = vsub.f32 %v4582, %v4840
        %v4923 = vsub.f32 %v4584, %v4843
        %v4924 = vsub.f32 %v4616, %v4846
        %v4925 = vsub.f32 %v4618, %v4849
        %v4926 = vsub.f32 %v4621, %v4852
        %v4927 = vsub.f32 %v4623, %v4855
        %v4928 = vsub.f32 %v4655, %v4858
        %v4929 = vsub.f32 %v4657, %v4861
        %v4930 = vsub.f32 %v4660, %v4864
        %v4931 = vsub.f32 %v4662, %v4867
        %v4932 = vsub.f32 %v4694, %v4870
        %v4933 = vsub.f32 %v4696, %v4873
        %v4934 = vsub.f32 %v4699, %v4876
        %v4935 = vsub.f32 %v4701, %v4879
        %v4936 = vsub.f32 %v4733, %v4882
        %v4937 = vsub.f32 %v4735, %v4885
        %v4938 = vsub.f32 %v4738, %v4888
        %v4939 = vsub.f32 %v4740, %v4891
        %v4940 = vsub.f32 %v4772, %v4894
        %v4941 = vsub.f32 %v4774, %v4897
        %v4942 = vsub.f32 %v4777, %v4900
        %v4943 = vsub.f32 %v4779, %v4903
        %v4944 = vsub.f32 %v4811, %v4906
        %v4945 = vsub.f32 %v4813, %v4909
        %v4946 = vsub.f32 %v4816, %v4912
        %v4947 = vsub.f32 %v4818, %v4915
        %v4948 = vmul.f32 %v4916, 1.442695
        %v4949 = vpow.pop %v4948
        %v4950 = vmul.f32 %v4917, 1.442695
        %v4951 = vpow.pop %v4950
        %v4952 = vmul.f32 %v4918, 1.442695
        %v4953 = vpow.pop %v4952
        %v4954 = vmul.f32 %v4919, 1.442695
        %v4955 = vpow.pop %v4954
        %v4956 = vmul.f32 %v4920, 1.442695
        %v4957 = vpow.pop %v4956
        %v4958 = vmul.f32 %v4921, 1.442695
        %v4959 = vpow.pop %v4958
        %v4960 = vmul.f32 %v4922, 1.442695
        %v4961 = vpow.pop %v4960
        %v4962 = vmul.f32 %v4923, 1.442695
        %v4963 = vpow.pop %v4962
        %v4964 = vmul.f32 %v4924, 1.442695
        %v4965 = vpow.pop %v4964
        %v4966 = vmul.f32 %v4925, 1.442695
        %v4967 = vpow.pop %v4966
        %v4968 = vmul.f32 %v4926, 1.442695
        %v4969 = vpow.pop %v4968
        %v4970 = vmul.f32 %v4927, 1.442695
        %v4971 = vpow.pop %v4970
        %v4972 = vmul.f32 %v4928, 1.442695
        %v4973 = vpow.pop %v4972
        %v4974 = vmul.f32 %v4929, 1.442695
        %v4975 = vpow.pop %v4974
        %v4976 = vmul.f32 %v4930, 1.442695
        %v4977 = vpow.pop %v4976
        %v4978 = vmul.f32 %v4931, 1.442695
        %v4979 = vpow.pop %v4978
        %v4980 = vmul.f32 %v4932, 1.442695
        %v4981 = vpow.pop %v4980
        %v4982 = vmul.f32 %v4933, 1.442695
        %v4983 = vpow.pop %v4982
        %v4984 = vmul.f32 %v4934, 1.442695
        %v4985 = vpow.pop %v4984
        %v4986 = vmul.f32 %v4935, 1.442695
        %v4987 = vpow.pop %v4986
        %v4988 = vmul.f32 %v4936, 1.442695
        %v4989 = vpow.pop %v4988
        %v4990 = vmul.f32 %v4937, 1.442695
        %v4991 = vpow.pop %v4990
        %v4992 = vmul.f32 %v4938, 1.442695
        %v4993 = vpow.pop %v4992
        %v4994 = vmul.f32 %v4939, 1.442695
        %v4995 = vpow.pop %v4994
        %v4996 = vmul.f32 %v4940, 1.442695
        %v4997 = vpow.pop %v4996
        %v4998 = vmul.f32 %v4941, 1.442695
        %v4999 = vpow.pop %v4998
        %v5000 = vmul.f32 %v4942, 1.442695
        %v5001 = vpow.pop %v5000
        %v5002 = vmul.f32 %v4943, 1.442695
        %v5003 = vpow.pop %v5002
        %v5004 = vmul.f32 %v4944, 1.442695
        %v5005 = vpow.pop %v5004
        %v5006 = vmul.f32 %v4945, 1.442695
        %v5007 = vpow.pop %v5006
        %v5008 = vmul.f32 %v4946, 1.442695
        %v5009 = vpow.pop %v5008
        %v5010 = vmul.f32 %v4947, 1.442695
        %v5011 = vpow.pop %v5010
        %v5012 = vsel %vm483, %v4949, 0.0
        %5013 = vadd.xlane.f32.xlu0 %v5012
        %v5014 = vpop.xlane.xlu0 %5013
        %v5015 = vsel %vm483, %v4951, 0.0
        %5016 = vadd.xlane.f32.xlu0 %v5015
        %v5017 = vpop.xlane.xlu0 %5016
        %v5018 = vsel %vm483, %v4953, 0.0
        %5019 = vadd.xlane.f32.xlu0 %v5018
        %v5020 = vpop.xlane.xlu0 %5019
        %v5021 = vsel %vm483, %v4955, 0.0
        %5022 = vadd.xlane.f32.xlu0 %v5021
        %v5023 = vpop.xlane.xlu0 %5022
        %v5024 = vsel %vm483, %v4957, 0.0
        %5025 = vadd.xlane.f32.xlu0 %v5024
        %v5026 = vpop.xlane.xlu0 %5025
        %v5027 = vsel %vm483, %v4959, 0.0
        %5028 = vadd.xlane.f32.xlu0 %v5027
        %v5029 = vpop.xlane.xlu0 %5028
        %v5030 = vsel %vm483, %v4961, 0.0
        %5031 = vadd.xlane.f32.xlu0 %v5030
        %v5032 = vpop.xlane.xlu0 %5031
        %v5033 = vsel %vm483, %v4963, 0.0
        %5034 = vadd.xlane.f32.xlu0 %v5033
        %v5035 = vpop.xlane.xlu0 %5034
        %v5036 = vsel %vm483, %v4965, 0.0
        %5037 = vadd.xlane.f32.xlu0 %v5036
        %v5038 = vpop.xlane.xlu0 %5037
        %v5039 = vsel %vm483, %v4967, 0.0
        %5040 = vadd.xlane.f32.xlu0 %v5039
        %v5041 = vpop.xlane.xlu0 %5040
        %v5042 = vsel %vm483, %v4969, 0.0
        %5043 = vadd.xlane.f32.xlu0 %v5042
        %v5044 = vpop.xlane.xlu0 %5043
        %v5045 = vsel %vm483, %v4971, 0.0
        %5046 = vadd.xlane.f32.xlu0 %v5045
        %v5047 = vpop.xlane.xlu0 %5046
        %v5048 = vsel %vm483, %v4973, 0.0
        %5049 = vadd.xlane.f32.xlu0 %v5048
        %v5050 = vpop.xlane.xlu0 %5049
        %v5051 = vsel %vm483, %v4975, 0.0
        %5052 = vadd.xlane.f32.xlu0 %v5051
        %v5053 = vpop.xlane.xlu0 %5052
        %v5054 = vsel %vm483, %v4977, 0.0
        %5055 = vadd.xlane.f32.xlu0 %v5054
        %v5056 = vpop.xlane.xlu0 %5055
        %v5057 = vsel %vm483, %v4979, 0.0
        %5058 = vadd.xlane.f32.xlu0 %v5057
        %v5059 = vpop.xlane.xlu0 %5058
        %v5060 = vsel %vm483, %v4981, 0.0
        %5061 = vadd.xlane.f32.xlu0 %v5060
        %v5062 = vpop.xlane.xlu0 %5061
        %v5063 = vsel %vm483, %v4983, 0.0
        %5064 = vadd.xlane.f32.xlu0 %v5063
        %v5065 = vpop.xlane.xlu0 %5064
        %v5066 = vsel %vm483, %v4985, 0.0
        %5067 = vadd.xlane.f32.xlu0 %v5066
        %v5068 = vpop.xlane.xlu0 %5067
        %v5069 = vsel %vm483, %v4987, 0.0
        %5070 = vadd.xlane.f32.xlu0 %v5069
        %v5071 = vpop.xlane.xlu0 %5070
        %v5072 = vsel %vm483, %v4989, 0.0
        %5073 = vadd.xlane.f32.xlu0 %v5072
        %v5074 = vpop.xlane.xlu0 %5073
        %v5075 = vsel %vm483, %v4991, 0.0
        %5076 = vadd.xlane.f32.xlu0 %v5075
        %v5077 = vpop.xlane.xlu0 %5076
        %v5078 = vsel %vm483, %v4993, 0.0
        %5079 = vadd.xlane.f32.xlu0 %v5078
        %v5080 = vpop.xlane.xlu0 %5079
        %v5081 = vsel %vm483, %v4995, 0.0
        %5082 = vadd.xlane.f32.xlu0 %v5081
        %v5083 = vpop.xlane.xlu0 %5082
        %v5084 = vsel %vm483, %v4997, 0.0
        %5085 = vadd.xlane.f32.xlu0 %v5084
        %v5086 = vpop.xlane.xlu0 %5085
        %v5087 = vsel %vm483, %v4999, 0.0
        %5088 = vadd.xlane.f32.xlu0 %v5087
        %v5089 = vpop.xlane.xlu0 %5088
        %v5090 = vsel %vm483, %v5001, 0.0
        %5091 = vadd.xlane.f32.xlu0 %v5090
        %v5092 = vpop.xlane.xlu0 %5091
        %v5093 = vsel %vm483, %v5003, 0.0
        %5094 = vadd.xlane.f32.xlu0 %v5093
        %v5095 = vpop.xlane.xlu0 %5094
        %v5096 = vsel %vm483, %v5005, 0.0
        %5097 = vadd.xlane.f32.xlu0 %v5096
        %v5098 = vpop.xlane.xlu0 %5097
        %v5099 = vsel %vm483, %v5007, 0.0
        %5100 = vadd.xlane.f32.xlu0 %v5099
        %v5101 = vpop.xlane.xlu0 %5100
        %v5102 = vsel %vm483, %v5009, 0.0
        %5103 = vadd.xlane.f32.xlu0 %v5102
        %v5104 = vpop.xlane.xlu0 %5103
        %v5105 = vsel %vm483, %v5011, 0.0
        %5106 = vadd.xlane.f32.xlu0 %v5105
        %v5107 = vpop.xlane.xlu0 %5106
        %v5108 = vrcp.pop %v5014
        %v5109 = vrcp.pop %v5017
        %v5110 = vrcp.pop %v5020
        %v5111 = vrcp.pop %v5023
        %v5112 = vrcp.pop %v5026
        %v5113 = vrcp.pop %v5029
        %v5114 = vrcp.pop %v5032
        %v5115 = vrcp.pop %v5035
        %v5116 = vrcp.pop %v5038
        %v5117 = vrcp.pop %v5041
        %v5118 = vrcp.pop %v5044
        %v5119 = vrcp.pop %v5047
        %v5120 = vrcp.pop %v5050
        %v5121 = vrcp.pop %v5053
        %v5122 = vrcp.pop %v5056
        %v5123 = vrcp.pop %v5059
        %v5124 = vrcp.pop %v5062
        %v5125 = vrcp.pop %v5065
        %v5126 = vrcp.pop %v5068
        %v5127 = vrcp.pop %v5071
        %v5128 = vrcp.pop %v5074
        %v5129 = vrcp.pop %v5077
        %v5130 = vrcp.pop %v5080
        %v5131 = vrcp.pop %v5083
        %v5132 = vrcp.pop %v5086
        %v5133 = vrcp.pop %v5089
        %v5134 = vrcp.pop %v5092
        %v5135 = vrcp.pop %v5095
        %v5136 = vrcp.pop %v5098
        %v5137 = vrcp.pop %v5101
        %v5138 = vrcp.pop %v5104
        %v5139 = vrcp.pop %v5107
        %v5140 = vmul.f32 %v4949, %v5108
        %v5141 = vmul.f32 %v4951, %v5109
        %v5142 = vmul.f32 %v4953, %v5110
        %v5143 = vmul.f32 %v4955, %v5111
        %v5144 = vmul.f32 %v4957, %v5112
        %v5145 = vmul.f32 %v4959, %v5113
        %v5146 = vmul.f32 %v4961, %v5114
        %v5147 = vmul.f32 %v4963, %v5115
        %v5148 = vmul.f32 %v4965, %v5116
        %v5149 = vmul.f32 %v4967, %v5117
        %v5150 = vmul.f32 %v4969, %v5118
        %v5151 = vmul.f32 %v4971, %v5119
        %v5152 = vmul.f32 %v4973, %v5120
        %v5153 = vmul.f32 %v4975, %v5121
        %v5154 = vmul.f32 %v4977, %v5122
        %v5155 = vmul.f32 %v4979, %v5123
        %v5156 = vmul.f32 %v4981, %v5124
        %v5157 = vmul.f32 %v4983, %v5125
        %v5158 = vmul.f32 %v4985, %v5126
        %v5159 = vmul.f32 %v4987, %v5127
        %v5160 = vmul.f32 %v4989, %v5128
        %v5161 = vmul.f32 %v4991, %v5129
        %v5162 = vmul.f32 %v4993, %v5130
        %v5163 = vmul.f32 %v4995, %v5131
        %v5164 = vmul.f32 %v4997, %v5132
        %v5165 = vmul.f32 %v4999, %v5133
        %v5166 = vmul.f32 %v5001, %v5134
        %v5167 = vmul.f32 %v5003, %v5135
        %v5168 = vmul.f32 %v5005, %v5136
        %v5169 = vmul.f32 %v5007, %v5137
        %v5170 = vmul.f32 %v5009, %v5138
        %v5171 = vmul.f32 %v5011, %v5139
        %v5172 = vpack.c.bf16 %v5140, %v5140
        %v5173 = vpack.c.bf16 %v5141, %v5141
        %v5174 = vpack.c.bf16 %v5142, %v5142
        %v5175 = vpack.c.bf16 %v5143, %v5143
        %v5176 = vpack.c.bf16 %v5144, %v5144
        %v5177 = vpack.c.bf16 %v5145, %v5145
        %v5178 = vpack.c.bf16 %v5146, %v5146
        %v5179 = vpack.c.bf16 %v5147, %v5147
        %v5180 = vpack.c.bf16 %v5148, %v5148
        %v5181 = vpack.c.bf16 %v5149, %v5149
        %v5182 = vpack.c.bf16 %v5150, %v5150
        %v5183 = vpack.c.bf16 %v5151, %v5151
        %v5184 = vpack.c.bf16 %v5152, %v5152
        %v5185 = vpack.c.bf16 %v5153, %v5153
        %v5186 = vpack.c.bf16 %v5154, %v5154
        %v5187 = vpack.c.bf16 %v5155, %v5155
        %v5188 = vpack.c.bf16 %v5156, %v5156
        %v5189 = vpack.c.bf16 %v5157, %v5157
        %v5190 = vpack.c.bf16 %v5158, %v5158
        %v5191 = vpack.c.bf16 %v5159, %v5159
        %v5192 = vpack.c.bf16 %v5160, %v5160
        %v5193 = vpack.c.bf16 %v5161, %v5161
        %v5194 = vpack.c.bf16 %v5162, %v5162
        %v5195 = vpack.c.bf16 %v5163, %v5163
        %v5196 = vpack.c.bf16 %v5164, %v5164
        %v5197 = vpack.c.bf16 %v5165, %v5165
        %v5198 = vpack.c.bf16 %v5166, %v5166
        %v5199 = vpack.c.bf16 %v5167, %v5167
        %v5200 = vpack.c.bf16 %v5168, %v5168
        %v5201 = vpack.c.bf16 %v5169, %v5169
        %v5202 = vpack.c.bf16 %v5170, %v5170
        %v5203 = vpack.c.bf16 %v5171, %v5171
        %v5208 = vunpack.c.l.b16 %v5172
        %v5209 = vunpack.c.l.b16 %v5173
        %v5210 = vunpack.c.l.b16 %v5174
        %v5211 = vunpack.c.l.b16 %v5175
        %v5212 = vpack.c.b16 %v5209, %v5208
        %v5213 = vpack.c.b16 %v5211, %v5210
        %5214 = vrot.lane.b32.xlu0 %v2102, 104
        %v5215 = vpop.permute.xlu0 %5214
        %5216 = vrot.lane.b32.xlu0 %v2103, 104
        %v5217 = vpop.permute.xlu0 %5216
        %v5221 = vsel %vm483, %v5212, 0
        %v5224 = vsel %vm483, %v5213, 0
        %5226 = vmatpush.bf16.msra.mxu0 0
        %5227 = vmatpush.bf16.msra.mxu0 0
        %5228 = vmatpush.bf16.msra.mxu0 0
        %5229 = vmatpush.bf16.msra.mxu0 0
        %5230 = vmatpush.bf16.msra.mxu0 0
        %5231 = vmatpush.bf16.msra.mxu0 0
        %5232 = vmatpush.bf16.msra.mxu0 %v5217
        %5233 = vmatpush.bf16.msra.mxu0 %v5215
        %5234 = vmatmul.bf16.gmra.mxu0 %v5221
        %v5235 = vpop.f32.mrf.mxu0
        %v5236 = vadd.f32 0.0, %v5235
        %v5237 = vpop.f32.mrf.mxu0
        %v5238 = vadd.f32 0.0, %v5237
        %5239 = vmatmul.bf16.gmra.mxu0 %v5224
        %v5240 = vpop.f32.mrf.mxu0
        %v5241 = vadd.f32 0.0, %v5240
        %v5242 = vpop.f32.mrf.mxu0
        %v5243 = vadd.f32 0.0, %v5242
        %5244 = vdwg.mxu0
        %v5249 = vunpack.c.l.b16 %v5176
        %v5250 = vunpack.c.l.b16 %v5177
        %v5251 = vunpack.c.l.b16 %v5178
        %v5252 = vunpack.c.l.b16 %v5179
        %v5253 = vpack.c.b16 %v5250, %v5249
        %v5254 = vpack.c.b16 %v5252, %v5251
        %5255 = vrot.lane.b32.xlu0 %v2149, 104
        %v5256 = vpop.permute.xlu0 %5255
        %5257 = vrot.lane.b32.xlu0 %v2150, 104
        %v5258 = vpop.permute.xlu0 %5257
        %v5262 = vsel %vm483, %v5253, 0
        %v5265 = vsel %vm483, %v5254, 0
        %5267 = vmatpush.bf16.msra.mxu0 0
        %5268 = vmatpush.bf16.msra.mxu0 0
        %5269 = vmatpush.bf16.msra.mxu0 0
        %5270 = vmatpush.bf16.msra.mxu0 0
        %5271 = vmatpush.bf16.msra.mxu0 0
        %5272 = vmatpush.bf16.msra.mxu0 0
        %5273 = vmatpush.bf16.msra.mxu0 %v5258
        %5274 = vmatpush.bf16.msra.mxu0 %v5256
        %5275 = vmatmul.bf16.gmra.mxu0 %v5262
        %v5276 = vpop.f32.mrf.mxu0
        %v5277 = vadd.f32 0.0, %v5276
        %v5278 = vpop.f32.mrf.mxu0
        %v5279 = vadd.f32 0.0, %v5278
        %5280 = vmatmul.bf16.gmra.mxu0 %v5265
        %v5281 = vpop.f32.mrf.mxu0
        %v5282 = vadd.f32 0.0, %v5281
        %v5283 = vpop.f32.mrf.mxu0
        %v5284 = vadd.f32 0.0, %v5283
        %5285 = vdwg.mxu0
        %v5290 = vunpack.c.l.b16 %v5180
        %v5291 = vunpack.c.l.b16 %v5181
        %v5292 = vunpack.c.l.b16 %v5182
        %v5293 = vunpack.c.l.b16 %v5183
        %v5294 = vpack.c.b16 %v5291, %v5290
        %v5295 = vpack.c.b16 %v5293, %v5292
        %5296 = vrot.lane.b32.xlu0 %v2196, 104
        %v5297 = vpop.permute.xlu0 %5296
        %5298 = vrot.lane.b32.xlu0 %v2197, 104
        %v5299 = vpop.permute.xlu0 %5298
        %v5303 = vsel %vm483, %v5294, 0
        %v5306 = vsel %vm483, %v5295, 0
        %5308 = vmatpush.bf16.msra.mxu0 0
        %5309 = vmatpush.bf16.msra.mxu0 0
        %5310 = vmatpush.bf16.msra.mxu0 0
        %5311 = vmatpush.bf16.msra.mxu0 0
        %5312 = vmatpush.bf16.msra.mxu0 0
        %5313 = vmatpush.bf16.msra.mxu0 0
        %5314 = vmatpush.bf16.msra.mxu0 %v5299
        %5315 = vmatpush.bf16.msra.mxu0 %v5297
        %5316 = vmatmul.bf16.gmra.mxu0 %v5303
        %v5317 = vpop.f32.mrf.mxu0
        %v5318 = vadd.f32 0.0, %v5317
        %v5319 = vpop.f32.mrf.mxu0
        %v5320 = vadd.f32 0.0, %v5319
        %5321 = vmatmul.bf16.gmra.mxu0 %v5306
        %v5322 = vpop.f32.mrf.mxu0
        %v5323 = vadd.f32 0.0, %v5322
        %v5324 = vpop.f32.mrf.mxu0
        %v5325 = vadd.f32 0.0, %v5324
        %5326 = vdwg.mxu0
        %v5331 = vunpack.c.l.b16 %v5184
        %v5332 = vunpack.c.l.b16 %v5185
        %v5333 = vunpack.c.l.b16 %v5186
        %v5334 = vunpack.c.l.b16 %v5187
        %v5335 = vpack.c.b16 %v5332, %v5331
        %v5336 = vpack.c.b16 %v5334, %v5333
        %5337 = vrot.lane.b32.xlu0 %v2243, 104
        %v5338 = vpop.permute.xlu0 %5337
        %5339 = vrot.lane.b32.xlu0 %v2244, 104
        %v5340 = vpop.permute.xlu0 %5339
        %v5344 = vsel %vm483, %v5335, 0
        %v5347 = vsel %vm483, %v5336, 0
        %5349 = vmatpush.bf16.msra.mxu0 0
        %5350 = vmatpush.bf16.msra.mxu0 0
        %5351 = vmatpush.bf16.msra.mxu0 0
        %5352 = vmatpush.bf16.msra.mxu0 0
        %5353 = vmatpush.bf16.msra.mxu0 0
        %5354 = vmatpush.bf16.msra.mxu0 0
        %5355 = vmatpush.bf16.msra.mxu0 %v5340
        %5356 = vmatpush.bf16.msra.mxu0 %v5338
        %5357 = vmatmul.bf16.gmra.mxu0 %v5344
        %v5358 = vpop.f32.mrf.mxu0
        %v5359 = vadd.f32 0.0, %v5358
        %v5360 = vpop.f32.mrf.mxu0
        %v5361 = vadd.f32 0.0, %v5360
        %5362 = vmatmul.bf16.gmra.mxu0 %v5347
        %v5363 = vpop.f32.mrf.mxu0
        %v5364 = vadd.f32 0.0, %v5363
        %v5365 = vpop.f32.mrf.mxu0
        %v5366 = vadd.f32 0.0, %v5365
        %5367 = vdwg.mxu0
        %v5372 = vunpack.c.l.b16 %v5188
        %v5373 = vunpack.c.l.b16 %v5189
        %v5374 = vunpack.c.l.b16 %v5190
        %v5375 = vunpack.c.l.b16 %v5191
        %v5376 = vpack.c.b16 %v5373, %v5372
        %v5377 = vpack.c.b16 %v5375, %v5374
        %5378 = vrot.lane.b32.xlu0 %v2290, 104
        %v5379 = vpop.permute.xlu0 %5378
        %5380 = vrot.lane.b32.xlu0 %v2291, 104
        %v5381 = vpop.permute.xlu0 %5380
        %v5385 = vsel %vm483, %v5376, 0
        %v5388 = vsel %vm483, %v5377, 0
        %5390 = vmatpush.bf16.msra.mxu0 0
        %5391 = vmatpush.bf16.msra.mxu0 0
        %5392 = vmatpush.bf16.msra.mxu0 0
        %5393 = vmatpush.bf16.msra.mxu0 0
        %5394 = vmatpush.bf16.msra.mxu0 0
        %5395 = vmatpush.bf16.msra.mxu0 0
        %5396 = vmatpush.bf16.msra.mxu0 %v5381
        %5397 = vmatpush.bf16.msra.mxu0 %v5379
        %5398 = vmatmul.bf16.gmra.mxu0 %v5385
        %v5399 = vpop.f32.mrf.mxu0
        %v5400 = vadd.f32 0.0, %v5399
        %v5401 = vpop.f32.mrf.mxu0
        %v5402 = vadd.f32 0.0, %v5401
        %5403 = vmatmul.bf16.gmra.mxu0 %v5388
        %v5404 = vpop.f32.mrf.mxu0
        %v5405 = vadd.f32 0.0, %v5404
        %v5406 = vpop.f32.mrf.mxu0
        %v5407 = vadd.f32 0.0, %v5406
        %5408 = vdwg.mxu0
        %v5413 = vunpack.c.l.b16 %v5192
        %v5414 = vunpack.c.l.b16 %v5193
        %v5415 = vunpack.c.l.b16 %v5194
        %v5416 = vunpack.c.l.b16 %v5195
        %v5417 = vpack.c.b16 %v5414, %v5413
        %v5418 = vpack.c.b16 %v5416, %v5415
        %5419 = vrot.lane.b32.xlu0 %v2337, 104
        %v5420 = vpop.permute.xlu0 %5419
        %5421 = vrot.lane.b32.xlu0 %v2338, 104
        %v5422 = vpop.permute.xlu0 %5421
        %v5426 = vsel %vm483, %v5417, 0
        %v5429 = vsel %vm483, %v5418, 0
        %5431 = vmatpush.bf16.msra.mxu0 0
        %5432 = vmatpush.bf16.msra.mxu0 0
        %5433 = vmatpush.bf16.msra.mxu0 0
        %5434 = vmatpush.bf16.msra.mxu0 0
        %5435 = vmatpush.bf16.msra.mxu0 0
        %5436 = vmatpush.bf16.msra.mxu0 0
        %5437 = vmatpush.bf16.msra.mxu0 %v5422
        %5438 = vmatpush.bf16.msra.mxu0 %v5420
        %5439 = vmatmul.bf16.gmra.mxu0 %v5426
        %v5440 = vpop.f32.mrf.mxu0
        %v5441 = vadd.f32 0.0, %v5440
        %v5442 = vpop.f32.mrf.mxu0
        %v5443 = vadd.f32 0.0, %v5442
        %5444 = vmatmul.bf16.gmra.mxu0 %v5429
        %v5445 = vpop.f32.mrf.mxu0
        %v5446 = vadd.f32 0.0, %v5445
        %v5447 = vpop.f32.mrf.mxu0
        %v5448 = vadd.f32 0.0, %v5447
        %5449 = vdwg.mxu0
        %v5454 = vunpack.c.l.b16 %v5196
        %v5455 = vunpack.c.l.b16 %v5197
        %v5456 = vunpack.c.l.b16 %v5198
        %v5457 = vunpack.c.l.b16 %v5199
        %v5458 = vpack.c.b16 %v5455, %v5454
        %v5459 = vpack.c.b16 %v5457, %v5456
        %5460 = vrot.lane.b32.xlu0 %v2384, 104
        %v5461 = vpop.permute.xlu0 %5460
        %5462 = vrot.lane.b32.xlu0 %v2385, 104
        %v5463 = vpop.permute.xlu0 %5462
        %v5467 = vsel %vm483, %v5458, 0
        %v5470 = vsel %vm483, %v5459, 0
        %5472 = vmatpush.bf16.msra.mxu0 0
        %5473 = vmatpush.bf16.msra.mxu0 0
        %5474 = vmatpush.bf16.msra.mxu0 0
        %5475 = vmatpush.bf16.msra.mxu0 0
        %5476 = vmatpush.bf16.msra.mxu0 0
        %5477 = vmatpush.bf16.msra.mxu0 0
        %5478 = vmatpush.bf16.msra.mxu0 %v5463
        %5479 = vmatpush.bf16.msra.mxu0 %v5461
        %5480 = vmatmul.bf16.gmra.mxu0 %v5467
        %v5481 = vpop.f32.mrf.mxu0
        %v5482 = vadd.f32 0.0, %v5481
        %v5483 = vpop.f32.mrf.mxu0
        %v5484 = vadd.f32 0.0, %v5483
        %5485 = vmatmul.bf16.gmra.mxu0 %v5470
        %v5486 = vpop.f32.mrf.mxu0
        %v5487 = vadd.f32 0.0, %v5486
        %v5488 = vpop.f32.mrf.mxu0
        %v5489 = vadd.f32 0.0, %v5488
        %5490 = vdwg.mxu0
        %v5495 = vunpack.c.l.b16 %v5200
        %v5496 = vunpack.c.l.b16 %v5201
        %v5497 = vunpack.c.l.b16 %v5202
        %v5498 = vunpack.c.l.b16 %v5203
        %v5499 = vpack.c.b16 %v5496, %v5495
        %v5500 = vpack.c.b16 %v5498, %v5497
        %5501 = vrot.lane.b32.xlu0 %v2431, 104
        %v5502 = vpop.permute.xlu0 %5501
        %5503 = vrot.lane.b32.xlu0 %v2432, 104
        %v5504 = vpop.permute.xlu0 %5503
        %v5508 = vsel %vm483, %v5499, 0
        %v5511 = vsel %vm483, %v5500, 0
        %5513 = vmatpush.bf16.msra.mxu0 0
        %5514 = vmatpush.bf16.msra.mxu0 0
        %5515 = vmatpush.bf16.msra.mxu0 0
        %5516 = vmatpush.bf16.msra.mxu0 0
        %5517 = vmatpush.bf16.msra.mxu0 0
        %5518 = vmatpush.bf16.msra.mxu0 0
        %5519 = vmatpush.bf16.msra.mxu0 %v5504
        %5520 = vmatpush.bf16.msra.mxu0 %v5502
        %5521 = vmatmul.bf16.gmra.mxu0 %v5508
        %v5522 = vpop.f32.mrf.mxu0
        %v5523 = vadd.f32 0.0, %v5522
        %v5524 = vpop.f32.mrf.mxu0
        %v5525 = vadd.f32 0.0, %v5524
        %5526 = vmatmul.bf16.gmra.mxu0 %v5511
        %v5527 = vpop.f32.mrf.mxu0
        %v5528 = vadd.f32 0.0, %v5527
        %v5529 = vpop.f32.mrf.mxu0
        %v5530 = vadd.f32 0.0, %v5529
        %5531 = vdwg.mxu0
        %5564 = vrot.lane.b32.xlu0 %v3188, 8
        %v5565 = vpop.permute.xlu0 %5564
        %5566 = vrot.lane.b32.xlu0 %v3190, 8
        %v5567 = vpop.permute.xlu0 %5566
        %5568 = vrot.lane.b32.xlu0 %v3193, 8
        %v5569 = vpop.permute.xlu0 %5568
        %5570 = vrot.lane.b32.xlu0 %v3195, 8
        %v5571 = vpop.permute.xlu0 %5570
        %5572 = vrot.lane.b32.xlu0 %v3229, 8
        %v5573 = vpop.permute.xlu0 %5572
        %5574 = vrot.lane.b32.xlu0 %v3231, 8
        %v5575 = vpop.permute.xlu0 %5574
        %5576 = vrot.lane.b32.xlu0 %v3234, 8
        %v5577 = vpop.permute.xlu0 %5576
        %5578 = vrot.lane.b32.xlu0 %v3236, 8
        %v5579 = vpop.permute.xlu0 %5578
        %5580 = vrot.lane.b32.xlu0 %v3270, 8
        %v5581 = vpop.permute.xlu0 %5580
        %5582 = vrot.lane.b32.xlu0 %v3272, 8
        %v5583 = vpop.permute.xlu0 %5582
        %5584 = vrot.lane.b32.xlu0 %v3275, 8
        %v5585 = vpop.permute.xlu0 %5584
        %5586 = vrot.lane.b32.xlu0 %v3277, 8
        %v5587 = vpop.permute.xlu0 %5586
        %5588 = vrot.lane.b32.xlu0 %v3311, 8
        %v5589 = vpop.permute.xlu0 %5588
        %5590 = vrot.lane.b32.xlu0 %v3313, 8
        %v5591 = vpop.permute.xlu0 %5590
        %5592 = vrot.lane.b32.xlu0 %v3316, 8
        %v5593 = vpop.permute.xlu0 %5592
        %5594 = vrot.lane.b32.xlu0 %v3318, 8
        %v5595 = vpop.permute.xlu0 %5594
        %5596 = vrot.lane.b32.xlu0 %v3352, 8
        %v5597 = vpop.permute.xlu0 %5596
        %5598 = vrot.lane.b32.xlu0 %v3354, 8
        %v5599 = vpop.permute.xlu0 %5598
        %5600 = vrot.lane.b32.xlu0 %v3357, 8
        %v5601 = vpop.permute.xlu0 %5600
        %5602 = vrot.lane.b32.xlu0 %v3359, 8
        %v5603 = vpop.permute.xlu0 %5602
        %5604 = vrot.lane.b32.xlu0 %v3393, 8
        %v5605 = vpop.permute.xlu0 %5604
        %5606 = vrot.lane.b32.xlu0 %v3395, 8
        %v5607 = vpop.permute.xlu0 %5606
        %5608 = vrot.lane.b32.xlu0 %v3398, 8
        %v5609 = vpop.permute.xlu0 %5608
        %5610 = vrot.lane.b32.xlu0 %v3400, 8
        %v5611 = vpop.permute.xlu0 %5610
        %5612 = vrot.lane.b32.xlu0 %v3434, 8
        %v5613 = vpop.permute.xlu0 %5612
        %5614 = vrot.lane.b32.xlu0 %v3436, 8
        %v5615 = vpop.permute.xlu0 %5614
        %5616 = vrot.lane.b32.xlu0 %v3439, 8
        %v5617 = vpop.permute.xlu0 %5616
        %5618 = vrot.lane.b32.xlu0 %v3441, 8
        %v5619 = vpop.permute.xlu0 %5618
        %5620 = vrot.lane.b32.xlu0 %v3475, 8
        %v5621 = vpop.permute.xlu0 %5620
        %5622 = vrot.lane.b32.xlu0 %v3477, 8
        %v5623 = vpop.permute.xlu0 %5622
        %5624 = vrot.lane.b32.xlu0 %v3480, 8
        %v5625 = vpop.permute.xlu0 %5624
        %5626 = vrot.lane.b32.xlu0 %v3482, 8
        %v5627 = vpop.permute.xlu0 %5626
        %5692 = vrot.lane.b32.xlu0 %v4212, 16
        %v5693 = vpop.permute.xlu0 %5692
        %5694 = vrot.lane.b32.xlu0 %v4214, 16
        %v5695 = vpop.permute.xlu0 %5694
        %5696 = vrot.lane.b32.xlu0 %v4217, 16
        %v5697 = vpop.permute.xlu0 %5696
        %5698 = vrot.lane.b32.xlu0 %v4219, 16
        %v5699 = vpop.permute.xlu0 %5698
        %5700 = vrot.lane.b32.xlu0 %v4253, 16
        %v5701 = vpop.permute.xlu0 %5700
        %5702 = vrot.lane.b32.xlu0 %v4255, 16
        %v5703 = vpop.permute.xlu0 %5702
        %5704 = vrot.lane.b32.xlu0 %v4258, 16
        %v5705 = vpop.permute.xlu0 %5704
        %5706 = vrot.lane.b32.xlu0 %v4260, 16
        %v5707 = vpop.permute.xlu0 %5706
        %5708 = vrot.lane.b32.xlu0 %v4294, 16
        %v5709 = vpop.permute.xlu0 %5708
        %5710 = vrot.lane.b32.xlu0 %v4296, 16
        %v5711 = vpop.permute.xlu0 %5710
        %5712 = vrot.lane.b32.xlu0 %v4299, 16
        %v5713 = vpop.permute.xlu0 %5712
        %5714 = vrot.lane.b32.xlu0 %v4301, 16
        %v5715 = vpop.permute.xlu0 %5714
        %5716 = vrot.lane.b32.xlu0 %v4335, 16
        %v5717 = vpop.permute.xlu0 %5716
        %5718 = vrot.lane.b32.xlu0 %v4337, 16
        %v5719 = vpop.permute.xlu0 %5718
        %5720 = vrot.lane.b32.xlu0 %v4340, 16
        %v5721 = vpop.permute.xlu0 %5720
        %5722 = vrot.lane.b32.xlu0 %v4342, 16
        %v5723 = vpop.permute.xlu0 %5722
        %5724 = vrot.lane.b32.xlu0 %v4376, 16
        %v5725 = vpop.permute.xlu0 %5724
        %5726 = vrot.lane.b32.xlu0 %v4378, 16
        %v5727 = vpop.permute.xlu0 %5726
        %5728 = vrot.lane.b32.xlu0 %v4381, 16
        %v5729 = vpop.permute.xlu0 %5728
        %5730 = vrot.lane.b32.xlu0 %v4383, 16
        %v5731 = vpop.permute.xlu0 %5730
        %5732 = vrot.lane.b32.xlu0 %v4417, 16
        %v5733 = vpop.permute.xlu0 %5732
        %5734 = vrot.lane.b32.xlu0 %v4419, 16
        %v5735 = vpop.permute.xlu0 %5734
        %5736 = vrot.lane.b32.xlu0 %v4422, 16
        %v5737 = vpop.permute.xlu0 %5736
        %5738 = vrot.lane.b32.xlu0 %v4424, 16
        %v5739 = vpop.permute.xlu0 %5738
        %5740 = vrot.lane.b32.xlu0 %v4458, 16
        %v5741 = vpop.permute.xlu0 %5740
        %5742 = vrot.lane.b32.xlu0 %v4460, 16
        %v5743 = vpop.permute.xlu0 %5742
        %5744 = vrot.lane.b32.xlu0 %v4463, 16
        %v5745 = vpop.permute.xlu0 %5744
        %5746 = vrot.lane.b32.xlu0 %v4465, 16
        %v5747 = vpop.permute.xlu0 %5746
        %5748 = vrot.lane.b32.xlu0 %v4499, 16
        %v5749 = vpop.permute.xlu0 %5748
        %5750 = vrot.lane.b32.xlu0 %v4501, 16
        %v5751 = vpop.permute.xlu0 %5750
        %5752 = vrot.lane.b32.xlu0 %v4504, 16
        %v5753 = vpop.permute.xlu0 %5752
        %5754 = vrot.lane.b32.xlu0 %v4506, 16
        %v5755 = vpop.permute.xlu0 %5754
        %5820 = vrot.lane.b32.xlu0 %v5236, 24
        %v5821 = vpop.permute.xlu0 %5820
        %5822 = vrot.lane.b32.xlu0 %v5238, 24
        %v5823 = vpop.permute.xlu0 %5822
        %5824 = vrot.lane.b32.xlu0 %v5241, 24
        %v5825 = vpop.permute.xlu0 %5824
        %5826 = vrot.lane.b32.xlu0 %v5243, 24
        %v5827 = vpop.permute.xlu0 %5826
        %5828 = vrot.lane.b32.xlu0 %v5277, 24
        %v5829 = vpop.permute.xlu0 %5828
        %5830 = vrot.lane.b32.xlu0 %v5279, 24
        %v5831 = vpop.permute.xlu0 %5830
        %5832 = vrot.lane.b32.xlu0 %v5282, 24
        %v5833 = vpop.permute.xlu0 %5832
        %5834 = vrot.lane.b32.xlu0 %v5284, 24
        %v5835 = vpop.permute.xlu0 %5834
        %5836 = vrot.lane.b32.xlu0 %v5318, 24
        %v5837 = vpop.permute.xlu0 %5836
        %5838 = vrot.lane.b32.xlu0 %v5320, 24
        %v5839 = vpop.permute.xlu0 %5838
        %5840 = vrot.lane.b32.xlu0 %v5323, 24
        %v5841 = vpop.permute.xlu0 %5840
        %5842 = vrot.lane.b32.xlu0 %v5325, 24
        %v5843 = vpop.permute.xlu0 %5842
        %5844 = vrot.lane.b32.xlu0 %v5359, 24
        %v5845 = vpop.permute.xlu0 %5844
        %5846 = vrot.lane.b32.xlu0 %v5361, 24
        %v5847 = vpop.permute.xlu0 %5846
        %5848 = vrot.lane.b32.xlu0 %v5364, 24
        %v5849 = vpop.permute.xlu0 %5848
        %5850 = vrot.lane.b32.xlu0 %v5366, 24
        %v5851 = vpop.permute.xlu0 %5850
        %5852 = vrot.lane.b32.xlu0 %v5400, 24
        %v5853 = vpop.permute.xlu0 %5852
        %5854 = vrot.lane.b32.xlu0 %v5402, 24
        %v5855 = vpop.permute.xlu0 %5854
        %5856 = vrot.lane.b32.xlu0 %v5405, 24
        %v5857 = vpop.permute.xlu0 %5856
        %5858 = vrot.lane.b32.xlu0 %v5407, 24
        %v5859 = vpop.permute.xlu0 %5858
        %5860 = vrot.lane.b32.xlu0 %v5441, 24
        %v5861 = vpop.permute.xlu0 %5860
        %5862 = vrot.lane.b32.xlu0 %v5443, 24
        %v5863 = vpop.permute.xlu0 %5862
        %5864 = vrot.lane.b32.xlu0 %v5446, 24
        %v5865 = vpop.permute.xlu0 %5864
        %5866 = vrot.lane.b32.xlu0 %v5448, 24
        %v5867 = vpop.permute.xlu0 %5866
        %5868 = vrot.lane.b32.xlu0 %v5482, 24
        %v5869 = vpop.permute.xlu0 %5868
        %5870 = vrot.lane.b32.xlu0 %v5484, 24
        %v5871 = vpop.permute.xlu0 %5870
        %5872 = vrot.lane.b32.xlu0 %v5487, 24
        %v5873 = vpop.permute.xlu0 %5872
        %5874 = vrot.lane.b32.xlu0 %v5489, 24
        %v5875 = vpop.permute.xlu0 %5874
        %5876 = vrot.lane.b32.xlu0 %v5523, 24
        %v5877 = vpop.permute.xlu0 %5876
        %5878 = vrot.lane.b32.xlu0 %v5525, 24
        %v5879 = vpop.permute.xlu0 %5878
        %5880 = vrot.lane.b32.xlu0 %v5528, 24
        %v5881 = vpop.permute.xlu0 %5880
        %5882 = vrot.lane.b32.xlu0 %v5530, 24
        %v5883 = vpop.permute.xlu0 %5882
        %v5916 = vsel %vm1311, %v2122, %v5565
        %v5917 = vsel %vm1311, %v2124, %v5567
        %v5918 = vsel %vm1311, %v2127, %v5569
        %v5919 = vsel %vm1311, %v2129, %v5571
        %v5920 = vsel %vm1311, %v2169, %v5573
        %v5921 = vsel %vm1311, %v2171, %v5575
        %v5922 = vsel %vm1311, %v2174, %v5577
        %v5923 = vsel %vm1311, %v2176, %v5579
        %v5924 = vsel %vm1311, %v2216, %v5581
        %v5925 = vsel %vm1311, %v2218, %v5583
        %v5926 = vsel %vm1311, %v2221, %v5585
        %v5927 = vsel %vm1311, %v2223, %v5587
        %v5928 = vsel %vm1311, %v2263, %v5589
        %v5929 = vsel %vm1311, %v2265, %v5591
        %v5930 = vsel %vm1311, %v2268, %v5593
        %v5931 = vsel %vm1311, %v2270, %v5595
        %v5932 = vsel %vm1311, %v2310, %v5597
        %v5933 = vsel %vm1311, %v2312, %v5599
        %v5934 = vsel %vm1311, %v2315, %v5601
        %v5935 = vsel %vm1311, %v2317, %v5603
        %v5936 = vsel %vm1311, %v2357, %v5605
        %v5937 = vsel %vm1311, %v2359, %v5607
        %v5938 = vsel %vm1311, %v2362, %v5609
        %v5939 = vsel %vm1311, %v2364, %v5611
        %v5940 = vsel %vm1311, %v2404, %v5613
        %v5941 = vsel %vm1311, %v2406, %v5615
        %v5942 = vsel %vm1311, %v2409, %v5617
        %v5943 = vsel %vm1311, %v2411, %v5619
        %v5944 = vsel %vm1311, %v2451, %v5621
        %v5945 = vsel %vm1311, %v2453, %v5623
        %v5946 = vsel %vm1311, %v2456, %v5625
        %v5947 = vsel %vm1311, %v2458, %v5627
        %vm5948 = vcmask 130048
        %v5949 = vsel %vm5948, %v5916, %v5693
        %v5950 = vsel %vm5948, %v5917, %v5695
        %v5951 = vsel %vm5948, %v5918, %v5697
        %v5952 = vsel %vm5948, %v5919, %v5699
        %v5953 = vsel %vm5948, %v5920, %v5701
        %v5954 = vsel %vm5948, %v5921, %v5703
        %v5955 = vsel %vm5948, %v5922, %v5705
        %v5956 = vsel %vm5948, %v5923, %v5707
        %v5957 = vsel %vm5948, %v5924, %v5709
        %v5958 = vsel %vm5948, %v5925, %v5711
        %v5959 = vsel %vm5948, %v5926, %v5713
        %v5960 = vsel %vm5948, %v5927, %v5715
        %v5961 = vsel %vm5948, %v5928, %v5717
        %v5962 = vsel %vm5948, %v5929, %v5719
        %v5963 = vsel %vm5948, %v5930, %v5721
        %v5964 = vsel %vm5948, %v5931, %v5723
        %v5965 = vsel %vm5948, %v5932, %v5725
        %v5966 = vsel %vm5948, %v5933, %v5727
        %v5967 = vsel %vm5948, %v5934, %v5729
        %v5968 = vsel %vm5948, %v5935, %v5731
        %v5969 = vsel %vm5948, %v5936, %v5733
        %v5970 = vsel %vm5948, %v5937, %v5735
        %v5971 = vsel %vm5948, %v5938, %v5737
        %v5972 = vsel %vm5948, %v5939, %v5739
        %v5973 = vsel %vm5948, %v5940, %v5741
        %v5974 = vsel %vm5948, %v5941, %v5743
        %v5975 = vsel %vm5948, %v5942, %v5745
        %v5976 = vsel %vm5948, %v5943, %v5747
        %v5977 = vsel %vm5948, %v5944, %v5749
        %v5978 = vsel %vm5948, %v5945, %v5751
        %v5979 = vsel %vm5948, %v5946, %v5753
        %v5980 = vsel %vm5948, %v5947, %v5755
        %vm5981 = vcmask 195584
        %v5982 = vsel %vm5981, %v5949, %v5821
        %v5983 = vsel %vm5981, %v5950, %v5823
        %v5984 = vsel %vm5981, %v5951, %v5825
        %v5985 = vsel %vm5981, %v5952, %v5827
        %v5986 = vsel %vm5981, %v5953, %v5829
        %v5987 = vsel %vm5981, %v5954, %v5831
        %v5988 = vsel %vm5981, %v5955, %v5833
        %v5989 = vsel %vm5981, %v5956, %v5835
        %v5990 = vsel %vm5981, %v5957, %v5837
        %v5991 = vsel %vm5981, %v5958, %v5839
        %v5992 = vsel %vm5981, %v5959, %v5841
        %v5993 = vsel %vm5981, %v5960, %v5843
        %v5994 = vsel %vm5981, %v5961, %v5845
        %v5995 = vsel %vm5981, %v5962, %v5847
        %v5996 = vsel %vm5981, %v5963, %v5849
        %v5997 = vsel %vm5981, %v5964, %v5851
        %v5998 = vsel %vm5981, %v5965, %v5853
        %v5999 = vsel %vm5981, %v5966, %v5855
        %v6000 = vsel %vm5981, %v5967, %v5857
        %v6001 = vsel %vm5981, %v5968, %v5859
        %v6002 = vsel %vm5981, %v5969, %v5861
        %v6003 = vsel %vm5981, %v5970, %v5863
        %v6004 = vsel %vm5981, %v5971, %v5865
        %v6005 = vsel %vm5981, %v5972, %v5867
        %v6006 = vsel %vm5981, %v5973, %v5869
        %v6007 = vsel %vm5981, %v5974, %v5871
        %v6008 = vsel %vm5981, %v5975, %v5873
        %v6009 = vsel %vm5981, %v5976, %v5875
        %v6010 = vsel %vm5981, %v5977, %v5877
        %v6011 = vsel %vm5981, %v5978, %v5879
        %v6012 = vsel %vm5981, %v5979, %v5881
        %v6013 = vsel %vm5981, %v5980, %v5883
        %6014 = vst.msk [vmem:[%s345] sm:$0xff] %vm483, %v5982
        %6015 = vst.msk [vmem:[%s345 + $0x8] sm:$0xff] %vm483, %v5983
        %6016 = vst.msk [vmem:[%s345 + $0x10] sm:$0xff] %vm483, %v5984
        %6017 = vst.msk [vmem:[%s345 + $0x18] sm:$0xff] %vm483, %v5985
        %6018 = vst.msk [vmem:[%s345 + $0x20] sm:$0xff] %vm483, %v5986
        %6019 = vst.msk [vmem:[%s345 + $0x28] sm:$0xff] %vm483, %v5987
        %6020 = vst.msk [vmem:[%s345 + $0x30] sm:$0xff] %vm483, %v5988
        %6021 = vst.msk [vmem:[%s345 + $0x38] sm:$0xff] %vm483, %v5989
        %6022 = vst.msk [vmem:[%s345 + $0x40] sm:$0xff] %vm483, %v5990
        %6023 = vst.msk [vmem:[%s345 + $0x48] sm:$0xff] %vm483, %v5991
        %6024 = vst.msk [vmem:[%s345 + $0x50] sm:$0xff] %vm483, %v5992
        %6025 = vst.msk [vmem:[%s345 + $0x58] sm:$0xff] %vm483, %v5993
        %6026 = vst.msk [vmem:[%s345 + $0x60] sm:$0xff] %vm483, %v5994
        %6027 = vst.msk [vmem:[%s345 + $0x68] sm:$0xff] %vm483, %v5995
        %6028 = vst.msk [vmem:[%s345 + $0x70] sm:$0xff] %vm483, %v5996
        %6029 = vst.msk [vmem:[%s345 + $0x78] sm:$0xff] %vm483, %v5997
        %6030 = vst.msk [vmem:[%s345 + $0x80] sm:$0xff] %vm483, %v5998
        %6031 = vst.msk [vmem:[%s345 + $0x88] sm:$0xff] %vm483, %v5999
        %6032 = vst.msk [vmem:[%s345 + $0x90] sm:$0xff] %vm483, %v6000
        %6033 = vst.msk [vmem:[%s345 + $0x98] sm:$0xff] %vm483, %v6001
        %6034 = vst.msk [vmem:[%s345 + $0xa0] sm:$0xff] %vm483, %v6002
        %6035 = vst.msk [vmem:[%s345 + $0xa8] sm:$0xff] %vm483, %v6003
        %6036 = vst.msk [vmem:[%s345 + $0xb0] sm:$0xff] %vm483, %v6004
        %6037 = vst.msk [vmem:[%s345 + $0xb8] sm:$0xff] %vm483, %v6005
        %6038 = vst.msk [vmem:[%s345 + $0xc0] sm:$0xff] %vm483, %v6006
        %6039 = vst.msk [vmem:[%s345 + $0xc8] sm:$0xff] %vm483, %v6007
        %6040 = vst.msk [vmem:[%s345 + $0xd0] sm:$0xff] %vm483, %v6008
        %6041 = vst.msk [vmem:[%s345 + $0xd8] sm:$0xff] %vm483, %v6009
        %6042 = vst.msk [vmem:[%s345 + $0xe0] sm:$0xff] %vm483, %v6010
        %6043 = vst.msk [vmem:[%s345 + $0xe8] sm:$0xff] %vm483, %v6011
        %6044 = vst.msk [vmem:[%s345 + $0xf0] sm:$0xff] %vm483, %v6012
        %6045 = vst.msk [vmem:[%s345 + $0xf8] sm:$0xff] %vm483, %v6013
        %s6046 = sand.u32 %s154, 1
        %s6047 = scalar_lea.sflag [#allocation4], %s6046
        %s6048 = sand.u32 %s154, 1
        %s6049 = smul.addr %s6048, 256
        %s6050 = scalar_lea.vmem [#allocation10], %s6049
        // Predicated region
        $region57: #{tpu_custom_call.1} parent=39 // pred_check
          %p6051 = pneg %p164
        $region58: #{tpu_custom_call.1} parent=39 // pred_check_branch
          %6053 = sbr.rel (%p6051) target = $region60
        $region59: #{tpu_custom_call.1} parent=39 // pred_region
          %s6054 = smul.u32 8, %s26
          %6056 = vsyncadd %s6047, 0
          %s6057 = smul.addr %s6054, 4
          %s6058 = smul.addr %s6057, 8
          %s6059 = scalar_lea.hbm %s5, %s6058
          %s6060 = sshll.u32 %s6050, 4
          %s6061 = int_to_ptr.vmem [resolvable:$true] %s6060
          %s6062 = sshll.u32 %s6059, 4
          %s6063 = int_to_ptr.hbm [resolvable:$true] %s6062
          %6068 = dma.vmem_to_hbm [thread:$0]  %s6061, 4096, %s6063, %s6047, 128, 128, 8
        $region60: #{tpu_custom_call.1} parent=39 // pred_fallthru
          _
      $region40: #{tpu_custom_call.1} parent=5 // pred_fallthru
        _
      %p6069 = scmp.le.s32.totalorder 2, %s21
      // Predicated region
      $region61: #{tpu_custom_call.1} parent=5 // pred_check
        %p6070 = pneg %p6069
      $region62: #{tpu_custom_call.1} parent=5 // pred_check_branch
        %6072 = sbr.rel (%p6070) target = $region64
      $region63: #{tpu_custom_call.1} parent=5 // pred_region
        %s6073 = ssub.s32 %s21, 2
        // Predicated region
        $region65: #{tpu_custom_call.1} parent=63 // pred_check
          %p6074 = pneg %p170
        $region66: #{tpu_custom_call.1} parent=63 // pred_check_branch
          %6076 = sbr.rel (%p6074) target = $region68
        $region67: #{tpu_custom_call.1} parent=63 // pred_region
          %s6077 = sand.u32 %s155, 1
          %s6078 = scalar_lea.sflag [#allocation4], %s6077
          %s6079 = sand.u32 %s155, 1
          %s6080 = smul.addr %s6079, 256
          %s6081 = scalar_lea.vmem [#allocation10], %s6080
          %6083 = dma.done %s6078, 4096
        $region68: #{tpu_custom_call.1} parent=63 // pred_fallthru
          _
      $region64: #{tpu_custom_call.1} parent=5 // pred_fallthru
        _
    $region6: #{tpu_custom_call.1} parent=1 // loop_footer
      %s25 = sadd.s32 1, %s21
    $region7: #{tpu_custom_call.1} parent=1 // loop_footer_branch
      %20 = sbr.rel target = $region3
    $region8: #{tpu_custom_call.1} parent=1 // loop_exit
      _
    %6084 = vsyncpa [#allocation3], 1
    %s6085 = scalar_lea.sflag [#allocation3], 1
    %6086 = vsyncpa %s6085, 1
    %6087 = vsyncpa [#allocation6], 1
    %s6088 = scalar_lea.sflag [#allocation6], 1
    %6089 = vsyncpa %s6088, 1
    %6090 = vsyncpa [#allocation9], 1
    %6091 = vsyncpa [#allocation4], 1
    %s6092 = scalar_lea.sflag [#allocation4], 1
    %6093 = vsyncpa %s6092, 1

// kernel: tpu_custom_call.1
$region0: #{tpu_custom_call.1}
  #allocation0 [shape = 'u32[]', space=smem, size = 0x4, offset = 0x4, fixed_abs, tag = 'smem constant byte address 0x4 - core index']
  #allocation1 [shape = 'u32[72,128]{1,0:T(1,128)}', space=vmem, size = 0x9000, scoped, tag = 'internal scratch']
  %s0 = inlined_call_operand.hbm [shape: bf16[32,32,32], index: 0, kind: input, shape index: {}]
  %s1 = inlined_call_operand.hbm [shape: bf16[32,32,32], index: 1, kind: input, shape index: {}]
  %s2 = inlined_call_operand.hbm [shape: bf16[32,32,32], index: 2, kind: input, shape index: {}]
  %s3 = inlined_call_operand.hbm [shape: bf16[3,32,32], index: 3, kind: input, shape index: {}]
  %s4 = inlined_call_operand.vmem [shape: f32[3,1,32], index: 4, kind: input, shape index: {}]
  %s5 = inlined_call_operand.hbm [shape: f32[32,32,32], index: 5, kind: output, shape index: {}]
  %s6 = sld [smem:[#allocation0]]
  $region69: #{tpu_custom_call.1} parent=0
    _
  %s8 = ssub.s32 1, %s6
  %s9 = scalar_select 0, %s8, %s6
  $region1: #{tpu_custom_call.1} parent=0
    #allocation2 [shape = 'u8[131072]{0}', space=vmem, size = 0x20000, scoped, tag = 'input window, operand 0']
    #allocation3 [shape = 's32[2]{0}', space=sflag, size = 0x8, scoped, tag = 'scoped memory for tpu_custom_call.1']
    #allocation4 [shape = 's32[2]{0}', space=sflag, size = 0x8, scoped, tag = 'scoped memory for tpu_custom_call.1']
    #allocation5 [shape = 'u8[131072]{0}', space=vmem, size = 0x20000, scoped, tag = 'input window, operand 1']
    #allocation6 [shape = 's32[2]{0}', space=sflag, size = 0x8, scoped, tag = 'scoped memory for tpu_custom_call.1']
    #allocation7 [shape = 'u8[131072]{0}', space=vmem, size = 0x20000, scoped, tag = 'input window, operand 2']
    #allocation8 [shape = 'u8[24576]{0}', space=vmem, size = 0x6000, scoped, tag = 'input window, operand 3, single buffered']
    #allocation9 [shape = 's32[1]{0}', space=sflag, size = 0x4, scoped, tag = 'scoped memory for tpu_custom_call.1']
    #allocation10 [shape = 'u8[262144]{0}', space=vmem, size = 0x40000, scoped, tag = 'output window, operand 0']
    %10 = vsyncpa [#allocation3], 0
    %s11 = scalar_lea.sflag [#allocation3], 1
    %12 = vsyncpa %s11, 0
    %13 = vsyncpa [#allocation6], 0
    %s14 = scalar_lea.sflag [#allocation6], 1
    %15 = vsyncpa %s14, 0
    %16 = vsyncpa [#allocation9], 0
    %17 = vsyncpa [#allocation4], 0
    %s18 = scalar_lea.sflag [#allocation4], 1
    %19 = vsyncpa %s18, 0
    loop: start=0, step=1, limit=6
    $region2: #{tpu_custom_call.1} parent=1 // loop_pre_header
      _
    $region3: #{tpu_custom_call.1} parent=1 // loop_header
      %s21 = sphi 0, %s25
      %p22 = scmp.ge.s32.totalorder %s21, 6
      %s31 = sphi 0, %s33
      %s34 = sphi 0, %s31
      %s35 = sphi 0, %s34
      %s51 = sphi 0, %s35
      %s57 = sphi 0, %s59
      %s60 = sphi 0, %s57
      %s61 = sphi 0, %s60
      %s77 = sphi 0, %s61
      %s83 = sphi 0, %s85
      %s86 = sphi 0, %s83
      %s87 = sphi 0, %s86
      %s103 = sphi 0, %s87
      %s107 = sphi 0, %s107
      %s109 = sphi 0, %s107
      %s110 = sphi 0, %s109
      %s124 = sphi 0, %s110
      %s128 = sphi 0, %s128
      %s130 = sphi 0, %s128
      %s131 = sphi 0, %s130
      %s145 = sphi 0, %s131
      %s151 = sphi 0, %s153
      %s154 = sphi 0, %s151
      %s155 = sphi 0, %s154
      %s171 = sphi 0, %s155
    $region4: #{tpu_custom_call.1} parent=1 // loop_header_branch
      %24 = sbr.rel (%p22) target = $region8
    $region5: #{tpu_custom_call.1} parent=1 // loop_body
      %s26 = ssub.s32 %s21, 1
      %s27 = ssub.s32 %s21, 2
      %s28 = sadd.s32 %s21, 1
      %s29 = ssub.s32 %s21, %s28
      %p30 = scmp.eq.s32.totalorder %s29, 0
      %s32 = sadd.s32 %s31, 1
      %s33 = scalar_select %p30, %s31, %s32
      %p36 = pneg %p30
      %p37 = scmp.eq.s32.totalorder %s21, 3
      %p38 = por %p36, %p37
      %p39 = scmp.ne.s32.totalorder %s31, %s34
      %p40 = scmp.eq.s32.totalorder %s21, 0
      %p41 = por %p39, %p40
      %p42 = scmp.ne.s32.totalorder %s31, %s34
      %p43 = scmp.eq.s32.totalorder %s26, 3
      %p44 = por %p42, %p43
      %p45 = scmp.ne.s32.totalorder %s34, %s35
      %p46 = scmp.eq.s32.totalorder %s26, 0
      %p47 = por %p45, %p46
      %p48 = scmp.ne.s32.totalorder %s34, %s35
      %p49 = scmp.eq.s32.totalorder %s27, 3
      %p50 = por %p48, %p49
      %p52 = scmp.ne.s32.totalorder %s35, %s51
      %p53 = scmp.eq.s32.totalorder %s27, 0
      %p54 = por %p52, %p53
      %s55 = ssub.s32 %s21, %s28
      %p56 = scmp.eq.s32.totalorder %s55, 0
      %s58 = sadd.s32 %s57, 1
      %s59 = scalar_select %p56, %s57, %s58
      %p62 = pneg %p56
      %p63 = scmp.eq.s32.totalorder %s21, 3
      %p64 = por %p62, %p63
      %p65 = scmp.ne.s32.totalorder %s57, %s60
      %p66 = scmp.eq.s32.totalorder %s21, 0
      %p67 = por %p65, %p66
      %p68 = scmp.ne.s32.totalorder %s57, %s60
      %p69 = scmp.eq.s32.totalorder %s26, 3
      %p70 = por %p68, %p69
      %p71 = scmp.ne.s32.totalorder %s60, %s61
      %p72 = scmp.eq.s32.totalorder %s26, 0
      %p73 = por %p71, %p72
      %p74 = scmp.ne.s32.totalorder %s60, %s61
      %p75 = scmp.eq.s32.totalorder %s27, 3
      %p76 = por %p74, %p75
      %p78 = scmp.ne.s32.totalorder %s61, %s77
      %p79 = scmp.eq.s32.totalorder %s27, 0
      %p80 = por %p78, %p79
      %s81 = ssub.s32 %s21, %s28
      %p82 = scmp.eq.s32.totalorder %s81, 0
      %s84 = sadd.s32 %s83, 1
      %s85 = scalar_select %p82, %s83, %s84
      %p88 = pneg %p82
      %p89 = scmp.eq.s32.totalorder %s21, 3
      %p90 = por %p88, %p89
      %p91 = scmp.ne.s32.totalorder %s83, %s86
      %p92 = scmp.eq.s32.totalorder %s21, 0
      %p93 = por %p91, %p92
      %p94 = scmp.ne.s32.totalorder %s83, %s86
      %p95 = scmp.eq.s32.totalorder %s26, 3
      %p96 = por %p94, %p95
      %p97 = scmp.ne.s32.totalorder %s86, %s87
      %p98 = scmp.eq.s32.totalorder %s26, 0
      %p99 = por %p97, %p98
      %p100 = scmp.ne.s32.totalorder %s86, %s87
      %p101 = scmp.eq.s32.totalorder %s27, 3
      %p102 = por %p100, %p101
      %p104 = scmp.ne.s32.totalorder %s87, %s103
      %p105 = scmp.eq.s32.totalorder %s27, 0
      %p106 = por %p104, %p105
      %s108 = sadd.s32 %s107, 1
      %p111 = scmp.eq.s32.totalorder %s21, 3
      %p112 = scmp.ne.s32.totalorder %s107, %s109
      %p113 = scmp.eq.s32.totalorder %s21, 0
      %p114 = por %p112, %p113
      %p115 = scmp.ne.s32.totalorder %s107, %s109
      %p116 = scmp.eq.s32.totalorder %s26, 3
      %p117 = por %p115, %p116
      %p118 = scmp.ne.s32.totalorder %s109, %s110
      %p119 = scmp.eq.s32.totalorder %s26, 0
      %p120 = por %p118, %p119
      %p121 = scmp.ne.s32.totalorder %s109, %s110
      %p122 = scmp.eq.s32.totalorder %s27, 3
      %p123 = por %p121, %p122
      %p125 = scmp.ne.s32.totalorder %s110, %s124
      %p126 = scmp.eq.s32.totalorder %s27, 0
      %p127 = por %p125, %p126
      %s129 = sadd.s32 %s128, 1
      %p132 = scmp.eq.s32.totalorder %s21, 3
      %p133 = scmp.ne.s32.totalorder %s128, %s130
      %p134 = scmp.eq.s32.totalorder %s21, 0
      %p135 = por %p133, %p134
      %p136 = scmp.ne.s32.totalorder %s128, %s130
      %p137 = scmp.eq.s32.totalorder %s26, 3
      %p138 = por %p136, %p137
      %p139 = scmp.ne.s32.totalorder %s130, %s131
      %p140 = scmp.eq.s32.totalorder %s26, 0
      %p141 = por %p139, %p140
      %p142 = scmp.ne.s32.totalorder %s130, %s131
      %p143 = scmp.eq.s32.totalorder %s27, 3
      %p144 = por %p142, %p143
      %p146 = scmp.ne.s32.totalorder %s131, %s145
      %p147 = scmp.eq.s32.totalorder %s27, 0
      %p148 = por %p146, %p147
      %s149 = ssub.s32 %s21, %s28
      %p150 = scmp.eq.s32.totalorder %s149, 0
      %s152 = sadd.s32 %s151, 1
      %s153 = scalar_select %p150, %s151, %s152
      %p156 = pneg %p150
      %p157 = scmp.eq.s32.totalorder %s21, 3
      %p158 = por %p156, %p157
      %p159 = scmp.ne.s32.totalorder %s151, %s154
      %p160 = scmp.eq.s32.totalorder %s21, 0
      %p161 = por %p159, %p160
      %p162 = scmp.ne.s32.totalorder %s151, %s154
      %p163 = scmp.eq.s32.totalorder %s26, 3
      %p164 = por %p162, %p163
      %p165 = scmp.ne.s32.totalorder %s154, %s155
      %p166 = scmp.eq.s32.totalorder %s26, 0
      %p167 = por %p165, %p166
      %p168 = scmp.ne.s32.totalorder %s154, %s155
      %p169 = scmp.eq.s32.totalorder %s27, 3
      %p170 = por %p168, %p169
      %p172 = scmp.ne.s32.totalorder %s155, %s171
      %p173 = scmp.eq.s32.totalorder %s27, 0
      %p174 = por %p172, %p173
      %p175 = scmp.le.s32.totalorder 1, %s21
      %p176 = scmp.lt.s32.totalorder %s21, 5
      %p177 = pnand %p175, %p176
      %p178 = pneg %p177
      // Predicated region
      $region9: #{tpu_custom_call.1} parent=5 // pred_check
        _
      $region10: #{tpu_custom_call.1} parent=5 // pred_check_branch
        %180 = sbr.rel (%p177) target = $region12
      $region11: #{tpu_custom_call.1} parent=5 // pred_region
        %s181 = ssub.s32 %s21, 1
        // Predicated region
        $region13: #{tpu_custom_call.1} parent=11 // pred_check
          %p182 = pneg %p120
        $region14: #{tpu_custom_call.1} parent=11 // pred_check_branch
          %184 = sbr.rel (%p182) target = $region16
        $region15: #{tpu_custom_call.1} parent=11 // pred_region
          %186 = vsyncadd [#allocation9], 0
          %s187 = sshll.u32 %s3, 4
          %s188 = int_to_ptr.hbm [resolvable:$true] %s187
          %s189 = sshll.u32 [#allocation8], 4
          %s190 = int_to_ptr.vmem [resolvable:$true] %s189
          %195 = dma.hbm_to_vmem [thread:$0]  %s188, 768, %s190, [#allocation9], 64, 64, 4
        $region16: #{tpu_custom_call.1} parent=11 // pred_fallthru
          _
        // Predicated region
        $region17: #{tpu_custom_call.1} parent=11 // pred_check
          %p196 = pneg %p141
        $region18: #{tpu_custom_call.1} parent=11 // pred_check_branch
          %198 = sbr.rel (%p196) target = $region20
        $region19: #{tpu_custom_call.1} parent=11 // pred_region
          _
        $region20: #{tpu_custom_call.1} parent=11 // pred_fallthru
          _
      $region12: #{tpu_custom_call.1} parent=5 // pred_fallthru
        _
      %p199 = scmp.lt.s32.totalorder %s21, 4
      // Predicated region
      $region21: #{tpu_custom_call.1} parent=5 // pred_check
        %p200 = pneg %p199
      $region22: #{tpu_custom_call.1} parent=5 // pred_check_branch
        %202 = sbr.rel (%p200) target = $region24
      $region23: #{tpu_custom_call.1} parent=5 // pred_region
        // Predicated region
        $region25: #{tpu_custom_call.1} parent=23 // pred_check
          %p203 = pneg %p41
        $region26: #{tpu_custom_call.1} parent=23 // pred_check_branch
          %205 = sbr.rel (%p203) target = $region28
        $region27: #{tpu_custom_call.1} parent=23 // pred_region
          %s206 = sand.u32 %s31, 1
          %s207 = scalar_lea.sflag [#allocation3], %s206
          %s208 = sand.u32 %s31, 1
          %s209 = smul.addr %s208, 128
          %s210 = scalar_lea.vmem [#allocation2], %s209
          %s211 = smul.u32 8, %s21
          %213 = vsyncadd %s207, 0
          %s214 = smul.addr %s211, 4
          %s215 = smul.addr %s214, 4
          %s216 = scalar_lea.hbm %s0, %s215
          %s217 = sshll.u32 %s216, 4
          %s218 = int_to_ptr.hbm [resolvable:$true] %s217
          %s219 = sshll.u32 %s210, 4
          %s220 = int_to_ptr.vmem [resolvable:$true] %s219
          %225 = dma.hbm_to_vmem [thread:$0]  %s218, 2048, %s220, %s207, 64, 64, 4
        $region28: #{tpu_custom_call.1} parent=23 // pred_fallthru
          _
        // Predicated region
        $region29: #{tpu_custom_call.1} parent=23 // pred_check
          %p226 = pneg %p67
        $region30: #{tpu_custom_call.1} parent=23 // pred_check_branch
          %228 = sbr.rel (%p226) target = $region32
        $region31: #{tpu_custom_call.1} parent=23 // pred_region
          %s229 = sand.u32 %s21, 1
          %s230 = scalar_lea.sflag [#allocation6], %s229
          %s231 = sand.u32 %s57, 1
          %s232 = smul.addr %s231, 128
          %s233 = scalar_lea.vmem [#allocation5], %s232
          %s234 = smul.u32 8, %s21
          %236 = vsyncadd %s230, 0
          %s237 = smul.addr %s234, 4
          %s238 = smul.addr %s237, 4
          %s239 = scalar_lea.hbm %s1, %s238
          %s240 = sshll.u32 %s239, 4
          %s241 = int_to_ptr.hbm [resolvable:$true] %s240
          %s242 = sshll.u32 %s233, 4
          %s243 = int_to_ptr.vmem [resolvable:$true] %s242
          %248 = dma.hbm_to_vmem [thread:$0]  %s241, 2048, %s243, %s230, 64, 64, 4
        $region32: #{tpu_custom_call.1} parent=23 // pred_fallthru
          _
        // Predicated region
        $region33: #{tpu_custom_call.1} parent=23 // pred_check
          %p249 = pneg %p93
        $region34: #{tpu_custom_call.1} parent=23 // pred_check_branch
          %251 = sbr.rel (%p249) target = $region36
        $region35: #{tpu_custom_call.1} parent=23 // pred_region
          %s252 = sand.u32 %s21, 1
          %s253 = scalar_lea.sflag [#allocation6], %s252
          %s254 = sand.u32 %s83, 1
          %s255 = smul.addr %s254, 128
          %s256 = scalar_lea.vmem [#allocation7], %s255
          %s257 = smul.u32 8, %s21
          %259 = vsyncadd %s253, 0
          %s260 = smul.addr %s257, 4
          %s261 = smul.addr %s260, 4
          %s262 = scalar_lea.hbm %s2, %s261
          %s263 = sshll.u32 %s262, 4
          %s264 = int_to_ptr.hbm [resolvable:$true] %s263
          %s265 = sshll.u32 %s256, 4
          %s266 = int_to_ptr.vmem [resolvable:$true] %s265
          %271 = dma.hbm_to_vmem [thread:$0]  %s264, 2048, %s266, %s253, 64, 64, 4
        $region36: #{tpu_custom_call.1} parent=23 // pred_fallthru
          _
      $region24: #{tpu_custom_call.1} parent=5 // pred_fallthru
        _
      %p272 = scmp.le.s32.totalorder 1, %s21
      %p273 = scmp.lt.s32.totalorder %s21, 5
      %p274 = pnand %p272, %p273
      %p275 = pneg %p274
      // Predicated region
      $region37: #{tpu_custom_call.1} parent=5 // pred_check
        _
      $region38: #{tpu_custom_call.1} parent=5 // pred_check_branch
        %277 = sbr.rel (%p274) target = $region40
      $region39: #{tpu_custom_call.1} parent=5 // pred_region
        %s278 = ssub.s32 %s21, 1
        %s279 = sand.u32 %s34, 1
        %s280 = scalar_lea.sflag [#allocation3], %s279
        %s281 = sand.u32 %s34, 1
        %s282 = smul.addr %s281, 128
        %s283 = scalar_lea.vmem [#allocation2], %s282
        // Predicated region
        $region41: #{tpu_custom_call.1} parent=39 // pred_check
          %p284 = pneg %p47
        $region42: #{tpu_custom_call.1} parent=39 // pred_check_branch
          %286 = sbr.rel (%p284) target = $region44
        $region43: #{tpu_custom_call.1} parent=39 // pred_region
          %288 = dma.done %s280, 2048
        $region44: #{tpu_custom_call.1} parent=39 // pred_fallthru
          _
        %s289 = sand.u32 %s26, 1
        %s290 = scalar_lea.sflag [#allocation6], %s289
        %s291 = sand.u32 %s60, 1
        %s292 = smul.addr %s291, 128
        %s293 = scalar_lea.vmem [#allocation5], %s292
        // Predicated region
        $region45: #{tpu_custom_call.1} parent=39 // pred_check
          %p294 = pneg %p73
        $region46: #{tpu_custom_call.1} parent=39 // pred_check_branch
          %296 = sbr.rel (%p294) target = $region48
        $region47: #{tpu_custom_call.1} parent=39 // pred_region
          %298 = dma.done %s290, 2048
        $region48: #{tpu_custom_call.1} parent=39 // pred_fallthru
          _
        %s299 = sand.u32 %s26, 1
        %s300 = scalar_lea.sflag [#allocation6], %s299
        %s301 = sand.u32 %s86, 1
        %s302 = smul.addr %s301, 128
        %s303 = scalar_lea.vmem [#allocation7], %s302
        // Predicated region
        $region49: #{tpu_custom_call.1} parent=39 // pred_check
          %p304 = pneg %p99
        $region50: #{tpu_custom_call.1} parent=39 // pred_check_branch
          %306 = sbr.rel (%p304) target = $region52
        $region51: #{tpu_custom_call.1} parent=39 // pred_region
          %308 = dma.done %s300, 2048
        $region52: #{tpu_custom_call.1} parent=39 // pred_fallthru
          _
        // Predicated region
        $region53: #{tpu_custom_call.1} parent=39 // pred_check
          %p309 = pneg %p120
        $region54: #{tpu_custom_call.1} parent=39 // pred_check_branch
          %311 = sbr.rel (%p309) target = $region56
        $region55: #{tpu_custom_call.1} parent=39 // pred_region
          %313 = dma.done [#allocation9], 768
        $region56: #{tpu_custom_call.1} parent=39 // pred_fallthru
          _
        %s314 = sand.u32 %s34, 1
        %s315 = scalar_lea.sflag [#allocation3], %s314
        %s316 = sand.u32 %s34, 1
        %s317 = smul.addr %s316, 128
        %s318 = scalar_lea.vmem [#allocation2], %s317
        %p319 = pneg %p47
        %p320 = pneg %p44
        %s321 = sand.u32 %s26, 1
        %s322 = scalar_lea.sflag [#allocation6], %s321
        %s323 = sand.u32 %s60, 1
        %s324 = smul.addr %s323, 128
        %s325 = scalar_lea.vmem [#allocation5], %s324
        %p326 = pneg %p73
        %p327 = pneg %p70
        %s328 = sand.u32 %s26, 1
        %s329 = scalar_lea.sflag [#allocation6], %s328
        %s330 = sand.u32 %s86, 1
        %s331 = smul.addr %s330, 128
        %s332 = scalar_lea.vmem [#allocation7], %s331
        %p333 = pneg %p99
        %p334 = pneg %p96
        %p335 = pneg %p120
        %p336 = pneg %p117
        %p337 = pneg %p141
        %p338 = pneg %p138
        %p339 = pneg %p167
        %p340 = pneg %p164
        %s341 = sand.u32 %s154, 1
        %s342 = scalar_lea.sflag [#allocation4], %s341
        %s343 = sand.u32 %s154, 1
        %s344 = smul.addr %s343, 256
        %s345 = scalar_lea.vmem [#allocation10], %s344
        %s346 = smul.u32 8, %s26
        %s347 = smul.u32 8, %s26
        %s348 = smul.u32 8, %s26
        %s349 = smul.u32 8, %s26
        %v351 = vld [vmem:[%s283] sm:$0xf]
        %v352 = vld [vmem:[%s283 + $0x4] sm:$0xf]
        %v353 = vld [vmem:[%s283 + $0x8] sm:$0xf]
        %v354 = vld [vmem:[%s283 + $0xc] sm:$0xf]
        %v355 = vld [vmem:[%s283 + $0x10] sm:$0xf]
        %v356 = vld [vmem:[%s283 + $0x14] sm:$0xf]
        %v357 = vld [vmem:[%s283 + $0x18] sm:$0xf]
        %v358 = vld [vmem:[%s283 + $0x1c] sm:$0xf]
        %v359 = vld [vmem:[%s283 + $0x20] sm:$0xf]
        %v360 = vld [vmem:[%s283 + $0x24] sm:$0xf]
        %v361 = vld [vmem:[%s283 + $0x28] sm:$0xf]
        %v362 = vld [vmem:[%s283 + $0x2c] sm:$0xf]
        %v363 = vld [vmem:[%s283 + $0x30] sm:$0xf]
        %v364 = vld [vmem:[%s283 + $0x34] sm:$0xf]
        %v365 = vld [vmem:[%s283 + $0x38] sm:$0xf]
        %v366 = vld [vmem:[%s283 + $0x3c] sm:$0xf]
        %v367 = vld [vmem:[%s283 + $0x40] sm:$0xf]
        %v368 = vld [vmem:[%s283 + $0x44] sm:$0xf]
        %v369 = vld [vmem:[%s283 + $0x48] sm:$0xf]
        %v370 = vld [vmem:[%s283 + $0x4c] sm:$0xf]
        %v371 = vld [vmem:[%s283 + $0x50] sm:$0xf]
        %v372 = vld [vmem:[%s283 + $0x54] sm:$0xf]
        %v373 = vld [vmem:[%s283 + $0x58] sm:$0xf]
        %v374 = vld [vmem:[%s283 + $0x5c] sm:$0xf]
        %v375 = vld [vmem:[%s283 + $0x60] sm:$0xf]
        %v376 = vld [vmem:[%s283 + $0x64] sm:$0xf]
        %v377 = vld [vmem:[%s283 + $0x68] sm:$0xf]
        %v378 = vld [vmem:[%s283 + $0x6c] sm:$0xf]
        %v379 = vld [vmem:[%s283 + $0x70] sm:$0xf]
        %v380 = vld [vmem:[%s283 + $0x74] sm:$0xf]
        %v381 = vld [vmem:[%s283 + $0x78] sm:$0xf]
        %v382 = vld [vmem:[%s283 + $0x7c] sm:$0xf]
        %v383 = vld [vmem:[#allocation8] sm:$0xf]
        %v384 = vld [vmem:[#allocation8 + $0x4] sm:$0xf]
        %v385 = vld [vmem:[#allocation8 + $0x8] sm:$0xf]
        %v386 = vld [vmem:[#allocation8 + $0xc] sm:$0xf]
        %v387 = vld [vmem:[%s4] sm:$0x1]
        %v389 = vperm.slane %v387, 0
        %v423 = vunpack.c.l.b16 %v351
        %v424 = vunpack.c.l.b16 %v352
        %v425 = vunpack.c.l.b16 %v353
        %v426 = vunpack.c.l.b16 %v354
        %v427 = vunpack.c.l.b16 %v355
        %v428 = vunpack.c.l.b16 %v356
        %v429 = vunpack.c.l.b16 %v357
        %v430 = vunpack.c.l.b16 %v358
        %v431 = vunpack.c.l.b16 %v359
        %v432 = vunpack.c.l.b16 %v360
        %v433 = vunpack.c.l.b16 %v361
        %v434 = vunpack.c.l.b16 %v362
        %v435 = vunpack.c.l.b16 %v363
        %v436 = vunpack.c.l.b16 %v364
        %v437 = vunpack.c.l.b16 %v365
        %v438 = vunpack.c.l.b16 %v366
        %v439 = vunpack.c.l.b16 %v367
        %v440 = vunpack.c.l.b16 %v368
        %v441 = vunpack.c.l.b16 %v369
        %v442 = vunpack.c.l.b16 %v370
        %v443 = vunpack.c.l.b16 %v371
        %v444 = vunpack.c.l.b16 %v372
        %v445 = vunpack.c.l.b16 %v373
        %v446 = vunpack.c.l.b16 %v374
        %v447 = vunpack.c.l.b16 %v375
        %v448 = vunpack.c.l.b16 %v376
        %v449 = vunpack.c.l.b16 %v377
        %v450 = vunpack.c.l.b16 %v378
        %v451 = vunpack.c.l.b16 %v379
        %v452 = vunpack.c.l.b16 %v380
        %v453 = vunpack.c.l.b16 %v381
        %v454 = vunpack.c.l.b16 %v382
        %v455 = vpack.c.b16 %v424, %v423
        %v456 = vpack.c.b16 %v426, %v425
        %v457 = vpack.c.b16 %v428, %v427
        %v458 = vpack.c.b16 %v430, %v429
        %v459 = vpack.c.b16 %v432, %v431
        %v460 = vpack.c.b16 %v434, %v433
        %v461 = vpack.c.b16 %v436, %v435
        %v462 = vpack.c.b16 %v438, %v437
        %v463 = vpack.c.b16 %v440, %v439
        %v464 = vpack.c.b16 %v442, %v441
        %v465 = vpack.c.b16 %v444, %v443
        %v466 = vpack.c.b16 %v446, %v445
        %v467 = vpack.c.b16 %v448, %v447
        %v468 = vpack.c.b16 %v450, %v449
        %v469 = vpack.c.b16 %v452, %v451
        %v470 = vpack.c.b16 %v454, %v453
        %v475 = vunpack.c.l.b16 %v383
        %v476 = vunpack.c.l.b16 %v384
        %v477 = vunpack.c.l.b16 %v385
        %v478 = vunpack.c.l.b16 %v386
        %v479 = vpack.c.b16 %v476, %v475
        %v480 = vpack.c.b16 %v478, %v477
        %vm483 = vcmask 261120
        %v485 = vsel %vm483, %v455, 0
        %v488 = vsel %vm483, %v456, 0
        %v491 = vsel %vm483, %v457, 0
        %v494 = vsel %vm483, %v458, 0
        %v497 = vsel %vm483, %v459, 0
        %v500 = vsel %vm483, %v460, 0
        %v503 = vsel %vm483, %v461, 0
        %v506 = vsel %vm483, %v462, 0
        %v509 = vsel %vm483, %v463, 0
        %v512 = vsel %vm483, %v464, 0
        %v515 = vsel %vm483, %v465, 0
        %v518 = vsel %vm483, %v466, 0
        %v521 = vsel %vm483, %v467, 0
        %v524 = vsel %vm483, %v468, 0
        %v527 = vsel %vm483, %v469, 0
        %v530 = vsel %vm483, %v470, 0
        %532 = vmatpush.bf16.msra.mxu0 0
        %533 = vmatpush.bf16.msra.mxu0 0
        %534 = vmatpush.bf16.msra.mxu0 0
        %535 = vmatpush.bf16.msra.mxu0 0
        %536 = vmatpush.bf16.msra.mxu0 0
        %537 = vmatpush.bf16.msra.mxu0 0
        %538 = vmatpush.bf16.msra.mxu0 %v480
        %539 = vmatpush.bf16.msra.mxu0 %v479
        %540 = vmatmul.bf16.gmra.mxu0 %v485
        %v541 = vpop.f32.mrf.mxu0
        %v542 = vadd.f32 %v389, %v541
        %v543 = vpop.f32.mrf.mxu0
        %v544 = vadd.f32 %v389, %v543
        %545 = vmatmul.bf16.gmra.mxu0 %v488
        %v546 = vpop.f32.mrf.mxu0
        %v547 = vadd.f32 %v389, %v546
        %v548 = vpop.f32.mrf.mxu0
        %v549 = vadd.f32 %v389, %v548
        %550 = vmatmul.bf16.gmra.mxu0 %v491
        %v551 = vpop.f32.mrf.mxu0
        %v552 = vadd.f32 %v389, %v551
        %v553 = vpop.f32.mrf.mxu0
        %v554 = vadd.f32 %v389, %v553
        %555 = vmatmul.bf16.gmra.mxu0 %v494
        %v556 = vpop.f32.mrf.mxu0
        %v557 = vadd.f32 %v389, %v556
        %v558 = vpop.f32.mrf.mxu0
        %v559 = vadd.f32 %v389, %v558
        %560 = vmatmul.bf16.gmra.mxu0 %v497
        %v561 = vpop.f32.mrf.mxu0
        %v562 = vadd.f32 %v389, %v561
        %v563 = vpop.f32.mrf.mxu0
        %v564 = vadd.f32 %v389, %v563
        %565 = vmatmul.bf16.gmra.mxu0 %v500
        %v566 = vpop.f32.mrf.mxu0
        %v567 = vadd.f32 %v389, %v566
        %v568 = vpop.f32.mrf.mxu0
        %v569 = vadd.f32 %v389, %v568
        %570 = vmatmul.bf16.gmra.mxu0 %v503
        %v571 = vpop.f32.mrf.mxu0
        %v572 = vadd.f32 %v389, %v571
        %v573 = vpop.f32.mrf.mxu0
        %v574 = vadd.f32 %v389, %v573
        %575 = vmatmul.bf16.gmra.mxu0 %v506
        %v576 = vpop.f32.mrf.mxu0
        %v577 = vadd.f32 %v389, %v576
        %v578 = vpop.f32.mrf.mxu0
        %v579 = vadd.f32 %v389, %v578
        %580 = vmatmul.bf16.gmra.mxu0 %v509
        %v581 = vpop.f32.mrf.mxu0
        %v582 = vadd.f32 %v389, %v581
        %v583 = vpop.f32.mrf.mxu0
        %v584 = vadd.f32 %v389, %v583
        %585 = vmatmul.bf16.gmra.mxu0 %v512
        %v586 = vpop.f32.mrf.mxu0
        %v587 = vadd.f32 %v389, %v586
        %v588 = vpop.f32.mrf.mxu0
        %v589 = vadd.f32 %v389, %v588
        %590 = vmatmul.bf16.gmra.mxu0 %v515
        %v591 = vpop.f32.mrf.mxu0
        %v592 = vadd.f32 %v389, %v591
        %v593 = vpop.f32.mrf.mxu0
        %v594 = vadd.f32 %v389, %v593
        %595 = vmatmul.bf16.gmra.mxu0 %v518
        %v596 = vpop.f32.mrf.mxu0
        %v597 = vadd.f32 %v389, %v596
        %v598 = vpop.f32.mrf.mxu0
        %v599 = vadd.f32 %v389, %v598
        %600 = vmatmul.bf16.gmra.mxu0 %v521
        %v601 = vpop.f32.mrf.mxu0
        %v602 = vadd.f32 %v389, %v601
        %v603 = vpop.f32.mrf.mxu0
        %v604 = vadd.f32 %v389, %v603
        %605 = vmatmul.bf16.gmra.mxu0 %v524
        %v606 = vpop.f32.mrf.mxu0
        %v607 = vadd.f32 %v389, %v606
        %v608 = vpop.f32.mrf.mxu0
        %v609 = vadd.f32 %v389, %v608
        %610 = vmatmul.bf16.gmra.mxu0 %v527
        %v611 = vpop.f32.mrf.mxu0
        %v612 = vadd.f32 %v389, %v611
        %v613 = vpop.f32.mrf.mxu0
        %v614 = vadd.f32 %v389, %v613
        %615 = vmatmul.bf16.gmra.mxu0 %v530
        %v616 = vpop.f32.mrf.mxu0
        %v617 = vadd.f32 %v389, %v616
        %v618 = vpop.f32.mrf.mxu0
        %v619 = vadd.f32 %v389, %v618
        %620 = vdwg.mxu0
        %v621 = vmul.f32 %v542, 0.17677669
        %v622 = vmul.f32 %v544, 0.17677669
        %v623 = vmul.f32 %v547, 0.17677669
        %v624 = vmul.f32 %v549, 0.17677669
        %v625 = vmul.f32 %v552, 0.17677669
        %v626 = vmul.f32 %v554, 0.17677669
        %v627 = vmul.f32 %v557, 0.17677669
        %v628 = vmul.f32 %v559, 0.17677669
        %v629 = vmul.f32 %v562, 0.17677669
        %v630 = vmul.f32 %v564, 0.17677669
        %v631 = vmul.f32 %v567, 0.17677669
        %v632 = vmul.f32 %v569, 0.17677669
        %v633 = vmul.f32 %v572, 0.17677669
        %v634 = vmul.f32 %v574, 0.17677669
        %v635 = vmul.f32 %v577, 0.17677669
        %v636 = vmul.f32 %v579, 0.17677669
        %v637 = vmul.f32 %v582, 0.17677669
        %v638 = vmul.f32 %v584, 0.17677669
        %v639 = vmul.f32 %v587, 0.17677669
        %v640 = vmul.f32 %v589, 0.17677669
        %v641 = vmul.f32 %v592, 0.17677669
        %v642 = vmul.f32 %v594, 0.17677669
        %v643 = vmul.f32 %v597, 0.17677669
        %v644 = vmul.f32 %v599, 0.17677669
        %v645 = vmul.f32 %v602, 0.17677669
        %v646 = vmul.f32 %v604, 0.17677669
        %v647 = vmul.f32 %v607, 0.17677669
        %v648 = vmul.f32 %v609, 0.17677669
        %v649 = vmul.f32 %v612, 0.17677669
        %v650 = vmul.f32 %v614, 0.17677669
        %v651 = vmul.f32 %v617, 0.17677669
        %v652 = vmul.f32 %v619, 0.17677669
        %v653 = vpack.c.bf16 %v621, %v621
        %v654 = vpack.c.bf16 %v622, %v622
        %v655 = vpack.c.bf16 %v623, %v623
        %v656 = vpack.c.bf16 %v624, %v624
        %v657 = vpack.c.bf16 %v625, %v625
        %v658 = vpack.c.bf16 %v626, %v626
        %v659 = vpack.c.bf16 %v627, %v627
        %v660 = vpack.c.bf16 %v628, %v628
        %v661 = vpack.c.bf16 %v629, %v629
        %v662 = vpack.c.bf16 %v630, %v630
        %v663 = vpack.c.bf16 %v631, %v631
        %v664 = vpack.c.bf16 %v632, %v632
        %v665 = vpack.c.bf16 %v633, %v633
        %v666 = vpack.c.bf16 %v634, %v634
        %v667 = vpack.c.bf16 %v635, %v635
        %v668 = vpack.c.bf16 %v636, %v636
        %v669 = vpack.c.bf16 %v637, %v637
        %v670 = vpack.c.bf16 %v638, %v638
        %v671 = vpack.c.bf16 %v639, %v639
        %v672 = vpack.c.bf16 %v640, %v640
        %v673 = vpack.c.bf16 %v641, %v641
        %v674 = vpack.c.bf16 %v642, %v642
        %v675 = vpack.c.bf16 %v643, %v643
        %v676 = vpack.c.bf16 %v644, %v644
        %v677 = vpack.c.bf16 %v645, %v645
        %v678 = vpack.c.bf16 %v646, %v646
        %v679 = vpack.c.bf16 %v647, %v647
        %v680 = vpack.c.bf16 %v648, %v648
        %v681 = vpack.c.bf16 %v649, %v649
        %v682 = vpack.c.bf16 %v650, %v650
        %v683 = vpack.c.bf16 %v651, %v651
        %v684 = vpack.c.bf16 %v652, %v652
        %v685 = vld [vmem:[%s293] sm:$0xf]
        %v686 = vld [vmem:[%s293 + $0x4] sm:$0xf]
        %v687 = vld [vmem:[%s293 + $0x8] sm:$0xf]
        %v688 = vld [vmem:[%s293 + $0xc] sm:$0xf]
        %v689 = vld [vmem:[%s293 + $0x10] sm:$0xf]
        %v690 = vld [vmem:[%s293 + $0x14] sm:$0xf]
        %v691 = vld [vmem:[%s293 + $0x18] sm:$0xf]
        %v692 = vld [vmem:[%s293 + $0x1c] sm:$0xf]
        %v693 = vld [vmem:[%s293 + $0x20] sm:$0xf]
        %v694 = vld [vmem:[%s293 + $0x24] sm:$0xf]
        %v695 = vld [vmem:[%s293 + $0x28] sm:$0xf]
        %v696 = vld [vmem:[%s293 + $0x2c] sm:$0xf]
        %v697 = vld [vmem:[%s293 + $0x30] sm:$0xf]
        %v698 = vld [vmem:[%s293 + $0x34] sm:$0xf]
        %v699 = vld [vmem:[%s293 + $0x38] sm:$0xf]
        %v700 = vld [vmem:[%s293 + $0x3c] sm:$0xf]
        %v701 = vld [vmem:[%s293 + $0x40] sm:$0xf]
        %v702 = vld [vmem:[%s293 + $0x44] sm:$0xf]
        %v703 = vld [vmem:[%s293 + $0x48] sm:$0xf]
        %v704 = vld [vmem:[%s293 + $0x4c] sm:$0xf]
        %v705 = vld [vmem:[%s293 + $0x50] sm:$0xf]
        %v706 = vld [vmem:[%s293 + $0x54] sm:$0xf]
        %v707 = vld [vmem:[%s293 + $0x58] sm:$0xf]
        %v708 = vld [vmem:[%s293 + $0x5c] sm:$0xf]
        %v709 = vld [vmem:[%s293 + $0x60] sm:$0xf]
        %v710 = vld [vmem:[%s293 + $0x64] sm:$0xf]
        %v711 = vld [vmem:[%s293 + $0x68] sm:$0xf]
        %v712 = vld [vmem:[%s293 + $0x6c] sm:$0xf]
        %v713 = vld [vmem:[%s293 + $0x70] sm:$0xf]
        %v714 = vld [vmem:[%s293 + $0x74] sm:$0xf]
        %v715 = vld [vmem:[%s293 + $0x78] sm:$0xf]
        %v716 = vld [vmem:[%s293 + $0x7c] sm:$0xf]
        %s717 = scalar_lea.vmem [#allocation8], 16
        %v718 = vld [vmem:[%s717] sm:$0xf]
        %v719 = vld [vmem:[%s717 + $0x4] sm:$0xf]
        %v720 = vld [vmem:[%s717 + $0x8] sm:$0xf]
        %v721 = vld [vmem:[%s717 + $0xc] sm:$0xf]
        %s722 = scalar_lea.vmem %s4, 1
        %v723 = vld [vmem:[%s722] sm:$0x1]
        %v725 = vperm.slane %v723, 0
        %v759 = vunpack.c.l.b16 %v685
        %v760 = vunpack.c.l.b16 %v686
        %v761 = vunpack.c.l.b16 %v687
        %v762 = vunpack.c.l.b16 %v688
        %v763 = vunpack.c.l.b16 %v689
        %v764 = vunpack.c.l.b16 %v690
        %v765 = vunpack.c.l.b16 %v691
        %v766 = vunpack.c.l.b16 %v692
        %v767 = vunpack.c.l.b16 %v693
        %v768 = vunpack.c.l.b16 %v694
        %v769 = vunpack.c.l.b16 %v695
        %v770 = vunpack.c.l.b16 %v696
        %v771 = vunpack.c.l.b16 %v697
        %v772 = vunpack.c.l.b16 %v698
        %v773 = vunpack.c.l.b16 %v699
        %v774 = vunpack.c.l.b16 %v700
        %v775 = vunpack.c.l.b16 %v701
        %v776 = vunpack.c.l.b16 %v702
        %v777 = vunpack.c.l.b16 %v703
        %v778 = vunpack.c.l.b16 %v704
        %v779 = vunpack.c.l.b16 %v705
        %v780 = vunpack.c.l.b16 %v706
        %v781 = vunpack.c.l.b16 %v707
        %v782 = vunpack.c.l.b16 %v708
        %v783 = vunpack.c.l.b16 %v709
        %v784 = vunpack.c.l.b16 %v710
        %v785 = vunpack.c.l.b16 %v711
        %v786 = vunpack.c.l.b16 %v712
        %v787 = vunpack.c.l.b16 %v713
        %v788 = vunpack.c.l.b16 %v714
        %v789 = vunpack.c.l.b16 %v715
        %v790 = vunpack.c.l.b16 %v716
        %v791 = vpack.c.b16 %v760, %v759
        %v792 = vpack.c.b16 %v762, %v761
        %v793 = vpack.c.b16 %v764, %v763
        %v794 = vpack.c.b16 %v766, %v765
        %v795 = vpack.c.b16 %v768, %v767
        %v796 = vpack.c.b16 %v770, %v769
        %v797 = vpack.c.b16 %v772, %v771
        %v798 = vpack.c.b16 %v774, %v773
        %v799 = vpack.c.b16 %v776, %v775
        %v800 = vpack.c.b16 %v778, %v777
        %v801 = vpack.c.b16 %v780, %v779
        %v802 = vpack.c.b16 %v782, %v781
        %v803 = vpack.c.b16 %v784, %v783
        %v804 = vpack.c.b16 %v786, %v785
        %v805 = vpack.c.b16 %v788, %v787
        %v806 = vpack.c.b16 %v790, %v789
        %v811 = vunpack.c.l.b16 %v718
        %v812 = vunpack.c.l.b16 %v719
        %v813 = vunpack.c.l.b16 %v720
        %v814 = vunpack.c.l.b16 %v721
        %v815 = vpack.c.b16 %v812, %v811
        %v816 = vpack.c.b16 %v814, %v813
        %v820 = vsel %vm483, %v791, 0
        %v823 = vsel %vm483, %v792, 0
        %v826 = vsel %vm483, %v793, 0
        %v829 = vsel %vm483, %v794, 0
        %v832 = vsel %vm483, %v795, 0
        %v835 = vsel %vm483, %v796, 0
        %v838 = vsel %vm483, %v797, 0
        %v841 = vsel %vm483, %v798, 0
        %v844 = vsel %vm483, %v799, 0
        %v847 = vsel %vm483, %v800, 0
        %v850 = vsel %vm483, %v801, 0
        %v853 = vsel %vm483, %v802, 0
        %v856 = vsel %vm483, %v803, 0
        %v859 = vsel %vm483, %v804, 0
        %v862 = vsel %vm483, %v805, 0
        %v865 = vsel %vm483, %v806, 0
        %867 = vmatpush.bf16.msra.mxu0 0
        %868 = vmatpush.bf16.msra.mxu0 0
        %869 = vmatpush.bf16.msra.mxu0 0
        %870 = vmatpush.bf16.msra.mxu0 0
        %871 = vmatpush.bf16.msra.mxu0 0
        %872 = vmatpush.bf16.msra.mxu0 0
        %873 = vmatpush.bf16.msra.mxu0 %v816
        %874 = vmatpush.bf16.msra.mxu0 %v815
        %875 = vmatmul.bf16.gmra.mxu0 %v820
        %v876 = vpop.f32.mrf.mxu0
        %v877 = vadd.f32 %v725, %v876
        %v878 = vpop.f32.mrf.mxu0
        %v879 = vadd.f32 %v725, %v878
        %880 = vmatmul.bf16.gmra.mxu0 %v823
        %v881 = vpop.f32.mrf.mxu0
        %v882 = vadd.f32 %v725, %v881
        %v883 = vpop.f32.mrf.mxu0
        %v884 = vadd.f32 %v725, %v883
        %885 = vmatmul.bf16.gmra.mxu0 %v826
        %v886 = vpop.f32.mrf.mxu0
        %v887 = vadd.f32 %v725, %v886
        %v888 = vpop.f32.mrf.mxu0
        %v889 = vadd.f32 %v725, %v888
        %890 = vmatmul.bf16.gmra.mxu0 %v829
        %v891 = vpop.f32.mrf.mxu0
        %v892 = vadd.f32 %v725, %v891
        %v893 = vpop.f32.mrf.mxu0
        %v894 = vadd.f32 %v725, %v893
        %895 = vmatmul.bf16.gmra.mxu0 %v832
        %v896 = vpop.f32.mrf.mxu0
        %v897 = vadd.f32 %v725, %v896
        %v898 = vpop.f32.mrf.mxu0
        %v899 = vadd.f32 %v725, %v898
        %900 = vmatmul.bf16.gmra.mxu0 %v835
        %v901 = vpop.f32.mrf.mxu0
        %v902 = vadd.f32 %v725, %v901
        %v903 = vpop.f32.mrf.mxu0
        %v904 = vadd.f32 %v725, %v903
        %905 = vmatmul.bf16.gmra.mxu0 %v838
        %v906 = vpop.f32.mrf.mxu0
        %v907 = vadd.f32 %v725, %v906
        %v908 = vpop.f32.mrf.mxu0
        %v909 = vadd.f32 %v725, %v908
        %910 = vmatmul.bf16.gmra.mxu0 %v841
        %v911 = vpop.f32.mrf.mxu0
        %v912 = vadd.f32 %v725, %v911
        %v913 = vpop.f32.mrf.mxu0
        %v914 = vadd.f32 %v725, %v913
        %915 = vmatmul.bf16.gmra.mxu0 %v844
        %v916 = vpop.f32.mrf.mxu0
        %v917 = vadd.f32 %v725, %v916
        %v918 = vpop.f32.mrf.mxu0
        %v919 = vadd.f32 %v725, %v918
        %920 = vmatmul.bf16.gmra.mxu0 %v847
        %v921 = vpop.f32.mrf.mxu0
        %v922 = vadd.f32 %v725, %v921
        %v923 = vpop.f32.mrf.mxu0
        %v924 = vadd.f32 %v725, %v923
        %925 = vmatmul.bf16.gmra.mxu0 %v850
        %v926 = vpop.f32.mrf.mxu0
        %v927 = vadd.f32 %v725, %v926
        %v928 = vpop.f32.mrf.mxu0
        %v929 = vadd.f32 %v725, %v928
        %930 = vmatmul.bf16.gmra.mxu0 %v853
        %v931 = vpop.f32.mrf.mxu0
        %v932 = vadd.f32 %v725, %v931
        %v933 = vpop.f32.mrf.mxu0
        %v934 = vadd.f32 %v725, %v933
        %935 = vmatmul.bf16.gmra.mxu0 %v856
        %v936 = vpop.f32.mrf.mxu0
        %v937 = vadd.f32 %v725, %v936
        %v938 = vpop.f32.mrf.mxu0
        %v939 = vadd.f32 %v725, %v938
        %940 = vmatmul.bf16.gmra.mxu0 %v859
        %v941 = vpop.f32.mrf.mxu0
        %v942 = vadd.f32 %v725, %v941
        %v943 = vpop.f32.mrf.mxu0
        %v944 = vadd.f32 %v725, %v943
        %945 = vmatmul.bf16.gmra.mxu0 %v862
        %v946 = vpop.f32.mrf.mxu0
        %v947 = vadd.f32 %v725, %v946
        %v948 = vpop.f32.mrf.mxu0
        %v949 = vadd.f32 %v725, %v948
        %950 = vmatmul.bf16.gmra.mxu0 %v865
        %v951 = vpop.f32.mrf.mxu0
        %v952 = vadd.f32 %v725, %v951
        %v953 = vpop.f32.mrf.mxu0
        %v954 = vadd.f32 %v725, %v953
        %955 = vdwg.mxu0
        %v956 = vpack.c.bf16 %v877, %v877
        %v957 = vpack.c.bf16 %v879, %v879
        %v958 = vpack.c.bf16 %v882, %v882
        %v959 = vpack.c.bf16 %v884, %v884
        %v960 = vpack.c.bf16 %v887, %v887
        %v961 = vpack.c.bf16 %v889, %v889
        %v962 = vpack.c.bf16 %v892, %v892
        %v963 = vpack.c.bf16 %v894, %v894
        %v964 = vpack.c.bf16 %v897, %v897
        %v965 = vpack.c.bf16 %v899, %v899
        %v966 = vpack.c.bf16 %v902, %v902
        %v967 = vpack.c.bf16 %v904, %v904
        %v968 = vpack.c.bf16 %v907, %v907
        %v969 = vpack.c.bf16 %v909, %v909
        %v970 = vpack.c.bf16 %v912, %v912
        %v971 = vpack.c.bf16 %v914, %v914
        %v972 = vpack.c.bf16 %v917, %v917
        %v973 = vpack.c.bf16 %v919, %v919
        %v974 = vpack.c.bf16 %v922, %v922
        %v975 = vpack.c.bf16 %v924, %v924
        %v976 = vpack.c.bf16 %v927, %v927
        %v977 = vpack.c.bf16 %v929, %v929
        %v978 = vpack.c.bf16 %v932, %v932
        %v979 = vpack.c.bf16 %v934, %v934
        %v980 = vpack.c.bf16 %v937, %v937
        %v981 = vpack.c.bf16 %v939, %v939
        %v982 = vpack.c.bf16 %v942, %v942
        %v983 = vpack.c.bf16 %v944, %v944
        %v984 = vpack.c.bf16 %v947, %v947
        %v985 = vpack.c.bf16 %v949, %v949
        %v986 = vpack.c.bf16 %v952, %v952
        %v987 = vpack.c.bf16 %v954, %v954
        %v988 = vld [vmem:[%s303] sm:$0xf]
        %v989 = vld [vmem:[%s303 + $0x4] sm:$0xf]
        %v990 = vld [vmem:[%s303 + $0x8] sm:$0xf]
        %v991 = vld [vmem:[%s303 + $0xc] sm:$0xf]
        %v992 = vld [vmem:[%s303 + $0x10] sm:$0xf]
        %v993 = vld [vmem:[%s303 + $0x14] sm:$0xf]
        %v994 = vld [vmem:[%s303 + $0x18] sm:$0xf]
        %v995 = vld [vmem:[%s303 + $0x1c] sm:$0xf]
        %v996 = vld [vmem:[%s303 + $0x20] sm:$0xf]
        %v997 = vld [vmem:[%s303 + $0x24] sm:$0xf]
        %v998 = vld [vmem:[%s303 + $0x28] sm:$0xf]
        %v999 = vld [vmem:[%s303 + $0x2c] sm:$0xf]
        %v1000 = vld [vmem:[%s303 + $0x30] sm:$0xf]
        %v1001 = vld [vmem:[%s303 + $0x34] sm:$0xf]
        %v1002 = vld [vmem:[%s303 + $0x38] sm:$0xf]
        %v1003 = vld [vmem:[%s303 + $0x3c] sm:$0xf]
        %v1004 = vld [vmem:[%s303 + $0x40] sm:$0xf]
        %v1005 = vld [vmem:[%s303 + $0x44] sm:$0xf]
        %v1006 = vld [vmem:[%s303 + $0x48] sm:$0xf]
        %v1007 = vld [vmem:[%s303 + $0x4c] sm:$0xf]
        %v1008 = vld [vmem:[%s303 + $0x50] sm:$0xf]
        %v1009 = vld [vmem:[%s303 + $0x54] sm:$0xf]
        %v1010 = vld [vmem:[%s303 + $0x58] sm:$0xf]
        %v1011 = vld [vmem:[%s303 + $0x5c] sm:$0xf]
        %v1012 = vld [vmem:[%s303 + $0x60] sm:$0xf]
        %v1013 = vld [vmem:[%s303 + $0x64] sm:$0xf]
        %v1014 = vld [vmem:[%s303 + $0x68] sm:$0xf]
        %v1015 = vld [vmem:[%s303 + $0x6c] sm:$0xf]
        %v1016 = vld [vmem:[%s303 + $0x70] sm:$0xf]
        %v1017 = vld [vmem:[%s303 + $0x74] sm:$0xf]
        %v1018 = vld [vmem:[%s303 + $0x78] sm:$0xf]
        %v1019 = vld [vmem:[%s303 + $0x7c] sm:$0xf]
        %s1020 = scalar_lea.vmem [#allocation8], 32
        %v1021 = vld [vmem:[%s1020] sm:$0xf]
        %v1022 = vld [vmem:[%s1020 + $0x4] sm:$0xf]
        %v1023 = vld [vmem:[%s1020 + $0x8] sm:$0xf]
        %v1024 = vld [vmem:[%s1020 + $0xc] sm:$0xf]
        %s1025 = scalar_lea.vmem %s4, 2
        %v1026 = vld [vmem:[%s1025] sm:$0x1]
        %v1028 = vperm.slane %v1026, 0
        %v1062 = vunpack.c.l.b16 %v988
        %v1063 = vunpack.c.l.b16 %v989
        %v1064 = vunpack.c.l.b16 %v990
        %v1065 = vunpack.c.l.b16 %v991
        %v1066 = vunpack.c.l.b16 %v992
        %v1067 = vunpack.c.l.b16 %v993
        %v1068 = vunpack.c.l.b16 %v994
        %v1069 = vunpack.c.l.b16 %v995
        %v1070 = vunpack.c.l.b16 %v996
        %v1071 = vunpack.c.l.b16 %v997
        %v1072 = vunpack.c.l.b16 %v998
        %v1073 = vunpack.c.l.b16 %v999
        %v1074 = vunpack.c.l.b16 %v1000
        %v1075 = vunpack.c.l.b16 %v1001
        %v1076 = vunpack.c.l.b16 %v1002
        %v1077 = vunpack.c.l.b16 %v1003
        %v1078 = vunpack.c.l.b16 %v1004
        %v1079 = vunpack.c.l.b16 %v1005
        %v1080 = vunpack.c.l.b16 %v1006
        %v1081 = vunpack.c.l.b16 %v1007
        %v1082 = vunpack.c.l.b16 %v1008
        %v1083 = vunpack.c.l.b16 %v1009
        %v1084 = vunpack.c.l.b16 %v1010
        %v1085 = vunpack.c.l.b16 %v1011
        %v1086 = vunpack.c.l.b16 %v1012
        %v1087 = vunpack.c.l.b16 %v1013
        %v1088 = vunpack.c.l.b16 %v1014
        %v1089 = vunpack.c.l.b16 %v1015
        %v1090 = vunpack.c.l.b16 %v1016
        %v1091 = vunpack.c.l.b16 %v1017
        %v1092 = vunpack.c.l.b16 %v1018
        %v1093 = vunpack.c.l.b16 %v1019
        %v1094 = vpack.c.b16 %v1063, %v1062
        %v1095 = vpack.c.b16 %v1065, %v1064
        %v1096 = vpack.c.b16 %v1067, %v1066
        %v1097 = vpack.c.b16 %v1069, %v1068
        %v1098 = vpack.c.b16 %v1071, %v1070
        %v1099 = vpack.c.b16 %v1073, %v1072
        %v1100 = vpack.c.b16 %v1075, %v1074
        %v1101 = vpack.c.b16 %v1077, %v1076
        %v1102 = vpack.c.b16 %v1079, %v1078
        %v1103 = vpack.c.b16 %v1081, %v1080
        %v1104 = vpack.c.b16 %v1083, %v1082
        %v1105 = vpack.c.b16 %v1085, %v1084
        %v1106 = vpack.c.b16 %v1087, %v1086
        %v1107 = vpack.c.b16 %v1089, %v1088
        %v1108 = vpack.c.b16 %v1091, %v1090
        %v1109 = vpack.c.b16 %v1093, %v1092
        %v1114 = vunpack.c.l.b16 %v1021
        %v1115 = vunpack.c.l.b16 %v1022
        %v1116 = vunpack.c.l.b16 %v1023
        %v1117 = vunpack.c.l.b16 %v1024
        %v1118 = vpack.c.b16 %v1115, %v1114
        %v1119 = vpack.c.b16 %v1117, %v1116
        %v1123 = vsel %vm483, %v1094, 0
        %v1126 = vsel %vm483, %v1095, 0
        %v1129 = vsel %vm483, %v1096, 0
        %v1132 = vsel %vm483, %v1097, 0
        %v1135 = vsel %vm483, %v1098, 0
        %v1138 = vsel %vm483, %v1099, 0
        %v1141 = vsel %vm483, %v1100, 0
        %v1144 = vsel %vm483, %v1101, 0
        %v1147 = vsel %vm483, %v1102, 0
        %v1150 = vsel %vm483, %v1103, 0
        %v1153 = vsel %vm483, %v1104, 0
        %v1156 = vsel %vm483, %v1105, 0
        %v1159 = vsel %vm483, %v1106, 0
        %v1162 = vsel %vm483, %v1107, 0
        %v1165 = vsel %vm483, %v1108, 0
        %v1168 = vsel %vm483, %v1109, 0
        %1170 = vmatpush.bf16.msra.mxu0 0
        %1171 = vmatpush.bf16.msra.mxu0 0
        %1172 = vmatpush.bf16.msra.mxu0 0
        %1173 = vmatpush.bf16.msra.mxu0 0
        %1174 = vmatpush.bf16.msra.mxu0 0
        %1175 = vmatpush.bf16.msra.mxu0 0
        %1176 = vmatpush.bf16.msra.mxu0 %v1119
        %1177 = vmatpush.bf16.msra.mxu0 %v1118
        %1178 = vmatmul.bf16.gmra.mxu0 %v1123
        %v1179 = vpop.f32.mrf.mxu0
        %v1180 = vadd.f32 %v1028, %v1179
        %v1181 = vpop.f32.mrf.mxu0
        %v1182 = vadd.f32 %v1028, %v1181
        %1183 = vmatmul.bf16.gmra.mxu0 %v1126
        %v1184 = vpop.f32.mrf.mxu0
        %v1185 = vadd.f32 %v1028, %v1184
        %v1186 = vpop.f32.mrf.mxu0
        %v1187 = vadd.f32 %v1028, %v1186
        %1188 = vmatmul.bf16.gmra.mxu0 %v1129
        %v1189 = vpop.f32.mrf.mxu0
        %v1190 = vadd.f32 %v1028, %v1189
        %v1191 = vpop.f32.mrf.mxu0
        %v1192 = vadd.f32 %v1028, %v1191
        %1193 = vmatmul.bf16.gmra.mxu0 %v1132
        %v1194 = vpop.f32.mrf.mxu0
        %v1195 = vadd.f32 %v1028, %v1194
        %v1196 = vpop.f32.mrf.mxu0
        %v1197 = vadd.f32 %v1028, %v1196
        %1198 = vmatmul.bf16.gmra.mxu0 %v1135
        %v1199 = vpop.f32.mrf.mxu0
        %v1200 = vadd.f32 %v1028, %v1199
        %v1201 = vpop.f32.mrf.mxu0
        %v1202 = vadd.f32 %v1028, %v1201
        %1203 = vmatmul.bf16.gmra.mxu0 %v1138
        %v1204 = vpop.f32.mrf.mxu0
        %v1205 = vadd.f32 %v1028, %v1204
        %v1206 = vpop.f32.mrf.mxu0
        %v1207 = vadd.f32 %v1028, %v1206
        %1208 = vmatmul.bf16.gmra.mxu0 %v1141
        %v1209 = vpop.f32.mrf.mxu0
        %v1210 = vadd.f32 %v1028, %v1209
        %v1211 = vpop.f32.mrf.mxu0
        %v1212 = vadd.f32 %v1028, %v1211
        %1213 = vmatmul.bf16.gmra.mxu0 %v1144
        %v1214 = vpop.f32.mrf.mxu0
        %v1215 = vadd.f32 %v1028, %v1214
        %v1216 = vpop.f32.mrf.mxu0
        %v1217 = vadd.f32 %v1028, %v1216
        %1218 = vmatmul.bf16.gmra.mxu0 %v1147
        %v1219 = vpop.f32.mrf.mxu0
        %v1220 = vadd.f32 %v1028, %v1219
        %v1221 = vpop.f32.mrf.mxu0
        %v1222 = vadd.f32 %v1028, %v1221
        %1223 = vmatmul.bf16.gmra.mxu0 %v1150
        %v1224 = vpop.f32.mrf.mxu0
        %v1225 = vadd.f32 %v1028, %v1224
        %v1226 = vpop.f32.mrf.mxu0
        %v1227 = vadd.f32 %v1028, %v1226
        %1228 = vmatmul.bf16.gmra.mxu0 %v1153
        %v1229 = vpop.f32.mrf.mxu0
        %v1230 = vadd.f32 %v1028, %v1229
        %v1231 = vpop.f32.mrf.mxu0
        %v1232 = vadd.f32 %v1028, %v1231
        %1233 = vmatmul.bf16.gmra.mxu0 %v1156
        %v1234 = vpop.f32.mrf.mxu0
        %v1235 = vadd.f32 %v1028, %v1234
        %v1236 = vpop.f32.mrf.mxu0
        %v1237 = vadd.f32 %v1028, %v1236
        %1238 = vmatmul.bf16.gmra.mxu0 %v1159
        %v1239 = vpop.f32.mrf.mxu0
        %v1240 = vadd.f32 %v1028, %v1239
        %v1241 = vpop.f32.mrf.mxu0
        %v1242 = vadd.f32 %v1028, %v1241
        %1243 = vmatmul.bf16.gmra.mxu0 %v1162
        %v1244 = vpop.f32.mrf.mxu0
        %v1245 = vadd.f32 %v1028, %v1244
        %v1246 = vpop.f32.mrf.mxu0
        %v1247 = vadd.f32 %v1028, %v1246
        %1248 = vmatmul.bf16.gmra.mxu0 %v1165
        %v1249 = vpop.f32.mrf.mxu0
        %v1250 = vadd.f32 %v1028, %v1249
        %v1251 = vpop.f32.mrf.mxu0
        %v1252 = vadd.f32 %v1028, %v1251
        %1253 = vmatmul.bf16.gmra.mxu0 %v1168
        %v1254 = vpop.f32.mrf.mxu0
        %v1255 = vadd.f32 %v1028, %v1254
        %v1256 = vpop.f32.mrf.mxu0
        %v1257 = vadd.f32 %v1028, %v1256
        %1258 = vdwg.mxu0
        %v1259 = vpack.c.bf16 %v1180, %v1180
        %v1260 = vpack.c.bf16 %v1182, %v1182
        %v1261 = vpack.c.bf16 %v1185, %v1185
        %v1262 = vpack.c.bf16 %v1187, %v1187
        %v1263 = vpack.c.bf16 %v1190, %v1190
        %v1264 = vpack.c.bf16 %v1192, %v1192
        %v1265 = vpack.c.bf16 %v1195, %v1195
        %v1266 = vpack.c.bf16 %v1197, %v1197
        %v1267 = vpack.c.bf16 %v1200, %v1200
        %v1268 = vpack.c.bf16 %v1202, %v1202
        %v1269 = vpack.c.bf16 %v1205, %v1205
        %v1270 = vpack.c.bf16 %v1207, %v1207
        %v1271 = vpack.c.bf16 %v1210, %v1210
        %v1272 = vpack.c.bf16 %v1212, %v1212
        %v1273 = vpack.c.bf16 %v1215, %v1215
        %v1274 = vpack.c.bf16 %v1217, %v1217
        %v1275 = vpack.c.bf16 %v1220, %v1220
        %v1276 = vpack.c.bf16 %v1222, %v1222
        %v1277 = vpack.c.bf16 %v1225, %v1225
        %v1278 = vpack.c.bf16 %v1227, %v1227
        %v1279 = vpack.c.bf16 %v1230, %v1230
        %v1280 = vpack.c.bf16 %v1232, %v1232
        %v1281 = vpack.c.bf16 %v1235, %v1235
        %v1282 = vpack.c.bf16 %v1237, %v1237
        %v1283 = vpack.c.bf16 %v1240, %v1240
        %v1284 = vpack.c.bf16 %v1242, %v1242
        %v1285 = vpack.c.bf16 %v1245, %v1245
        %v1286 = vpack.c.bf16 %v1247, %v1247
        %v1287 = vpack.c.bf16 %v1250, %v1250
        %v1288 = vpack.c.bf16 %v1252, %v1252
        %v1289 = vpack.c.bf16 %v1255, %v1255
        %v1290 = vpack.c.bf16 %v1257, %v1257
        %v1295 = vunpack.c.l.b16 %v653
        %v1296 = vunpack.c.l.b16 %v654
        %v1297 = vunpack.c.l.b16 %v655
        %v1298 = vunpack.c.l.b16 %v656
        %v1299 = vpack.c.b16 %v1296, %v1295
        %v1300 = vpack.c.b16 %v1298, %v1297
        %v1305 = vunpack.c.l.b16 %v956
        %v1306 = vunpack.c.l.b16 %v957
        %v1307 = vunpack.c.l.b16 %v958
        %v1308 = vunpack.c.l.b16 %v959
        %v1309 = vpack.c.b16 %v1306, %v1305
        %v1310 = vpack.c.b16 %v1308, %v1307
        %vm1311 = vcmask 64512
        %v1313 = vsel %vm1311, %v1299, 0
        %v1316 = vsel %vm1311, %v1300, 0
        %v1319 = vsel %vm1311, %v1309, 0
        %v1322 = vsel %vm1311, %v1310, 0
        %1324 = vmatpush.bf16.xpose.msra.mxu0 0
        %1325 = vmatpush.bf16.xpose.msra.mxu0 0
        %1326 = vmatpush.bf16.xpose.msra.mxu0 0
        %1327 = vmatpush.bf16.xpose.msra.mxu0 0
        %1328 = vmatpush.bf16.xpose.msra.mxu0 0
        %1329 = vmatpush.bf16.xpose.msra.mxu0 0
        %1330 = vmatpush.bf16.xpose.msra.mxu0 %v1322
        %1331 = vmatpush.bf16.xpose.msra.mxu0 %v1319
        %1332 = vmatmul.bf16.gmra.mxu0 %v1313
        %v1333 = vpop.f32.mrf.mxu0
        %v1334 = vadd.f32 0.0, %v1333
        %v1335 = vpop.f32.mrf.mxu0
        %v1336 = vadd.f32 0.0, %v1335
        %1337 = vmatmul.bf16.gmra.mxu0 %v1316
        %v1338 = vpop.f32.mrf.mxu0
        %v1339 = vadd.f32 0.0, %v1338
        %v1340 = vpop.f32.mrf.mxu0
        %v1341 = vadd.f32 0.0, %v1340
        %1342 = vdwg.mxu0
        %v1347 = vunpack.c.l.b16 %v657
        %v1348 = vunpack.c.l.b16 %v658
        %v1349 = vunpack.c.l.b16 %v659
        %v1350 = vunpack.c.l.b16 %v660
        %v1351 = vpack.c.b16 %v1348, %v1347
        %v1352 = vpack.c.b16 %v1350, %v1349
        %v1357 = vunpack.c.l.b16 %v960
        %v1358 = vunpack.c.l.b16 %v961
        %v1359 = vunpack.c.l.b16 %v962
        %v1360 = vunpack.c.l.b16 %v963
        %v1361 = vpack.c.b16 %v1358, %v1357
        %v1362 = vpack.c.b16 %v1360, %v1359
        %v1364 = vsel %vm1311, %v1351, 0
        %v1367 = vsel %vm1311, %v1352, 0
        %v1370 = vsel %vm1311, %v1361, 0
        %v1373 = vsel %vm1311, %v1362, 0
        %1375 = vmatpush.bf16.xpose.msra.mxu0 0
        %1376 = vmatpush.bf16.xpose.msra.mxu0 0
        %1377 = vmatpush.bf16.xpose.msra.mxu0 0
        %1378 = vmatpush.bf16.xpose.msra.mxu0 0
        %1379 = vmatpush.bf16.xpose.msra.mxu0 0
        %1380 = vmatpush.bf16.xpose.msra.mxu0 0
        %1381 = vmatpush.bf16.xpose.msra.mxu0 %v1373
        %1382 = vmatpush.bf16.xpose.msra.mxu0 %v1370
        %1383 = vmatmul.bf16.gmra.mxu0 %v1364
        %v1384 = vpop.f32.mrf.mxu0
        %v1385 = vadd.f32 0.0, %v1384
        %v1386 = vpop.f32.mrf.mxu0
        %v1387 = vadd.f32 0.0, %v1386
        %1388 = vmatmul.bf16.gmra.mxu0 %v1367
        %v1389 = vpop.f32.mrf.mxu0
        %v1390 = vadd.f32 0.0, %v1389
        %v1391 = vpop.f32.mrf.mxu0
        %v1392 = vadd.f32 0.0, %v1391
        %1393 = vdwg.mxu0
        %v1398 = vunpack.c.l.b16 %v661
        %v1399 = vunpack.c.l.b16 %v662
        %v1400 = vunpack.c.l.b16 %v663
        %v1401 = vunpack.c.l.b16 %v664
        %v1402 = vpack.c.b16 %v1399, %v1398
        %v1403 = vpack.c.b16 %v1401, %v1400
        %v1408 = vunpack.c.l.b16 %v964
        %v1409 = vunpack.c.l.b16 %v965
        %v1410 = vunpack.c.l.b16 %v966
        %v1411 = vunpack.c.l.b16 %v967
        %v1412 = vpack.c.b16 %v1409, %v1408
        %v1413 = vpack.c.b16 %v1411, %v1410
        %v1415 = vsel %vm1311, %v1402, 0
        %v1418 = vsel %vm1311, %v1403, 0
        %v1421 = vsel %vm1311, %v1412, 0
        %v1424 = vsel %vm1311, %v1413, 0
        %1426 = vmatpush.bf16.xpose.msra.mxu0 0
        %1427 = vmatpush.bf16.xpose.msra.mxu0 0
        %1428 = vmatpush.bf16.xpose.msra.mxu0 0
        %1429 = vmatpush.bf16.xpose.msra.mxu0 0
        %1430 = vmatpush.bf16.xpose.msra.mxu0 0
        %1431 = vmatpush.bf16.xpose.msra.mxu0 0
        %1432 = vmatpush.bf16.xpose.msra.mxu0 %v1424
        %1433 = vmatpush.bf16.xpose.msra.mxu0 %v1421
        %1434 = vmatmul.bf16.gmra.mxu0 %v1415
        %v1435 = vpop.f32.mrf.mxu0
        %v1436 = vadd.f32 0.0, %v1435
        %v1437 = vpop.f32.mrf.mxu0
        %v1438 = vadd.f32 0.0, %v1437
        %1439 = vmatmul.bf16.gmra.mxu0 %v1418
        %v1440 = vpop.f32.mrf.mxu0
        %v1441 = vadd.f32 0.0, %v1440
        %v1442 = vpop.f32.mrf.mxu0
        %v1443 = vadd.f32 0.0, %v1442
        %1444 = vdwg.mxu0
        %v1449 = vunpack.c.l.b16 %v665
        %v1450 = vunpack.c.l.b16 %v666
        %v1451 = vunpack.c.l.b16 %v667
        %v1452 = vunpack.c.l.b16 %v668
        %v1453 = vpack.c.b16 %v1450, %v1449
        %v1454 = vpack.c.b16 %v1452, %v1451
        %v1459 = vunpack.c.l.b16 %v968
        %v1460 = vunpack.c.l.b16 %v969
        %v1461 = vunpack.c.l.b16 %v970
        %v1462 = vunpack.c.l.b16 %v971
        %v1463 = vpack.c.b16 %v1460, %v1459
        %v1464 = vpack.c.b16 %v1462, %v1461
        %v1466 = vsel %vm1311, %v1453, 0
        %v1469 = vsel %vm1311, %v1454, 0
        %v1472 = vsel %vm1311, %v1463, 0
        %v1475 = vsel %vm1311, %v1464, 0
        %1477 = vmatpush.bf16.xpose.msra.mxu0 0
        %1478 = vmatpush.bf16.xpose.msra.mxu0 0
        %1479 = vmatpush.bf16.xpose.msra.mxu0 0
        %1480 = vmatpush.bf16.xpose.msra.mxu0 0
        %1481 = vmatpush.bf16.xpose.msra.mxu0 0
        %1482 = vmatpush.bf16.xpose.msra.mxu0 0
        %1483 = vmatpush.bf16.xpose.msra.mxu0 %v1475
        %1484 = vmatpush.bf16.xpose.msra.mxu0 %v1472
        %1485 = vmatmul.bf16.gmra.mxu0 %v1466
        %v1486 = vpop.f32.mrf.mxu0
        %v1487 = vadd.f32 0.0, %v1486
        %v1488 = vpop.f32.mrf.mxu0
        %v1489 = vadd.f32 0.0, %v1488
        %1490 = vmatmul.bf16.gmra.mxu0 %v1469
        %v1491 = vpop.f32.mrf.mxu0
        %v1492 = vadd.f32 0.0, %v1491
        %v1493 = vpop.f32.mrf.mxu0
        %v1494 = vadd.f32 0.0, %v1493
        %1495 = vdwg.mxu0
        %v1500 = vunpack.c.l.b16 %v669
        %v1501 = vunpack.c.l.b16 %v670
        %v1502 = vunpack.c.l.b16 %v671
        %v1503 = vunpack.c.l.b16 %v672
        %v1504 = vpack.c.b16 %v1501, %v1500
        %v1505 = vpack.c.b16 %v1503, %v1502
        %v1510 = vunpack.c.l.b16 %v972
        %v1511 = vunpack.c.l.b16 %v973
        %v1512 = vunpack.c.l.b16 %v974
        %v1513 = vunpack.c.l.b16 %v975
        %v1514 = vpack.c.b16 %v1511, %v1510
        %v1515 = vpack.c.b16 %v1513, %v1512
        %v1517 = vsel %vm1311, %v1504, 0
        %v1520 = vsel %vm1311, %v1505, 0
        %v1523 = vsel %vm1311, %v1514, 0
        %v1526 = vsel %vm1311, %v1515, 0
        %1528 = vmatpush.bf16.xpose.msra.mxu0 0
        %1529 = vmatpush.bf16.xpose.msra.mxu0 0
        %1530 = vmatpush.bf16.xpose.msra.mxu0 0
        %1531 = vmatpush.bf16.xpose.msra.mxu0 0
        %1532 = vmatpush.bf16.xpose.msra.mxu0 0
        %1533 = vmatpush.bf16.xpose.msra.mxu0 0
        %1534 = vmatpush.bf16.xpose.msra.mxu0 %v1526
        %1535 = vmatpush.bf16.xpose.msra.mxu0 %v1523
        %1536 = vmatmul.bf16.gmra.mxu0 %v1517
        %v1537 = vpop.f32.mrf.mxu0
        %v1538 = vadd.f32 0.0, %v1537
        %v1539 = vpop.f32.mrf.mxu0
        %v1540 = vadd.f32 0.0, %v1539
        %1541 = vmatmul.bf16.gmra.mxu0 %v1520
        %v1542 = vpop.f32.mrf.mxu0
        %v1543 = vadd.f32 0.0, %v1542
        %v1544 = vpop.f32.mrf.mxu0
        %v1545 = vadd.f32 0.0, %v1544
        %1546 = vdwg.mxu0
        %v1551 = vunpack.c.l.b16 %v673
        %v1552 = vunpack.c.l.b16 %v674
        %v1553 = vunpack.c.l.b16 %v675
        %v1554 = vunpack.c.l.b16 %v676
        %v1555 = vpack.c.b16 %v1552, %v1551
        %v1556 = vpack.c.b16 %v1554, %v1553
        %v1561 = vunpack.c.l.b16 %v976
        %v1562 = vunpack.c.l.b16 %v977
        %v1563 = vunpack.c.l.b16 %v978
        %v1564 = vunpack.c.l.b16 %v979
        %v1565 = vpack.c.b16 %v1562, %v1561
        %v1566 = vpack.c.b16 %v1564, %v1563
        %v1568 = vsel %vm1311, %v1555, 0
        %v1571 = vsel %vm1311, %v1556, 0
        %v1574 = vsel %vm1311, %v1565, 0
        %v1577 = vsel %vm1311, %v1566, 0
        %1579 = vmatpush.bf16.xpose.msra.mxu0 0
        %1580 = vmatpush.bf16.xpose.msra.mxu0 0
        %1581 = vmatpush.bf16.xpose.msra.mxu0 0
        %1582 = vmatpush.bf16.xpose.msra.mxu0 0
        %1583 = vmatpush.bf16.xpose.msra.mxu0 0
        %1584 = vmatpush.bf16.xpose.msra.mxu0 0
        %1585 = vmatpush.bf16.xpose.msra.mxu0 %v1577
        %1586 = vmatpush.bf16.xpose.msra.mxu0 %v1574
        %1587 = vmatmul.bf16.gmra.mxu0 %v1568
        %v1588 = vpop.f32.mrf.mxu0
        %v1589 = vadd.f32 0.0, %v1588
        %v1590 = vpop.f32.mrf.mxu0
        %v1591 = vadd.f32 0.0, %v1590
        %1592 = vmatmul.bf16.gmra.mxu0 %v1571
        %v1593 = vpop.f32.mrf.mxu0
        %v1594 = vadd.f32 0.0, %v1593
        %v1595 = vpop.f32.mrf.mxu0
        %v1596 = vadd.f32 0.0, %v1595
        %1597 = vdwg.mxu0
        %v1602 = vunpack.c.l.b16 %v677
        %v1603 = vunpack.c.l.b16 %v678
        %v1604 = vunpack.c.l.b16 %v679
        %v1605 = vunpack.c.l.b16 %v680
        %v1606 = vpack.c.b16 %v1603, %v1602
        %v1607 = vpack.c.b16 %v1605, %v1604
        %v1612 = vunpack.c.l.b16 %v980
        %v1613 = vunpack.c.l.b16 %v981
        %v1614 = vunpack.c.l.b16 %v982
        %v1615 = vunpack.c.l.b16 %v983
        %v1616 = vpack.c.b16 %v1613, %v1612
        %v1617 = vpack.c.b16 %v1615, %v1614
        %v1619 = vsel %vm1311, %v1606, 0
        %v1622 = vsel %vm1311, %v1607, 0
        %v1625 = vsel %vm1311, %v1616, 0
        %v1628 = vsel %vm1311, %v1617, 0
        %1630 = vmatpush.bf16.xpose.msra.mxu0 0
        %1631 = vmatpush.bf16.xpose.msra.mxu0 0
        %1632 = vmatpush.bf16.xpose.msra.mxu0 0
        %1633 = vmatpush.bf16.xpose.msra.mxu0 0
        %1634 = vmatpush.bf16.xpose.msra.mxu0 0
        %1635 = vmatpush.bf16.xpose.msra.mxu0 0
        %1636 = vmatpush.bf16.xpose.msra.mxu0 %v1628
        %1637 = vmatpush.bf16.xpose.msra.mxu0 %v1625
        %1638 = vmatmul.bf16.gmra.mxu0 %v1619
        %v1639 = vpop.f32.mrf.mxu0
        %v1640 = vadd.f32 0.0, %v1639
        %v1641 = vpop.f32.mrf.mxu0
        %v1642 = vadd.f32 0.0, %v1641
        %1643 = vmatmul.bf16.gmra.mxu0 %v1622
        %v1644 = vpop.f32.mrf.mxu0
        %v1645 = vadd.f32 0.0, %v1644
        %v1646 = vpop.f32.mrf.mxu0
        %v1647 = vadd.f32 0.0, %v1646
        %1648 = vdwg.mxu0
        %v1653 = vunpack.c.l.b16 %v681
        %v1654 = vunpack.c.l.b16 %v682
        %v1655 = vunpack.c.l.b16 %v683
        %v1656 = vunpack.c.l.b16 %v684
        %v1657 = vpack.c.b16 %v1654, %v1653
        %v1658 = vpack.c.b16 %v1656, %v1655
        %v1663 = vunpack.c.l.b16 %v984
        %v1664 = vunpack.c.l.b16 %v985
        %v1665 = vunpack.c.l.b16 %v986
        %v1666 = vunpack.c.l.b16 %v987
        %v1667 = vpack.c.b16 %v1664, %v1663
        %v1668 = vpack.c.b16 %v1666, %v1665
        %v1670 = vsel %vm1311, %v1657, 0
        %v1673 = vsel %vm1311, %v1658, 0
        %v1676 = vsel %vm1311, %v1667, 0
        %v1679 = vsel %vm1311, %v1668, 0
        %1681 = vmatpush.bf16.xpose.msra.mxu0 0
        %1682 = vmatpush.bf16.xpose.msra.mxu0 0
        %1683 = vmatpush.bf16.xpose.msra.mxu0 0
        %1684 = vmatpush.bf16.xpose.msra.mxu0 0
        %1685 = vmatpush.bf16.xpose.msra.mxu0 0
        %1686 = vmatpush.bf16.xpose.msra.mxu0 0
        %1687 = vmatpush.bf16.xpose.msra.mxu0 %v1679
        %1688 = vmatpush.bf16.xpose.msra.mxu0 %v1676
        %1689 = vmatmul.bf16.gmra.mxu0 %v1670
        %v1690 = vpop.f32.mrf.mxu0
        %v1691 = vadd.f32 0.0, %v1690
        %v1692 = vpop.f32.mrf.mxu0
        %v1693 = vadd.f32 0.0, %v1692
        %1694 = vmatmul.bf16.gmra.mxu0 %v1673
        %v1695 = vpop.f32.mrf.mxu0
        %v1696 = vadd.f32 0.0, %v1695
        %v1697 = vpop.f32.mrf.mxu0
        %v1698 = vadd.f32 0.0, %v1697
        %1699 = vdwg.mxu0
        %v1700 = vsel %vm483, %v1334, -inf
        %1701 = vmax.xlane.f32.xlu0 %v1700
        %v1702 = vpop.xlane.xlu0 %1701
        %v1703 = vsel %vm483, %v1336, -inf
        %1704 = vmax.xlane.f32.xlu0 %v1703
        %v1705 = vpop.xlane.xlu0 %1704
        %v1706 = vsel %vm483, %v1339, -inf
        %1707 = vmax.xlane.f32.xlu0 %v1706
        %v1708 = vpop.xlane.xlu0 %1707
        %v1709 = vsel %vm483, %v1341, -inf
        %1710 = vmax.xlane.f32.xlu0 %v1709
        %v1711 = vpop.xlane.xlu0 %1710
        %v1712 = vsel %vm483, %v1385, -inf
        %1713 = vmax.xlane.f32.xlu0 %v1712
        %v1714 = vpop.xlane.xlu0 %1713
        %v1715 = vsel %vm483, %v1387, -inf
        %1716 = vmax.xlane.f32.xlu0 %v1715
        %v1717 = vpop.xlane.xlu0 %1716
        %v1718 = vsel %vm483, %v1390, -inf
        %1719 = vmax.xlane.f32.xlu0 %v1718
        %v1720 = vpop.xlane.xlu0 %1719
        %v1721 = vsel %vm483, %v1392, -inf
        %1722 = vmax.xlane.f32.xlu0 %v1721
        %v1723 = vpop.xlane.xlu0 %1722
        %v1724 = vsel %vm483, %v1436, -inf
        %1725 = vmax.xlane.f32.xlu0 %v1724
        %v1726 = vpop.xlane.xlu0 %1725
        %v1727 = vsel %vm483, %v1438, -inf
        %1728 = vmax.xlane.f32.xlu0 %v1727
        %v1729 = vpop.xlane.xlu0 %1728
        %v1730 = vsel %vm483, %v1441, -inf
        %1731 = vmax.xlane.f32.xlu0 %v1730
        %v1732 = vpop.xlane.xlu0 %1731
        %v1733 = vsel %vm483, %v1443, -inf
        %1734 = vmax.xlane.f32.xlu0 %v1733
        %v1735 = vpop.xlane.xlu0 %1734
        %v1736 = vsel %vm483, %v1487, -inf
        %1737 = vmax.xlane.f32.xlu0 %v1736
        %v1738 = vpop.xlane.xlu0 %1737
        %v1739 = vsel %vm483, %v1489, -inf
        %1740 = vmax.xlane.f32.xlu0 %v1739
        %v1741 = vpop.xlane.xlu0 %1740
        %v1742 = vsel %vm483, %v1492, -inf
        %1743 = vmax.xlane.f32.xlu0 %v1742
        %v1744 = vpop.xlane.xlu0 %1743
        %v1745 = vsel %vm483, %v1494, -inf
        %1746 = vmax.xlane.f32.xlu0 %v1745
        %v1747 = vpop.xlane.xlu0 %1746
        %v1748 = vsel %vm483, %v1538, -inf
        %1749 = vmax.xlane.f32.xlu0 %v1748
        %v1750 = vpop.xlane.xlu0 %1749
        %v1751 = vsel %vm483, %v1540, -inf
        %1752 = vmax.xlane.f32.xlu0 %v1751
        %v1753 = vpop.xlane.xlu0 %1752
        %v1754 = vsel %vm483, %v1543, -inf
        %1755 = vmax.xlane.f32.xlu0 %v1754
        %v1756 = vpop.xlane.xlu0 %1755
        %v1757 = vsel %vm483, %v1545, -inf
        %1758 = vmax.xlane.f32.xlu0 %v1757
        %v1759 = vpop.xlane.xlu0 %1758
        %v1760 = vsel %vm483, %v1589, -inf
        %1761 = vmax.xlane.f32.xlu0 %v1760
        %v1762 = vpop.xlane.xlu0 %1761
        %v1763 = vsel %vm483, %v1591, -inf
        %1764 = vmax.xlane.f32.xlu0 %v1763
        %v1765 = vpop.xlane.xlu0 %1764
        %v1766 = vsel %vm483, %v1594, -inf
        %1767 = vmax.xlane.f32.xlu0 %v1766
        %v1768 = vpop.xlane.xlu0 %1767
        %v1769 = vsel %vm483, %v1596, -inf
        %1770 = vmax.xlane.f32.xlu0 %v1769
        %v1771 = vpop.xlane.xlu0 %1770
        %v1772 = vsel %vm483, %v1640, -inf
        %1773 = vmax.xlane.f32.xlu0 %v1772
        %v1774 = vpop.xlane.xlu0 %1773
        %v1775 = vsel %vm483, %v1642, -inf
        %1776 = vmax.xlane.f32.xlu0 %v1775
        %v1777 = vpop.xlane.xlu0 %1776
        %v1778 = vsel %vm483, %v1645, -inf
        %1779 = vmax.xlane.f32.xlu0 %v1778
        %v1780 = vpop.xlane.xlu0 %1779
        %v1781 = vsel %vm483, %v1647, -inf
        %1782 = vmax.xlane.f32.xlu0 %v1781
        %v1783 = vpop.xlane.xlu0 %1782
        %v1784 = vsel %vm483, %v1691, -inf
        %1785 = vmax.xlane.f32.xlu0 %v1784
        %v1786 = vpop.xlane.xlu0 %1785
        %v1787 = vsel %vm483, %v1693, -inf
        %1788 = vmax.xlane.f32.xlu0 %v1787
        %v1789 = vpop.xlane.xlu0 %1788
        %v1790 = vsel %vm483, %v1696, -inf
        %1791 = vmax.xlane.f32.xlu0 %v1790
        %v1792 = vpop.xlane.xlu0 %1791
        %v1793 = vsel %vm483, %v1698, -inf
        %1794 = vmax.xlane.f32.xlu0 %v1793
        %v1795 = vpop.xlane.xlu0 %1794
        %v1796 = vsub.f32 %v1334, %v1702
        %v1797 = vsub.f32 %v1336, %v1705
        %v1798 = vsub.f32 %v1339, %v1708
        %v1799 = vsub.f32 %v1341, %v1711
        %v1800 = vsub.f32 %v1385, %v1714
        %v1801 = vsub.f32 %v1387, %v1717
        %v1802 = vsub.f32 %v1390, %v1720
        %v1803 = vsub.f32 %v1392, %v1723
        %v1804 = vsub.f32 %v1436, %v1726
        %v1805 = vsub.f32 %v1438, %v1729
        %v1806 = vsub.f32 %v1441, %v1732
        %v1807 = vsub.f32 %v1443, %v1735
        %v1808 = vsub.f32 %v1487, %v1738
        %v1809 = vsub.f32 %v1489, %v1741
        %v1810 = vsub.f32 %v1492, %v1744
        %v1811 = vsub.f32 %v1494, %v1747
        %v1812 = vsub.f32 %v1538, %v1750
        %v1813 = vsub.f32 %v1540, %v1753
        %v1814 = vsub.f32 %v1543, %v1756
        %v1815 = vsub.f32 %v1545, %v1759
        %v1816 = vsub.f32 %v1589, %v1762
        %v1817 = vsub.f32 %v1591, %v1765
        %v1818 = vsub.f32 %v1594, %v1768
        %v1819 = vsub.f32 %v1596, %v1771
        %v1820 = vsub.f32 %v1640, %v1774
        %v1821 = vsub.f32 %v1642, %v1777
        %v1822 = vsub.f32 %v1645, %v1780
        %v1823 = vsub.f32 %v1647, %v1783
        %v1824 = vsub.f32 %v1691, %v1786
        %v1825 = vsub.f32 %v1693, %v1789
        %v1826 = vsub.f32 %v1696, %v1792
        %v1827 = vsub.f32 %v1698, %v1795
        %v1828 = vmul.f32 %v1796, 1.442695
        %v1829 = vpow.pop %v1828
        %v1830 = vmul.f32 %v1797, 1.442695
        %v1831 = vpow.pop %v1830
        %v1832 = vmul.f32 %v1798, 1.442695
        %v1833 = vpow.pop %v1832
        %v1834 = vmul.f32 %v1799, 1.442695
        %v1835 = vpow.pop %v1834
        %v1836 = vmul.f32 %v1800, 1.442695
        %v1837 = vpow.pop %v1836
        %v1838 = vmul.f32 %v1801, 1.442695
        %v1839 = vpow.pop %v1838
        %v1840 = vmul.f32 %v1802, 1.442695
        %v1841 = vpow.pop %v1840
        %v1842 = vmul.f32 %v1803, 1.442695
        %v1843 = vpow.pop %v1842
        %v1844 = vmul.f32 %v1804, 1.442695
        %v1845 = vpow.pop %v1844
        %v1846 = vmul.f32 %v1805, 1.442695
        %v1847 = vpow.pop %v1846
        %v1848 = vmul.f32 %v1806, 1.442695
        %v1849 = vpow.pop %v1848
        %v1850 = vmul.f32 %v1807, 1.442695
        %v1851 = vpow.pop %v1850
        %v1852 = vmul.f32 %v1808, 1.442695
        %v1853 = vpow.pop %v1852
        %v1854 = vmul.f32 %v1809, 1.442695
        %v1855 = vpow.pop %v1854
        %v1856 = vmul.f32 %v1810, 1.442695
        %v1857 = vpow.pop %v1856
        %v1858 = vmul.f32 %v1811, 1.442695
        %v1859 = vpow.pop %v1858
        %v1860 = vmul.f32 %v1812, 1.442695
        %v1861 = vpow.pop %v1860
        %v1862 = vmul.f32 %v1813, 1.442695
        %v1863 = vpow.pop %v1862
        %v1864 = vmul.f32 %v1814, 1.442695
        %v1865 = vpow.pop %v1864
        %v1866 = vmul.f32 %v1815, 1.442695
        %v1867 = vpow.pop %v1866
        %v1868 = vmul.f32 %v1816, 1.442695
        %v1869 = vpow.pop %v1868
        %v1870 = vmul.f32 %v1817, 1.442695
        %v1871 = vpow.pop %v1870
        %v1872 = vmul.f32 %v1818, 1.442695
        %v1873 = vpow.pop %v1872
        %v1874 = vmul.f32 %v1819, 1.442695
        %v1875 = vpow.pop %v1874
        %v1876 = vmul.f32 %v1820, 1.442695
        %v1877 = vpow.pop %v1876
        %v1878 = vmul.f32 %v1821, 1.442695
        %v1879 = vpow.pop %v1878
        %v1880 = vmul.f32 %v1822, 1.442695
        %v1881 = vpow.pop %v1880
        %v1882 = vmul.f32 %v1823, 1.442695
        %v1883 = vpow.pop %v1882
        %v1884 = vmul.f32 %v1824, 1.442695
        %v1885 = vpow.pop %v1884
        %v1886 = vmul.f32 %v1825, 1.442695
        %v1887 = vpow.pop %v1886
        %v1888 = vmul.f32 %v1826, 1.442695
        %v1889 = vpow.pop %v1888
        %v1890 = vmul.f32 %v1827, 1.442695
        %v1891 = vpow.pop %v1890
        %v1892 = vsel %vm483, %v1829, 0.0
        %1893 = vadd.xlane.f32.xlu0 %v1892
        %v1894 = vpop.xlane.xlu0 %1893
        %v1895 = vsel %vm483, %v1831, 0.0
        %1896 = vadd.xlane.f32.xlu0 %v1895
        %v1897 = vpop.xlane.xlu0 %1896
        %v1898 = vsel %vm483, %v1833, 0.0
        %1899 = vadd.xlane.f32.xlu0 %v1898
        %v1900 = vpop.xlane.xlu0 %1899
        %v1901 = vsel %vm483, %v1835, 0.0
        %1902 = vadd.xlane.f32.xlu0 %v1901
        %v1903 = vpop.xlane.xlu0 %1902
        %v1904 = vsel %vm483, %v1837, 0.0
        %1905 = vadd.xlane.f32.xlu0 %v1904
        %v1906 = vpop.xlane.xlu0 %1905
        %v1907 = vsel %vm483, %v1839, 0.0
        %1908 = vadd.xlane.f32.xlu0 %v1907
        %v1909 = vpop.xlane.xlu0 %1908
        %v1910 = vsel %vm483, %v1841, 0.0
        %1911 = vadd.xlane.f32.xlu0 %v1910
        %v1912 = vpop.xlane.xlu0 %1911
        %v1913 = vsel %vm483, %v1843, 0.0
        %1914 = vadd.xlane.f32.xlu0 %v1913
        %v1915 = vpop.xlane.xlu0 %1914
        %v1916 = vsel %vm483, %v1845, 0.0
        %1917 = vadd.xlane.f32.xlu0 %v1916
        %v1918 = vpop.xlane.xlu0 %1917
        %v1919 = vsel %vm483, %v1847, 0.0
        %1920 = vadd.xlane.f32.xlu0 %v1919
        %v1921 = vpop.xlane.xlu0 %1920
        %v1922 = vsel %vm483, %v1849, 0.0
        %1923 = vadd.xlane.f32.xlu0 %v1922
        %v1924 = vpop.xlane.xlu0 %1923
        %v1925 = vsel %vm483, %v1851, 0.0
        %1926 = vadd.xlane.f32.xlu0 %v1925
        %v1927 = vpop.xlane.xlu0 %1926
        %v1928 = vsel %vm483, %v1853, 0.0
        %1929 = vadd.xlane.f32.xlu0 %v1928
        %v1930 = vpop.xlane.xlu0 %1929
        %v1931 = vsel %vm483, %v1855, 0.0
        %1932 = vadd.xlane.f32.xlu0 %v1931
        %v1933 = vpop.xlane.xlu0 %1932
        %v1934 = vsel %vm483, %v1857, 0.0
        %1935 = vadd.xlane.f32.xlu0 %v1934
        %v1936 = vpop.xlane.xlu0 %1935
        %v1937 = vsel %vm483, %v1859, 0.0
        %1938 = vadd.xlane.f32.xlu0 %v1937
        %v1939 = vpop.xlane.xlu0 %1938
        %v1940 = vsel %vm483, %v1861, 0.0
        %1941 = vadd.xlane.f32.xlu0 %v1940
        %v1942 = vpop.xlane.xlu0 %1941
        %v1943 = vsel %vm483, %v1863, 0.0
        %1944 = vadd.xlane.f32.xlu0 %v1943
        %v1945 = vpop.xlane.xlu0 %1944
        %v1946 = vsel %vm483, %v1865, 0.0
        %1947 = vadd.xlane.f32.xlu0 %v1946
        %v1948 = vpop.xlane.xlu0 %1947
        %v1949 = vsel %vm483, %v1867, 0.0
        %1950 = vadd.xlane.f32.xlu0 %v1949
        %v1951 = vpop.xlane.xlu0 %1950
        %v1952 = vsel %vm483, %v1869, 0.0
        %1953 = vadd.xlane.f32.xlu0 %v1952
        %v1954 = vpop.xlane.xlu0 %1953
        %v1955 = vsel %vm483, %v1871, 0.0
        %1956 = vadd.xlane.f32.xlu0 %v1955
        %v1957 = vpop.xlane.xlu0 %1956
        %v1958 = vsel %vm483, %v1873, 0.0
        %1959 = vadd.xlane.f32.xlu0 %v1958
        %v1960 = vpop.xlane.xlu0 %1959
        %v1961 = vsel %vm483, %v1875, 0.0
        %1962 = vadd.xlane.f32.xlu0 %v1961
        %v1963 = vpop.xlane.xlu0 %1962
        %v1964 = vsel %vm483, %v1877, 0.0
        %1965 = vadd.xlane.f32.xlu0 %v1964
        %v1966 = vpop.xlane.xlu0 %1965
        %v1967 = vsel %vm483, %v1879, 0.0
        %1968 = vadd.xlane.f32.xlu0 %v1967
        %v1969 = vpop.xlane.xlu0 %1968
        %v1970 = vsel %vm483, %v1881, 0.0
        %1971 = vadd.xlane.f32.xlu0 %v1970
        %v1972 = vpop.xlane.xlu0 %1971
        %v1973 = vsel %vm483, %v1883, 0.0
        %1974 = vadd.xlane.f32.xlu0 %v1973
        %v1975 = vpop.xlane.xlu0 %1974
        %v1976 = vsel %vm483, %v1885, 0.0
        %1977 = vadd.xlane.f32.xlu0 %v1976
        %v1978 = vpop.xlane.xlu0 %1977
        %v1979 = vsel %vm483, %v1887, 0.0
        %1980 = vadd.xlane.f32.xlu0 %v1979
        %v1981 = vpop.xlane.xlu0 %1980
        %v1982 = vsel %vm483, %v1889, 0.0
        %1983 = vadd.xlane.f32.xlu0 %v1982
        %v1984 = vpop.xlane.xlu0 %1983
        %v1985 = vsel %vm483, %v1891, 0.0
        %1986 = vadd.xlane.f32.xlu0 %v1985
        %v1987 = vpop.xlane.xlu0 %1986
        %v1988 = vrcp.pop %v1894
        %v1989 = vrcp.pop %v1897
        %v1990 = vrcp.pop %v1900
        %v1991 = vrcp.pop %v1903
        %v1992 = vrcp.pop %v1906
        %v1993 = vrcp.pop %v1909
        %v1994 = vrcp.pop %v1912
        %v1995 = vrcp.pop %v1915
        %v1996 = vrcp.pop %v1918
        %v1997 = vrcp.pop %v1921
        %v1998 = vrcp.pop %v1924
        %v1999 = vrcp.pop %v1927
        %v2000 = vrcp.pop %v1930
        %v2001 = vrcp.pop %v1933
        %v2002 = vrcp.pop %v1936
        %v2003 = vrcp.pop %v1939
        %v2004 = vrcp.pop %v1942
        %v2005 = vrcp.pop %v1945
        %v2006 = vrcp.pop %v1948
        %v2007 = vrcp.pop %v1951
        %v2008 = vrcp.pop %v1954
        %v2009 = vrcp.pop %v1957
        %v2010 = vrcp.pop %v1960
        %v2011 = vrcp.pop %v1963
        %v2012 = vrcp.pop %v1966
        %v2013 = vrcp.pop %v1969
        %v2014 = vrcp.pop %v1972
        %v2015 = vrcp.pop %v1975
        %v2016 = vrcp.pop %v1978
        %v2017 = vrcp.pop %v1981
        %v2018 = vrcp.pop %v1984
        %v2019 = vrcp.pop %v1987
        %v2020 = vmul.f32 %v1829, %v1988
        %v2021 = vmul.f32 %v1831, %v1989
        %v2022 = vmul.f32 %v1833, %v1990
        %v2023 = vmul.f32 %v1835, %v1991
        %v2024 = vmul.f32 %v1837, %v1992
        %v2025 = vmul.f32 %v1839, %v1993
        %v2026 = vmul.f32 %v1841, %v1994
        %v2027 = vmul.f32 %v1843, %v1995
        %v2028 = vmul.f32 %v1845, %v1996
        %v2029 = vmul.f32 %v1847, %v1997
        %v2030 = vmul.f32 %v1849, %v1998
        %v2031 = vmul.f32 %v1851, %v1999
        %v2032 = vmul.f32 %v1853, %v2000
        %v2033 = vmul.f32 %v1855, %v2001
        %v2034 = vmul.f32 %v1857, %v2002
        %v2035 = vmul.f32 %v1859, %v2003
        %v2036 = vmul.f32 %v1861, %v2004
        %v2037 = vmul.f32 %v1863, %v2005
        %v2038 = vmul.f32 %v1865, %v2006
        %v2039 = vmul.f32 %v1867, %v2007
        %v2040 = vmul.f32 %v1869, %v2008
        %v2041 = vmul.f32 %v1871, %v2009
        %v2042 = vmul.f32 %v1873, %v2010
        %v2043 = vmul.f32 %v1875, %v2011
        %v2044 = vmul.f32 %v1877, %v2012
        %v2045 = vmul.f32 %v1879, %v2013
        %v2046 = vmul.f32 %v1881, %v2014
        %v2047 = vmul.f32 %v1883, %v2015
        %v2048 = vmul.f32 %v1885, %v2016
        %v2049 = vmul.f32 %v1887, %v2017
        %v2050 = vmul.f32 %v1889, %v2018
        %v2051 = vmul.f32 %v1891, %v2019
        %v2052 = vpack.c.bf16 %v2020, %v2020
        %v2053 = vpack.c.bf16 %v2021, %v2021
        %v2054 = vpack.c.bf16 %v2022, %v2022
        %v2055 = vpack.c.bf16 %v2023, %v2023
        %v2056 = vpack.c.bf16 %v2024, %v2024
        %v2057 = vpack.c.bf16 %v2025, %v2025
        %v2058 = vpack.c.bf16 %v2026, %v2026
        %v2059 = vpack.c.bf16 %v2027, %v2027
        %v2060 = vpack.c.bf16 %v2028, %v2028
        %v2061 = vpack.c.bf16 %v2029, %v2029
        %v2062 = vpack.c.bf16 %v2030, %v2030
        %v2063 = vpack.c.bf16 %v2031, %v2031
        %v2064 = vpack.c.bf16 %v2032, %v2032
        %v2065 = vpack.c.bf16 %v2033, %v2033
        %v2066 = vpack.c.bf16 %v2034, %v2034
        %v2067 = vpack.c.bf16 %v2035, %v2035
        %v2068 = vpack.c.bf16 %v2036, %v2036
        %v2069 = vpack.c.bf16 %v2037, %v2037
        %v2070 = vpack.c.bf16 %v2038, %v2038
        %v2071 = vpack.c.bf16 %v2039, %v2039
        %v2072 = vpack.c.bf16 %v2040, %v2040
        %v2073 = vpack.c.bf16 %v2041, %v2041
        %v2074 = vpack.c.bf16 %v2042, %v2042
        %v2075 = vpack.c.bf16 %v2043, %v2043
        %v2076 = vpack.c.bf16 %v2044, %v2044
        %v2077 = vpack.c.bf16 %v2045, %v2045
        %v2078 = vpack.c.bf16 %v2046, %v2046
        %v2079 = vpack.c.bf16 %v2047, %v2047
        %v2080 = vpack.c.bf16 %v2048, %v2048
        %v2081 = vpack.c.bf16 %v2049, %v2049
        %v2082 = vpack.c.bf16 %v2050, %v2050
        %v2083 = vpack.c.bf16 %v2051, %v2051
        %v2088 = vunpack.c.l.b16 %v2052
        %v2089 = vunpack.c.l.b16 %v2053
        %v2090 = vunpack.c.l.b16 %v2054
        %v2091 = vunpack.c.l.b16 %v2055
        %v2092 = vpack.c.b16 %v2089, %v2088
        %v2093 = vpack.c.b16 %v2091, %v2090
        %v2098 = vunpack.c.l.b16 %v1259
        %v2099 = vunpack.c.l.b16 %v1260
        %v2100 = vunpack.c.l.b16 %v1261
        %v2101 = vunpack.c.l.b16 %v1262
        %v2102 = vpack.c.b16 %v2099, %v2098
        %v2103 = vpack.c.b16 %v2101, %v2100
        %v2107 = vsel %vm483, %v2092, 0
        %v2110 = vsel %vm483, %v2093, 0
        %2112 = vmatpush.bf16.msra.mxu0 0
        %2113 = vmatpush.bf16.msra.mxu0 0
        %2114 = vmatpush.bf16.msra.mxu0 0
        %2115 = vmatpush.bf16.msra.mxu0 0
        %2116 = vmatpush.bf16.msra.mxu0 0
        %2117 = vmatpush.bf16.msra.mxu0 0
        %2118 = vmatpush.bf16.msra.mxu0 %v2103
        %2119 = vmatpush.bf16.msra.mxu0 %v2102
        %2120 = vmatmul.bf16.gmra.mxu0 %v2107
        %v2121 = vpop.f32.mrf.mxu0
        %v2122 = vadd.f32 0.0, %v2121
        %v2123 = vpop.f32.mrf.mxu0
        %v2124 = vadd.f32 0.0, %v2123
        %2125 = vmatmul.bf16.gmra.mxu0 %v2110
        %v2126 = vpop.f32.mrf.mxu0
        %v2127 = vadd.f32 0.0, %v2126
        %v2128 = vpop.f32.mrf.mxu0
        %v2129 = vadd.f32 0.0, %v2128
        %2130 = vdwg.mxu0
        %v2135 = vunpack.c.l.b16 %v2056
        %v2136 = vunpack.c.l.b16 %v2057
        %v2137 = vunpack.c.l.b16 %v2058
        %v2138 = vunpack.c.l.b16 %v2059
        %v2139 = vpack.c.b16 %v2136, %v2135
        %v2140 = vpack.c.b16 %v2138, %v2137
        %v2145 = vunpack.c.l.b16 %v1263
        %v2146 = vunpack.c.l.b16 %v1264
        %v2147 = vunpack.c.l.b16 %v1265
        %v2148 = vunpack.c.l.b16 %v1266
        %v2149 = vpack.c.b16 %v2146, %v2145
        %v2150 = vpack.c.b16 %v2148, %v2147
        %v2154 = vsel %vm483, %v2139, 0
        %v2157 = vsel %vm483, %v2140, 0
        %2159 = vmatpush.bf16.msra.mxu0 0
        %2160 = vmatpush.bf16.msra.mxu0 0
        %2161 = vmatpush.bf16.msra.mxu0 0
        %2162 = vmatpush.bf16.msra.mxu0 0
        %2163 = vmatpush.bf16.msra.mxu0 0
        %2164 = vmatpush.bf16.msra.mxu0 0
        %2165 = vmatpush.bf16.msra.mxu0 %v2150
        %2166 = vmatpush.bf16.msra.mxu0 %v2149
        %2167 = vmatmul.bf16.gmra.mxu0 %v2154
        %v2168 = vpop.f32.mrf.mxu0
        %v2169 = vadd.f32 0.0, %v2168
        %v2170 = vpop.f32.mrf.mxu0
        %v2171 = vadd.f32 0.0, %v2170
        %2172 = vmatmul.bf16.gmra.mxu0 %v2157
        %v2173 = vpop.f32.mrf.mxu0
        %v2174 = vadd.f32 0.0, %v2173
        %v2175 = vpop.f32.mrf.mxu0
        %v2176 = vadd.f32 0.0, %v2175
        %2177 = vdwg.mxu0
        %v2182 = vunpack.c.l.b16 %v2060
        %v2183 = vunpack.c.l.b16 %v2061
        %v2184 = vunpack.c.l.b16 %v2062
        %v2185 = vunpack.c.l.b16 %v2063
        %v2186 = vpack.c.b16 %v2183, %v2182
        %v2187 = vpack.c.b16 %v2185, %v2184
        %v2192 = vunpack.c.l.b16 %v1267
        %v2193 = vunpack.c.l.b16 %v1268
        %v2194 = vunpack.c.l.b16 %v1269
        %v2195 = vunpack.c.l.b16 %v1270
        %v2196 = vpack.c.b16 %v2193, %v2192
        %v2197 = vpack.c.b16 %v2195, %v2194
        %v2201 = vsel %vm483, %v2186, 0
        %v2204 = vsel %vm483, %v2187, 0
        %2206 = vmatpush.bf16.msra.mxu0 0
        %2207 = vmatpush.bf16.msra.mxu0 0
        %2208 = vmatpush.bf16.msra.mxu0 0
        %2209 = vmatpush.bf16.msra.mxu0 0
        %2210 = vmatpush.bf16.msra.mxu0 0
        %2211 = vmatpush.bf16.msra.mxu0 0
        %2212 = vmatpush.bf16.msra.mxu0 %v2197
        %2213 = vmatpush.bf16.msra.mxu0 %v2196
        %2214 = vmatmul.bf16.gmra.mxu0 %v2201
        %v2215 = vpop.f32.mrf.mxu0
        %v2216 = vadd.f32 0.0, %v2215
        %v2217 = vpop.f32.mrf.mxu0
        %v2218 = vadd.f32 0.0, %v2217
        %2219 = vmatmul.bf16.gmra.mxu0 %v2204
        %v2220 = vpop.f32.mrf.mxu0
        %v2221 = vadd.f32 0.0, %v2220
        %v2222 = vpop.f32.mrf.mxu0
        %v2223 = vadd.f32 0.0, %v2222
        %2224 = vdwg.mxu0
        %v2229 = vunpack.c.l.b16 %v2064
        %v2230 = vunpack.c.l.b16 %v2065
        %v2231 = vunpack.c.l.b16 %v2066
        %v2232 = vunpack.c.l.b16 %v2067
        %v2233 = vpack.c.b16 %v2230, %v2229
        %v2234 = vpack.c.b16 %v2232, %v2231
        %v2239 = vunpack.c.l.b16 %v1271
        %v2240 = vunpack.c.l.b16 %v1272
        %v2241 = vunpack.c.l.b16 %v1273
        %v2242 = vunpack.c.l.b16 %v1274
        %v2243 = vpack.c.b16 %v2240, %v2239
        %v2244 = vpack.c.b16 %v2242, %v2241
        %v2248 = vsel %vm483, %v2233, 0
        %v2251 = vsel %vm483, %v2234, 0
        %2253 = vmatpush.bf16.msra.mxu0 0
        %2254 = vmatpush.bf16.msra.mxu0 0
        %2255 = vmatpush.bf16.msra.mxu0 0
        %2256 = vmatpush.bf16.msra.mxu0 0
        %2257 = vmatpush.bf16.msra.mxu0 0
        %2258 = vmatpush.bf16.msra.mxu0 0
        %2259 = vmatpush.bf16.msra.mxu0 %v2244
        %2260 = vmatpush.bf16.msra.mxu0 %v2243
        %2261 = vmatmul.bf16.gmra.mxu0 %v2248
        %v2262 = vpop.f32.mrf.mxu0
        %v2263 = vadd.f32 0.0, %v2262
        %v2264 = vpop.f32.mrf.mxu0
        %v2265 = vadd.f32 0.0, %v2264
        %2266 = vmatmul.bf16.gmra.mxu0 %v2251
        %v2267 = vpop.f32.mrf.mxu0
        %v2268 = vadd.f32 0.0, %v2267
        %v2269 = vpop.f32.mrf.mxu0
        %v2270 = vadd.f32 0.0, %v2269
        %2271 = vdwg.mxu0
        %v2276 = vunpack.c.l.b16 %v2068
        %v2277 = vunpack.c.l.b16 %v2069
        %v2278 = vunpack.c.l.b16 %v2070
        %v2279 = vunpack.c.l.b16 %v2071
        %v2280 = vpack.c.b16 %v2277, %v2276
        %v2281 = vpack.c.b16 %v2279, %v2278
        %v2286 = vunpack.c.l.b16 %v1275
        %v2287 = vunpack.c.l.b16 %v1276
        %v2288 = vunpack.c.l.b16 %v1277
        %v2289 = vunpack.c.l.b16 %v1278
        %v2290 = vpack.c.b16 %v2287, %v2286
        %v2291 = vpack.c.b16 %v2289, %v2288
        %v2295 = vsel %vm483, %v2280, 0
        %v2298 = vsel %vm483, %v2281, 0
        %2300 = vmatpush.bf16.msra.mxu0 0
        %2301 = vmatpush.bf16.msra.mxu0 0
        %2302 = vmatpush.bf16.msra.mxu0 0
        %2303 = vmatpush.bf16.msra.mxu0 0
        %2304 = vmatpush.bf16.msra.mxu0 0
        %2305 = vmatpush.bf16.msra.mxu0 0
        %2306 = vmatpush.bf16.msra.mxu0 %v2291
        %2307 = vmatpush.bf16.msra.mxu0 %v2290
        %2308 = vmatmul.bf16.gmra.mxu0 %v2295
        %v2309 = vpop.f32.mrf.mxu0
        %v2310 = vadd.f32 0.0, %v2309
        %v2311 = vpop.f32.mrf.mxu0
        %v2312 = vadd.f32 0.0, %v2311
        %2313 = vmatmul.bf16.gmra.mxu0 %v2298
        %v2314 = vpop.f32.mrf.mxu0
        %v2315 = vadd.f32 0.0, %v2314
        %v2316 = vpop.f32.mrf.mxu0
        %v2317 = vadd.f32 0.0, %v2316
        %2318 = vdwg.mxu0
        %v2323 = vunpack.c.l.b16 %v2072
        %v2324 = vunpack.c.l.b16 %v2073
        %v2325 = vunpack.c.l.b16 %v2074
        %v2326 = vunpack.c.l.b16 %v2075
        %v2327 = vpack.c.b16 %v2324, %v2323
        %v2328 = vpack.c.b16 %v2326, %v2325
        %v2333 = vunpack.c.l.b16 %v1279
        %v2334 = vunpack.c.l.b16 %v1280
        %v2335 = vunpack.c.l.b16 %v1281
        %v2336 = vunpack.c.l.b16 %v1282
        %v2337 = vpack.c.b16 %v2334, %v2333
        %v2338 = vpack.c.b16 %v2336, %v2335
        %v2342 = vsel %vm483, %v2327, 0
        %v2345 = vsel %vm483, %v2328, 0
        %2347 = vmatpush.bf16.msra.mxu0 0
        %2348 = vmatpush.bf16.msra.mxu0 0
        %2349 = vmatpush.bf16.msra.mxu0 0
        %2350 = vmatpush.bf16.msra.mxu0 0
        %2351 = vmatpush.bf16.msra.mxu0 0
        %2352 = vmatpush.bf16.msra.mxu0 0
        %2353 = vmatpush.bf16.msra.mxu0 %v2338
        %2354 = vmatpush.bf16.msra.mxu0 %v2337
        %2355 = vmatmul.bf16.gmra.mxu0 %v2342
        %v2356 = vpop.f32.mrf.mxu0
        %v2357 = vadd.f32 0.0, %v2356
        %v2358 = vpop.f32.mrf.mxu0
        %v2359 = vadd.f32 0.0, %v2358
        %2360 = vmatmul.bf16.gmra.mxu0 %v2345
        %v2361 = vpop.f32.mrf.mxu0
        %v2362 = vadd.f32 0.0, %v2361
        %v2363 = vpop.f32.mrf.mxu0
        %v2364 = vadd.f32 0.0, %v2363
        %2365 = vdwg.mxu0
        %v2370 = vunpack.c.l.b16 %v2076
        %v2371 = vunpack.c.l.b16 %v2077
        %v2372 = vunpack.c.l.b16 %v2078
        %v2373 = vunpack.c.l.b16 %v2079
        %v2374 = vpack.c.b16 %v2371, %v2370
        %v2375 = vpack.c.b16 %v2373, %v2372
        %v2380 = vunpack.c.l.b16 %v1283
        %v2381 = vunpack.c.l.b16 %v1284
        %v2382 = vunpack.c.l.b16 %v1285
        %v2383 = vunpack.c.l.b16 %v1286
        %v2384 = vpack.c.b16 %v2381, %v2380
        %v2385 = vpack.c.b16 %v2383, %v2382
        %v2389 = vsel %vm483, %v2374, 0
        %v2392 = vsel %vm483, %v2375, 0
        %2394 = vmatpush.bf16.msra.mxu0 0
        %2395 = vmatpush.bf16.msra.mxu0 0
        %2396 = vmatpush.bf16.msra.mxu0 0
        %2397 = vmatpush.bf16.msra.mxu0 0
        %2398 = vmatpush.bf16.msra.mxu0 0
        %2399 = vmatpush.bf16.msra.mxu0 0
        %2400 = vmatpush.bf16.msra.mxu0 %v2385
        %2401 = vmatpush.bf16.msra.mxu0 %v2384
        %2402 = vmatmul.bf16.gmra.mxu0 %v2389
        %v2403 = vpop.f32.mrf.mxu0
        %v2404 = vadd.f32 0.0, %v2403
        %v2405 = vpop.f32.mrf.mxu0
        %v2406 = vadd.f32 0.0, %v2405
        %2407 = vmatmul.bf16.gmra.mxu0 %v2392
        %v2408 = vpop.f32.mrf.mxu0
        %v2409 = vadd.f32 0.0, %v2408
        %v2410 = vpop.f32.mrf.mxu0
        %v2411 = vadd.f32 0.0, %v2410
        %2412 = vdwg.mxu0
        %v2417 = vunpack.c.l.b16 %v2080
        %v2418 = vunpack.c.l.b16 %v2081
        %v2419 = vunpack.c.l.b16 %v2082
        %v2420 = vunpack.c.l.b16 %v2083
        %v2421 = vpack.c.b16 %v2418, %v2417
        %v2422 = vpack.c.b16 %v2420, %v2419
        %v2427 = vunpack.c.l.b16 %v1287
        %v2428 = vunpack.c.l.b16 %v1288
        %v2429 = vunpack.c.l.b16 %v1289
        %v2430 = vunpack.c.l.b16 %v1290
        %v2431 = vpack.c.b16 %v2428, %v2427
        %v2432 = vpack.c.b16 %v2430, %v2429
        %v2436 = vsel %vm483, %v2421, 0
        %v2439 = vsel %vm483, %v2422, 0
        %2441 = vmatpush.bf16.msra.mxu0 0
        %2442 = vmatpush.bf16.msra.mxu0 0
        %2443 = vmatpush.bf16.msra.mxu0 0
        %2444 = vmatpush.bf16.msra.mxu0 0
        %2445 = vmatpush.bf16.msra.mxu0 0
        %2446 = vmatpush.bf16.msra.mxu0 0
        %2447 = vmatpush.bf16.msra.mxu0 %v2432
        %2448 = vmatpush.bf16.msra.mxu0 %v2431
        %2449 = vmatmul.bf16.gmra.mxu0 %v2436
        %v2450 = vpop.f32.mrf.mxu0
        %v2451 = vadd.f32 0.0, %v2450
        %v2452 = vpop.f32.mrf.mxu0
        %v2453 = vadd.f32 0.0, %v2452
        %2454 = vmatmul.bf16.gmra.mxu0 %v2439
        %v2455 = vpop.f32.mrf.mxu0
        %v2456 = vadd.f32 0.0, %v2455
        %v2457 = vpop.f32.mrf.mxu0
        %v2458 = vadd.f32 0.0, %v2457
        %2459 = vdwg.mxu0
        %2460 = vrot.lane.b32.xlu0 %v1299, 120
        %v2461 = vpop.permute.xlu0 %2460
        %2462 = vrot.lane.b32.xlu0 %v1300, 120
        %v2463 = vpop.permute.xlu0 %2462
        %2464 = vrot.lane.b32.xlu0 %v1309, 120
        %v2465 = vpop.permute.xlu0 %2464
        %2466 = vrot.lane.b32.xlu0 %v1310, 120
        %v2467 = vpop.permute.xlu0 %2466
        %v2469 = vsel %vm1311, %v2461, 0
        %v2472 = vsel %vm1311, %v2463, 0
        %v2475 = vsel %vm1311, %v2465, 0
        %v2478 = vsel %vm1311, %v2467, 0
        %2480 = vmatpush.bf16.xpose.msra.mxu0 0
        %2481 = vmatpush.bf16.xpose.msra.mxu0 0
        %2482 = vmatpush.bf16.xpose.msra.mxu0 0
        %2483 = vmatpush.bf16.xpose.msra.mxu0 0
        %2484 = vmatpush.bf16.xpose.msra.mxu0 0
        %2485 = vmatpush.bf16.xpose.msra.mxu0 0
        %2486 = vmatpush.bf16.xpose.msra.mxu0 %v2478
        %2487 = vmatpush.bf16.xpose.msra.mxu0 %v2475
        %2488 = vmatmul.bf16.gmra.mxu0 %v2469
        %v2489 = vpop.f32.mrf.mxu0
        %v2490 = vadd.f32 0.0, %v2489
        %v2491 = vpop.f32.mrf.mxu0
        %v2492 = vadd.f32 0.0, %v2491
        %2493 = vmatmul.bf16.gmra.mxu0 %v2472
        %v2494 = vpop.f32.mrf.mxu0
        %v2495 = vadd.f32 0.0, %v2494
        %v2496 = vpop.f32.mrf.mxu0
        %v2497 = vadd.f32 0.0, %v2496
        %2498 = vdwg.mxu0
        %2499 = vrot.lane.b32.xlu0 %v1351, 120
        %v2500 = vpop.permute.xlu0 %2499
        %2501 = vrot.lane.b32.xlu0 %v1352, 120
        %v2502 = vpop.permute.xlu0 %2501
        %2503 = vrot.lane.b32.xlu0 %v1361, 120
        %v2504 = vpop.permute.xlu0 %2503
        %2505 = vrot.lane.b32.xlu0 %v1362, 120
        %v2506 = vpop.permute.xlu0 %2505
        %v2508 = vsel %vm1311, %v2500, 0
        %v2511 = vsel %vm1311, %v2502, 0
        %v2514 = vsel %vm1311, %v2504, 0
        %v2517 = vsel %vm1311, %v2506, 0
        %2519 = vmatpush.bf16.xpose.msra.mxu0 0
        %2520 = vmatpush.bf16.xpose.msra.mxu0 0
        %2521 = vmatpush.bf16.xpose.msra.mxu0 0
        %2522 = vmatpush.bf16.xpose.msra.mxu0 0
        %2523 = vmatpush.bf16.xpose.msra.mxu0 0
        %2524 = vmatpush.bf16.xpose.msra.mxu0 0
        %2525 = vmatpush.bf16.xpose.msra.mxu0 %v2517
        %2526 = vmatpush.bf16.xpose.msra.mxu0 %v2514
        %2527 = vmatmul.bf16.gmra.mxu0 %v2508
        %v2528 = vpop.f32.mrf.mxu0
        %v2529 = vadd.f32 0.0, %v2528
        %v2530 = vpop.f32.mrf.mxu0
        %v2531 = vadd.f32 0.0, %v2530
        %2532 = vmatmul.bf16.gmra.mxu0 %v2511
        %v2533 = vpop.f32.mrf.mxu0
        %v2534 = vadd.f32 0.0, %v2533
        %v2535 = vpop.f32.mrf.mxu0
        %v2536 = vadd.f32 0.0, %v2535
        %2537 = vdwg.mxu0
        %2538 = vrot.lane.b32.xlu0 %v1402, 120
        %v2539 = vpop.permute.xlu0 %2538
        %2540 = vrot.lane.b32.xlu0 %v1403, 120
        %v2541 = vpop.permute.xlu0 %2540
        %2542 = vrot.lane.b32.xlu0 %v1412, 120
        %v2543 = vpop.permute.xlu0 %2542
        %2544 = vrot.lane.b32.xlu0 %v1413, 120
        %v2545 = vpop.permute.xlu0 %2544
        %v2547 = vsel %vm1311, %v2539, 0
        %v2550 = vsel %vm1311, %v2541, 0
        %v2553 = vsel %vm1311, %v2543, 0
        %v2556 = vsel %vm1311, %v2545, 0
        %2558 = vmatpush.bf16.xpose.msra.mxu0 0
        %2559 = vmatpush.bf16.xpose.msra.mxu0 0
        %2560 = vmatpush.bf16.xpose.msra.mxu0 0
        %2561 = vmatpush.bf16.xpose.msra.mxu0 0
        %2562 = vmatpush.bf16.xpose.msra.mxu0 0
        %2563 = vmatpush.bf16.xpose.msra.mxu0 0
        %2564 = vmatpush.bf16.xpose.msra.mxu0 %v2556
        %2565 = vmatpush.bf16.xpose.msra.mxu0 %v2553
        %2566 = vmatmul.bf16.gmra.mxu0 %v2547
        %v2567 = vpop.f32.mrf.mxu0
        %v2568 = vadd.f32 0.0, %v2567
        %v2569 = vpop.f32.mrf.mxu0
        %v2570 = vadd.f32 0.0, %v2569
        %2571 = vmatmul.bf16.gmra.mxu0 %v2550
        %v2572 = vpop.f32.mrf.mxu0
        %v2573 = vadd.f32 0.0, %v2572
        %v2574 = vpop.f32.mrf.mxu0
        %v2575 = vadd.f32 0.0, %v2574
        %2576 = vdwg.mxu0
        %2577 = vrot.lane.b32.xlu0 %v1453, 120
        %v2578 = vpop.permute.xlu0 %2577
        %2579 = vrot.lane.b32.xlu0 %v1454, 120
        %v2580 = vpop.permute.xlu0 %2579
        %2581 = vrot.lane.b32.xlu0 %v1463, 120
        %v2582 = vpop.permute.xlu0 %2581
        %2583 = vrot.lane.b32.xlu0 %v1464, 120
        %v2584 = vpop.permute.xlu0 %2583
        %v2586 = vsel %vm1311, %v2578, 0
        %v2589 = vsel %vm1311, %v2580, 0
        %v2592 = vsel %vm1311, %v2582, 0
        %v2595 = vsel %vm1311, %v2584, 0
        %2597 = vmatpush.bf16.xpose.msra.mxu0 0
        %2598 = vmatpush.bf16.xpose.msra.mxu0 0
        %2599 = vmatpush.bf16.xpose.msra.mxu0 0
        %2600 = vmatpush.bf16.xpose.msra.mxu0 0
        %2601 = vmatpush.bf16.xpose.msra.mxu0 0
        %2602 = vmatpush.bf16.xpose.msra.mxu0 0
        %2603 = vmatpush.bf16.xpose.msra.mxu0 %v2595
        %2604 = vmatpush.bf16.xpose.msra.mxu0 %v2592
        %2605 = vmatmul.bf16.gmra.mxu0 %v2586
        %v2606 = vpop.f32.mrf.mxu0
        %v2607 = vadd.f32 0.0, %v2606
        %v2608 = vpop.f32.mrf.mxu0
        %v2609 = vadd.f32 0.0, %v2608
        %2610 = vmatmul.bf16.gmra.mxu0 %v2589
        %v2611 = vpop.f32.mrf.mxu0
        %v2612 = vadd.f32 0.0, %v2611
        %v2613 = vpop.f32.mrf.mxu0
        %v2614 = vadd.f32 0.0, %v2613
        %2615 = vdwg.mxu0
        %2616 = vrot.lane.b32.xlu0 %v1504, 120
        %v2617 = vpop.permute.xlu0 %2616
        %2618 = vrot.lane.b32.xlu0 %v1505, 120
        %v2619 = vpop.permute.xlu0 %2618
        %2620 = vrot.lane.b32.xlu0 %v1514, 120
        %v2621 = vpop.permute.xlu0 %2620
        %2622 = vrot.lane.b32.xlu0 %v1515, 120
        %v2623 = vpop.permute.xlu0 %2622
        %v2625 = vsel %vm1311, %v2617, 0
        %v2628 = vsel %vm1311, %v2619, 0
        %v2631 = vsel %vm1311, %v2621, 0
        %v2634 = vsel %vm1311, %v2623, 0
        %2636 = vmatpush.bf16.xpose.msra.mxu0 0
        %2637 = vmatpush.bf16.xpose.msra.mxu0 0
        %2638 = vmatpush.bf16.xpose.msra.mxu0 0
        %2639 = vmatpush.bf16.xpose.msra.mxu0 0
        %2640 = vmatpush.bf16.xpose.msra.mxu0 0
        %2641 = vmatpush.bf16.xpose.msra.mxu0 0
        %2642 = vmatpush.bf16.xpose.msra.mxu0 %v2634
        %2643 = vmatpush.bf16.xpose.msra.mxu0 %v2631
        %2644 = vmatmul.bf16.gmra.mxu0 %v2625
        %v2645 = vpop.f32.mrf.mxu0
        %v2646 = vadd.f32 0.0, %v2645
        %v2647 = vpop.f32.mrf.mxu0
        %v2648 = vadd.f32 0.0, %v2647
        %2649 = vmatmul.bf16.gmra.mxu0 %v2628
        %v2650 = vpop.f32.mrf.mxu0
        %v2651 = vadd.f32 0.0, %v2650
        %v2652 = vpop.f32.mrf.mxu0
        %v2653 = vadd.f32 0.0, %v2652
        %2654 = vdwg.mxu0
        %2655 = vrot.lane.b32.xlu0 %v1555, 120
        %v2656 = vpop.permute.xlu0 %2655
        %2657 = vrot.lane.b32.xlu0 %v1556, 120
        %v2658 = vpop.permute.xlu0 %2657
        %2659 = vrot.lane.b32.xlu0 %v1565, 120
        %v2660 = vpop.permute.xlu0 %2659
        %2661 = vrot.lane.b32.xlu0 %v1566, 120
        %v2662 = vpop.permute.xlu0 %2661
        %v2664 = vsel %vm1311, %v2656, 0
        %v2667 = vsel %vm1311, %v2658, 0
        %v2670 = vsel %vm1311, %v2660, 0
        %v2673 = vsel %vm1311, %v2662, 0
        %2675 = vmatpush.bf16.xpose.msra.mxu0 0
        %2676 = vmatpush.bf16.xpose.msra.mxu0 0
        %2677 = vmatpush.bf16.xpose.msra.mxu0 0
        %2678 = vmatpush.bf16.xpose.msra.mxu0 0
        %2679 = vmatpush.bf16.xpose.msra.mxu0 0
        %2680 = vmatpush.bf16.xpose.msra.mxu0 0
        %2681 = vmatpush.bf16.xpose.msra.mxu0 %v2673
        %2682 = vmatpush.bf16.xpose.msra.mxu0 %v2670
        %2683 = vmatmul.bf16.gmra.mxu0 %v2664
        %v2684 = vpop.f32.mrf.mxu0
        %v2685 = vadd.f32 0.0, %v2684
        %v2686 = vpop.f32.mrf.mxu0
        %v2687 = vadd.f32 0.0, %v2686
        %2688 = vmatmul.bf16.gmra.mxu0 %v2667
        %v2689 = vpop.f32.mrf.mxu0
        %v2690 = vadd.f32 0.0, %v2689
        %v2691 = vpop.f32.mrf.mxu0
        %v2692 = vadd.f32 0.0, %v2691
        %2693 = vdwg.mxu0
        %2694 = vrot.lane.b32.xlu0 %v1606, 120
        %v2695 = vpop.permute.xlu0 %2694
        %2696 = vrot.lane.b32.xlu0 %v1607, 120
        %v2697 = vpop.permute.xlu0 %2696
        %2698 = vrot.lane.b32.xlu0 %v1616, 120
        %v2699 = vpop.permute.xlu0 %2698
        %2700 = vrot.lane.b32.xlu0 %v1617, 120
        %v2701 = vpop.permute.xlu0 %2700
        %v2703 = vsel %vm1311, %v2695, 0
        %v2706 = vsel %vm1311, %v2697, 0
        %v2709 = vsel %vm1311, %v2699, 0
        %v2712 = vsel %vm1311, %v2701, 0
        %2714 = vmatpush.bf16.xpose.msra.mxu0 0
        %2715 = vmatpush.bf16.xpose.msra.mxu0 0
        %2716 = vmatpush.bf16.xpose.msra.mxu0 0
        %2717 = vmatpush.bf16.xpose.msra.mxu0 0
        %2718 = vmatpush.bf16.xpose.msra.mxu0 0
        %2719 = vmatpush.bf16.xpose.msra.mxu0 0
        %2720 = vmatpush.bf16.xpose.msra.mxu0 %v2712
        %2721 = vmatpush.bf16.xpose.msra.mxu0 %v2709
        %2722 = vmatmul.bf16.gmra.mxu0 %v2703
        %v2723 = vpop.f32.mrf.mxu0
        %v2724 = vadd.f32 0.0, %v2723
        %v2725 = vpop.f32.mrf.mxu0
        %v2726 = vadd.f32 0.0, %v2725
        %2727 = vmatmul.bf16.gmra.mxu0 %v2706
        %v2728 = vpop.f32.mrf.mxu0
        %v2729 = vadd.f32 0.0, %v2728
        %v2730 = vpop.f32.mrf.mxu0
        %v2731 = vadd.f32 0.0, %v2730
        %2732 = vdwg.mxu0
        %2733 = vrot.lane.b32.xlu0 %v1657, 120
        %v2734 = vpop.permute.xlu0 %2733
        %2735 = vrot.lane.b32.xlu0 %v1658, 120
        %v2736 = vpop.permute.xlu0 %2735
        %2737 = vrot.lane.b32.xlu0 %v1667, 120
        %v2738 = vpop.permute.xlu0 %2737
        %2739 = vrot.lane.b32.xlu0 %v1668, 120
        %v2740 = vpop.permute.xlu0 %2739
        %v2742 = vsel %vm1311, %v2734, 0
        %v2745 = vsel %vm1311, %v2736, 0
        %v2748 = vsel %vm1311, %v2738, 0
        %v2751 = vsel %vm1311, %v2740, 0
        %2753 = vmatpush.bf16.xpose.msra.mxu0 0
        %2754 = vmatpush.bf16.xpose.msra.mxu0 0
        %2755 = vmatpush.bf16.xpose.msra.mxu0 0
        %2756 = vmatpush.bf16.xpose.msra.mxu0 0
        %2757 = vmatpush.bf16.xpose.msra.mxu0 0
        %2758 = vmatpush.bf16.xpose.msra.mxu0 0
        %2759 = vmatpush.bf16.xpose.msra.mxu0 %v2751
        %2760 = vmatpush.bf16.xpose.msra.mxu0 %v2748
        %2761 = vmatmul.bf16.gmra.mxu0 %v2742
        %v2762 = vpop.f32.mrf.mxu0
        %v2763 = vadd.f32 0.0, %v2762
        %v2764 = vpop.f32.mrf.mxu0
        %v2765 = vadd.f32 0.0, %v2764
        %2766 = vmatmul.bf16.gmra.mxu0 %v2745
        %v2767 = vpop.f32.mrf.mxu0
        %v2768 = vadd.f32 0.0, %v2767
        %v2769 = vpop.f32.mrf.mxu0
        %v2770 = vadd.f32 0.0, %v2769
        %2771 = vdwg.mxu0
        %v2772 = vsel %vm483, %v2490, -inf
        %2773 = vmax.xlane.f32.xlu0 %v2772
        %v2774 = vpop.xlane.xlu0 %2773
        %v2775 = vsel %vm483, %v2492, -inf
        %2776 = vmax.xlane.f32.xlu0 %v2775
        %v2777 = vpop.xlane.xlu0 %2776
        %v2778 = vsel %vm483, %v2495, -inf
        %2779 = vmax.xlane.f32.xlu0 %v2778
        %v2780 = vpop.xlane.xlu0 %2779
        %v2781 = vsel %vm483, %v2497, -inf
        %2782 = vmax.xlane.f32.xlu0 %v2781
        %v2783 = vpop.xlane.xlu0 %2782
        %v2784 = vsel %vm483, %v2529, -inf
        %2785 = vmax.xlane.f32.xlu0 %v2784
        %v2786 = vpop.xlane.xlu0 %2785
        %v2787 = vsel %vm483, %v2531, -inf
        %2788 = vmax.xlane.f32.xlu0 %v2787
        %v2789 = vpop.xlane.xlu0 %2788
        %v2790 = vsel %vm483, %v2534, -inf
        %2791 = vmax.xlane.f32.xlu0 %v2790
        %v2792 = vpop.xlane.xlu0 %2791
        %v2793 = vsel %vm483, %v2536, -inf
        %2794 = vmax.xlane.f32.xlu0 %v2793
        %v2795 = vpop.xlane.xlu0 %2794
        %v2796 = vsel %vm483, %v2568, -inf
        %2797 = vmax.xlane.f32.xlu0 %v2796
        %v2798 = vpop.xlane.xlu0 %2797
        %v2799 = vsel %vm483, %v2570, -inf
        %2800 = vmax.xlane.f32.xlu0 %v2799
        %v2801 = vpop.xlane.xlu0 %2800
        %v2802 = vsel %vm483, %v2573, -inf
        %2803 = vmax.xlane.f32.xlu0 %v2802
        %v2804 = vpop.xlane.xlu0 %2803
        %v2805 = vsel %vm483, %v2575, -inf
        %2806 = vmax.xlane.f32.xlu0 %v2805
        %v2807 = vpop.xlane.xlu0 %2806
        %v2808 = vsel %vm483, %v2607, -inf
        %2809 = vmax.xlane.f32.xlu0 %v2808
        %v2810 = vpop.xlane.xlu0 %2809
        %v2811 = vsel %vm483, %v2609, -inf
        %2812 = vmax.xlane.f32.xlu0 %v2811
        %v2813 = vpop.xlane.xlu0 %2812
        %v2814 = vsel %vm483, %v2612, -inf
        %2815 = vmax.xlane.f32.xlu0 %v2814
        %v2816 = vpop.xlane.xlu0 %2815
        %v2817 = vsel %vm483, %v2614, -inf
        %2818 = vmax.xlane.f32.xlu0 %v2817
        %v2819 = vpop.xlane.xlu0 %2818
        %v2820 = vsel %vm483, %v2646, -inf
        %2821 = vmax.xlane.f32.xlu0 %v2820
        %v2822 = vpop.xlane.xlu0 %2821
        %v2823 = vsel %vm483, %v2648, -inf
        %2824 = vmax.xlane.f32.xlu0 %v2823
        %v2825 = vpop.xlane.xlu0 %2824
        %v2826 = vsel %vm483, %v2651, -inf
        %2827 = vmax.xlane.f32.xlu0 %v2826
        %v2828 = vpop.xlane.xlu0 %2827
        %v2829 = vsel %vm483, %v2653, -inf
        %2830 = vmax.xlane.f32.xlu0 %v2829
        %v2831 = vpop.xlane.xlu0 %2830
        %v2832 = vsel %vm483, %v2685, -inf
        %2833 = vmax.xlane.f32.xlu0 %v2832
        %v2834 = vpop.xlane.xlu0 %2833
        %v2835 = vsel %vm483, %v2687, -inf
        %2836 = vmax.xlane.f32.xlu0 %v2835
        %v2837 = vpop.xlane.xlu0 %2836
        %v2838 = vsel %vm483, %v2690, -inf
        %2839 = vmax.xlane.f32.xlu0 %v2838
        %v2840 = vpop.xlane.xlu0 %2839
        %v2841 = vsel %vm483, %v2692, -inf
        %2842 = vmax.xlane.f32.xlu0 %v2841
        %v2843 = vpop.xlane.xlu0 %2842
        %v2844 = vsel %vm483, %v2724, -inf
        %2845 = vmax.xlane.f32.xlu0 %v2844
        %v2846 = vpop.xlane.xlu0 %2845
        %v2847 = vsel %vm483, %v2726, -inf
        %2848 = vmax.xlane.f32.xlu0 %v2847
        %v2849 = vpop.xlane.xlu0 %2848
        %v2850 = vsel %vm483, %v2729, -inf
        %2851 = vmax.xlane.f32.xlu0 %v2850
        %v2852 = vpop.xlane.xlu0 %2851
        %v2853 = vsel %vm483, %v2731, -inf
        %2854 = vmax.xlane.f32.xlu0 %v2853
        %v2855 = vpop.xlane.xlu0 %2854
        %v2856 = vsel %vm483, %v2763, -inf
        %2857 = vmax.xlane.f32.xlu0 %v2856
        %v2858 = vpop.xlane.xlu0 %2857
        %v2859 = vsel %vm483, %v2765, -inf
        %2860 = vmax.xlane.f32.xlu0 %v2859
        %v2861 = vpop.xlane.xlu0 %2860
        %v2862 = vsel %vm483, %v2768, -inf
        %2863 = vmax.xlane.f32.xlu0 %v2862
        %v2864 = vpop.xlane.xlu0 %2863
        %v2865 = vsel %vm483, %v2770, -inf
        %2866 = vmax.xlane.f32.xlu0 %v2865
        %v2867 = vpop.xlane.xlu0 %2866
        %v2868 = vsub.f32 %v2490, %v2774
        %v2869 = vsub.f32 %v2492, %v2777
        %v2870 = vsub.f32 %v2495, %v2780
        %v2871 = vsub.f32 %v2497, %v2783
        %v2872 = vsub.f32 %v2529, %v2786
        %v2873 = vsub.f32 %v2531, %v2789
        %v2874 = vsub.f32 %v2534, %v2792
        %v2875 = vsub.f32 %v2536, %v2795
        %v2876 = vsub.f32 %v2568, %v2798
        %v2877 = vsub.f32 %v2570, %v2801
        %v2878 = vsub.f32 %v2573, %v2804
        %v2879 = vsub.f32 %v2575, %v2807
        %v2880 = vsub.f32 %v2607, %v2810
        %v2881 = vsub.f32 %v2609, %v2813
        %v2882 = vsub.f32 %v2612, %v2816
        %v2883 = vsub.f32 %v2614, %v2819
        %v2884 = vsub.f32 %v2646, %v2822
        %v2885 = vsub.f32 %v2648, %v2825
        %v2886 = vsub.f32 %v2651, %v2828
        %v2887 = vsub.f32 %v2653, %v2831
        %v2888 = vsub.f32 %v2685, %v2834
        %v2889 = vsub.f32 %v2687, %v2837
        %v2890 = vsub.f32 %v2690, %v2840
        %v2891 = vsub.f32 %v2692, %v2843
        %v2892 = vsub.f32 %v2724, %v2846
        %v2893 = vsub.f32 %v2726, %v2849
        %v2894 = vsub.f32 %v2729, %v2852
        %v2895 = vsub.f32 %v2731, %v2855
        %v2896 = vsub.f32 %v2763, %v2858
        %v2897 = vsub.f32 %v2765, %v2861
        %v2898 = vsub.f32 %v2768, %v2864
        %v2899 = vsub.f32 %v2770, %v2867
        %v2900 = vmul.f32 %v2868, 1.442695
        %v2901 = vpow.pop %v2900
        %v2902 = vmul.f32 %v2869, 1.442695
        %v2903 = vpow.pop %v2902
        %v2904 = vmul.f32 %v2870, 1.442695
        %v2905 = vpow.pop %v2904
        %v2906 = vmul.f32 %v2871, 1.442695
        %v2907 = vpow.pop %v2906
        %v2908 = vmul.f32 %v2872, 1.442695
        %v2909 = vpow.pop %v2908
        %v2910 = vmul.f32 %v2873, 1.442695
        %v2911 = vpow.pop %v2910
        %v2912 = vmul.f32 %v2874, 1.442695
        %v2913 = vpow.pop %v2912
        %v2914 = vmul.f32 %v2875, 1.442695
        %v2915 = vpow.pop %v2914
        %v2916 = vmul.f32 %v2876, 1.442695
        %v2917 = vpow.pop %v2916
        %v2918 = vmul.f32 %v2877, 1.442695
        %v2919 = vpow.pop %v2918
        %v2920 = vmul.f32 %v2878, 1.442695
        %v2921 = vpow.pop %v2920
        %v2922 = vmul.f32 %v2879, 1.442695
        %v2923 = vpow.pop %v2922
        %v2924 = vmul.f32 %v2880, 1.442695
        %v2925 = vpow.pop %v2924
        %v2926 = vmul.f32 %v2881, 1.442695
        %v2927 = vpow.pop %v2926
        %v2928 = vmul.f32 %v2882, 1.442695
        %v2929 = vpow.pop %v2928
        %v2930 = vmul.f32 %v2883, 1.442695
        %v2931 = vpow.pop %v2930
        %v2932 = vmul.f32 %v2884, 1.442695
        %v2933 = vpow.pop %v2932
        %v2934 = vmul.f32 %v2885, 1.442695
        %v2935 = vpow.pop %v2934
        %v2936 = vmul.f32 %v2886, 1.442695
        %v2937 = vpow.pop %v2936
        %v2938 = vmul.f32 %v2887, 1.442695
        %v2939 = vpow.pop %v2938
        %v2940 = vmul.f32 %v2888, 1.442695
        %v2941 = vpow.pop %v2940
        %v2942 = vmul.f32 %v2889, 1.442695
        %v2943 = vpow.pop %v2942
        %v2944 = vmul.f32 %v2890, 1.442695
        %v2945 = vpow.pop %v2944
        %v2946 = vmul.f32 %v2891, 1.442695
        %v2947 = vpow.pop %v2946
        %v2948 = vmul.f32 %v2892, 1.442695
        %v2949 = vpow.pop %v2948
        %v2950 = vmul.f32 %v2893, 1.442695
        %v2951 = vpow.pop %v2950
        %v2952 = vmul.f32 %v2894, 1.442695
        %v2953 = vpow.pop %v2952
        %v2954 = vmul.f32 %v2895, 1.442695
        %v2955 = vpow.pop %v2954
        %v2956 = vmul.f32 %v2896, 1.442695
        %v2957 = vpow.pop %v2956
        %v2958 = vmul.f32 %v2897, 1.442695
        %v2959 = vpow.pop %v2958
        %v2960 = vmul.f32 %v2898, 1.442695
        %v2961 = vpow.pop %v2960
        %v2962 = vmul.f32 %v2899, 1.442695
        %v2963 = vpow.pop %v2962
        %v2964 = vsel %vm483, %v2901, 0.0
        %2965 = vadd.xlane.f32.xlu0 %v2964
        %v2966 = vpop.xlane.xlu0 %2965
        %v2967 = vsel %vm483, %v2903, 0.0
        %2968 = vadd.xlane.f32.xlu0 %v2967
        %v2969 = vpop.xlane.xlu0 %2968
        %v2970 = vsel %vm483, %v2905, 0.0
        %2971 = vadd.xlane.f32.xlu0 %v2970
        %v2972 = vpop.xlane.xlu0 %2971
        %v2973 = vsel %vm483, %v2907, 0.0
        %2974 = vadd.xlane.f32.xlu0 %v2973
        %v2975 = vpop.xlane.xlu0 %2974
        %v2976 = vsel %vm483, %v2909, 0.0
        %2977 = vadd.xlane.f32.xlu0 %v2976
        %v2978 = vpop.xlane.xlu0 %2977
        %v2979 = vsel %vm483, %v2911, 0.0
        %2980 = vadd.xlane.f32.xlu0 %v2979
        %v2981 = vpop.xlane.xlu0 %2980
        %v2982 = vsel %vm483, %v2913, 0.0
        %2983 = vadd.xlane.f32.xlu0 %v2982
        %v2984 = vpop.xlane.xlu0 %2983
        %v2985 = vsel %vm483, %v2915, 0.0
        %2986 = vadd.xlane.f32.xlu0 %v2985
        %v2987 = vpop.xlane.xlu0 %2986
        %v2988 = vsel %vm483, %v2917, 0.0
        %2989 = vadd.xlane.f32.xlu0 %v2988
        %v2990 = vpop.xlane.xlu0 %2989
        %v2991 = vsel %vm483, %v2919, 0.0
        %2992 = vadd.xlane.f32.xlu0 %v2991
        %v2993 = vpop.xlane.xlu0 %2992
        %v2994 = vsel %vm483, %v2921, 0.0
        %2995 = vadd.xlane.f32.xlu0 %v2994
        %v2996 = vpop.xlane.xlu0 %2995
        %v2997 = vsel %vm483, %v2923, 0.0
        %2998 = vadd.xlane.f32.xlu0 %v2997
        %v2999 = vpop.xlane.xlu0 %2998
        %v3000 = vsel %vm483, %v2925, 0.0
        %3001 = vadd.xlane.f32.xlu0 %v3000
        %v3002 = vpop.xlane.xlu0 %3001
        %v3003 = vsel %vm483, %v2927, 0.0
        %3004 = vadd.xlane.f32.xlu0 %v3003
        %v3005 = vpop.xlane.xlu0 %3004
        %v3006 = vsel %vm483, %v2929, 0.0
        %3007 = vadd.xlane.f32.xlu0 %v3006
        %v3008 = vpop.xlane.xlu0 %3007
        %v3009 = vsel %vm483, %v2931, 0.0
        %3010 = vadd.xlane.f32.xlu0 %v3009
        %v3011 = vpop.xlane.xlu0 %3010
        %v3012 = vsel %vm483, %v2933, 0.0
        %3013 = vadd.xlane.f32.xlu0 %v3012
        %v3014 = vpop.xlane.xlu0 %3013
        %v3015 = vsel %vm483, %v2935, 0.0
        %3016 = vadd.xlane.f32.xlu0 %v3015
        %v3017 = vpop.xlane.xlu0 %3016
        %v3018 = vsel %vm483, %v2937, 0.0
        %3019 = vadd.xlane.f32.xlu0 %v3018
        %v3020 = vpop.xlane.xlu0 %3019
        %v3021 = vsel %vm483, %v2939, 0.0
        %3022 = vadd.xlane.f32.xlu0 %v3021
        %v3023 = vpop.xlane.xlu0 %3022
        %v3024 = vsel %vm483, %v2941, 0.0
        %3025 = vadd.xlane.f32.xlu0 %v3024
        %v3026 = vpop.xlane.xlu0 %3025
        %v3027 = vsel %vm483, %v2943, 0.0
        %3028 = vadd.xlane.f32.xlu0 %v3027
        %v3029 = vpop.xlane.xlu0 %3028
        %v3030 = vsel %vm483, %v2945, 0.0
        %3031 = vadd.xlane.f32.xlu0 %v3030
        %v3032 = vpop.xlane.xlu0 %3031
        %v3033 = vsel %vm483, %v2947, 0.0
        %3034 = vadd.xlane.f32.xlu0 %v3033
        %v3035 = vpop.xlane.xlu0 %3034
        %v3036 = vsel %vm483, %v2949, 0.0
        %3037 = vadd.xlane.f32.xlu0 %v3036
        %v3038 = vpop.xlane.xlu0 %3037
        %v3039 = vsel %vm483, %v2951, 0.0
        %3040 = vadd.xlane.f32.xlu0 %v3039
        %v3041 = vpop.xlane.xlu0 %3040
        %v3042 = vsel %vm483, %v2953, 0.0
        %3043 = vadd.xlane.f32.xlu0 %v3042
        %v3044 = vpop.xlane.xlu0 %3043
        %v3045 = vsel %vm483, %v2955, 0.0
        %3046 = vadd.xlane.f32.xlu0 %v3045
        %v3047 = vpop.xlane.xlu0 %3046
        %v3048 = vsel %vm483, %v2957, 0.0
        %3049 = vadd.xlane.f32.xlu0 %v3048
        %v3050 = vpop.xlane.xlu0 %3049
        %v3051 = vsel %vm483, %v2959, 0.0
        %3052 = vadd.xlane.f32.xlu0 %v3051
        %v3053 = vpop.xlane.xlu0 %3052
        %v3054 = vsel %vm483, %v2961, 0.0
        %3055 = vadd.xlane.f32.xlu0 %v3054
        %v3056 = vpop.xlane.xlu0 %3055
        %v3057 = vsel %vm483, %v2963, 0.0
        %3058 = vadd.xlane.f32.xlu0 %v3057
        %v3059 = vpop.xlane.xlu0 %3058
        %v3060 = vrcp.pop %v2966
        %v3061 = vrcp.pop %v2969
        %v3062 = vrcp.pop %v2972
        %v3063 = vrcp.pop %v2975
        %v3064 = vrcp.pop %v2978
        %v3065 = vrcp.pop %v2981
        %v3066 = vrcp.pop %v2984
        %v3067 = vrcp.pop %v2987
        %v3068 = vrcp.pop %v2990
        %v3069 = vrcp.pop %v2993
        %v3070 = vrcp.pop %v2996
        %v3071 = vrcp.pop %v2999
        %v3072 = vrcp.pop %v3002
        %v3073 = vrcp.pop %v3005
        %v3074 = vrcp.pop %v3008
        %v3075 = vrcp.pop %v3011
        %v3076 = vrcp.pop %v3014
        %v3077 = vrcp.pop %v3017
        %v3078 = vrcp.pop %v3020
        %v3079 = vrcp.pop %v3023
        %v3080 = vrcp.pop %v3026
        %v3081 = vrcp.pop %v3029
        %v3082 = vrcp.pop %v3032
        %v3083 = vrcp.pop %v3035
        %v3084 = vrcp.pop %v3038
        %v3085 = vrcp.pop %v3041
        %v3086 = vrcp.pop %v3044
        %v3087 = vrcp.pop %v3047
        %v3088 = vrcp.pop %v3050
        %v3089 = vrcp.pop %v3053
        %v3090 = vrcp.pop %v3056
        %v3091 = vrcp.pop %v3059
        %v3092 = vmul.f32 %v2901, %v3060
        %v3093 = vmul.f32 %v2903, %v3061
        %v3094 = vmul.f32 %v2905, %v3062
        %v3095 = vmul.f32 %v2907, %v3063
        %v3096 = vmul.f32 %v2909, %v3064
        %v3097 = vmul.f32 %v2911, %v3065
        %v3098 = vmul.f32 %v2913, %v3066
        %v3099 = vmul.f32 %v2915, %v3067
        %v3100 = vmul.f32 %v2917, %v3068
        %v3101 = vmul.f32 %v2919, %v3069
        %v3102 = vmul.f32 %v2921, %v3070
        %v3103 = vmul.f32 %v2923, %v3071
        %v3104 = vmul.f32 %v2925, %v3072
        %v3105 = vmul.f32 %v2927, %v3073
        %v3106 = vmul.f32 %v2929, %v3074
        %v3107 = vmul.f32 %v2931, %v3075
        %v3108 = vmul.f32 %v2933, %v3076
        %v3109 = vmul.f32 %v2935, %v3077
        %v3110 = vmul.f32 %v2937, %v3078
        %v3111 = vmul.f32 %v2939, %v3079
        %v3112 = vmul.f32 %v2941, %v3080
        %v3113 = vmul.f32 %v2943, %v3081
        %v3114 = vmul.f32 %v2945, %v3082
        %v3115 = vmul.f32 %v2947, %v3083
        %v3116 = vmul.f32 %v2949, %v3084
        %v3117 = vmul.f32 %v2951, %v3085
        %v3118 = vmul.f32 %v2953, %v3086
        %v3119 = vmul.f32 %v2955, %v3087
        %v3120 = vmul.f32 %v2957, %v3088
        %v3121 = vmul.f32 %v2959, %v3089
        %v3122 = vmul.f32 %v2961, %v3090
        %v3123 = vmul.f32 %v2963, %v3091
        %v3124 = vpack.c.bf16 %v3092, %v3092
        %v3125 = vpack.c.bf16 %v3093, %v3093
        %v3126 = vpack.c.bf16 %v3094, %v3094
        %v3127 = vpack.c.bf16 %v3095, %v3095
        %v3128 = vpack.c.bf16 %v3096, %v3096
        %v3129 = vpack.c.bf16 %v3097, %v3097
        %v3130 = vpack.c.bf16 %v3098, %v3098
        %v3131 = vpack.c.bf16 %v3099, %v3099
        %v3132 = vpack.c.bf16 %v3100, %v3100
        %v3133 = vpack.c.bf16 %v3101, %v3101
        %v3134 = vpack.c.bf16 %v3102, %v3102
        %v3135 = vpack.c.bf16 %v3103, %v3103
        %v3136 = vpack.c.bf16 %v3104, %v3104
        %v3137 = vpack.c.bf16 %v3105, %v3105
        %v3138 = vpack.c.bf16 %v3106, %v3106
        %v3139 = vpack.c.bf16 %v3107, %v3107
        %v3140 = vpack.c.bf16 %v3108, %v3108
        %v3141 = vpack.c.bf16 %v3109, %v3109
        %v3142 = vpack.c.bf16 %v3110, %v3110
        %v3143 = vpack.c.bf16 %v3111, %v3111
        %v3144 = vpack.c.bf16 %v3112, %v3112
        %v3145 = vpack.c.bf16 %v3113, %v3113
        %v3146 = vpack.c.bf16 %v3114, %v3114
        %v3147 = vpack.c.bf16 %v3115, %v3115
        %v3148 = vpack.c.bf16 %v3116, %v3116
        %v3149 = vpack.c.bf16 %v3117, %v3117
        %v3150 = vpack.c.bf16 %v3118, %v3118
        %v3151 = vpack.c.bf16 %v3119, %v3119
        %v3152 = vpack.c.bf16 %v3120, %v3120
        %v3153 = vpack.c.bf16 %v3121, %v3121
        %v3154 = vpack.c.bf16 %v3122, %v3122
        %v3155 = vpack.c.bf16 %v3123, %v3123
        %v3160 = vunpack.c.l.b16 %v3124
        %v3161 = vunpack.c.l.b16 %v3125
        %v3162 = vunpack.c.l.b16 %v3126
        %v3163 = vunpack.c.l.b16 %v3127
        %v3164 = vpack.c.b16 %v3161, %v3160
        %v3165 = vpack.c.b16 %v3163, %v3162
        %3166 = vrot.lane.b32.xlu0 %v2102, 120
        %v3167 = vpop.permute.xlu0 %3166
        %3168 = vrot.lane.b32.xlu0 %v2103, 120
        %v3169 = vpop.permute.xlu0 %3168
        %v3173 = vsel %vm483, %v3164, 0
        %v3176 = vsel %vm483, %v3165, 0
        %3178 = vmatpush.bf16.msra.mxu0 0
        %3179 = vmatpush.bf16.msra.mxu0 0
        %3180 = vmatpush.bf16.msra.mxu0 0
        %3181 = vmatpush.bf16.msra.mxu0 0
        %3182 = vmatpush.bf16.msra.mxu0 0
        %3183 = vmatpush.bf16.msra.mxu0 0
        %3184 = vmatpush.bf16.msra.mxu0 %v3169
        %3185 = vmatpush.bf16.msra.mxu0 %v3167
        %3186 = vmatmul.bf16.gmra.mxu0 %v3173
        %v3187 = vpop.f32.mrf.mxu0
        %v3188 = vadd.f32 0.0, %v3187
        %v3189 = vpop.f32.mrf.mxu0
        %v3190 = vadd.f32 0.0, %v3189
        %3191 = vmatmul.bf16.gmra.mxu0 %v3176
        %v3192 = vpop.f32.mrf.mxu0
        %v3193 = vadd.f32 0.0, %v3192
        %v3194 = vpop.f32.mrf.mxu0
        %v3195 = vadd.f32 0.0, %v3194
        %3196 = vdwg.mxu0
        %v3201 = vunpack.c.l.b16 %v3128
        %v3202 = vunpack.c.l.b16 %v3129
        %v3203 = vunpack.c.l.b16 %v3130
        %v3204 = vunpack.c.l.b16 %v3131
        %v3205 = vpack.c.b16 %v3202, %v3201
        %v3206 = vpack.c.b16 %v3204, %v3203
        %3207 = vrot.lane.b32.xlu0 %v2149, 120
        %v3208 = vpop.permute.xlu0 %3207
        %3209 = vrot.lane.b32.xlu0 %v2150, 120
        %v3210 = vpop.permute.xlu0 %3209
        %v3214 = vsel %vm483, %v3205, 0
        %v3217 = vsel %vm483, %v3206, 0
        %3219 = vmatpush.bf16.msra.mxu0 0
        %3220 = vmatpush.bf16.msra.mxu0 0
        %3221 = vmatpush.bf16.msra.mxu0 0
        %3222 = vmatpush.bf16.msra.mxu0 0
        %3223 = vmatpush.bf16.msra.mxu0 0
        %3224 = vmatpush.bf16.msra.mxu0 0
        %3225 = vmatpush.bf16.msra.mxu0 %v3210
        %3226 = vmatpush.bf16.msra.mxu0 %v3208
        %3227 = vmatmul.bf16.gmra.mxu0 %v3214
        %v3228 = vpop.f32.mrf.mxu0
        %v3229 = vadd.f32 0.0, %v3228
        %v3230 = vpop.f32.mrf.mxu0
        %v3231 = vadd.f32 0.0, %v3230
        %3232 = vmatmul.bf16.gmra.mxu0 %v3217
        %v3233 = vpop.f32.mrf.mxu0
        %v3234 = vadd.f32 0.0, %v3233
        %v3235 = vpop.f32.mrf.mxu0
        %v3236 = vadd.f32 0.0, %v3235
        %3237 = vdwg.mxu0
        %v3242 = vunpack.c.l.b16 %v3132
        %v3243 = vunpack.c.l.b16 %v3133
        %v3244 = vunpack.c.l.b16 %v3134
        %v3245 = vunpack.c.l.b16 %v3135
        %v3246 = vpack.c.b16 %v3243, %v3242
        %v3247 = vpack.c.b16 %v3245, %v3244
        %3248 = vrot.lane.b32.xlu0 %v2196, 120
        %v3249 = vpop.permute.xlu0 %3248
        %3250 = vrot.lane.b32.xlu0 %v2197, 120
        %v3251 = vpop.permute.xlu0 %3250
        %v3255 = vsel %vm483, %v3246, 0
        %v3258 = vsel %vm483, %v3247, 0
        %3260 = vmatpush.bf16.msra.mxu0 0
        %3261 = vmatpush.bf16.msra.mxu0 0
        %3262 = vmatpush.bf16.msra.mxu0 0
        %3263 = vmatpush.bf16.msra.mxu0 0
        %3264 = vmatpush.bf16.msra.mxu0 0
        %3265 = vmatpush.bf16.msra.mxu0 0
        %3266 = vmatpush.bf16.msra.mxu0 %v3251
        %3267 = vmatpush.bf16.msra.mxu0 %v3249
        %3268 = vmatmul.bf16.gmra.mxu0 %v3255
        %v3269 = vpop.f32.mrf.mxu0
        %v3270 = vadd.f32 0.0, %v3269
        %v3271 = vpop.f32.mrf.mxu0
        %v3272 = vadd.f32 0.0, %v3271
        %3273 = vmatmul.bf16.gmra.mxu0 %v3258
        %v3274 = vpop.f32.mrf.mxu0
        %v3275 = vadd.f32 0.0, %v3274
        %v3276 = vpop.f32.mrf.mxu0
        %v3277 = vadd.f32 0.0, %v3276
        %3278 = vdwg.mxu0
        %v3283 = vunpack.c.l.b16 %v3136
        %v3284 = vunpack.c.l.b16 %v3137
        %v3285 = vunpack.c.l.b16 %v3138
        %v3286 = vunpack.c.l.b16 %v3139
        %v3287 = vpack.c.b16 %v3284, %v3283
        %v3288 = vpack.c.b16 %v3286, %v3285
        %3289 = vrot.lane.b32.xlu0 %v2243, 120
        %v3290 = vpop.permute.xlu0 %3289
        %3291 = vrot.lane.b32.xlu0 %v2244, 120
        %v3292 = vpop.permute.xlu0 %3291
        %v3296 = vsel %vm483, %v3287, 0
        %v3299 = vsel %vm483, %v3288, 0
        %3301 = vmatpush.bf16.msra.mxu0 0
        %3302 = vmatpush.bf16.msra.mxu0 0
        %3303 = vmatpush.bf16.msra.mxu0 0
        %3304 = vmatpush.bf16.msra.mxu0 0
        %3305 = vmatpush.bf16.msra.mxu0 0
        %3306 = vmatpush.bf16.msra.mxu0 0
        %3307 = vmatpush.bf16.msra.mxu0 %v3292
        %3308 = vmatpush.bf16.msra.mxu0 %v3290
        %3309 = vmatmul.bf16.gmra.mxu0 %v3296
        %v3310 = vpop.f32.mrf.mxu0
        %v3311 = vadd.f32 0.0, %v3310
        %v3312 = vpop.f32.mrf.mxu0
        %v3313 = vadd.f32 0.0, %v3312
        %3314 = vmatmul.bf16.gmra.mxu0 %v3299
        %v3315 = vpop.f32.mrf.mxu0
        %v3316 = vadd.f32 0.0, %v3315
        %v3317 = vpop.f32.mrf.mxu0
        %v3318 = vadd.f32 0.0, %v3317
        %3319 = vdwg.mxu0
        %v3324 = vunpack.c.l.b16 %v3140
        %v3325 = vunpack.c.l.b16 %v3141
        %v3326 = vunpack.c.l.b16 %v3142
        %v3327 = vunpack.c.l.b16 %v3143
        %v3328 = vpack.c.b16 %v3325, %v3324
        %v3329 = vpack.c.b16 %v3327, %v3326
        %3330 = vrot.lane.b32.xlu0 %v2290, 120
        %v3331 = vpop.permute.xlu0 %3330
        %3332 = vrot.lane.b32.xlu0 %v2291, 120
        %v3333 = vpop.permute.xlu0 %3332
        %v3337 = vsel %vm483, %v3328, 0
        %v3340 = vsel %vm483, %v3329, 0
        %3342 = vmatpush.bf16.msra.mxu0 0
        %3343 = vmatpush.bf16.msra.mxu0 0
        %3344 = vmatpush.bf16.msra.mxu0 0
        %3345 = vmatpush.bf16.msra.mxu0 0
        %3346 = vmatpush.bf16.msra.mxu0 0
        %3347 = vmatpush.bf16.msra.mxu0 0
        %3348 = vmatpush.bf16.msra.mxu0 %v3333
        %3349 = vmatpush.bf16.msra.mxu0 %v3331
        %3350 = vmatmul.bf16.gmra.mxu0 %v3337
        %v3351 = vpop.f32.mrf.mxu0
        %v3352 = vadd.f32 0.0, %v3351
        %v3353 = vpop.f32.mrf.mxu0
        %v3354 = vadd.f32 0.0, %v3353
        %3355 = vmatmul.bf16.gmra.mxu0 %v3340
        %v3356 = vpop.f32.mrf.mxu0
        %v3357 = vadd.f32 0.0, %v3356
        %v3358 = vpop.f32.mrf.mxu0
        %v3359 = vadd.f32 0.0, %v3358
        %3360 = vdwg.mxu0
        %v3365 = vunpack.c.l.b16 %v3144
        %v3366 = vunpack.c.l.b16 %v3145
        %v3367 = vunpack.c.l.b16 %v3146
        %v3368 = vunpack.c.l.b16 %v3147
        %v3369 = vpack.c.b16 %v3366, %v3365
        %v3370 = vpack.c.b16 %v3368, %v3367
        %3371 = vrot.lane.b32.xlu0 %v2337, 120
        %v3372 = vpop.permute.xlu0 %3371
        %3373 = vrot.lane.b32.xlu0 %v2338, 120
        %v3374 = vpop.permute.xlu0 %3373
        %v3378 = vsel %vm483, %v3369, 0
        %v3381 = vsel %vm483, %v3370, 0
        %3383 = vmatpush.bf16.msra.mxu0 0
        %3384 = vmatpush.bf16.msra.mxu0 0
        %3385 = vmatpush.bf16.msra.mxu0 0
        %3386 = vmatpush.bf16.msra.mxu0 0
        %3387 = vmatpush.bf16.msra.mxu0 0
        %3388 = vmatpush.bf16.msra.mxu0 0
        %3389 = vmatpush.bf16.msra.mxu0 %v3374
        %3390 = vmatpush.bf16.msra.mxu0 %v3372
        %3391 = vmatmul.bf16.gmra.mxu0 %v3378
        %v3392 = vpop.f32.mrf.mxu0
        %v3393 = vadd.f32 0.0, %v3392
        %v3394 = vpop.f32.mrf.mxu0
        %v3395 = vadd.f32 0.0, %v3394
        %3396 = vmatmul.bf16.gmra.mxu0 %v3381
        %v3397 = vpop.f32.mrf.mxu0
        %v3398 = vadd.f32 0.0, %v3397
        %v3399 = vpop.f32.mrf.mxu0
        %v3400 = vadd.f32 0.0, %v3399
        %3401 = vdwg.mxu0
        %v3406 = vunpack.c.l.b16 %v3148
        %v3407 = vunpack.c.l.b16 %v3149
        %v3408 = vunpack.c.l.b16 %v3150
        %v3409 = vunpack.c.l.b16 %v3151
        %v3410 = vpack.c.b16 %v3407, %v3406
        %v3411 = vpack.c.b16 %v3409, %v3408
        %3412 = vrot.lane.b32.xlu0 %v2384, 120
        %v3413 = vpop.permute.xlu0 %3412
        %3414 = vrot.lane.b32.xlu0 %v2385, 120
        %v3415 = vpop.permute.xlu0 %3414
        %v3419 = vsel %vm483, %v3410, 0
        %v3422 = vsel %vm483, %v3411, 0
        %3424 = vmatpush.bf16.msra.mxu0 0
        %3425 = vmatpush.bf16.msra.mxu0 0
        %3426 = vmatpush.bf16.msra.mxu0 0
        %3427 = vmatpush.bf16.msra.mxu0 0
        %3428 = vmatpush.bf16.msra.mxu0 0
        %3429 = vmatpush.bf16.msra.mxu0 0
        %3430 = vmatpush.bf16.msra.mxu0 %v3415
        %3431 = vmatpush.bf16.msra.mxu0 %v3413
        %3432 = vmatmul.bf16.gmra.mxu0 %v3419
        %v3433 = vpop.f32.mrf.mxu0
        %v3434 = vadd.f32 0.0, %v3433
        %v3435 = vpop.f32.mrf.mxu0
        %v3436 = vadd.f32 0.0, %v3435
        %3437 = vmatmul.bf16.gmra.mxu0 %v3422
        %v3438 = vpop.f32.mrf.mxu0
        %v3439 = vadd.f32 0.0, %v3438
        %v3440 = vpop.f32.mrf.mxu0
        %v3441 = vadd.f32 0.0, %v3440
        %3442 = vdwg.mxu0
        %v3447 = vunpack.c.l.b16 %v3152
        %v3448 = vunpack.c.l.b16 %v3153
        %v3449 = vunpack.c.l.b16 %v3154
        %v3450 = vunpack.c.l.b16 %v3155
        %v3451 = vpack.c.b16 %v3448, %v3447
        %v3452 = vpack.c.b16 %v3450, %v3449
        %3453 = vrot.lane.b32.xlu0 %v2431, 120
        %v3454 = vpop.permute.xlu0 %3453
        %3455 = vrot.lane.b32.xlu0 %v2432, 120
        %v3456 = vpop.permute.xlu0 %3455
        %v3460 = vsel %vm483, %v3451, 0
        %v3463 = vsel %vm483, %v3452, 0
        %3465 = vmatpush.bf16.msra.mxu0 0
        %3466 = vmatpush.bf16.msra.mxu0 0
        %3467 = vmatpush.bf16.msra.mxu0 0
        %3468 = vmatpush.bf16.msra.mxu0 0
        %3469 = vmatpush.bf16.msra.mxu0 0
        %3470 = vmatpush.bf16.msra.mxu0 0
        %3471 = vmatpush.bf16.msra.mxu0 %v3456
        %3472 = vmatpush.bf16.msra.mxu0 %v3454
        %3473 = vmatmul.bf16.gmra.mxu0 %v3460
        %v3474 = vpop.f32.mrf.mxu0
        %v3475 = vadd.f32 0.0, %v3474
        %v3476 = vpop.f32.mrf.mxu0
        %v3477 = vadd.f32 0.0, %v3476
        %3478 = vmatmul.bf16.gmra.mxu0 %v3463
        %v3479 = vpop.f32.mrf.mxu0
        %v3480 = vadd.f32 0.0, %v3479
        %v3481 = vpop.f32.mrf.mxu0
        %v3482 = vadd.f32 0.0, %v3481
        %3483 = vdwg.mxu0
        %3484 = vrot.lane.b32.xlu0 %v1299, 112
        %v3485 = vpop.permute.xlu0 %3484
        %3486 = vrot.lane.b32.xlu0 %v1300, 112
        %v3487 = vpop.permute.xlu0 %3486
        %3488 = vrot.lane.b32.xlu0 %v1309, 112
        %v3489 = vpop.permute.xlu0 %3488
        %3490 = vrot.lane.b32.xlu0 %v1310, 112
        %v3491 = vpop.permute.xlu0 %3490
        %v3493 = vsel %vm1311, %v3485, 0
        %v3496 = vsel %vm1311, %v3487, 0
        %v3499 = vsel %vm1311, %v3489, 0
        %v3502 = vsel %vm1311, %v3491, 0
        %3504 = vmatpush.bf16.xpose.msra.mxu0 0
        %3505 = vmatpush.bf16.xpose.msra.mxu0 0
        %3506 = vmatpush.bf16.xpose.msra.mxu0 0
        %3507 = vmatpush.bf16.xpose.msra.mxu0 0
        %3508 = vmatpush.bf16.xpose.msra.mxu0 0
        %3509 = vmatpush.bf16.xpose.msra.mxu0 0
        %3510 = vmatpush.bf16.xpose.msra.mxu0 %v3502
        %3511 = vmatpush.bf16.xpose.msra.mxu0 %v3499
        %3512 = vmatmul.bf16.gmra.mxu0 %v3493
        %v3513 = vpop.f32.mrf.mxu0
        %v3514 = vadd.f32 0.0, %v3513
        %v3515 = vpop.f32.mrf.mxu0
        %v3516 = vadd.f32 0.0, %v3515
        %3517 = vmatmul.bf16.gmra.mxu0 %v3496
        %v3518 = vpop.f32.mrf.mxu0
        %v3519 = vadd.f32 0.0, %v3518
        %v3520 = vpop.f32.mrf.mxu0
        %v3521 = vadd.f32 0.0, %v3520
        %3522 = vdwg.mxu0
        %3523 = vrot.lane.b32.xlu0 %v1351, 112
        %v3524 = vpop.permute.xlu0 %3523
        %3525 = vrot.lane.b32.xlu0 %v1352, 112
        %v3526 = vpop.permute.xlu0 %3525
        %3527 = vrot.lane.b32.xlu0 %v1361, 112
        %v3528 = vpop.permute.xlu0 %3527
        %3529 = vrot.lane.b32.xlu0 %v1362, 112
        %v3530 = vpop.permute.xlu0 %3529
        %v3532 = vsel %vm1311, %v3524, 0
        %v3535 = vsel %vm1311, %v3526, 0
        %v3538 = vsel %vm1311, %v3528, 0
        %v3541 = vsel %vm1311, %v3530, 0
        %3543 = vmatpush.bf16.xpose.msra.mxu0 0
        %3544 = vmatpush.bf16.xpose.msra.mxu0 0
        %3545 = vmatpush.bf16.xpose.msra.mxu0 0
        %3546 = vmatpush.bf16.xpose.msra.mxu0 0
        %3547 = vmatpush.bf16.xpose.msra.mxu0 0
        %3548 = vmatpush.bf16.xpose.msra.mxu0 0
        %3549 = vmatpush.bf16.xpose.msra.mxu0 %v3541
        %3550 = vmatpush.bf16.xpose.msra.mxu0 %v3538
        %3551 = vmatmul.bf16.gmra.mxu0 %v3532
        %v3552 = vpop.f32.mrf.mxu0
        %v3553 = vadd.f32 0.0, %v3552
        %v3554 = vpop.f32.mrf.mxu0
        %v3555 = vadd.f32 0.0, %v3554
        %3556 = vmatmul.bf16.gmra.mxu0 %v3535
        %v3557 = vpop.f32.mrf.mxu0
        %v3558 = vadd.f32 0.0, %v3557
        %v3559 = vpop.f32.mrf.mxu0
        %v3560 = vadd.f32 0.0, %v3559
        %3561 = vdwg.mxu0
        %3562 = vrot.lane.b32.xlu0 %v1402, 112
        %v3563 = vpop.permute.xlu0 %3562
        %3564 = vrot.lane.b32.xlu0 %v1403, 112
        %v3565 = vpop.permute.xlu0 %3564
        %3566 = vrot.lane.b32.xlu0 %v1412, 112
        %v3567 = vpop.permute.xlu0 %3566
        %3568 = vrot.lane.b32.xlu0 %v1413, 112
        %v3569 = vpop.permute.xlu0 %3568
        %v3571 = vsel %vm1311, %v3563, 0
        %v3574 = vsel %vm1311, %v3565, 0
        %v3577 = vsel %vm1311, %v3567, 0
        %v3580 = vsel %vm1311, %v3569, 0
        %3582 = vmatpush.bf16.xpose.msra.mxu0 0
        %3583 = vmatpush.bf16.xpose.msra.mxu0 0
        %3584 = vmatpush.bf16.xpose.msra.mxu0 0
        %3585 = vmatpush.bf16.xpose.msra.mxu0 0
        %3586 = vmatpush.bf16.xpose.msra.mxu0 0
        %3587 = vmatpush.bf16.xpose.msra.mxu0 0
        %3588 = vmatpush.bf16.xpose.msra.mxu0 %v3580
        %3589 = vmatpush.bf16.xpose.msra.mxu0 %v3577
        %3590 = vmatmul.bf16.gmra.mxu0 %v3571
        %v3591 = vpop.f32.mrf.mxu0
        %v3592 = vadd.f32 0.0, %v3591
        %v3593 = vpop.f32.mrf.mxu0
        %v3594 = vadd.f32 0.0, %v3593
        %3595 = vmatmul.bf16.gmra.mxu0 %v3574
        %v3596 = vpop.f32.mrf.mxu0
        %v3597 = vadd.f32 0.0, %v3596
        %v3598 = vpop.f32.mrf.mxu0
        %v3599 = vadd.f32 0.0, %v3598
        %3600 = vdwg.mxu0
        %3601 = vrot.lane.b32.xlu0 %v1453, 112
        %v3602 = vpop.permute.xlu0 %3601
        %3603 = vrot.lane.b32.xlu0 %v1454, 112
        %v3604 = vpop.permute.xlu0 %3603
        %3605 = vrot.lane.b32.xlu0 %v1463, 112
        %v3606 = vpop.permute.xlu0 %3605
        %3607 = vrot.lane.b32.xlu0 %v1464, 112
        %v3608 = vpop.permute.xlu0 %3607
        %v3610 = vsel %vm1311, %v3602, 0
        %v3613 = vsel %vm1311, %v3604, 0
        %v3616 = vsel %vm1311, %v3606, 0
        %v3619 = vsel %vm1311, %v3608, 0
        %3621 = vmatpush.bf16.xpose.msra.mxu0 0
        %3622 = vmatpush.bf16.xpose.msra.mxu0 0
        %3623 = vmatpush.bf16.xpose.msra.mxu0 0
        %3624 = vmatpush.bf16.xpose.msra.mxu0 0
        %3625 = vmatpush.bf16.xpose.msra.mxu0 0
        %3626 = vmatpush.bf16.xpose.msra.mxu0 0
        %3627 = vmatpush.bf16.xpose.msra.mxu0 %v3619
        %3628 = vmatpush.bf16.xpose.msra.mxu0 %v3616
        %3629 = vmatmul.bf16.gmra.mxu0 %v3610
        %v3630 = vpop.f32.mrf.mxu0
        %v3631 = vadd.f32 0.0, %v3630
        %v3632 = vpop.f32.mrf.mxu0
        %v3633 = vadd.f32 0.0, %v3632
        %3634 = vmatmul.bf16.gmra.mxu0 %v3613
        %v3635 = vpop.f32.mrf.mxu0
        %v3636 = vadd.f32 0.0, %v3635
        %v3637 = vpop.f32.mrf.mxu0
        %v3638 = vadd.f32 0.0, %v3637
        %3639 = vdwg.mxu0
        %3640 = vrot.lane.b32.xlu0 %v1504, 112
        %v3641 = vpop.permute.xlu0 %3640
        %3642 = vrot.lane.b32.xlu0 %v1505, 112
        %v3643 = vpop.permute.xlu0 %3642
        %3644 = vrot.lane.b32.xlu0 %v1514, 112
        %v3645 = vpop.permute.xlu0 %3644
        %3646 = vrot.lane.b32.xlu0 %v1515, 112
        %v3647 = vpop.permute.xlu0 %3646
        %v3649 = vsel %vm1311, %v3641, 0
        %v3652 = vsel %vm1311, %v3643, 0
        %v3655 = vsel %vm1311, %v3645, 0
        %v3658 = vsel %vm1311, %v3647, 0
        %3660 = vmatpush.bf16.xpose.msra.mxu0 0
        %3661 = vmatpush.bf16.xpose.msra.mxu0 0
        %3662 = vmatpush.bf16.xpose.msra.mxu0 0
        %3663 = vmatpush.bf16.xpose.msra.mxu0 0
        %3664 = vmatpush.bf16.xpose.msra.mxu0 0
        %3665 = vmatpush.bf16.xpose.msra.mxu0 0
        %3666 = vmatpush.bf16.xpose.msra.mxu0 %v3658
        %3667 = vmatpush.bf16.xpose.msra.mxu0 %v3655
        %3668 = vmatmul.bf16.gmra.mxu0 %v3649
        %v3669 = vpop.f32.mrf.mxu0
        %v3670 = vadd.f32 0.0, %v3669
        %v3671 = vpop.f32.mrf.mxu0
        %v3672 = vadd.f32 0.0, %v3671
        %3673 = vmatmul.bf16.gmra.mxu0 %v3652
        %v3674 = vpop.f32.mrf.mxu0
        %v3675 = vadd.f32 0.0, %v3674
        %v3676 = vpop.f32.mrf.mxu0
        %v3677 = vadd.f32 0.0, %v3676
        %3678 = vdwg.mxu0
        %3679 = vrot.lane.b32.xlu0 %v1555, 112
        %v3680 = vpop.permute.xlu0 %3679
        %3681 = vrot.lane.b32.xlu0 %v1556, 112
        %v3682 = vpop.permute.xlu0 %3681
        %3683 = vrot.lane.b32.xlu0 %v1565, 112
        %v3684 = vpop.permute.xlu0 %3683
        %3685 = vrot.lane.b32.xlu0 %v1566, 112
        %v3686 = vpop.permute.xlu0 %3685
        %v3688 = vsel %vm1311, %v3680, 0
        %v3691 = vsel %vm1311, %v3682, 0
        %v3694 = vsel %vm1311, %v3684, 0
        %v3697 = vsel %vm1311, %v3686, 0
        %3699 = vmatpush.bf16.xpose.msra.mxu0 0
        %3700 = vmatpush.bf16.xpose.msra.mxu0 0
        %3701 = vmatpush.bf16.xpose.msra.mxu0 0
        %3702 = vmatpush.bf16.xpose.msra.mxu0 0
        %3703 = vmatpush.bf16.xpose.msra.mxu0 0
        %3704 = vmatpush.bf16.xpose.msra.mxu0 0
        %3705 = vmatpush.bf16.xpose.msra.mxu0 %v3697
        %3706 = vmatpush.bf16.xpose.msra.mxu0 %v3694
        %3707 = vmatmul.bf16.gmra.mxu0 %v3688
        %v3708 = vpop.f32.mrf.mxu0
        %v3709 = vadd.f32 0.0, %v3708
        %v3710 = vpop.f32.mrf.mxu0
        %v3711 = vadd.f32 0.0, %v3710
        %3712 = vmatmul.bf16.gmra.mxu0 %v3691
        %v3713 = vpop.f32.mrf.mxu0
        %v3714 = vadd.f32 0.0, %v3713
        %v3715 = vpop.f32.mrf.mxu0
        %v3716 = vadd.f32 0.0, %v3715
        %3717 = vdwg.mxu0
        %3718 = vrot.lane.b32.xlu0 %v1606, 112
        %v3719 = vpop.permute.xlu0 %3718
        %3720 = vrot.lane.b32.xlu0 %v1607, 112
        %v3721 = vpop.permute.xlu0 %3720
        %3722 = vrot.lane.b32.xlu0 %v1616, 112
        %v3723 = vpop.permute.xlu0 %3722
        %3724 = vrot.lane.b32.xlu0 %v1617, 112
        %v3725 = vpop.permute.xlu0 %3724
        %v3727 = vsel %vm1311, %v3719, 0
        %v3730 = vsel %vm1311, %v3721, 0
        %v3733 = vsel %vm1311, %v3723, 0
        %v3736 = vsel %vm1311, %v3725, 0
        %3738 = vmatpush.bf16.xpose.msra.mxu0 0
        %3739 = vmatpush.bf16.xpose.msra.mxu0 0
        %3740 = vmatpush.bf16.xpose.msra.mxu0 0
        %3741 = vmatpush.bf16.xpose.msra.mxu0 0
        %3742 = vmatpush.bf16.xpose.msra.mxu0 0
        %3743 = vmatpush.bf16.xpose.msra.mxu0 0
        %3744 = vmatpush.bf16.xpose.msra.mxu0 %v3736
        %3745 = vmatpush.bf16.xpose.msra.mxu0 %v3733
        %3746 = vmatmul.bf16.gmra.mxu0 %v3727
        %v3747 = vpop.f32.mrf.mxu0
        %v3748 = vadd.f32 0.0, %v3747
        %v3749 = vpop.f32.mrf.mxu0
        %v3750 = vadd.f32 0.0, %v3749
        %3751 = vmatmul.bf16.gmra.mxu0 %v3730
        %v3752 = vpop.f32.mrf.mxu0
        %v3753 = vadd.f32 0.0, %v3752
        %v3754 = vpop.f32.mrf.mxu0
        %v3755 = vadd.f32 0.0, %v3754
        %3756 = vdwg.mxu0
        %3757 = vrot.lane.b32.xlu0 %v1657, 112
        %v3758 = vpop.permute.xlu0 %3757
        %3759 = vrot.lane.b32.xlu0 %v1658, 112
        %v3760 = vpop.permute.xlu0 %3759
        %3761 = vrot.lane.b32.xlu0 %v1667, 112
        %v3762 = vpop.permute.xlu0 %3761
        %3763 = vrot.lane.b32.xlu0 %v1668, 112
        %v3764 = vpop.permute.xlu0 %3763
        %v3766 = vsel %vm1311, %v3758, 0
        %v3769 = vsel %vm1311, %v3760, 0
        %v3772 = vsel %vm1311, %v3762, 0
        %v3775 = vsel %vm1311, %v3764, 0
        %3777 = vmatpush.bf16.xpose.msra.mxu0 0
        %3778 = vmatpush.bf16.xpose.msra.mxu0 0
        %3779 = vmatpush.bf16.xpose.msra.mxu0 0
        %3780 = vmatpush.bf16.xpose.msra.mxu0 0
        %3781 = vmatpush.bf16.xpose.msra.mxu0 0
        %3782 = vmatpush.bf16.xpose.msra.mxu0 0
        %3783 = vmatpush.bf16.xpose.msra.mxu0 %v3775
        %3784 = vmatpush.bf16.xpose.msra.mxu0 %v3772
        %3785 = vmatmul.bf16.gmra.mxu0 %v3766
        %v3786 = vpop.f32.mrf.mxu0
        %v3787 = vadd.f32 0.0, %v3786
        %v3788 = vpop.f32.mrf.mxu0
        %v3789 = vadd.f32 0.0, %v3788
        %3790 = vmatmul.bf16.gmra.mxu0 %v3769
        %v3791 = vpop.f32.mrf.mxu0
        %v3792 = vadd.f32 0.0, %v3791
        %v3793 = vpop.f32.mrf.mxu0
        %v3794 = vadd.f32 0.0, %v3793
        %3795 = vdwg.mxu0
        %v3796 = vsel %vm483, %v3514, -inf
        %3797 = vmax.xlane.f32.xlu0 %v3796
        %v3798 = vpop.xlane.xlu0 %3797
        %v3799 = vsel %vm483, %v3516, -inf
        %3800 = vmax.xlane.f32.xlu0 %v3799
        %v3801 = vpop.xlane.xlu0 %3800
        %v3802 = vsel %vm483, %v3519, -inf
        %3803 = vmax.xlane.f32.xlu0 %v3802
        %v3804 = vpop.xlane.xlu0 %3803
        %v3805 = vsel %vm483, %v3521, -inf
        %3806 = vmax.xlane.f32.xlu0 %v3805
        %v3807 = vpop.xlane.xlu0 %3806
        %v3808 = vsel %vm483, %v3553, -inf
        %3809 = vmax.xlane.f32.xlu0 %v3808
        %v3810 = vpop.xlane.xlu0 %3809
        %v3811 = vsel %vm483, %v3555, -inf
        %3812 = vmax.xlane.f32.xlu0 %v3811
        %v3813 = vpop.xlane.xlu0 %3812
        %v3814 = vsel %vm483, %v3558, -inf
        %3815 = vmax.xlane.f32.xlu0 %v3814
        %v3816 = vpop.xlane.xlu0 %3815
        %v3817 = vsel %vm483, %v3560, -inf
        %3818 = vmax.xlane.f32.xlu0 %v3817
        %v3819 = vpop.xlane.xlu0 %3818
        %v3820 = vsel %vm483, %v3592, -inf
        %3821 = vmax.xlane.f32.xlu0 %v3820
        %v3822 = vpop.xlane.xlu0 %3821
        %v3823 = vsel %vm483, %v3594, -inf
        %3824 = vmax.xlane.f32.xlu0 %v3823
        %v3825 = vpop.xlane.xlu0 %3824
        %v3826 = vsel %vm483, %v3597, -inf
        %3827 = vmax.xlane.f32.xlu0 %v3826
        %v3828 = vpop.xlane.xlu0 %3827
        %v3829 = vsel %vm483, %v3599, -inf
        %3830 = vmax.xlane.f32.xlu0 %v3829
        %v3831 = vpop.xlane.xlu0 %3830
        %v3832 = vsel %vm483, %v3631, -inf
        %3833 = vmax.xlane.f32.xlu0 %v3832
        %v3834 = vpop.xlane.xlu0 %3833
        %v3835 = vsel %vm483, %v3633, -inf
        %3836 = vmax.xlane.f32.xlu0 %v3835
        %v3837 = vpop.xlane.xlu0 %3836
        %v3838 = vsel %vm483, %v3636, -inf
        %3839 = vmax.xlane.f32.xlu0 %v3838
        %v3840 = vpop.xlane.xlu0 %3839
        %v3841 = vsel %vm483, %v3638, -inf
        %3842 = vmax.xlane.f32.xlu0 %v3841
        %v3843 = vpop.xlane.xlu0 %3842
        %v3844 = vsel %vm483, %v3670, -inf
        %3845 = vmax.xlane.f32.xlu0 %v3844
        %v3846 = vpop.xlane.xlu0 %3845
        %v3847 = vsel %vm483, %v3672, -inf
        %3848 = vmax.xlane.f32.xlu0 %v3847
        %v3849 = vpop.xlane.xlu0 %3848
        %v3850 = vsel %vm483, %v3675, -inf
        %3851 = vmax.xlane.f32.xlu0 %v3850
        %v3852 = vpop.xlane.xlu0 %3851
        %v3853 = vsel %vm483, %v3677, -inf
        %3854 = vmax.xlane.f32.xlu0 %v3853
        %v3855 = vpop.xlane.xlu0 %3854
        %v3856 = vsel %vm483, %v3709, -inf
        %3857 = vmax.xlane.f32.xlu0 %v3856
        %v3858 = vpop.xlane.xlu0 %3857
        %v3859 = vsel %vm483, %v3711, -inf
        %3860 = vmax.xlane.f32.xlu0 %v3859
        %v3861 = vpop.xlane.xlu0 %3860
        %v3862 = vsel %vm483, %v3714, -inf
        %3863 = vmax.xlane.f32.xlu0 %v3862
        %v3864 = vpop.xlane.xlu0 %3863
        %v3865 = vsel %vm483, %v3716, -inf
        %3866 = vmax.xlane.f32.xlu0 %v3865
        %v3867 = vpop.xlane.xlu0 %3866
        %v3868 = vsel %vm483, %v3748, -inf
        %3869 = vmax.xlane.f32.xlu0 %v3868
        %v3870 = vpop.xlane.xlu0 %3869
        %v3871 = vsel %vm483, %v3750, -inf
        %3872 = vmax.xlane.f32.xlu0 %v3871
        %v3873 = vpop.xlane.xlu0 %3872
        %v3874 = vsel %vm483, %v3753, -inf
        %3875 = vmax.xlane.f32.xlu0 %v3874
        %v3876 = vpop.xlane.xlu0 %3875
        %v3877 = vsel %vm483, %v3755, -inf
        %3878 = vmax.xlane.f32.xlu0 %v3877
        %v3879 = vpop.xlane.xlu0 %3878
        %v3880 = vsel %vm483, %v3787, -inf
        %3881 = vmax.xlane.f32.xlu0 %v3880
        %v3882 = vpop.xlane.xlu0 %3881
        %v3883 = vsel %vm483, %v3789, -inf
        %3884 = vmax.xlane.f32.xlu0 %v3883
        %v3885 = vpop.xlane.xlu0 %3884
        %v3886 = vsel %vm483, %v3792, -inf
        %3887 = vmax.xlane.f32.xlu0 %v3886
        %v3888 = vpop.xlane.xlu0 %3887
        %v3889 = vsel %vm483, %v3794, -inf
        %3890 = vmax.xlane.f32.xlu0 %v3889
        %v3891 = vpop.xlane.xlu0 %3890
        %v3892 = vsub.f32 %v3514, %v3798
        %v3893 = vsub.f32 %v3516, %v3801
        %v3894 = vsub.f32 %v3519, %v3804
        %v3895 = vsub.f32 %v3521, %v3807
        %v3896 = vsub.f32 %v3553, %v3810
        %v3897 = vsub.f32 %v3555, %v3813
        %v3898 = vsub.f32 %v3558, %v3816
        %v3899 = vsub.f32 %v3560, %v3819
        %v3900 = vsub.f32 %v3592, %v3822
        %v3901 = vsub.f32 %v3594, %v3825
        %v3902 = vsub.f32 %v3597, %v3828
        %v3903 = vsub.f32 %v3599, %v3831
        %v3904 = vsub.f32 %v3631, %v3834
        %v3905 = vsub.f32 %v3633, %v3837
        %v3906 = vsub.f32 %v3636, %v3840
        %v3907 = vsub.f32 %v3638, %v3843
        %v3908 = vsub.f32 %v3670, %v3846
        %v3909 = vsub.f32 %v3672, %v3849
        %v3910 = vsub.f32 %v3675, %v3852
        %v3911 = vsub.f32 %v3677, %v3855
        %v3912 = vsub.f32 %v3709, %v3858
        %v3913 = vsub.f32 %v3711, %v3861
        %v3914 = vsub.f32 %v3714, %v3864
        %v3915 = vsub.f32 %v3716, %v3867
        %v3916 = vsub.f32 %v3748, %v3870
        %v3917 = vsub.f32 %v3750, %v3873
        %v3918 = vsub.f32 %v3753, %v3876
        %v3919 = vsub.f32 %v3755, %v3879
        %v3920 = vsub.f32 %v3787, %v3882
        %v3921 = vsub.f32 %v3789, %v3885
        %v3922 = vsub.f32 %v3792, %v3888
        %v3923 = vsub.f32 %v3794, %v3891
        %v3924 = vmul.f32 %v3892, 1.442695
        %v3925 = vpow.pop %v3924
        %v3926 = vmul.f32 %v3893, 1.442695
        %v3927 = vpow.pop %v3926
        %v3928 = vmul.f32 %v3894, 1.442695
        %v3929 = vpow.pop %v3928
        %v3930 = vmul.f32 %v3895, 1.442695
        %v3931 = vpow.pop %v3930
        %v3932 = vmul.f32 %v3896, 1.442695
        %v3933 = vpow.pop %v3932
        %v3934 = vmul.f32 %v3897, 1.442695
        %v3935 = vpow.pop %v3934
        %v3936 = vmul.f32 %v3898, 1.442695
        %v3937 = vpow.pop %v3936
        %v3938 = vmul.f32 %v3899, 1.442695
        %v3939 = vpow.pop %v3938
        %v3940 = vmul.f32 %v3900, 1.442695
        %v3941 = vpow.pop %v3940
        %v3942 = vmul.f32 %v3901, 1.442695
        %v3943 = vpow.pop %v3942
        %v3944 = vmul.f32 %v3902, 1.442695
        %v3945 = vpow.pop %v3944
        %v3946 = vmul.f32 %v3903, 1.442695
        %v3947 = vpow.pop %v3946
        %v3948 = vmul.f32 %v3904, 1.442695
        %v3949 = vpow.pop %v3948
        %v3950 = vmul.f32 %v3905, 1.442695
        %v3951 = vpow.pop %v3950
        %v3952 = vmul.f32 %v3906, 1.442695
        %v3953 = vpow.pop %v3952
        %v3954 = vmul.f32 %v3907, 1.442695
        %v3955 = vpow.pop %v3954
        %v3956 = vmul.f32 %v3908, 1.442695
        %v3957 = vpow.pop %v3956
        %v3958 = vmul.f32 %v3909, 1.442695
        %v3959 = vpow.pop %v3958
        %v3960 = vmul.f32 %v3910, 1.442695
        %v3961 = vpow.pop %v3960
        %v3962 = vmul.f32 %v3911, 1.442695
        %v3963 = vpow.pop %v3962
        %v3964 = vmul.f32 %v3912, 1.442695
        %v3965 = vpow.pop %v3964
        %v3966 = vmul.f32 %v3913, 1.442695
        %v3967 = vpow.pop %v3966
        %v3968 = vmul.f32 %v3914, 1.442695
        %v3969 = vpow.pop %v3968
        %v3970 = vmul.f32 %v3915, 1.442695
        %v3971 = vpow.pop %v3970
        %v3972 = vmul.f32 %v3916, 1.442695
        %v3973 = vpow.pop %v3972
        %v3974 = vmul.f32 %v3917, 1.442695
        %v3975 = vpow.pop %v3974
        %v3976 = vmul.f32 %v3918, 1.442695
        %v3977 = vpow.pop %v3976
        %v3978 = vmul.f32 %v3919, 1.442695
        %v3979 = vpow.pop %v3978
        %v3980 = vmul.f32 %v3920, 1.442695
        %v3981 = vpow.pop %v3980
        %v3982 = vmul.f32 %v3921, 1.442695
        %v3983 = vpow.pop %v3982
        %v3984 = vmul.f32 %v3922, 1.442695
        %v3985 = vpow.pop %v3984
        %v3986 = vmul.f32 %v3923, 1.442695
        %v3987 = vpow.pop %v3986
        %v3988 = vsel %vm483, %v3925, 0.0
        %3989 = vadd.xlane.f32.xlu0 %v3988
        %v3990 = vpop.xlane.xlu0 %3989
        %v3991 = vsel %vm483, %v3927, 0.0
        %3992 = vadd.xlane.f32.xlu0 %v3991
        %v3993 = vpop.xlane.xlu0 %3992
        %v3994 = vsel %vm483, %v3929, 0.0
        %3995 = vadd.xlane.f32.xlu0 %v3994
        %v3996 = vpop.xlane.xlu0 %3995
        %v3997 = vsel %vm483, %v3931, 0.0
        %3998 = vadd.xlane.f32.xlu0 %v3997
        %v3999 = vpop.xlane.xlu0 %3998
        %v4000 = vsel %vm483, %v3933, 0.0
        %4001 = vadd.xlane.f32.xlu0 %v4000
        %v4002 = vpop.xlane.xlu0 %4001
        %v4003 = vsel %vm483, %v3935, 0.0
        %4004 = vadd.xlane.f32.xlu0 %v4003
        %v4005 = vpop.xlane.xlu0 %4004
        %v4006 = vsel %vm483, %v3937, 0.0
        %4007 = vadd.xlane.f32.xlu0 %v4006
        %v4008 = vpop.xlane.xlu0 %4007
        %v4009 = vsel %vm483, %v3939, 0.0
        %4010 = vadd.xlane.f32.xlu0 %v4009
        %v4011 = vpop.xlane.xlu0 %4010
        %v4012 = vsel %vm483, %v3941, 0.0
        %4013 = vadd.xlane.f32.xlu0 %v4012
        %v4014 = vpop.xlane.xlu0 %4013
        %v4015 = vsel %vm483, %v3943, 0.0
        %4016 = vadd.xlane.f32.xlu0 %v4015
        %v4017 = vpop.xlane.xlu0 %4016
        %v4018 = vsel %vm483, %v3945, 0.0
        %4019 = vadd.xlane.f32.xlu0 %v4018
        %v4020 = vpop.xlane.xlu0 %4019
        %v4021 = vsel %vm483, %v3947, 0.0
        %4022 = vadd.xlane.f32.xlu0 %v4021
        %v4023 = vpop.xlane.xlu0 %4022
        %v4024 = vsel %vm483, %v3949, 0.0
        %4025 = vadd.xlane.f32.xlu0 %v4024
        %v4026 = vpop.xlane.xlu0 %4025
        %v4027 = vsel %vm483, %v3951, 0.0
        %4028 = vadd.xlane.f32.xlu0 %v4027
        %v4029 = vpop.xlane.xlu0 %4028
        %v4030 = vsel %vm483, %v3953, 0.0
        %4031 = vadd.xlane.f32.xlu0 %v4030
        %v4032 = vpop.xlane.xlu0 %4031
        %v4033 = vsel %vm483, %v3955, 0.0
        %4034 = vadd.xlane.f32.xlu0 %v4033
        %v4035 = vpop.xlane.xlu0 %4034
        %v4036 = vsel %vm483, %v3957, 0.0
        %4037 = vadd.xlane.f32.xlu0 %v4036
        %v4038 = vpop.xlane.xlu0 %4037
        %v4039 = vsel %vm483, %v3959, 0.0
        %4040 = vadd.xlane.f32.xlu0 %v4039
        %v4041 = vpop.xlane.xlu0 %4040
        %v4042 = vsel %vm483, %v3961, 0.0
        %4043 = vadd.xlane.f32.xlu0 %v4042
        %v4044 = vpop.xlane.xlu0 %4043
        %v4045 = vsel %vm483, %v3963, 0.0
        %4046 = vadd.xlane.f32.xlu0 %v4045
        %v4047 = vpop.xlane.xlu0 %4046
        %v4048 = vsel %vm483, %v3965, 0.0
        %4049 = vadd.xlane.f32.xlu0 %v4048
        %v4050 = vpop.xlane.xlu0 %4049
        %v4051 = vsel %vm483, %v3967, 0.0
        %4052 = vadd.xlane.f32.xlu0 %v4051
        %v4053 = vpop.xlane.xlu0 %4052
        %v4054 = vsel %vm483, %v3969, 0.0
        %4055 = vadd.xlane.f32.xlu0 %v4054
        %v4056 = vpop.xlane.xlu0 %4055
        %v4057 = vsel %vm483, %v3971, 0.0
        %4058 = vadd.xlane.f32.xlu0 %v4057
        %v4059 = vpop.xlane.xlu0 %4058
        %v4060 = vsel %vm483, %v3973, 0.0
        %4061 = vadd.xlane.f32.xlu0 %v4060
        %v4062 = vpop.xlane.xlu0 %4061
        %v4063 = vsel %vm483, %v3975, 0.0
        %4064 = vadd.xlane.f32.xlu0 %v4063
        %v4065 = vpop.xlane.xlu0 %4064
        %v4066 = vsel %vm483, %v3977, 0.0
        %4067 = vadd.xlane.f32.xlu0 %v4066
        %v4068 = vpop.xlane.xlu0 %4067
        %v4069 = vsel %vm483, %v3979, 0.0
        %4070 = vadd.xlane.f32.xlu0 %v4069
        %v4071 = vpop.xlane.xlu0 %4070
        %v4072 = vsel %vm483, %v3981, 0.0
        %4073 = vadd.xlane.f32.xlu0 %v4072
        %v4074 = vpop.xlane.xlu0 %4073
        %v4075 = vsel %vm483, %v3983, 0.0
        %4076 = vadd.xlane.f32.xlu0 %v4075
        %v4077 = vpop.xlane.xlu0 %4076
        %v4078 = vsel %vm483, %v3985, 0.0
        %4079 = vadd.xlane.f32.xlu0 %v4078
        %v4080 = vpop.xlane.xlu0 %4079
        %v4081 = vsel %vm483, %v3987, 0.0
        %4082 = vadd.xlane.f32.xlu0 %v4081
        %v4083 = vpop.xlane.xlu0 %4082
        %v4084 = vrcp.pop %v3990
        %v4085 = vrcp.pop %v3993
        %v4086 = vrcp.pop %v3996
        %v4087 = vrcp.pop %v3999
        %v4088 = vrcp.pop %v4002
        %v4089 = vrcp.pop %v4005
        %v4090 = vrcp.pop %v4008
        %v4091 = vrcp.pop %v4011
        %v4092 = vrcp.pop %v4014
        %v4093 = vrcp.pop %v4017
        %v4094 = vrcp.pop %v4020
        %v4095 = vrcp.pop %v4023
        %v4096 = vrcp.pop %v4026
        %v4097 = vrcp.pop %v4029
        %v4098 = vrcp.pop %v4032
        %v4099 = vrcp.pop %v4035
        %v4100 = vrcp.pop %v4038
        %v4101 = vrcp.pop %v4041
        %v4102 = vrcp.pop %v4044
        %v4103 = vrcp.pop %v4047
        %v4104 = vrcp.pop %v4050
        %v4105 = vrcp.pop %v4053
        %v4106 = vrcp.pop %v4056
        %v4107 = vrcp.pop %v4059
        %v4108 = vrcp.pop %v4062
        %v4109 = vrcp.pop %v4065
        %v4110 = vrcp.pop %v4068
        %v4111 = vrcp.pop %v4071
        %v4112 = vrcp.pop %v4074
        %v4113 = vrcp.pop %v4077
        %v4114 = vrcp.pop %v4080
        %v4115 = vrcp.pop %v4083
        %v4116 = vmul.f32 %v3925, %v4084
        %v4117 = vmul.f32 %v3927, %v4085
        %v4118 = vmul.f32 %v3929, %v4086
        %v4119 = vmul.f32 %v3931, %v4087
        %v4120 = vmul.f32 %v3933, %v4088
        %v4121 = vmul.f32 %v3935, %v4089
        %v4122 = vmul.f32 %v3937, %v4090
        %v4123 = vmul.f32 %v3939, %v4091
        %v4124 = vmul.f32 %v3941, %v4092
        %v4125 = vmul.f32 %v3943, %v4093
        %v4126 = vmul.f32 %v3945, %v4094
        %v4127 = vmul.f32 %v3947, %v4095
        %v4128 = vmul.f32 %v3949, %v4096
        %v4129 = vmul.f32 %v3951, %v4097
        %v4130 = vmul.f32 %v3953, %v4098
        %v4131 = vmul.f32 %v3955, %v4099
        %v4132 = vmul.f32 %v3957, %v4100
        %v4133 = vmul.f32 %v3959, %v4101
        %v4134 = vmul.f32 %v3961, %v4102
        %v4135 = vmul.f32 %v3963, %v4103
        %v4136 = vmul.f32 %v3965, %v4104
        %v4137 = vmul.f32 %v3967, %v4105
        %v4138 = vmul.f32 %v3969, %v4106
        %v4139 = vmul.f32 %v3971, %v4107
        %v4140 = vmul.f32 %v3973, %v4108
        %v4141 = vmul.f32 %v3975, %v4109
        %v4142 = vmul.f32 %v3977, %v4110
        %v4143 = vmul.f32 %v3979, %v4111
        %v4144 = vmul.f32 %v3981, %v4112
        %v4145 = vmul.f32 %v3983, %v4113
        %v4146 = vmul.f32 %v3985, %v4114
        %v4147 = vmul.f32 %v3987, %v4115
        %v4148 = vpack.c.bf16 %v4116, %v4116
        %v4149 = vpack.c.bf16 %v4117, %v4117
        %v4150 = vpack.c.bf16 %v4118, %v4118
        %v4151 = vpack.c.bf16 %v4119, %v4119
        %v4152 = vpack.c.bf16 %v4120, %v4120
        %v4153 = vpack.c.bf16 %v4121, %v4121
        %v4154 = vpack.c.bf16 %v4122, %v4122
        %v4155 = vpack.c.bf16 %v4123, %v4123
        %v4156 = vpack.c.bf16 %v4124, %v4124
        %v4157 = vpack.c.bf16 %v4125, %v4125
        %v4158 = vpack.c.bf16 %v4126, %v4126
        %v4159 = vpack.c.bf16 %v4127, %v4127
        %v4160 = vpack.c.bf16 %v4128, %v4128
        %v4161 = vpack.c.bf16 %v4129, %v4129
        %v4162 = vpack.c.bf16 %v4130, %v4130
        %v4163 = vpack.c.bf16 %v4131, %v4131
        %v4164 = vpack.c.bf16 %v4132, %v4132
        %v4165 = vpack.c.bf16 %v4133, %v4133
        %v4166 = vpack.c.bf16 %v4134, %v4134
        %v4167 = vpack.c.bf16 %v4135, %v4135
        %v4168 = vpack.c.bf16 %v4136, %v4136
        %v4169 = vpack.c.bf16 %v4137, %v4137
        %v4170 = vpack.c.bf16 %v4138, %v4138
        %v4171 = vpack.c.bf16 %v4139, %v4139
        %v4172 = vpack.c.bf16 %v4140, %v4140
        %v4173 = vpack.c.bf16 %v4141, %v4141
        %v4174 = vpack.c.bf16 %v4142, %v4142
        %v4175 = vpack.c.bf16 %v4143, %v4143
        %v4176 = vpack.c.bf16 %v4144, %v4144
        %v4177 = vpack.c.bf16 %v4145, %v4145
        %v4178 = vpack.c.bf16 %v4146, %v4146
        %v4179 = vpack.c.bf16 %v4147, %v4147
        %v4184 = vunpack.c.l.b16 %v4148
        %v4185 = vunpack.c.l.b16 %v4149
        %v4186 = vunpack.c.l.b16 %v4150
        %v4187 = vunpack.c.l.b16 %v4151
        %v4188 = vpack.c.b16 %v4185, %v4184
        %v4189 = vpack.c.b16 %v4187, %v4186
        %4190 = vrot.lane.b32.xlu0 %v2102, 112
        %v4191 = vpop.permute.xlu0 %4190
        %4192 = vrot.lane.b32.xlu0 %v2103, 112
        %v4193 = vpop.permute.xlu0 %4192
        %v4197 = vsel %vm483, %v4188, 0
        %v4200 = vsel %vm483, %v4189, 0
        %4202 = vmatpush.bf16.msra.mxu0 0
        %4203 = vmatpush.bf16.msra.mxu0 0
        %4204 = vmatpush.bf16.msra.mxu0 0
        %4205 = vmatpush.bf16.msra.mxu0 0
        %4206 = vmatpush.bf16.msra.mxu0 0
        %4207 = vmatpush.bf16.msra.mxu0 0
        %4208 = vmatpush.bf16.msra.mxu0 %v4193
        %4209 = vmatpush.bf16.msra.mxu0 %v4191
        %4210 = vmatmul.bf16.gmra.mxu0 %v4197
        %v4211 = vpop.f32.mrf.mxu0
        %v4212 = vadd.f32 0.0, %v4211
        %v4213 = vpop.f32.mrf.mxu0
        %v4214 = vadd.f32 0.0, %v4213
        %4215 = vmatmul.bf16.gmra.mxu0 %v4200
        %v4216 = vpop.f32.mrf.mxu0
        %v4217 = vadd.f32 0.0, %v4216
        %v4218 = vpop.f32.mrf.mxu0
        %v4219 = vadd.f32 0.0, %v4218
        %4220 = vdwg.mxu0
        %v4225 = vunpack.c.l.b16 %v4152
        %v4226 = vunpack.c.l.b16 %v4153
        %v4227 = vunpack.c.l.b16 %v4154
        %v4228 = vunpack.c.l.b16 %v4155
        %v4229 = vpack.c.b16 %v4226, %v4225
        %v4230 = vpack.c.b16 %v4228, %v4227
        %4231 = vrot.lane.b32.xlu0 %v2149, 112
        %v4232 = vpop.permute.xlu0 %4231
        %4233 = vrot.lane.b32.xlu0 %v2150, 112
        %v4234 = vpop.permute.xlu0 %4233
        %v4238 = vsel %vm483, %v4229, 0
        %v4241 = vsel %vm483, %v4230, 0
        %4243 = vmatpush.bf16.msra.mxu0 0
        %4244 = vmatpush.bf16.msra.mxu0 0
        %4245 = vmatpush.bf16.msra.mxu0 0
        %4246 = vmatpush.bf16.msra.mxu0 0
        %4247 = vmatpush.bf16.msra.mxu0 0
        %4248 = vmatpush.bf16.msra.mxu0 0
        %4249 = vmatpush.bf16.msra.mxu0 %v4234
        %4250 = vmatpush.bf16.msra.mxu0 %v4232
        %4251 = vmatmul.bf16.gmra.mxu0 %v4238
        %v4252 = vpop.f32.mrf.mxu0
        %v4253 = vadd.f32 0.0, %v4252
        %v4254 = vpop.f32.mrf.mxu0
        %v4255 = vadd.f32 0.0, %v4254
        %4256 = vmatmul.bf16.gmra.mxu0 %v4241
        %v4257 = vpop.f32.mrf.mxu0
        %v4258 = vadd.f32 0.0, %v4257
        %v4259 = vpop.f32.mrf.mxu0
        %v4260 = vadd.f32 0.0, %v4259
        %4261 = vdwg.mxu0
        %v4266 = vunpack.c.l.b16 %v4156
        %v4267 = vunpack.c.l.b16 %v4157
        %v4268 = vunpack.c.l.b16 %v4158
        %v4269 = vunpack.c.l.b16 %v4159
        %v4270 = vpack.c.b16 %v4267, %v4266
        %v4271 = vpack.c.b16 %v4269, %v4268
        %4272 = vrot.lane.b32.xlu0 %v2196, 112
        %v4273 = vpop.permute.xlu0 %4272
        %4274 = vrot.lane.b32.xlu0 %v2197, 112
        %v4275 = vpop.permute.xlu0 %4274
        %v4279 = vsel %vm483, %v4270, 0
        %v4282 = vsel %vm483, %v4271, 0
        %4284 = vmatpush.bf16.msra.mxu0 0
        %4285 = vmatpush.bf16.msra.mxu0 0
        %4286 = vmatpush.bf16.msra.mxu0 0
        %4287 = vmatpush.bf16.msra.mxu0 0
        %4288 = vmatpush.bf16.msra.mxu0 0
        %4289 = vmatpush.bf16.msra.mxu0 0
        %4290 = vmatpush.bf16.msra.mxu0 %v4275
        %4291 = vmatpush.bf16.msra.mxu0 %v4273
        %4292 = vmatmul.bf16.gmra.mxu0 %v4279
        %v4293 = vpop.f32.mrf.mxu0
        %v4294 = vadd.f32 0.0, %v4293
        %v4295 = vpop.f32.mrf.mxu0
        %v4296 = vadd.f32 0.0, %v4295
        %4297 = vmatmul.bf16.gmra.mxu0 %v4282
        %v4298 = vpop.f32.mrf.mxu0
        %v4299 = vadd.f32 0.0, %v4298
        %v4300 = vpop.f32.mrf.mxu0
        %v4301 = vadd.f32 0.0, %v4300
        %4302 = vdwg.mxu0
        %v4307 = vunpack.c.l.b16 %v4160
        %v4308 = vunpack.c.l.b16 %v4161
        %v4309 = vunpack.c.l.b16 %v4162
        %v4310 = vunpack.c.l.b16 %v4163
        %v4311 = vpack.c.b16 %v4308, %v4307
        %v4312 = vpack.c.b16 %v4310, %v4309
        %4313 = vrot.lane.b32.xlu0 %v2243, 112
        %v4314 = vpop.permute.xlu0 %4313
        %4315 = vrot.lane.b32.xlu0 %v2244, 112
        %v4316 = vpop.permute.xlu0 %4315
        %v4320 = vsel %vm483, %v4311, 0
        %v4323 = vsel %vm483, %v4312, 0
        %4325 = vmatpush.bf16.msra.mxu0 0
        %4326 = vmatpush.bf16.msra.mxu0 0
        %4327 = vmatpush.bf16.msra.mxu0 0
        %4328 = vmatpush.bf16.msra.mxu0 0
        %4329 = vmatpush.bf16.msra.mxu0 0
        %4330 = vmatpush.bf16.msra.mxu0 0
        %4331 = vmatpush.bf16.msra.mxu0 %v4316
        %4332 = vmatpush.bf16.msra.mxu0 %v4314
        %4333 = vmatmul.bf16.gmra.mxu0 %v4320
        %v4334 = vpop.f32.mrf.mxu0
        %v4335 = vadd.f32 0.0, %v4334
        %v4336 = vpop.f32.mrf.mxu0
        %v4337 = vadd.f32 0.0, %v4336
        %4338 = vmatmul.bf16.gmra.mxu0 %v4323
        %v4339 = vpop.f32.mrf.mxu0
        %v4340 = vadd.f32 0.0, %v4339
        %v4341 = vpop.f32.mrf.mxu0
        %v4342 = vadd.f32 0.0, %v4341
        %4343 = vdwg.mxu0
        %v4348 = vunpack.c.l.b16 %v4164
        %v4349 = vunpack.c.l.b16 %v4165
        %v4350 = vunpack.c.l.b16 %v4166
        %v4351 = vunpack.c.l.b16 %v4167
        %v4352 = vpack.c.b16 %v4349, %v4348
        %v4353 = vpack.c.b16 %v4351, %v4350
        %4354 = vrot.lane.b32.xlu0 %v2290, 112
        %v4355 = vpop.permute.xlu0 %4354
        %4356 = vrot.lane.b32.xlu0 %v2291, 112
        %v4357 = vpop.permute.xlu0 %4356
        %v4361 = vsel %vm483, %v4352, 0
        %v4364 = vsel %vm483, %v4353, 0
        %4366 = vmatpush.bf16.msra.mxu0 0
        %4367 = vmatpush.bf16.msra.mxu0 0
        %4368 = vmatpush.bf16.msra.mxu0 0
        %4369 = vmatpush.bf16.msra.mxu0 0
        %4370 = vmatpush.bf16.msra.mxu0 0
        %4371 = vmatpush.bf16.msra.mxu0 0
        %4372 = vmatpush.bf16.msra.mxu0 %v4357
        %4373 = vmatpush.bf16.msra.mxu0 %v4355
        %4374 = vmatmul.bf16.gmra.mxu0 %v4361
        %v4375 = vpop.f32.mrf.mxu0
        %v4376 = vadd.f32 0.0, %v4375
        %v4377 = vpop.f32.mrf.mxu0
        %v4378 = vadd.f32 0.0, %v4377
        %4379 = vmatmul.bf16.gmra.mxu0 %v4364
        %v4380 = vpop.f32.mrf.mxu0
        %v4381 = vadd.f32 0.0, %v4380
        %v4382 = vpop.f32.mrf.mxu0
        %v4383 = vadd.f32 0.0, %v4382
        %4384 = vdwg.mxu0
        %v4389 = vunpack.c.l.b16 %v4168
        %v4390 = vunpack.c.l.b16 %v4169
        %v4391 = vunpack.c.l.b16 %v4170
        %v4392 = vunpack.c.l.b16 %v4171
        %v4393 = vpack.c.b16 %v4390, %v4389
        %v4394 = vpack.c.b16 %v4392, %v4391
        %4395 = vrot.lane.b32.xlu0 %v2337, 112
        %v4396 = vpop.permute.xlu0 %4395
        %4397 = vrot.lane.b32.xlu0 %v2338, 112
        %v4398 = vpop.permute.xlu0 %4397
        %v4402 = vsel %vm483, %v4393, 0
        %v4405 = vsel %vm483, %v4394, 0
        %4407 = vmatpush.bf16.msra.mxu0 0
        %4408 = vmatpush.bf16.msra.mxu0 0
        %4409 = vmatpush.bf16.msra.mxu0 0
        %4410 = vmatpush.bf16.msra.mxu0 0
        %4411 = vmatpush.bf16.msra.mxu0 0
        %4412 = vmatpush.bf16.msra.mxu0 0
        %4413 = vmatpush.bf16.msra.mxu0 %v4398
        %4414 = vmatpush.bf16.msra.mxu0 %v4396
        %4415 = vmatmul.bf16.gmra.mxu0 %v4402
        %v4416 = vpop.f32.mrf.mxu0
        %v4417 = vadd.f32 0.0, %v4416
        %v4418 = vpop.f32.mrf.mxu0
        %v4419 = vadd.f32 0.0, %v4418
        %4420 = vmatmul.bf16.gmra.mxu0 %v4405
        %v4421 = vpop.f32.mrf.mxu0
        %v4422 = vadd.f32 0.0, %v4421
        %v4423 = vpop.f32.mrf.mxu0
        %v4424 = vadd.f32 0.0, %v4423
        %4425 = vdwg.mxu0
        %v4430 = vunpack.c.l.b16 %v4172
        %v4431 = vunpack.c.l.b16 %v4173
        %v4432 = vunpack.c.l.b16 %v4174
        %v4433 = vunpack.c.l.b16 %v4175
        %v4434 = vpack.c.b16 %v4431, %v4430
        %v4435 = vpack.c.b16 %v4433, %v4432
        %4436 = vrot.lane.b32.xlu0 %v2384, 112
        %v4437 = vpop.permute.xlu0 %4436
        %4438 = vrot.lane.b32.xlu0 %v2385, 112
        %v4439 = vpop.permute.xlu0 %4438
        %v4443 = vsel %vm483, %v4434, 0
        %v4446 = vsel %vm483, %v4435, 0
        %4448 = vmatpush.bf16.msra.mxu0 0
        %4449 = vmatpush.bf16.msra.mxu0 0
        %4450 = vmatpush.bf16.msra.mxu0 0
        %4451 = vmatpush.bf16.msra.mxu0 0
        %4452 = vmatpush.bf16.msra.mxu0 0
        %4453 = vmatpush.bf16.msra.mxu0 0
        %4454 = vmatpush.bf16.msra.mxu0 %v4439
        %4455 = vmatpush.bf16.msra.mxu0 %v4437
        %4456 = vmatmul.bf16.gmra.mxu0 %v4443
        %v4457 = vpop.f32.mrf.mxu0
        %v4458 = vadd.f32 0.0, %v4457
        %v4459 = vpop.f32.mrf.mxu0
        %v4460 = vadd.f32 0.0, %v4459
        %4461 = vmatmul.bf16.gmra.mxu0 %v4446
        %v4462 = vpop.f32.mrf.mxu0
        %v4463 = vadd.f32 0.0, %v4462
        %v4464 = vpop.f32.mrf.mxu0
        %v4465 = vadd.f32 0.0, %v4464
        %4466 = vdwg.mxu0
        %v4471 = vunpack.c.l.b16 %v4176
        %v4472 = vunpack.c.l.b16 %v4177
        %v4473 = vunpack.c.l.b16 %v4178
        %v4474 = vunpack.c.l.b16 %v4179
        %v4475 = vpack.c.b16 %v4472, %v4471
        %v4476 = vpack.c.b16 %v4474, %v4473
        %4477 = vrot.lane.b32.xlu0 %v2431, 112
        %v4478 = vpop.permute.xlu0 %4477
        %4479 = vrot.lane.b32.xlu0 %v2432, 112
        %v4480 = vpop.permute.xlu0 %4479
        %v4484 = vsel %vm483, %v4475, 0
        %v4487 = vsel %vm483, %v4476, 0
        %4489 = vmatpush.bf16.msra.mxu0 0
        %4490 = vmatpush.bf16.msra.mxu0 0
        %4491 = vmatpush.bf16.msra.mxu0 0
        %4492 = vmatpush.bf16.msra.mxu0 0
        %4493 = vmatpush.bf16.msra.mxu0 0
        %4494 = vmatpush.bf16.msra.mxu0 0
        %4495 = vmatpush.bf16.msra.mxu0 %v4480
        %4496 = vmatpush.bf16.msra.mxu0 %v4478
        %4497 = vmatmul.bf16.gmra.mxu0 %v4484
        %v4498 = vpop.f32.mrf.mxu0
        %v4499 = vadd.f32 0.0, %v4498
        %v4500 = vpop.f32.mrf.mxu0
        %v4501 = vadd.f32 0.0, %v4500
        %4502 = vmatmul.bf16.gmra.mxu0 %v4487
        %v4503 = vpop.f32.mrf.mxu0
        %v4504 = vadd.f32 0.0, %v4503
        %v4505 = vpop.f32.mrf.mxu0
        %v4506 = vadd.f32 0.0, %v4505
        %4507 = vdwg.mxu0
        %4508 = vrot.lane.b32.xlu0 %v1299, 104
        %v4509 = vpop.permute.xlu0 %4508
        %4510 = vrot.lane.b32.xlu0 %v1300, 104
        %v4511 = vpop.permute.xlu0 %4510
        %4512 = vrot.lane.b32.xlu0 %v1309, 104
        %v4513 = vpop.permute.xlu0 %4512
        %4514 = vrot.lane.b32.xlu0 %v1310, 104
        %v4515 = vpop.permute.xlu0 %4514
        %v4517 = vsel %vm1311, %v4509, 0
        %v4520 = vsel %vm1311, %v4511, 0
        %v4523 = vsel %vm1311, %v4513, 0
        %v4526 = vsel %vm1311, %v4515, 0
        %4528 = vmatpush.bf16.xpose.msra.mxu0 0
        %4529 = vmatpush.bf16.xpose.msra.mxu0 0
        %4530 = vmatpush.bf16.xpose.msra.mxu0 0
        %4531 = vmatpush.bf16.xpose.msra.mxu0 0
        %4532 = vmatpush.bf16.xpose.msra.mxu0 0
        %4533 = vmatpush.bf16.xpose.msra.mxu0 0
        %4534 = vmatpush.bf16.xpose.msra.mxu0 %v4526
        %4535 = vmatpush.bf16.xpose.msra.mxu0 %v4523
        %4536 = vmatmul.bf16.gmra.mxu0 %v4517
        %v4537 = vpop.f32.mrf.mxu0
        %v4538 = vadd.f32 0.0, %v4537
        %v4539 = vpop.f32.mrf.mxu0
        %v4540 = vadd.f32 0.0, %v4539
        %4541 = vmatmul.bf16.gmra.mxu0 %v4520
        %v4542 = vpop.f32.mrf.mxu0
        %v4543 = vadd.f32 0.0, %v4542
        %v4544 = vpop.f32.mrf.mxu0
        %v4545 = vadd.f32 0.0, %v4544
        %4546 = vdwg.mxu0
        %4547 = vrot.lane.b32.xlu0 %v1351, 104
        %v4548 = vpop.permute.xlu0 %4547
        %4549 = vrot.lane.b32.xlu0 %v1352, 104
        %v4550 = vpop.permute.xlu0 %4549
        %4551 = vrot.lane.b32.xlu0 %v1361, 104
        %v4552 = vpop.permute.xlu0 %4551
        %4553 = vrot.lane.b32.xlu0 %v1362, 104
        %v4554 = vpop.permute.xlu0 %4553
        %v4556 = vsel %vm1311, %v4548, 0
        %v4559 = vsel %vm1311, %v4550, 0
        %v4562 = vsel %vm1311, %v4552, 0
        %v4565 = vsel %vm1311, %v4554, 0
        %4567 = vmatpush.bf16.xpose.msra.mxu0 0
        %4568 = vmatpush.bf16.xpose.msra.mxu0 0
        %4569 = vmatpush.bf16.xpose.msra.mxu0 0
        %4570 = vmatpush.bf16.xpose.msra.mxu0 0
        %4571 = vmatpush.bf16.xpose.msra.mxu0 0
        %4572 = vmatpush.bf16.xpose.msra.mxu0 0
        %4573 = vmatpush.bf16.xpose.msra.mxu0 %v4565
        %4574 = vmatpush.bf16.xpose.msra.mxu0 %v4562
        %4575 = vmatmul.bf16.gmra.mxu0 %v4556
        %v4576 = vpop.f32.mrf.mxu0
        %v4577 = vadd.f32 0.0, %v4576
        %v4578 = vpop.f32.mrf.mxu0
        %v4579 = vadd.f32 0.0, %v4578
        %4580 = vmatmul.bf16.gmra.mxu0 %v4559
        %v4581 = vpop.f32.mrf.mxu0
        %v4582 = vadd.f32 0.0, %v4581
        %v4583 = vpop.f32.mrf.mxu0
        %v4584 = vadd.f32 0.0, %v4583
        %4585 = vdwg.mxu0
        %4586 = vrot.lane.b32.xlu0 %v1402, 104
        %v4587 = vpop.permute.xlu0 %4586
        %4588 = vrot.lane.b32.xlu0 %v1403, 104
        %v4589 = vpop.permute.xlu0 %4588
        %4590 = vrot.lane.b32.xlu0 %v1412, 104
        %v4591 = vpop.permute.xlu0 %4590
        %4592 = vrot.lane.b32.xlu0 %v1413, 104
        %v4593 = vpop.permute.xlu0 %4592
        %v4595 = vsel %vm1311, %v4587, 0
        %v4598 = vsel %vm1311, %v4589, 0
        %v4601 = vsel %vm1311, %v4591, 0
        %v4604 = vsel %vm1311, %v4593, 0
        %4606 = vmatpush.bf16.xpose.msra.mxu0 0
        %4607 = vmatpush.bf16.xpose.msra.mxu0 0
        %4608 = vmatpush.bf16.xpose.msra.mxu0 0
        %4609 = vmatpush.bf16.xpose.msra.mxu0 0
        %4610 = vmatpush.bf16.xpose.msra.mxu0 0
        %4611 = vmatpush.bf16.xpose.msra.mxu0 0
        %4612 = vmatpush.bf16.xpose.msra.mxu0 %v4604
        %4613 = vmatpush.bf16.xpose.msra.mxu0 %v4601
        %4614 = vmatmul.bf16.gmra.mxu0 %v4595
        %v4615 = vpop.f32.mrf.mxu0
        %v4616 = vadd.f32 0.0, %v4615
        %v4617 = vpop.f32.mrf.mxu0
        %v4618 = vadd.f32 0.0, %v4617
        %4619 = vmatmul.bf16.gmra.mxu0 %v4598
        %v4620 = vpop.f32.mrf.mxu0
        %v4621 = vadd.f32 0.0, %v4620
        %v4622 = vpop.f32.mrf.mxu0
        %v4623 = vadd.f32 0.0, %v4622
        %4624 = vdwg.mxu0
        %4625 = vrot.lane.b32.xlu0 %v1453, 104
        %v4626 = vpop.permute.xlu0 %4625
        %4627 = vrot.lane.b32.xlu0 %v1454, 104
        %v4628 = vpop.permute.xlu0 %4627
        %4629 = vrot.lane.b32.xlu0 %v1463, 104
        %v4630 = vpop.permute.xlu0 %4629
        %4631 = vrot.lane.b32.xlu0 %v1464, 104
        %v4632 = vpop.permute.xlu0 %4631
        %v4634 = vsel %vm1311, %v4626, 0
        %v4637 = vsel %vm1311, %v4628, 0
        %v4640 = vsel %vm1311, %v4630, 0
        %v4643 = vsel %vm1311, %v4632, 0
        %4645 = vmatpush.bf16.xpose.msra.mxu0 0
        %4646 = vmatpush.bf16.xpose.msra.mxu0 0
        %4647 = vmatpush.bf16.xpose.msra.mxu0 0
        %4648 = vmatpush.bf16.xpose.msra.mxu0 0
        %4649 = vmatpush.bf16.xpose.msra.mxu0 0
        %4650 = vmatpush.bf16.xpose.msra.mxu0 0
        %4651 = vmatpush.bf16.xpose.msra.mxu0 %v4643
        %4652 = vmatpush.bf16.xpose.msra.mxu0 %v4640
        %4653 = vmatmul.bf16.gmra.mxu0 %v4634
        %v4654 = vpop.f32.mrf.mxu0
        %v4655 = vadd.f32 0.0, %v4654
        %v4656 = vpop.f32.mrf.mxu0
        %v4657 = vadd.f32 0.0, %v4656
        %4658 = vmatmul.bf16.gmra.mxu0 %v4637
        %v4659 = vpop.f32.mrf.mxu0
        %v4660 = vadd.f32 0.0, %v4659
        %v4661 = vpop.f32.mrf.mxu0
        %v4662 = vadd.f32 0.0, %v4661
        %4663 = vdwg.mxu0
        %4664 = vrot.lane.b32.xlu0 %v1504, 104
        %v4665 = vpop.permute.xlu0 %4664
        %4666 = vrot.lane.b32.xlu0 %v1505, 104
        %v4667 = vpop.permute.xlu0 %4666
        %4668 = vrot.lane.b32.xlu0 %v1514, 104
        %v4669 = vpop.permute.xlu0 %4668
        %4670 = vrot.lane.b32.xlu0 %v1515, 104
        %v4671 = vpop.permute.xlu0 %4670
        %v4673 = vsel %vm1311, %v4665, 0
        %v4676 = vsel %vm1311, %v4667, 0
        %v4679 = vsel %vm1311, %v4669, 0
        %v4682 = vsel %vm1311, %v4671, 0
        %4684 = vmatpush.bf16.xpose.msra.mxu0 0
        %4685 = vmatpush.bf16.xpose.msra.mxu0 0
        %4686 = vmatpush.bf16.xpose.msra.mxu0 0
        %4687 = vmatpush.bf16.xpose.msra.mxu0 0
        %4688 = vmatpush.bf16.xpose.msra.mxu0 0
        %4689 = vmatpush.bf16.xpose.msra.mxu0 0
        %4690 = vmatpush.bf16.xpose.msra.mxu0 %v4682
        %4691 = vmatpush.bf16.xpose.msra.mxu0 %v4679
        %4692 = vmatmul.bf16.gmra.mxu0 %v4673
        %v4693 = vpop.f32.mrf.mxu0
        %v4694 = vadd.f32 0.0, %v4693
        %v4695 = vpop.f32.mrf.mxu0
        %v4696 = vadd.f32 0.0, %v4695
        %4697 = vmatmul.bf16.gmra.mxu0 %v4676
        %v4698 = vpop.f32.mrf.mxu0
        %v4699 = vadd.f32 0.0, %v4698
        %v4700 = vpop.f32.mrf.mxu0
        %v4701 = vadd.f32 0.0, %v4700
        %4702 = vdwg.mxu0
        %4703 = vrot.lane.b32.xlu0 %v1555, 104
        %v4704 = vpop.permute.xlu0 %4703
        %4705 = vrot.lane.b32.xlu0 %v1556, 104
        %v4706 = vpop.permute.xlu0 %4705
        %4707 = vrot.lane.b32.xlu0 %v1565, 104
        %v4708 = vpop.permute.xlu0 %4707
        %4709 = vrot.lane.b32.xlu0 %v1566, 104
        %v4710 = vpop.permute.xlu0 %4709
        %v4712 = vsel %vm1311, %v4704, 0
        %v4715 = vsel %vm1311, %v4706, 0
        %v4718 = vsel %vm1311, %v4708, 0
        %v4721 = vsel %vm1311, %v4710, 0
        %4723 = vmatpush.bf16.xpose.msra.mxu0 0
        %4724 = vmatpush.bf16.xpose.msra.mxu0 0
        %4725 = vmatpush.bf16.xpose.msra.mxu0 0
        %4726 = vmatpush.bf16.xpose.msra.mxu0 0
        %4727 = vmatpush.bf16.xpose.msra.mxu0 0
        %4728 = vmatpush.bf16.xpose.msra.mxu0 0
        %4729 = vmatpush.bf16.xpose.msra.mxu0 %v4721
        %4730 = vmatpush.bf16.xpose.msra.mxu0 %v4718
        %4731 = vmatmul.bf16.gmra.mxu0 %v4712
        %v4732 = vpop.f32.mrf.mxu0
        %v4733 = vadd.f32 0.0, %v4732
        %v4734 = vpop.f32.mrf.mxu0
        %v4735 = vadd.f32 0.0, %v4734
        %4736 = vmatmul.bf16.gmra.mxu0 %v4715
        %v4737 = vpop.f32.mrf.mxu0
        %v4738 = vadd.f32 0.0, %v4737
        %v4739 = vpop.f32.mrf.mxu0
        %v4740 = vadd.f32 0.0, %v4739
        %4741 = vdwg.mxu0
        %4742 = vrot.lane.b32.xlu0 %v1606, 104
        %v4743 = vpop.permute.xlu0 %4742
        %4744 = vrot.lane.b32.xlu0 %v1607, 104
        %v4745 = vpop.permute.xlu0 %4744
        %4746 = vrot.lane.b32.xlu0 %v1616, 104
        %v4747 = vpop.permute.xlu0 %4746
        %4748 = vrot.lane.b32.xlu0 %v1617, 104
        %v4749 = vpop.permute.xlu0 %4748
        %v4751 = vsel %vm1311, %v4743, 0
        %v4754 = vsel %vm1311, %v4745, 0
        %v4757 = vsel %vm1311, %v4747, 0
        %v4760 = vsel %vm1311, %v4749, 0
        %4762 = vmatpush.bf16.xpose.msra.mxu0 0
        %4763 = vmatpush.bf16.xpose.msra.mxu0 0
        %4764 = vmatpush.bf16.xpose.msra.mxu0 0
        %4765 = vmatpush.bf16.xpose.msra.mxu0 0
        %4766 = vmatpush.bf16.xpose.msra.mxu0 0
        %4767 = vmatpush.bf16.xpose.msra.mxu0 0
        %4768 = vmatpush.bf16.xpose.msra.mxu0 %v4760
        %4769 = vmatpush.bf16.xpose.msra.mxu0 %v4757
        %4770 = vmatmul.bf16.gmra.mxu0 %v4751
        %v4771 = vpop.f32.mrf.mxu0
        %v4772 = vadd.f32 0.0, %v4771
        %v4773 = vpop.f32.mrf.mxu0
        %v4774 = vadd.f32 0.0, %v4773
        %4775 = vmatmul.bf16.gmra.mxu0 %v4754
        %v4776 = vpop.f32.mrf.mxu0
        %v4777 = vadd.f32 0.0, %v4776
        %v4778 = vpop.f32.mrf.mxu0
        %v4779 = vadd.f32 0.0, %v4778
        %4780 = vdwg.mxu0
        %4781 = vrot.lane.b32.xlu0 %v1657, 104
        %v4782 = vpop.permute.xlu0 %4781
        %4783 = vrot.lane.b32.xlu0 %v1658, 104
        %v4784 = vpop.permute.xlu0 %4783
        %4785 = vrot.lane.b32.xlu0 %v1667, 104
        %v4786 = vpop.permute.xlu0 %4785
        %4787 = vrot.lane.b32.xlu0 %v1668, 104
        %v4788 = vpop.permute.xlu0 %4787
        %v4790 = vsel %vm1311, %v4782, 0
        %v4793 = vsel %vm1311, %v4784, 0
        %v4796 = vsel %vm1311, %v4786, 0
        %v4799 = vsel %vm1311, %v4788, 0
        %4801 = vmatpush.bf16.xpose.msra.mxu0 0
        %4802 = vmatpush.bf16.xpose.msra.mxu0 0
        %4803 = vmatpush.bf16.xpose.msra.mxu0 0
        %4804 = vmatpush.bf16.xpose.msra.mxu0 0
        %4805 = vmatpush.bf16.xpose.msra.mxu0 0
        %4806 = vmatpush.bf16.xpose.msra.mxu0 0
        %4807 = vmatpush.bf16.xpose.msra.mxu0 %v4799
        %4808 = vmatpush.bf16.xpose.msra.mxu0 %v4796
        %4809 = vmatmul.bf16.gmra.mxu0 %v4790
        %v4810 = vpop.f32.mrf.mxu0
        %v4811 = vadd.f32 0.0, %v4810
        %v4812 = vpop.f32.mrf.mxu0
        %v4813 = vadd.f32 0.0, %v4812
        %4814 = vmatmul.bf16.gmra.mxu0 %v4793
        %v4815 = vpop.f32.mrf.mxu0
        %v4816 = vadd.f32 0.0, %v4815
        %v4817 = vpop.f32.mrf.mxu0
        %v4818 = vadd.f32 0.0, %v4817
        %4819 = vdwg.mxu0
        %v4820 = vsel %vm483, %v4538, -inf
        %4821 = vmax.xlane.f32.xlu0 %v4820
        %v4822 = vpop.xlane.xlu0 %4821
        %v4823 = vsel %vm483, %v4540, -inf
        %4824 = vmax.xlane.f32.xlu0 %v4823
        %v4825 = vpop.xlane.xlu0 %4824
        %v4826 = vsel %vm483, %v4543, -inf
        %4827 = vmax.xlane.f32.xlu0 %v4826
        %v4828 = vpop.xlane.xlu0 %4827
        %v4829 = vsel %vm483, %v4545, -inf
        %4830 = vmax.xlane.f32.xlu0 %v4829
        %v4831 = vpop.xlane.xlu0 %4830
        %v4832 = vsel %vm483, %v4577, -inf
        %4833 = vmax.xlane.f32.xlu0 %v4832
        %v4834 = vpop.xlane.xlu0 %4833
        %v4835 = vsel %vm483, %v4579, -inf
        %4836 = vmax.xlane.f32.xlu0 %v4835
        %v4837 = vpop.xlane.xlu0 %4836
        %v4838 = vsel %vm483, %v4582, -inf
        %4839 = vmax.xlane.f32.xlu0 %v4838
        %v4840 = vpop.xlane.xlu0 %4839
        %v4841 = vsel %vm483, %v4584, -inf
        %4842 = vmax.xlane.f32.xlu0 %v4841
        %v4843 = vpop.xlane.xlu0 %4842
        %v4844 = vsel %vm483, %v4616, -inf
        %4845 = vmax.xlane.f32.xlu0 %v4844
        %v4846 = vpop.xlane.xlu0 %4845
        %v4847 = vsel %vm483, %v4618, -inf
        %4848 = vmax.xlane.f32.xlu0 %v4847
        %v4849 = vpop.xlane.xlu0 %4848
        %v4850 = vsel %vm483, %v4621, -inf
        %4851 = vmax.xlane.f32.xlu0 %v4850
        %v4852 = vpop.xlane.xlu0 %4851
        %v4853 = vsel %vm483, %v4623, -inf
        %4854 = vmax.xlane.f32.xlu0 %v4853
        %v4855 = vpop.xlane.xlu0 %4854
        %v4856 = vsel %vm483, %v4655, -inf
        %4857 = vmax.xlane.f32.xlu0 %v4856
        %v4858 = vpop.xlane.xlu0 %4857
        %v4859 = vsel %vm483, %v4657, -inf
        %4860 = vmax.xlane.f32.xlu0 %v4859
        %v4861 = vpop.xlane.xlu0 %4860
        %v4862 = vsel %vm483, %v4660, -inf
        %4863 = vmax.xlane.f32.xlu0 %v4862
        %v4864 = vpop.xlane.xlu0 %4863
        %v4865 = vsel %vm483, %v4662, -inf
        %4866 = vmax.xlane.f32.xlu0 %v4865
        %v4867 = vpop.xlane.xlu0 %4866
        %v4868 = vsel %vm483, %v4694, -inf
        %4869 = vmax.xlane.f32.xlu0 %v4868
        %v4870 = vpop.xlane.xlu0 %4869
        %v4871 = vsel %vm483, %v4696, -inf
        %4872 = vmax.xlane.f32.xlu0 %v4871
        %v4873 = vpop.xlane.xlu0 %4872
        %v4874 = vsel %vm483, %v4699, -inf
        %4875 = vmax.xlane.f32.xlu0 %v4874
        %v4876 = vpop.xlane.xlu0 %4875
        %v4877 = vsel %vm483, %v4701, -inf
        %4878 = vmax.xlane.f32.xlu0 %v4877
        %v4879 = vpop.xlane.xlu0 %4878
        %v4880 = vsel %vm483, %v4733, -inf
        %4881 = vmax.xlane.f32.xlu0 %v4880
        %v4882 = vpop.xlane.xlu0 %4881
        %v4883 = vsel %vm483, %v4735, -inf
        %4884 = vmax.xlane.f32.xlu0 %v4883
        %v4885 = vpop.xlane.xlu0 %4884
        %v4886 = vsel %vm483, %v4738, -inf
        %4887 = vmax.xlane.f32.xlu0 %v4886
        %v4888 = vpop.xlane.xlu0 %4887
        %v4889 = vsel %vm483, %v4740, -inf
        %4890 = vmax.xlane.f32.xlu0 %v4889
        %v4891 = vpop.xlane.xlu0 %4890
        %v4892 = vsel %vm483, %v4772, -inf
        %4893 = vmax.xlane.f32.xlu0 %v4892
        %v4894 = vpop.xlane.xlu0 %4893
        %v4895 = vsel %vm483, %v4774, -inf
        %4896 = vmax.xlane.f32.xlu0 %v4895
        %v4897 = vpop.xlane.xlu0 %4896
        %v4898 = vsel %vm483, %v4777, -inf
        %4899 = vmax.xlane.f32.xlu0 %v4898
        %v4900 = vpop.xlane.xlu0 %4899
        %v4901 = vsel %vm483, %v4779, -inf
        %4902 = vmax.xlane.f32.xlu0 %v4901
        %v4903 = vpop.xlane.xlu0 %4902
        %v4904 = vsel %vm483, %v4811, -inf
        %4905 = vmax.xlane.f32.xlu0 %v4904
        %v4906 = vpop.xlane.xlu0 %4905
        %v4907 = vsel %vm483, %v4813, -inf
        %4908 = vmax.xlane.f32.xlu0 %v4907
        %v4909 = vpop.xlane.xlu0 %4908
        %v4910 = vsel %vm483, %v4816, -inf
        %4911 = vmax.xlane.f32.xlu0 %v4910
        %v4912 = vpop.xlane.xlu0 %4911
        %v4913 = vsel %vm483, %v4818, -inf
        %4914 = vmax.xlane.f32.xlu0 %v4913
        %v4915 = vpop.xlane.xlu0 %4914
        %v4916 = vsub.f32 %v4538, %v4822
        %v4917 = vsub.f32 %v4540, %v4825
        %v4918 = vsub.f32 %v4543, %v4828
        %v4919 = vsub.f32 %v4545, %v4831
        %v4920 = vsub.f32 %v4577, %v4834
        %v4921 = vsub.f32 %v4579, %v4837
        %v4922 = vsub.f32 %v4582, %v4840
        %v4923 = vsub.f32 %v4584, %v4843
        %v4924 = vsub.f32 %v4616, %v4846
        %v4925 = vsub.f32 %v4618, %v4849
        %v4926 = vsub.f32 %v4621, %v4852
        %v4927 = vsub.f32 %v4623, %v4855
        %v4928 = vsub.f32 %v4655, %v4858
        %v4929 = vsub.f32 %v4657, %v4861
        %v4930 = vsub.f32 %v4660, %v4864
        %v4931 = vsub.f32 %v4662, %v4867
        %v4932 = vsub.f32 %v4694, %v4870
        %v4933 = vsub.f32 %v4696, %v4873
        %v4934 = vsub.f32 %v4699, %v4876
        %v4935 = vsub.f32 %v4701, %v4879
        %v4936 = vsub.f32 %v4733, %v4882
        %v4937 = vsub.f32 %v4735, %v4885
        %v4938 = vsub.f32 %v4738, %v4888
        %v4939 = vsub.f32 %v4740, %v4891
        %v4940 = vsub.f32 %v4772, %v4894
        %v4941 = vsub.f32 %v4774, %v4897
        %v4942 = vsub.f32 %v4777, %v4900
        %v4943 = vsub.f32 %v4779, %v4903
        %v4944 = vsub.f32 %v4811, %v4906
        %v4945 = vsub.f32 %v4813, %v4909
        %v4946 = vsub.f32 %v4816, %v4912
        %v4947 = vsub.f32 %v4818, %v4915
        %v4948 = vmul.f32 %v4916, 1.442695
        %v4949 = vpow.pop %v4948
        %v4950 = vmul.f32 %v4917, 1.442695
        %v4951 = vpow.pop %v4950
        %v4952 = vmul.f32 %v4918, 1.442695
        %v4953 = vpow.pop %v4952
        %v4954 = vmul.f32 %v4919, 1.442695
        %v4955 = vpow.pop %v4954
        %v4956 = vmul.f32 %v4920, 1.442695
        %v4957 = vpow.pop %v4956
        %v4958 = vmul.f32 %v4921, 1.442695
        %v4959 = vpow.pop %v4958
        %v4960 = vmul.f32 %v4922, 1.442695
        %v4961 = vpow.pop %v4960
        %v4962 = vmul.f32 %v4923, 1.442695
        %v4963 = vpow.pop %v4962
        %v4964 = vmul.f32 %v4924, 1.442695
        %v4965 = vpow.pop %v4964
        %v4966 = vmul.f32 %v4925, 1.442695
        %v4967 = vpow.pop %v4966
        %v4968 = vmul.f32 %v4926, 1.442695
        %v4969 = vpow.pop %v4968
        %v4970 = vmul.f32 %v4927, 1.442695
        %v4971 = vpow.pop %v4970
        %v4972 = vmul.f32 %v4928, 1.442695
        %v4973 = vpow.pop %v4972
        %v4974 = vmul.f32 %v4929, 1.442695
        %v4975 = vpow.pop %v4974
        %v4976 = vmul.f32 %v4930, 1.442695
        %v4977 = vpow.pop %v4976
        %v4978 = vmul.f32 %v4931, 1.442695
        %v4979 = vpow.pop %v4978
        %v4980 = vmul.f32 %v4932, 1.442695
        %v4981 = vpow.pop %v4980
        %v4982 = vmul.f32 %v4933, 1.442695
        %v4983 = vpow.pop %v4982
        %v4984 = vmul.f32 %v4934, 1.442695
        %v4985 = vpow.pop %v4984
        %v4986 = vmul.f32 %v4935, 1.442695
        %v4987 = vpow.pop %v4986
        %v4988 = vmul.f32 %v4936, 1.442695
        %v4989 = vpow.pop %v4988
        %v4990 = vmul.f32 %v4937, 1.442695
        %v4991 = vpow.pop %v4990
        %v4992 = vmul.f32 %v4938, 1.442695
        %v4993 = vpow.pop %v4992
        %v4994 = vmul.f32 %v4939, 1.442695
        %v4995 = vpow.pop %v4994
        %v4996 = vmul.f32 %v4940, 1.442695
        %v4997 = vpow.pop %v4996
        %v4998 = vmul.f32 %v4941, 1.442695
        %v4999 = vpow.pop %v4998
        %v5000 = vmul.f32 %v4942, 1.442695
        %v5001 = vpow.pop %v5000
        %v5002 = vmul.f32 %v4943, 1.442695
        %v5003 = vpow.pop %v5002
        %v5004 = vmul.f32 %v4944, 1.442695
        %v5005 = vpow.pop %v5004
        %v5006 = vmul.f32 %v4945, 1.442695
        %v5007 = vpow.pop %v5006
        %v5008 = vmul.f32 %v4946, 1.442695
        %v5009 = vpow.pop %v5008
        %v5010 = vmul.f32 %v4947, 1.442695
        %v5011 = vpow.pop %v5010
        %v5012 = vsel %vm483, %v4949, 0.0
        %5013 = vadd.xlane.f32.xlu0 %v5012
        %v5014 = vpop.xlane.xlu0 %5013
        %v5015 = vsel %vm483, %v4951, 0.0
        %5016 = vadd.xlane.f32.xlu0 %v5015
        %v5017 = vpop.xlane.xlu0 %5016
        %v5018 = vsel %vm483, %v4953, 0.0
        %5019 = vadd.xlane.f32.xlu0 %v5018
        %v5020 = vpop.xlane.xlu0 %5019
        %v5021 = vsel %vm483, %v4955, 0.0
        %5022 = vadd.xlane.f32.xlu0 %v5021
        %v5023 = vpop.xlane.xlu0 %5022
        %v5024 = vsel %vm483, %v4957, 0.0
        %5025 = vadd.xlane.f32.xlu0 %v5024
        %v5026 = vpop.xlane.xlu0 %5025
        %v5027 = vsel %vm483, %v4959, 0.0
        %5028 = vadd.xlane.f32.xlu0 %v5027
        %v5029 = vpop.xlane.xlu0 %5028
        %v5030 = vsel %vm483, %v4961, 0.0
        %5031 = vadd.xlane.f32.xlu0 %v5030
        %v5032 = vpop.xlane.xlu0 %5031
        %v5033 = vsel %vm483, %v4963, 0.0
        %5034 = vadd.xlane.f32.xlu0 %v5033
        %v5035 = vpop.xlane.xlu0 %5034
        %v5036 = vsel %vm483, %v4965, 0.0
        %5037 = vadd.xlane.f32.xlu0 %v5036
        %v5038 = vpop.xlane.xlu0 %5037
        %v5039 = vsel %vm483, %v4967, 0.0
        %5040 = vadd.xlane.f32.xlu0 %v5039
        %v5041 = vpop.xlane.xlu0 %5040
        %v5042 = vsel %vm483, %v4969, 0.0
        %5043 = vadd.xlane.f32.xlu0 %v5042
        %v5044 = vpop.xlane.xlu0 %5043
        %v5045 = vsel %vm483, %v4971, 0.0
        %5046 = vadd.xlane.f32.xlu0 %v5045
        %v5047 = vpop.xlane.xlu0 %5046
        %v5048 = vsel %vm483, %v4973, 0.0
        %5049 = vadd.xlane.f32.xlu0 %v5048
        %v5050 = vpop.xlane.xlu0 %5049
        %v5051 = vsel %vm483, %v4975, 0.0
        %5052 = vadd.xlane.f32.xlu0 %v5051
        %v5053 = vpop.xlane.xlu0 %5052
        %v5054 = vsel %vm483, %v4977, 0.0
        %5055 = vadd.xlane.f32.xlu0 %v5054
        %v5056 = vpop.xlane.xlu0 %5055
        %v5057 = vsel %vm483, %v4979, 0.0
        %5058 = vadd.xlane.f32.xlu0 %v5057
        %v5059 = vpop.xlane.xlu0 %5058
        %v5060 = vsel %vm483, %v4981, 0.0
        %5061 = vadd.xlane.f32.xlu0 %v5060
        %v5062 = vpop.xlane.xlu0 %5061
        %v5063 = vsel %vm483, %v4983, 0.0
        %5064 = vadd.xlane.f32.xlu0 %v5063
        %v5065 = vpop.xlane.xlu0 %5064
        %v5066 = vsel %vm483, %v4985, 0.0
        %5067 = vadd.xlane.f32.xlu0 %v5066
        %v5068 = vpop.xlane.xlu0 %5067
        %v5069 = vsel %vm483, %v4987, 0.0
        %5070 = vadd.xlane.f32.xlu0 %v5069
        %v5071 = vpop.xlane.xlu0 %5070
        %v5072 = vsel %vm483, %v4989, 0.0
        %5073 = vadd.xlane.f32.xlu0 %v5072
        %v5074 = vpop.xlane.xlu0 %5073
        %v5075 = vsel %vm483, %v4991, 0.0
        %5076 = vadd.xlane.f32.xlu0 %v5075
        %v5077 = vpop.xlane.xlu0 %5076
        %v5078 = vsel %vm483, %v4993, 0.0
        %5079 = vadd.xlane.f32.xlu0 %v5078
        %v5080 = vpop.xlane.xlu0 %5079
        %v5081 = vsel %vm483, %v4995, 0.0
        %5082 = vadd.xlane.f32.xlu0 %v5081
        %v5083 = vpop.xlane.xlu0 %5082
        %v5084 = vsel %vm483, %v4997, 0.0
        %5085 = vadd.xlane.f32.xlu0 %v5084
        %v5086 = vpop.xlane.xlu0 %5085
        %v5087 = vsel %vm483, %v4999, 0.0
        %5088 = vadd.xlane.f32.xlu0 %v5087
        %v5089 = vpop.xlane.xlu0 %5088
        %v5090 = vsel %vm483, %v5001, 0.0
        %5091 = vadd.xlane.f32.xlu0 %v5090
        %v5092 = vpop.xlane.xlu0 %5091
        %v5093 = vsel %vm483, %v5003, 0.0
        %5094 = vadd.xlane.f32.xlu0 %v5093
        %v5095 = vpop.xlane.xlu0 %5094
        %v5096 = vsel %vm483, %v5005, 0.0
        %5097 = vadd.xlane.f32.xlu0 %v5096
        %v5098 = vpop.xlane.xlu0 %5097
        %v5099 = vsel %vm483, %v5007, 0.0
        %5100 = vadd.xlane.f32.xlu0 %v5099
        %v5101 = vpop.xlane.xlu0 %5100
        %v5102 = vsel %vm483, %v5009, 0.0
        %5103 = vadd.xlane.f32.xlu0 %v5102
        %v5104 = vpop.xlane.xlu0 %5103
        %v5105 = vsel %vm483, %v5011, 0.0
        %5106 = vadd.xlane.f32.xlu0 %v5105
        %v5107 = vpop.xlane.xlu0 %5106
        %v5108 = vrcp.pop %v5014
        %v5109 = vrcp.pop %v5017
        %v5110 = vrcp.pop %v5020
        %v5111 = vrcp.pop %v5023
        %v5112 = vrcp.pop %v5026
        %v5113 = vrcp.pop %v5029
        %v5114 = vrcp.pop %v5032
        %v5115 = vrcp.pop %v5035
        %v5116 = vrcp.pop %v5038
        %v5117 = vrcp.pop %v5041
        %v5118 = vrcp.pop %v5044
        %v5119 = vrcp.pop %v5047
        %v5120 = vrcp.pop %v5050
        %v5121 = vrcp.pop %v5053
        %v5122 = vrcp.pop %v5056
        %v5123 = vrcp.pop %v5059
        %v5124 = vrcp.pop %v5062
        %v5125 = vrcp.pop %v5065
        %v5126 = vrcp.pop %v5068
        %v5127 = vrcp.pop %v5071
        %v5128 = vrcp.pop %v5074
        %v5129 = vrcp.pop %v5077
        %v5130 = vrcp.pop %v5080
        %v5131 = vrcp.pop %v5083
        %v5132 = vrcp.pop %v5086
        %v5133 = vrcp.pop %v5089
        %v5134 = vrcp.pop %v5092
        %v5135 = vrcp.pop %v5095
        %v5136 = vrcp.pop %v5098
        %v5137 = vrcp.pop %v5101
        %v5138 = vrcp.pop %v5104
        %v5139 = vrcp.pop %v5107
        %v5140 = vmul.f32 %v4949, %v5108
        %v5141 = vmul.f32 %v4951, %v5109
        %v5142 = vmul.f32 %v4953, %v5110
        %v5143 = vmul.f32 %v4955, %v5111
        %v5144 = vmul.f32 %v4957, %v5112
        %v5145 = vmul.f32 %v4959, %v5113
        %v5146 = vmul.f32 %v4961, %v5114
        %v5147 = vmul.f32 %v4963, %v5115
        %v5148 = vmul.f32 %v4965, %v5116
        %v5149 = vmul.f32 %v4967, %v5117
        %v5150 = vmul.f32 %v4969, %v5118
        %v5151 = vmul.f32 %v4971, %v5119
        %v5152 = vmul.f32 %v4973, %v5120
        %v5153 = vmul.f32 %v4975, %v5121
        %v5154 = vmul.f32 %v4977, %v5122
        %v5155 = vmul.f32 %v4979, %v5123
        %v5156 = vmul.f32 %v4981, %v5124
        %v5157 = vmul.f32 %v4983, %v5125
        %v5158 = vmul.f32 %v4985, %v5126
        %v5159 = vmul.f32 %v4987, %v5127
        %v5160 = vmul.f32 %v4989, %v5128
        %v5161 = vmul.f32 %v4991, %v5129
        %v5162 = vmul.f32 %v4993, %v5130
        %v5163 = vmul.f32 %v4995, %v5131
        %v5164 = vmul.f32 %v4997, %v5132
        %v5165 = vmul.f32 %v4999, %v5133
        %v5166 = vmul.f32 %v5001, %v5134
        %v5167 = vmul.f32 %v5003, %v5135
        %v5168 = vmul.f32 %v5005, %v5136
        %v5169 = vmul.f32 %v5007, %v5137
        %v5170 = vmul.f32 %v5009, %v5138
        %v5171 = vmul.f32 %v5011, %v5139
        %v5172 = vpack.c.bf16 %v5140, %v5140
        %v5173 = vpack.c.bf16 %v5141, %v5141
        %v5174 = vpack.c.bf16 %v5142, %v5142
        %v5175 = vpack.c.bf16 %v5143, %v5143
        %v5176 = vpack.c.bf16 %v5144, %v5144
        %v5177 = vpack.c.bf16 %v5145, %v5145
        %v5178 = vpack.c.bf16 %v5146, %v5146
        %v5179 = vpack.c.bf16 %v5147, %v5147
        %v5180 = vpack.c.bf16 %v5148, %v5148
        %v5181 = vpack.c.bf16 %v5149, %v5149
        %v5182 = vpack.c.bf16 %v5150, %v5150
        %v5183 = vpack.c.bf16 %v5151, %v5151
        %v5184 = vpack.c.bf16 %v5152, %v5152
        %v5185 = vpack.c.bf16 %v5153, %v5153
        %v5186 = vpack.c.bf16 %v5154, %v5154
        %v5187 = vpack.c.bf16 %v5155, %v5155
        %v5188 = vpack.c.bf16 %v5156, %v5156
        %v5189 = vpack.c.bf16 %v5157, %v5157
        %v5190 = vpack.c.bf16 %v5158, %v5158
        %v5191 = vpack.c.bf16 %v5159, %v5159
        %v5192 = vpack.c.bf16 %v5160, %v5160
        %v5193 = vpack.c.bf16 %v5161, %v5161
        %v5194 = vpack.c.bf16 %v5162, %v5162
        %v5195 = vpack.c.bf16 %v5163, %v5163
        %v5196 = vpack.c.bf16 %v5164, %v5164
        %v5197 = vpack.c.bf16 %v5165, %v5165
        %v5198 = vpack.c.bf16 %v5166, %v5166
        %v5199 = vpack.c.bf16 %v5167, %v5167
        %v5200 = vpack.c.bf16 %v5168, %v5168
        %v5201 = vpack.c.bf16 %v5169, %v5169
        %v5202 = vpack.c.bf16 %v5170, %v5170
        %v5203 = vpack.c.bf16 %v5171, %v5171
        %v5208 = vunpack.c.l.b16 %v5172
        %v5209 = vunpack.c.l.b16 %v5173
        %v5210 = vunpack.c.l.b16 %v5174
        %v5211 = vunpack.c.l.b16 %v5175
        %v5212 = vpack.c.b16 %v5209, %v5208
        %v5213 = vpack.c.b16 %v5211, %v5210
        %5214 = vrot.lane.b32.xlu0 %v2102, 104
        %v5215 = vpop.permute.xlu0 %5214
        %5216 = vrot.lane.b32.xlu0 %v2103, 104
        %v5217 = vpop.permute.xlu0 %5216
        %v5221 = vsel %vm483, %v5212, 0
        %v5224 = vsel %vm483, %v5213, 0
        %5226 = vmatpush.bf16.msra.mxu0 0
        %5227 = vmatpush.bf16.msra.mxu0 0
        %5228 = vmatpush.bf16.msra.mxu0 0
        %5229 = vmatpush.bf16.msra.mxu0 0
        %5230 = vmatpush.bf16.msra.mxu0 0
        %5231 = vmatpush.bf16.msra.mxu0 0
        %5232 = vmatpush.bf16.msra.mxu0 %v5217
        %5233 = vmatpush.bf16.msra.mxu0 %v5215
        %5234 = vmatmul.bf16.gmra.mxu0 %v5221
        %v5235 = vpop.f32.mrf.mxu0
        %v5236 = vadd.f32 0.0, %v5235
        %v5237 = vpop.f32.mrf.mxu0
        %v5238 = vadd.f32 0.0, %v5237
        %5239 = vmatmul.bf16.gmra.mxu0 %v5224
        %v5240 = vpop.f32.mrf.mxu0
        %v5241 = vadd.f32 0.0, %v5240
        %v5242 = vpop.f32.mrf.mxu0
        %v5243 = vadd.f32 0.0, %v5242
        %5244 = vdwg.mxu0
        %v5249 = vunpack.c.l.b16 %v5176
        %v5250 = vunpack.c.l.b16 %v5177
        %v5251 = vunpack.c.l.b16 %v5178
        %v5252 = vunpack.c.l.b16 %v5179
        %v5253 = vpack.c.b16 %v5250, %v5249
        %v5254 = vpack.c.b16 %v5252, %v5251
        %5255 = vrot.lane.b32.xlu0 %v2149, 104
        %v5256 = vpop.permute.xlu0 %5255
        %5257 = vrot.lane.b32.xlu0 %v2150, 104
        %v5258 = vpop.permute.xlu0 %5257
        %v5262 = vsel %vm483, %v5253, 0
        %v5265 = vsel %vm483, %v5254, 0
        %5267 = vmatpush.bf16.msra.mxu0 0
        %5268 = vmatpush.bf16.msra.mxu0 0
        %5269 = vmatpush.bf16.msra.mxu0 0
        %5270 = vmatpush.bf16.msra.mxu0 0
        %5271 = vmatpush.bf16.msra.mxu0 0
        %5272 = vmatpush.bf16.msra.mxu0 0
        %5273 = vmatpush.bf16.msra.mxu0 %v5258
        %5274 = vmatpush.bf16.msra.mxu0 %v5256
        %5275 = vmatmul.bf16.gmra.mxu0 %v5262
        %v5276 = vpop.f32.mrf.mxu0
        %v5277 = vadd.f32 0.0, %v5276
        %v5278 = vpop.f32.mrf.mxu0
        %v5279 = vadd.f32 0.0, %v5278
        %5280 = vmatmul.bf16.gmra.mxu0 %v5265
        %v5281 = vpop.f32.mrf.mxu0
        %v5282 = vadd.f32 0.0, %v5281
        %v5283 = vpop.f32.mrf.mxu0
        %v5284 = vadd.f32 0.0, %v5283
        %5285 = vdwg.mxu0
        %v5290 = vunpack.c.l.b16 %v5180
        %v5291 = vunpack.c.l.b16 %v5181
        %v5292 = vunpack.c.l.b16 %v5182
        %v5293 = vunpack.c.l.b16 %v5183
        %v5294 = vpack.c.b16 %v5291, %v5290
        %v5295 = vpack.c.b16 %v5293, %v5292
        %5296 = vrot.lane.b32.xlu0 %v2196, 104
        %v5297 = vpop.permute.xlu0 %5296
        %5298 = vrot.lane.b32.xlu0 %v2197, 104
        %v5299 = vpop.permute.xlu0 %5298
        %v5303 = vsel %vm483, %v5294, 0
        %v5306 = vsel %vm483, %v5295, 0
        %5308 = vmatpush.bf16.msra.mxu0 0
        %5309 = vmatpush.bf16.msra.mxu0 0
        %5310 = vmatpush.bf16.msra.mxu0 0
        %5311 = vmatpush.bf16.msra.mxu0 0
        %5312 = vmatpush.bf16.msra.mxu0 0
        %5313 = vmatpush.bf16.msra.mxu0 0
        %5314 = vmatpush.bf16.msra.mxu0 %v5299
        %5315 = vmatpush.bf16.msra.mxu0 %v5297
        %5316 = vmatmul.bf16.gmra.mxu0 %v5303
        %v5317 = vpop.f32.mrf.mxu0
        %v5318 = vadd.f32 0.0, %v5317
        %v5319 = vpop.f32.mrf.mxu0
        %v5320 = vadd.f32 0.0, %v5319
        %5321 = vmatmul.bf16.gmra.mxu0 %v5306
        %v5322 = vpop.f32.mrf.mxu0
        %v5323 = vadd.f32 0.0, %v5322
        %v5324 = vpop.f32.mrf.mxu0
        %v5325 = vadd.f32 0.0, %v5324
        %5326 = vdwg.mxu0
        %v5331 = vunpack.c.l.b16 %v5184
        %v5332 = vunpack.c.l.b16 %v5185
        %v5333 = vunpack.c.l.b16 %v5186
        %v5334 = vunpack.c.l.b16 %v5187
        %v5335 = vpack.c.b16 %v5332, %v5331
        %v5336 = vpack.c.b16 %v5334, %v5333
        %5337 = vrot.lane.b32.xlu0 %v2243, 104
        %v5338 = vpop.permute.xlu0 %5337
        %5339 = vrot.lane.b32.xlu0 %v2244, 104
        %v5340 = vpop.permute.xlu0 %5339
        %v5344 = vsel %vm483, %v5335, 0
        %v5347 = vsel %vm483, %v5336, 0
        %5349 = vmatpush.bf16.msra.mxu0 0
        %5350 = vmatpush.bf16.msra.mxu0 0
        %5351 = vmatpush.bf16.msra.mxu0 0
        %5352 = vmatpush.bf16.msra.mxu0 0
        %5353 = vmatpush.bf16.msra.mxu0 0
        %5354 = vmatpush.bf16.msra.mxu0 0
        %5355 = vmatpush.bf16.msra.mxu0 %v5340
        %5356 = vmatpush.bf16.msra.mxu0 %v5338
        %5357 = vmatmul.bf16.gmra.mxu0 %v5344
        %v5358 = vpop.f32.mrf.mxu0
        %v5359 = vadd.f32 0.0, %v5358
        %v5360 = vpop.f32.mrf.mxu0
        %v5361 = vadd.f32 0.0, %v5360
        %5362 = vmatmul.bf16.gmra.mxu0 %v5347
        %v5363 = vpop.f32.mrf.mxu0
        %v5364 = vadd.f32 0.0, %v5363
        %v5365 = vpop.f32.mrf.mxu0
        %v5366 = vadd.f32 0.0, %v5365
        %5367 = vdwg.mxu0
        %v5372 = vunpack.c.l.b16 %v5188
        %v5373 = vunpack.c.l.b16 %v5189
        %v5374 = vunpack.c.l.b16 %v5190
        %v5375 = vunpack.c.l.b16 %v5191
        %v5376 = vpack.c.b16 %v5373, %v5372
        %v5377 = vpack.c.b16 %v5375, %v5374
        %5378 = vrot.lane.b32.xlu0 %v2290, 104
        %v5379 = vpop.permute.xlu0 %5378
        %5380 = vrot.lane.b32.xlu0 %v2291, 104
        %v5381 = vpop.permute.xlu0 %5380
        %v5385 = vsel %vm483, %v5376, 0
        %v5388 = vsel %vm483, %v5377, 0
        %5390 = vmatpush.bf16.msra.mxu0 0
        %5391 = vmatpush.bf16.msra.mxu0 0
        %5392 = vmatpush.bf16.msra.mxu0 0
        %5393 = vmatpush.bf16.msra.mxu0 0
        %5394 = vmatpush.bf16.msra.mxu0 0
        %5395 = vmatpush.bf16.msra.mxu0 0
        %5396 = vmatpush.bf16.msra.mxu0 %v5381
        %5397 = vmatpush.bf16.msra.mxu0 %v5379
        %5398 = vmatmul.bf16.gmra.mxu0 %v5385
        %v5399 = vpop.f32.mrf.mxu0
        %v5400 = vadd.f32 0.0, %v5399
        %v5401 = vpop.f32.mrf.mxu0
        %v5402 = vadd.f32 0.0, %v5401
        %5403 = vmatmul.bf16.gmra.mxu0 %v5388
        %v5404 = vpop.f32.mrf.mxu0
        %v5405 = vadd.f32 0.0, %v5404
        %v5406 = vpop.f32.mrf.mxu0
        %v5407 = vadd.f32 0.0, %v5406
        %5408 = vdwg.mxu0
        %v5413 = vunpack.c.l.b16 %v5192
        %v5414 = vunpack.c.l.b16 %v5193
        %v5415 = vunpack.c.l.b16 %v5194
        %v5416 = vunpack.c.l.b16 %v5195
        %v5417 = vpack.c.b16 %v5414, %v5413
        %v5418 = vpack.c.b16 %v5416, %v5415
        %5419 = vrot.lane.b32.xlu0 %v2337, 104
        %v5420 = vpop.permute.xlu0 %5419
        %5421 = vrot.lane.b32.xlu0 %v2338, 104
        %v5422 = vpop.permute.xlu0 %5421
        %v5426 = vsel %vm483, %v5417, 0
        %v5429 = vsel %vm483, %v5418, 0
        %5431 = vmatpush.bf16.msra.mxu0 0
        %5432 = vmatpush.bf16.msra.mxu0 0
        %5433 = vmatpush.bf16.msra.mxu0 0
        %5434 = vmatpush.bf16.msra.mxu0 0
        %5435 = vmatpush.bf16.msra.mxu0 0
        %5436 = vmatpush.bf16.msra.mxu0 0
        %5437 = vmatpush.bf16.msra.mxu0 %v5422
        %5438 = vmatpush.bf16.msra.mxu0 %v5420
        %5439 = vmatmul.bf16.gmra.mxu0 %v5426
        %v5440 = vpop.f32.mrf.mxu0
        %v5441 = vadd.f32 0.0, %v5440
        %v5442 = vpop.f32.mrf.mxu0
        %v5443 = vadd.f32 0.0, %v5442
        %5444 = vmatmul.bf16.gmra.mxu0 %v5429
        %v5445 = vpop.f32.mrf.mxu0
        %v5446 = vadd.f32 0.0, %v5445
        %v5447 = vpop.f32.mrf.mxu0
        %v5448 = vadd.f32 0.0, %v5447
        %5449 = vdwg.mxu0
        %v5454 = vunpack.c.l.b16 %v5196
        %v5455 = vunpack.c.l.b16 %v5197
        %v5456 = vunpack.c.l.b16 %v5198
        %v5457 = vunpack.c.l.b16 %v5199
        %v5458 = vpack.c.b16 %v5455, %v5454
        %v5459 = vpack.c.b16 %v5457, %v5456
        %5460 = vrot.lane.b32.xlu0 %v2384, 104
        %v5461 = vpop.permute.xlu0 %5460
        %5462 = vrot.lane.b32.xlu0 %v2385, 104
        %v5463 = vpop.permute.xlu0 %5462
        %v5467 = vsel %vm483, %v5458, 0
        %v5470 = vsel %vm483, %v5459, 0
        %5472 = vmatpush.bf16.msra.mxu0 0
        %5473 = vmatpush.bf16.msra.mxu0 0
        %5474 = vmatpush.bf16.msra.mxu0 0
        %5475 = vmatpush.bf16.msra.mxu0 0
        %5476 = vmatpush.bf16.msra.mxu0 0
        %5477 = vmatpush.bf16.msra.mxu0 0
        %5478 = vmatpush.bf16.msra.mxu0 %v5463
        %5479 = vmatpush.bf16.msra.mxu0 %v5461
        %5480 = vmatmul.bf16.gmra.mxu0 %v5467
        %v5481 = vpop.f32.mrf.mxu0
        %v5482 = vadd.f32 0.0, %v5481
        %v5483 = vpop.f32.mrf.mxu0
        %v5484 = vadd.f32 0.0, %v5483
        %5485 = vmatmul.bf16.gmra.mxu0 %v5470
        %v5486 = vpop.f32.mrf.mxu0
        %v5487 = vadd.f32 0.0, %v5486
        %v5488 = vpop.f32.mrf.mxu0
        %v5489 = vadd.f32 0.0, %v5488
        %5490 = vdwg.mxu0
        %v5495 = vunpack.c.l.b16 %v5200
        %v5496 = vunpack.c.l.b16 %v5201
        %v5497 = vunpack.c.l.b16 %v5202
        %v5498 = vunpack.c.l.b16 %v5203
        %v5499 = vpack.c.b16 %v5496, %v5495
        %v5500 = vpack.c.b16 %v5498, %v5497
        %5501 = vrot.lane.b32.xlu0 %v2431, 104
        %v5502 = vpop.permute.xlu0 %5501
        %5503 = vrot.lane.b32.xlu0 %v2432, 104
        %v5504 = vpop.permute.xlu0 %5503
        %v5508 = vsel %vm483, %v5499, 0
        %v5511 = vsel %vm483, %v5500, 0
        %5513 = vmatpush.bf16.msra.mxu0 0
        %5514 = vmatpush.bf16.msra.mxu0 0
        %5515 = vmatpush.bf16.msra.mxu0 0
        %5516 = vmatpush.bf16.msra.mxu0 0
        %5517 = vmatpush.bf16.msra.mxu0 0
        %5518 = vmatpush.bf16.msra.mxu0 0
        %5519 = vmatpush.bf16.msra.mxu0 %v5504
        %5520 = vmatpush.bf16.msra.mxu0 %v5502
        %5521 = vmatmul.bf16.gmra.mxu0 %v5508
        %v5522 = vpop.f32.mrf.mxu0
        %v5523 = vadd.f32 0.0, %v5522
        %v5524 = vpop.f32.mrf.mxu0
        %v5525 = vadd.f32 0.0, %v5524
        %5526 = vmatmul.bf16.gmra.mxu0 %v5511
        %v5527 = vpop.f32.mrf.mxu0
        %v5528 = vadd.f32 0.0, %v5527
        %v5529 = vpop.f32.mrf.mxu0
        %v5530 = vadd.f32 0.0, %v5529
        %5531 = vdwg.mxu0
        %5564 = vrot.lane.b32.xlu0 %v3188, 8
        %v5565 = vpop.permute.xlu0 %5564
        %5566 = vrot.lane.b32.xlu0 %v3190, 8
        %v5567 = vpop.permute.xlu0 %5566
        %5568 = vrot.lane.b32.xlu0 %v3193, 8
        %v5569 = vpop.permute.xlu0 %5568
        %5570 = vrot.lane.b32.xlu0 %v3195, 8
        %v5571 = vpop.permute.xlu0 %5570
        %5572 = vrot.lane.b32.xlu0 %v3229, 8
        %v5573 = vpop.permute.xlu0 %5572
        %5574 = vrot.lane.b32.xlu0 %v3231, 8
        %v5575 = vpop.permute.xlu0 %5574
        %5576 = vrot.lane.b32.xlu0 %v3234, 8
        %v5577 = vpop.permute.xlu0 %5576
        %5578 = vrot.lane.b32.xlu0 %v3236, 8
        %v5579 = vpop.permute.xlu0 %5578
        %5580 = vrot.lane.b32.xlu0 %v3270, 8
        %v5581 = vpop.permute.xlu0 %5580
        %5582 = vrot.lane.b32.xlu0 %v3272, 8
        %v5583 = vpop.permute.xlu0 %5582
        %5584 = vrot.lane.b32.xlu0 %v3275, 8
        %v5585 = vpop.permute.xlu0 %5584
        %5586 = vrot.lane.b32.xlu0 %v3277, 8
        %v5587 = vpop.permute.xlu0 %5586
        %5588 = vrot.lane.b32.xlu0 %v3311, 8
        %v5589 = vpop.permute.xlu0 %5588
        %5590 = vrot.lane.b32.xlu0 %v3313, 8
        %v5591 = vpop.permute.xlu0 %5590
        %5592 = vrot.lane.b32.xlu0 %v3316, 8
        %v5593 = vpop.permute.xlu0 %5592
        %5594 = vrot.lane.b32.xlu0 %v3318, 8
        %v5595 = vpop.permute.xlu0 %5594
        %5596 = vrot.lane.b32.xlu0 %v3352, 8
        %v5597 = vpop.permute.xlu0 %5596
        %5598 = vrot.lane.b32.xlu0 %v3354, 8
        %v5599 = vpop.permute.xlu0 %5598
        %5600 = vrot.lane.b32.xlu0 %v3357, 8
        %v5601 = vpop.permute.xlu0 %5600
        %5602 = vrot.lane.b32.xlu0 %v3359, 8
        %v5603 = vpop.permute.xlu0 %5602
        %5604 = vrot.lane.b32.xlu0 %v3393, 8
        %v5605 = vpop.permute.xlu0 %5604
        %5606 = vrot.lane.b32.xlu0 %v3395, 8
        %v5607 = vpop.permute.xlu0 %5606
        %5608 = vrot.lane.b32.xlu0 %v3398, 8
        %v5609 = vpop.permute.xlu0 %5608
        %5610 = vrot.lane.b32.xlu0 %v3400, 8
        %v5611 = vpop.permute.xlu0 %5610
        %5612 = vrot.lane.b32.xlu0 %v3434, 8
        %v5613 = vpop.permute.xlu0 %5612
        %5614 = vrot.lane.b32.xlu0 %v3436, 8
        %v5615 = vpop.permute.xlu0 %5614
        %5616 = vrot.lane.b32.xlu0 %v3439, 8
        %v5617 = vpop.permute.xlu0 %5616
        %5618 = vrot.lane.b32.xlu0 %v3441, 8
        %v5619 = vpop.permute.xlu0 %5618
        %5620 = vrot.lane.b32.xlu0 %v3475, 8
        %v5621 = vpop.permute.xlu0 %5620
        %5622 = vrot.lane.b32.xlu0 %v3477, 8
        %v5623 = vpop.permute.xlu0 %5622
        %5624 = vrot.lane.b32.xlu0 %v3480, 8
        %v5625 = vpop.permute.xlu0 %5624
        %5626 = vrot.lane.b32.xlu0 %v3482, 8
        %v5627 = vpop.permute.xlu0 %5626
        %5692 = vrot.lane.b32.xlu0 %v4212, 16
        %v5693 = vpop.permute.xlu0 %5692
        %5694 = vrot.lane.b32.xlu0 %v4214, 16
        %v5695 = vpop.permute.xlu0 %5694
        %5696 = vrot.lane.b32.xlu0 %v4217, 16
        %v5697 = vpop.permute.xlu0 %5696
        %5698 = vrot.lane.b32.xlu0 %v4219, 16
        %v5699 = vpop.permute.xlu0 %5698
        %5700 = vrot.lane.b32.xlu0 %v4253, 16
        %v5701 = vpop.permute.xlu0 %5700
        %5702 = vrot.lane.b32.xlu0 %v4255, 16
        %v5703 = vpop.permute.xlu0 %5702
        %5704 = vrot.lane.b32.xlu0 %v4258, 16
        %v5705 = vpop.permute.xlu0 %5704
        %5706 = vrot.lane.b32.xlu0 %v4260, 16
        %v5707 = vpop.permute.xlu0 %5706
        %5708 = vrot.lane.b32.xlu0 %v4294, 16
        %v5709 = vpop.permute.xlu0 %5708
        %5710 = vrot.lane.b32.xlu0 %v4296, 16
        %v5711 = vpop.permute.xlu0 %5710
        %5712 = vrot.lane.b32.xlu0 %v4299, 16
        %v5713 = vpop.permute.xlu0 %5712
        %5714 = vrot.lane.b32.xlu0 %v4301, 16
        %v5715 = vpop.permute.xlu0 %5714
        %5716 = vrot.lane.b32.xlu0 %v4335, 16
        %v5717 = vpop.permute.xlu0 %5716
        %5718 = vrot.lane.b32.xlu0 %v4337, 16
        %v5719 = vpop.permute.xlu0 %5718
        %5720 = vrot.lane.b32.xlu0 %v4340, 16
        %v5721 = vpop.permute.xlu0 %5720
        %5722 = vrot.lane.b32.xlu0 %v4342, 16
        %v5723 = vpop.permute.xlu0 %5722
        %5724 = vrot.lane.b32.xlu0 %v4376, 16
        %v5725 = vpop.permute.xlu0 %5724
        %5726 = vrot.lane.b32.xlu0 %v4378, 16
        %v5727 = vpop.permute.xlu0 %5726
        %5728 = vrot.lane.b32.xlu0 %v4381, 16
        %v5729 = vpop.permute.xlu0 %5728
        %5730 = vrot.lane.b32.xlu0 %v4383, 16
        %v5731 = vpop.permute.xlu0 %5730
        %5732 = vrot.lane.b32.xlu0 %v4417, 16
        %v5733 = vpop.permute.xlu0 %5732
        %5734 = vrot.lane.b32.xlu0 %v4419, 16
        %v5735 = vpop.permute.xlu0 %5734
        %5736 = vrot.lane.b32.xlu0 %v4422, 16
        %v5737 = vpop.permute.xlu0 %5736
        %5738 = vrot.lane.b32.xlu0 %v4424, 16
        %v5739 = vpop.permute.xlu0 %5738
        %5740 = vrot.lane.b32.xlu0 %v4458, 16
        %v5741 = vpop.permute.xlu0 %5740
        %5742 = vrot.lane.b32.xlu0 %v4460, 16
        %v5743 = vpop.permute.xlu0 %5742
        %5744 = vrot.lane.b32.xlu0 %v4463, 16
        %v5745 = vpop.permute.xlu0 %5744
        %5746 = vrot.lane.b32.xlu0 %v4465, 16
        %v5747 = vpop.permute.xlu0 %5746
        %5748 = vrot.lane.b32.xlu0 %v4499, 16
        %v5749 = vpop.permute.xlu0 %5748
        %5750 = vrot.lane.b32.xlu0 %v4501, 16
        %v5751 = vpop.permute.xlu0 %5750
        %5752 = vrot.lane.b32.xlu0 %v4504, 16
        %v5753 = vpop.permute.xlu0 %5752
        %5754 = vrot.lane.b32.xlu0 %v4506, 16
        %v5755 = vpop.permute.xlu0 %5754
        %5820 = vrot.lane.b32.xlu0 %v5236, 24
        %v5821 = vpop.permute.xlu0 %5820
        %5822 = vrot.lane.b32.xlu0 %v5238, 24
        %v5823 = vpop.permute.xlu0 %5822
        %5824 = vrot.lane.b32.xlu0 %v5241, 24
        %v5825 = vpop.permute.xlu0 %5824
        %5826 = vrot.lane.b32.xlu0 %v5243, 24
        %v5827 = vpop.permute.xlu0 %5826
        %5828 = vrot.lane.b32.xlu0 %v5277, 24
        %v5829 = vpop.permute.xlu0 %5828
        %5830 = vrot.lane.b32.xlu0 %v5279, 24
        %v5831 = vpop.permute.xlu0 %5830
        %5832 = vrot.lane.b32.xlu0 %v5282, 24
        %v5833 = vpop.permute.xlu0 %5832
        %5834 = vrot.lane.b32.xlu0 %v5284, 24
        %v5835 = vpop.permute.xlu0 %5834
        %5836 = vrot.lane.b32.xlu0 %v5318, 24
        %v5837 = vpop.permute.xlu0 %5836
        %5838 = vrot.lane.b32.xlu0 %v5320, 24
        %v5839 = vpop.permute.xlu0 %5838
        %5840 = vrot.lane.b32.xlu0 %v5323, 24
        %v5841 = vpop.permute.xlu0 %5840
        %5842 = vrot.lane.b32.xlu0 %v5325, 24
        %v5843 = vpop.permute.xlu0 %5842
        %5844 = vrot.lane.b32.xlu0 %v5359, 24
        %v5845 = vpop.permute.xlu0 %5844
        %5846 = vrot.lane.b32.xlu0 %v5361, 24
        %v5847 = vpop.permute.xlu0 %5846
        %5848 = vrot.lane.b32.xlu0 %v5364, 24
        %v5849 = vpop.permute.xlu0 %5848
        %5850 = vrot.lane.b32.xlu0 %v5366, 24
        %v5851 = vpop.permute.xlu0 %5850
        %5852 = vrot.lane.b32.xlu0 %v5400, 24
        %v5853 = vpop.permute.xlu0 %5852
        %5854 = vrot.lane.b32.xlu0 %v5402, 24
        %v5855 = vpop.permute.xlu0 %5854
        %5856 = vrot.lane.b32.xlu0 %v5405, 24
        %v5857 = vpop.permute.xlu0 %5856
        %5858 = vrot.lane.b32.xlu0 %v5407, 24
        %v5859 = vpop.permute.xlu0 %5858
        %5860 = vrot.lane.b32.xlu0 %v5441, 24
        %v5861 = vpop.permute.xlu0 %5860
        %5862 = vrot.lane.b32.xlu0 %v5443, 24
        %v5863 = vpop.permute.xlu0 %5862
        %5864 = vrot.lane.b32.xlu0 %v5446, 24
        %v5865 = vpop.permute.xlu0 %5864
        %5866 = vrot.lane.b32.xlu0 %v5448, 24
        %v5867 = vpop.permute.xlu0 %5866
        %5868 = vrot.lane.b32.xlu0 %v5482, 24
        %v5869 = vpop.permute.xlu0 %5868
        %5870 = vrot.lane.b32.xlu0 %v5484, 24
        %v5871 = vpop.permute.xlu0 %5870
        %5872 = vrot.lane.b32.xlu0 %v5487, 24
        %v5873 = vpop.permute.xlu0 %5872
        %5874 = vrot.lane.b32.xlu0 %v5489, 24
        %v5875 = vpop.permute.xlu0 %5874
        %5876 = vrot.lane.b32.xlu0 %v5523, 24
        %v5877 = vpop.permute.xlu0 %5876
        %5878 = vrot.lane.b32.xlu0 %v5525, 24
        %v5879 = vpop.permute.xlu0 %5878
        %5880 = vrot.lane.b32.xlu0 %v5528, 24
        %v5881 = vpop.permute.xlu0 %5880
        %5882 = vrot.lane.b32.xlu0 %v5530, 24
        %v5883 = vpop.permute.xlu0 %5882
        %v5916 = vsel %vm1311, %v2122, %v5565
        %v5917 = vsel %vm1311, %v2124, %v5567
        %v5918 = vsel %vm1311, %v2127, %v5569
        %v5919 = vsel %vm1311, %v2129, %v5571
        %v5920 = vsel %vm1311, %v2169, %v5573
        %v5921 = vsel %vm1311, %v2171, %v5575
        %v5922 = vsel %vm1311, %v2174, %v5577
        %v5923 = vsel %vm1311, %v2176, %v5579
        %v5924 = vsel %vm1311, %v2216, %v5581
        %v5925 = vsel %vm1311, %v2218, %v5583
        %v5926 = vsel %vm1311, %v2221, %v5585
        %v5927 = vsel %vm1311, %v2223, %v5587
        %v5928 = vsel %vm1311, %v2263, %v5589
        %v5929 = vsel %vm1311, %v2265, %v5591
        %v5930 = vsel %vm1311, %v2268, %v5593
        %v5931 = vsel %vm1311, %v2270, %v5595
        %v5932 = vsel %vm1311, %v2310, %v5597
        %v5933 = vsel %vm1311, %v2312, %v5599
        %v5934 = vsel %vm1311, %v2315, %v5601
        %v5935 = vsel %vm1311, %v2317, %v5603
        %v5936 = vsel %vm1311, %v2357, %v5605
        %v5937 = vsel %vm1311, %v2359, %v5607
        %v5938 = vsel %vm1311, %v2362, %v5609
        %v5939 = vsel %vm1311, %v2364, %v5611
        %v5940 = vsel %vm1311, %v2404, %v5613
        %v5941 = vsel %vm1311, %v2406, %v5615
        %v5942 = vsel %vm1311, %v2409, %v5617
        %v5943 = vsel %vm1311, %v2411, %v5619
        %v5944 = vsel %vm1311, %v2451, %v5621
        %v5945 = vsel %vm1311, %v2453, %v5623
        %v5946 = vsel %vm1311, %v2456, %v5625
        %v5947 = vsel %vm1311, %v2458, %v5627
        %vm5948 = vcmask 130048
        %v5949 = vsel %vm5948, %v5916, %v5693
        %v5950 = vsel %vm5948, %v5917, %v5695
        %v5951 = vsel %vm5948, %v5918, %v5697
        %v5952 = vsel %vm5948, %v5919, %v5699
        %v5953 = vsel %vm5948, %v5920, %v5701
        %v5954 = vsel %vm5948, %v5921, %v5703
        %v5955 = vsel %vm5948, %v5922, %v5705
        %v5956 = vsel %vm5948, %v5923, %v5707
        %v5957 = vsel %vm5948, %v5924, %v5709
        %v5958 = vsel %vm5948, %v5925, %v5711
        %v5959 = vsel %vm5948, %v5926, %v5713
        %v5960 = vsel %vm5948, %v5927, %v5715
        %v5961 = vsel %vm5948, %v5928, %v5717
        %v5962 = vsel %vm5948, %v5929, %v5719
        %v5963 = vsel %vm5948, %v5930, %v5721
        %v5964 = vsel %vm5948, %v5931, %v5723
        %v5965 = vsel %vm5948, %v5932, %v5725
        %v5966 = vsel %vm5948, %v5933, %v5727
        %v5967 = vsel %vm5948, %v5934, %v5729
        %v5968 = vsel %vm5948, %v5935, %v5731
        %v5969 = vsel %vm5948, %v5936, %v5733
        %v5970 = vsel %vm5948, %v5937, %v5735
        %v5971 = vsel %vm5948, %v5938, %v5737
        %v5972 = vsel %vm5948, %v5939, %v5739
        %v5973 = vsel %vm5948, %v5940, %v5741
        %v5974 = vsel %vm5948, %v5941, %v5743
        %v5975 = vsel %vm5948, %v5942, %v5745
        %v5976 = vsel %vm5948, %v5943, %v5747
        %v5977 = vsel %vm5948, %v5944, %v5749
        %v5978 = vsel %vm5948, %v5945, %v5751
        %v5979 = vsel %vm5948, %v5946, %v5753
        %v5980 = vsel %vm5948, %v5947, %v5755
        %vm5981 = vcmask 195584
        %v5982 = vsel %vm5981, %v5949, %v5821
        %v5983 = vsel %vm5981, %v5950, %v5823
        %v5984 = vsel %vm5981, %v5951, %v5825
        %v5985 = vsel %vm5981, %v5952, %v5827
        %v5986 = vsel %vm5981, %v5953, %v5829
        %v5987 = vsel %vm5981, %v5954, %v5831
        %v5988 = vsel %vm5981, %v5955, %v5833
        %v5989 = vsel %vm5981, %v5956, %v5835
        %v5990 = vsel %vm5981, %v5957, %v5837
        %v5991 = vsel %vm5981, %v5958, %v5839
        %v5992 = vsel %vm5981, %v5959, %v5841
        %v5993 = vsel %vm5981, %v5960, %v5843
        %v5994 = vsel %vm5981, %v5961, %v5845
        %v5995 = vsel %vm5981, %v5962, %v5847
        %v5996 = vsel %vm5981, %v5963, %v5849
        %v5997 = vsel %vm5981, %v5964, %v5851
        %v5998 = vsel %vm5981, %v5965, %v5853
        %v5999 = vsel %vm5981, %v5966, %v5855
        %v6000 = vsel %vm5981, %v5967, %v5857
        %v6001 = vsel %vm5981, %v5968, %v5859
        %v6002 = vsel %vm5981, %v5969, %v5861
        %v6003 = vsel %vm5981, %v5970, %v5863
        %v6004 = vsel %vm5981, %v5971, %v5865
        %v6005 = vsel %vm5981, %v5972, %v5867
        %v6006 = vsel %vm5981, %v5973, %v5869
        %v6007 = vsel %vm5981, %v5974, %v5871
        %v6008 = vsel %vm5981, %v5975, %v5873
        %v6009 = vsel %vm5981, %v5976, %v5875
        %v6010 = vsel %vm5981, %v5977, %v5877
        %v6011 = vsel %vm5981, %v5978, %v5879
        %v6012 = vsel %vm5981, %v5979, %v5881
        %v6013 = vsel %vm5981, %v5980, %v5883
        %6014 = vst.msk [vmem:[%s345] sm:$0xff] %vm483, %v5982
        %6015 = vst.msk [vmem:[%s345 + $0x8] sm:$0xff] %vm483, %v5983
        %6016 = vst.msk [vmem:[%s345 + $0x10] sm:$0xff] %vm483, %v5984
        %6017 = vst.msk [vmem:[%s345 + $0x18] sm:$0xff] %vm483, %v5985
        %6018 = vst.msk [vmem:[%s345 + $0x20] sm:$0xff] %vm483, %v5986
        %6019 = vst.msk [vmem:[%s345 + $0x28] sm:$0xff] %vm483, %v5987
        %6020 = vst.msk [vmem:[%s345 + $0x30] sm:$0xff] %vm483, %v5988
        %6021 = vst.msk [vmem:[%s345 + $0x38] sm:$0xff] %vm483, %v5989
        %6022 = vst.msk [vmem:[%s345 + $0x40] sm:$0xff] %vm483, %v5990
        %6023 = vst.msk [vmem:[%s345 + $0x48] sm:$0xff] %vm483, %v5991
        %6024 = vst.msk [vmem:[%s345 + $0x50] sm:$0xff] %vm483, %v5992
        %6025 = vst.msk [vmem:[%s345 + $0x58] sm:$0xff] %vm483, %v5993
        %6026 = vst.msk [vmem:[%s345 + $0x60] sm:$0xff] %vm483, %v5994
        %6027 = vst.msk [vmem:[%s345 + $0x68] sm:$0xff] %vm483, %v5995
        %6028 = vst.msk [vmem:[%s345 + $0x70] sm:$0xff] %vm483, %v5996
        %6029 = vst.msk [vmem:[%s345 + $0x78] sm:$0xff] %vm483, %v5997
        %6030 = vst.msk [vmem:[%s345 + $0x80] sm:$0xff] %vm483, %v5998
        %6031 = vst.msk [vmem:[%s345 + $0x88] sm:$0xff] %vm483, %v5999
        %6032 = vst.msk [vmem:[%s345 + $0x90] sm:$0xff] %vm483, %v6000
        %6033 = vst.msk [vmem:[%s345 + $0x98] sm:$0xff] %vm483, %v6001
        %6034 = vst.msk [vmem:[%s345 + $0xa0] sm:$0xff] %vm483, %v6002
        %6035 = vst.msk [vmem:[%s345 + $0xa8] sm:$0xff] %vm483, %v6003
        %6036 = vst.msk [vmem:[%s345 + $0xb0] sm:$0xff] %vm483, %v6004
        %6037 = vst.msk [vmem:[%s345 + $0xb8] sm:$0xff] %vm483, %v6005
        %6038 = vst.msk [vmem:[%s345 + $0xc0] sm:$0xff] %vm483, %v6006
        %6039 = vst.msk [vmem:[%s345 + $0xc8] sm:$0xff] %vm483, %v6007
        %6040 = vst.msk [vmem:[%s345 + $0xd0] sm:$0xff] %vm483, %v6008
        %6041 = vst.msk [vmem:[%s345 + $0xd8] sm:$0xff] %vm483, %v6009
        %6042 = vst.msk [vmem:[%s345 + $0xe0] sm:$0xff] %vm483, %v6010
        %6043 = vst.msk [vmem:[%s345 + $0xe8] sm:$0xff] %vm483, %v6011
        %6044 = vst.msk [vmem:[%s345 + $0xf0] sm:$0xff] %vm483, %v6012
        %6045 = vst.msk [vmem:[%s345 + $0xf8] sm:$0xff] %vm483, %v6013
        %s6046 = sand.u32 %s154, 1
        %s6047 = scalar_lea.sflag [#allocation4], %s6046
        %s6048 = sand.u32 %s154, 1
        %s6049 = smul.addr %s6048, 256
        %s6050 = scalar_lea.vmem [#allocation10], %s6049
        // Predicated region
        $region57: #{tpu_custom_call.1} parent=39 // pred_check
          %p6051 = pneg %p164
        $region58: #{tpu_custom_call.1} parent=39 // pred_check_branch
          %6053 = sbr.rel (%p6051) target = $region60
        $region59: #{tpu_custom_call.1} parent=39 // pred_region
          %s6054 = smul.u32 8, %s26
          %6056 = vsyncadd %s6047, 0
          %s6057 = smul.addr %s6054, 4
          %s6058 = smul.addr %s6057, 8
          %s6059 = scalar_lea.hbm %s5, %s6058
          %s6060 = sshll.u32 %s6050, 4
          %s6061 = int_to_ptr.vmem [resolvable:$true] %s6060
          %s6062 = sshll.u32 %s6059, 4
          %s6063 = int_to_ptr.hbm [resolvable:$true] %s6062
          %6068 = dma.vmem_to_hbm [thread:$0]  %s6061, 4096, %s6063, %s6047, 128, 128, 8
        $region60: #{tpu_custom_call.1} parent=39 // pred_fallthru
          _
      $region40: #{tpu_custom_call.1} parent=5 // pred_fallthru
        _
      %p6069 = scmp.le.s32.totalorder 2, %s21
      // Predicated region
      $region61: #{tpu_custom_call.1} parent=5 // pred_check
        %p6070 = pneg %p6069
      $region62: #{tpu_custom_call.1} parent=5 // pred_check_branch
        %6072 = sbr.rel (%p6070) target = $region64
      $region63: #{tpu_custom_call.1} parent=5 // pred_region
        %s6073 = ssub.s32 %s21, 2
        // Predicated region
        $region65: #{tpu_custom_call.1} parent=63 // pred_check
          %p6074 = pneg %p170
        $region66: #{tpu_custom_call.1} parent=63 // pred_check_branch
          %6076 = sbr.rel (%p6074) target = $region68
        $region67: #{tpu_custom_call.1} parent=63 // pred_region
          %s6077 = sand.u32 %s155, 1
          %s6078 = scalar_lea.sflag [#allocation4], %s6077
          %s6079 = sand.u32 %s155, 1
          %s6080 = smul.addr %s6079, 256
          %s6081 = scalar_lea.vmem [#allocation10], %s6080
          %6083 = dma.done %s6078, 4096
        $region68: #{tpu_custom_call.1} parent=63 // pred_fallthru
          _
      $region64: #{tpu_custom_call.1} parent=5 // pred_fallthru
        _
    $region6: #{tpu_custom_call.1} parent=1 // loop_footer
      %s25 = sadd.s32 1, %s21
    $region7: #{tpu_custom_call.1} parent=1 // loop_footer_branch
      %20 = sbr.rel target = $region3
    $region8: #{tpu_custom_call.1} parent=1 // loop_exit
      _
    %6084 = vsyncpa [#allocation3], 1
    %s6085 = scalar_lea.sflag [#allocation3], 1
    %6086 = vsyncpa %s6085, 1
    %6087 = vsyncpa [#allocation6], 1
    %s6088 = scalar_lea.sflag [#allocation6], 1
    %6089 = vsyncpa %s6088, 1
    %6090 = vsyncpa [#allocation9], 1
    %6091 = vsyncpa [#allocation4], 1
    %s6092 = scalar_lea.sflag [#allocation4], 1
    %6093 = vsyncpa %s6092, 1

</llo_original>
